<compile_context>
chip_gen: v7x
topology: tpu7x:2x2x1
jax: 0.10.0
libtpu: 0.0.40
codegen_flags: <defaults>
</compile_context>

<pallas_src>
import math

import jax
import jax.numpy as jnp
from jax.experimental import pallas as pl
from jax.experimental.pallas import tpu as pltpu

DILATION_DEPTH = 5          # AnDi_Wave(dilation_depth=5)
KERNEL_SIZE = 3             # AnDi_Wave(kernel_size=3)
BN_EPS = 1e-5

WEIGHT_NAMES = [
    "fc0_w", "fc0_b",
    "conv0_w", "conv0_b",
    "tanh_w", "tanh_b",
    "sigm_w", "sigm_b",
    "conv1_w", "conv1_b",
    "bn_scale", "bn_shift",
    "wq", "bq", "wk", "bk", "wv", "bv",
    "mlp1_w", "mlp1_b",
]


def make_kernel(BT, L, E, H, NH, dilations, use_bf16):
    NR = BT * L
    inv_sqrt = 1.0 / math.sqrt(H)

    def dot(a, b):
        if use_bf16:                      # bf16 operands, f32 accumulation
            a = a.astype(jnp.bfloat16)
            b = b.astype(jnp.bfloat16)
        return jnp.dot(a, b, preferred_element_type=jnp.float32)

    def bmm(eq, a, b):
        if use_bf16:
            a = a.astype(jnp.bfloat16)
            b = b.astype(jnp.bfloat16)
        return jnp.einsum(eq, a, b, preferred_element_type=jnp.float32)

    def kernel(x_ref,
               fc0_w_ref, fc0_b_ref,
               conv0_w_ref, conv0_b_ref,
               tanh_w_ref, tanh_b_ref,
               sigm_w_ref, sigm_b_ref,
               conv1_w_ref, conv1_b_ref,
               bn_scale_ref, bn_shift_ref,
               wq_ref, bq_ref, wk_ref, bk_ref, wv_ref, bv_ref,
               mlp1_w_ref, mlp1_b_ref,
               o_ref):
        # (BT, L, E) -> (BT*L, E): flatten batch into rows (sublane fill)
        x = x_ref[...].reshape(NR, E)

        # per-row position inside its length-L sequence (for shift masking)
        pos = jax.lax.broadcasted_iota(jnp.int32, (NR, 1), 0) % L

        def shift(v, o):
            # result[b, l] = v[b, l + o], zero outside [0, L).  pltpu.roll runs
            # on the XLU (free w.r.t. MXU); the mask removes the zero-padding
            # rows and any cross-batch leakage of the flat roll.
            rolled = pltpu.roll(v, shift=(-o) % NR, axis=0)
            valid = jnp.logical_and(pos + o >= 0, pos + o < L)
            return jnp.where(valid, rolled, 0.0)

        # ---- x_attn = relu(fc0(x)) ----
        x_attn = jnp.maximum(dot(x, fc0_w_ref[...]) + fc0_b_ref[...], 0.0)

        # ---- AnDi_Wave ----
        # conv1d_0 (kernel 3, padding 1): three accumulated K=E matmuls,
        # no lane concatenation of taps.
        h = (dot(shift(x, -1), conv0_w_ref[0])
             + dot(x, conv0_w_ref[1])
             + dot(shift(x, 1), conv0_w_ref[2])
             + conv0_b_ref[...])                                   # (NR, H)
        res = h

        # NOTE(perf): statically unrolled (5 iterations, small live set at
        # NR<=1024); convert to lax.fori_loop if NR is raised much further.
        for i, d in enumerate(dilations):
            hm, hp = shift(h, -d), shift(h, d)
            pre_t = (dot(hm, tanh_w_ref[i, 0]) + dot(h, tanh_w_ref[i, 1])
                     + dot(hp, tanh_w_ref[i, 2]) + tanh_b_ref[i])
            pre_s = (dot(hm, sigm_w_ref[i, 0]) + dot(h, sigm_w_ref[i, 1])
                     + dot(hp, sigm_w_ref[i, 2]) + sigm_b_ref[i])
            g = jnp.tanh(pre_t) * jax.nn.sigmoid(pre_s)
            h = dot(g, conv1_w_ref[...]) + conv1_b_ref[...]        # 1x1 conv
            res = res + h
        # BatchNorm1d (eval, folded) + Dropout(0.1) (identity)
        x_res = res * bn_scale_ref[...] + bn_shift_ref[...]

        # ---- multi-head SelfAttention + mlp1 ----
        # Per-head weight matmuls: no qkv slicing, no heads concat; out_attn is
        # accumulated per head through mlp1_w[hh].
        # NOTE(perf): if attention micro-matmuls dominate at larger shapes,
        # batch the NH heads into one 128-wide MXU op (block-diagonal K/V);
        # for large L, tile this softmax flash-style (required on v7x VMEM).
        out_attn = jnp.zeros((NR, H), jnp.float32)
        for hh in range(NH):
            q = (dot(x_attn, wq_ref[hh]) + bq_ref[hh]).reshape(BT, L, H)
            k = (dot(x_attn, wk_ref[hh]) + bk_ref[hh]).reshape(BT, L, H)
            v = (dot(x_attn, wv_ref[hh]) + bv_ref[hh]).reshape(BT, L, H)
            s = bmm("bld,bmd->blm", q, k) * inv_sqrt
            m = jnp.max(s, axis=-1, keepdims=True)
            e = jnp.exp(s - m)
            a = e * pl.reciprocal(jnp.sum(e, axis=-1, keepdims=True), approx=True)
            head = bmm("blm,bmd->bld", a, v).reshape(NR, H)
            out_attn = out_attn + dot(head, mlp1_w_ref[hh])
        out_attn = out_attn + mlp1_b_ref[...]       # Dropout(0.5) = identity

        o_ref[...] = (x_res + out_attn).reshape(BT, L, H)

    return kernel


# --------------------------- batch-block selection ---------------------------

def _pick_batch_block(B, L, *, max_rows=1024, min_grid=2, row_granule=128):
    """Pick BT: prefer >= min_grid grid steps (keeps both v7x TCs busy), then
    NR = BT*L a multiple of the MXU row granule, then the largest NR."""
    best, best_key = 1, None
    for bt in range(1, B + 1):
        if B % bt:
            continue
        nr = bt * L
        if nr > max_rows:
            continue
        steps = B // bt
        key = (steps >= min(min_grid, B), (nr % row_granule) == 0, nr)
        if best_key is None or key > best_key:
            best, best_key = bt, key
    return best


def traj_module_forward(x, params, *, batch_block=None, use_bf16_matmul=False,
                        min_grid_steps=2, max_rows=1024):
    B, L, E = x.shape
    H = params["fc0_w"].shape[1]
    NH = params["wq"].shape[0]
    dilations = [2 ** i for i in range(DILATION_DEPTH)]

    if batch_block is None:
        batch_block = _pick_batch_block(B, L, max_rows=max_rows,
                                        min_grid=min_grid_steps)
    BT = batch_block
    assert B % BT == 0

    kernel = make_kernel(BT, L, E, H, NH, dilations, use_bf16_matmul)

    def full_spec(a):
        nd = a.ndim
        return pl.BlockSpec(a.shape, lambda b, nd=nd: (0,) * nd)

    weights = [params[n] for n in WEIGHT_NAMES]
    in_specs = ([pl.BlockSpec((BT, L, E), lambda b: (b, 0, 0))]
                + [full_spec(w) for w in weights])
    out_spec = pl.BlockSpec((BT, L, H), lambda b: (b, 0, 0))

    return pl.pallas_call(
        kernel,
        out_shape=jax.ShapeDtypeStruct((B, L, H), jnp.float32),
        grid_spec=pltpu.PrefetchScalarGridSpec(
            num_scalar_prefetch=0,
            grid=(B // BT,),
            in_specs=in_specs,
            out_specs=out_spec),
        compiler_params=pltpu.CompilerParams(
            dimension_semantics=("parallel",)),
    )(x, *weights)


# --------------------------- parameter setup (glue) ---------------------------

def init_params(key, E, H, NH):
    keys = iter(jax.random.split(key, 32))

    def nrm(shape, scale):
        return jax.random.normal(next(keys), shape, jnp.float32) * scale

    p = dict(
        fc0_w=nrm((E, H), 1.0 / math.sqrt(E)),
        fc0_b=nrm((1, H), 0.02),
        # conv weights stored pre-transposed as (tap, C_in, C_out)
        conv0_w=nrm((KERNEL_SIZE, E, H), 1.0 / math.sqrt(KERNEL_SIZE * E)),
        conv0_b=nrm((1, H), 0.02),
        tanh_w=nrm((DILATION_DEPTH, KERNEL_SIZE, H, H), 1.0 / math.sqrt(KERNEL_SIZE * H)),
        tanh_b=nrm((DILATION_DEPTH, 1, H), 0.02),
        sigm_w=nrm((DILATION_DEPTH, KERNEL_SIZE, H, H), 1.0 / math.sqrt(KERNEL_SIZE * H)),
        sigm_b=nrm((DILATION_DEPTH, 1, H), 0.02),
        conv1_w=nrm((H, H), 1.0 / math.sqrt(H)),        # 1x1 conv
        conv1_b=nrm((1, H), 0.02),
        wq=nrm((NH, H, H), 1.0 / math.sqrt(H)),
        bq=nrm((NH, 1, H), 0.02),
        wk=nrm((NH, H, H), 1.0 / math.sqrt(H)),
        bk=nrm((NH, 1, H), 0.02),
        wv=nrm((NH, H, H), 1.0 / math.sqrt(H)),
        bv=nrm((NH, 1, H), 0.02),
        # mlp1: Linear(NH*H, H), stored as per-head (H, H) blocks
        mlp1_w=nrm((NH, H, H), 1.0 / math.sqrt(NH * H)),
        mlp1_b=nrm((1, H), 0.02),
    )
    # BatchNorm1d (eval mode) folded into scale/shift
    gamma = 1.0 + nrm((1, H), 0.1)
    beta = nrm((1, H), 0.1)
    rmean = nrm((1, H), 0.1)
    rvar = 1.0 + jnp.abs(nrm((1, H), 0.1))
    scale = gamma / jnp.sqrt(rvar + BN_EPS)
    p["bn_scale"] = scale
    p["bn_shift"] = beta - rmean * scale
    return p


# --------------------------- pure-JAX reference ---------------------------

def reference_forward(x, p):
    dilations = [2 ** i for i in range(DILATION_DEPTH)]

    def sh(v, o):
        # result[:, l] = v[:, l + o] with zero padding
        if o == 0:
            return v
        if o > 0:
            return jnp.pad(v[:, o:, :], ((0, 0), (0, o), (0, 0)))
        return jnp.pad(v[:, :o, :], ((0, 0), (-o, 0), (0, 0)))

    x_attn = jax.nn.relu(x @ p["fc0_w"] + p["fc0_b"])

    h = (sh(x, -1) @ p["conv0_w"][0] + x @ p["conv0_w"][1]
         + sh(x, 1) @ p["conv0_w"][2] + p["conv0_b"])
    res = h
    for i, d in enumerate(dilations):
        hm, hp = sh(h, -d), sh(h, d)
        pre_t = (hm @ p["tanh_w"][i, 0] + h @ p["tanh_w"][i, 1]
                 + hp @ p["tanh_w"][i, 2] + p["tanh_b"][i])
        pre_s = (hm @ p["sigm_w"][i, 0] + h @ p["sigm_w"][i, 1]
                 + hp @ p["sigm_w"][i, 2] + p["sigm_b"][i])
        g = jnp.tanh(pre_t) * jax.nn.sigmoid(pre_s)
        h = g @ p["conv1_w"] + p["conv1_b"]
        res = res + h
    x_res = res * p["bn_scale"] + p["bn_shift"]

    H = p["fc0_w"].shape[1]
    NH = p["wq"].shape[0]
    inv_sqrt = 1.0 / math.sqrt(H)
    acc = jnp.zeros_like(x_attn)
    for hh in range(NH):
        q = x_attn @ p["wq"][hh] + p["bq"][hh]
        k = x_attn @ p["wk"][hh] + p["bk"][hh]
        v = x_attn @ p["wv"][hh] + p["bv"][hh]
        s = jnp.einsum("bld,bmd->blm", q, k) * inv_sqrt
        a = jax.nn.softmax(s, axis=-1)
        acc = acc + jnp.einsum("blm,bmd->bld", a, v) @ p["mlp1_w"][hh]
    return x_res + acc + p["mlp1_b"]


if __name__ == "__main__":
    B, L, E, H, NH = 2, 32, 16, 32, 4   # batch, seq, embed_dim, hidden_dim, num_head
    key = jax.random.PRNGKey(0)
    kx, kp = jax.random.split(key)
    x = jax.random.normal(kx, (B, L, E), jnp.float32)
    params = init_params(kp, E, H, NH)

    ref = reference_forward(x, params)

    # f32 MXU path (exact parity with the f32 reference)
    out = jax.block_until_ready(traj_module_forward(x, params))
    assert out.shape == (B, L, H), out.shape
    assert bool(jnp.all(jnp.isfinite(out)))
    max_err = float(jnp.max(jnp.abs(out - ref)))
    assert bool(jnp.allclose(out, ref, atol=1e-2, rtol=1e-2)), max_err

    # bf16-operand MXU path (v6e/v7x throughput mode); f32 accumulation keeps
    # error at the ~1e-3 level, checked loosely against the f32 reference.
    out_bf16 = jax.block_until_ready(
        traj_module_forward(x, params, use_bf16_matmul=True))
    assert out_bf16.shape == (B, L, H)
    assert bool(jnp.all(jnp.isfinite(out_bf16)))
    assert bool(jnp.allclose(out_bf16, ref, atol=1e-1, rtol=1e-1))

    print("KERNEL_OK")
</pallas_src>

<mosaic_0001>
module attributes {stable_mosaic.version = 11 : i64} {
  func.func @kernel(%arg0: i32, %arg1: memref<1x32x16xf32, #tpu.memory_space<vmem>>, %arg2: memref<16x32xf32, #tpu.memory_space<vmem>>, %arg3: memref<1x32xf32, #tpu.memory_space<vmem>>, %arg4: memref<3x16x32xf32, #tpu.memory_space<vmem>>, %arg5: memref<1x32xf32, #tpu.memory_space<vmem>>, %arg6: memref<5x3x32x32xf32, #tpu.memory_space<vmem>>, %arg7: memref<5x1x32xf32, #tpu.memory_space<vmem>>, %arg8: memref<5x3x32x32xf32, #tpu.memory_space<vmem>>, %arg9: memref<5x1x32xf32, #tpu.memory_space<vmem>>, %arg10: memref<32x32xf32, #tpu.memory_space<vmem>>, %arg11: memref<1x32xf32, #tpu.memory_space<vmem>>, %arg12: memref<1x32xf32, #tpu.memory_space<vmem>>, %arg13: memref<1x32xf32, #tpu.memory_space<vmem>>, %arg14: memref<4x32x32xf32, #tpu.memory_space<vmem>>, %arg15: memref<4x1x32xf32, #tpu.memory_space<vmem>>, %arg16: memref<4x32x32xf32, #tpu.memory_space<vmem>>, %arg17: memref<4x1x32xf32, #tpu.memory_space<vmem>>, %arg18: memref<4x32x32xf32, #tpu.memory_space<vmem>>, %arg19: memref<4x1x32xf32, #tpu.memory_space<vmem>>, %arg20: memref<4x32x32xf32, #tpu.memory_space<vmem>>, %arg21: memref<1x32xf32, #tpu.memory_space<vmem>>, %arg22: memref<1x32x32xf32, #tpu.memory_space<vmem>>) attributes {dimension_semantics = [#tpu.dimension_semantics<parallel>], iteration_bounds = array<i64: 2>, scalar_prefetch = 0 : i64, scratch_operands = 0 : i64, tpu.core_type = #tpu.core_type<tc>, window_params = [{transform_indices = @transform_0, window_bounds = array<i64: 1, 32, 16>}, {pipeline_mode = #tpu.pipeline_mode<synchronous>, transform_indices = @transform_1, window_bounds = array<i64: 16, 32>}, {pipeline_mode = #tpu.pipeline_mode<synchronous>, transform_indices = @transform_2, window_bounds = array<i64: 1, 32>}, {pipeline_mode = #tpu.pipeline_mode<synchronous>, transform_indices = @transform_3, window_bounds = array<i64: 3, 16, 32>}, {pipeline_mode = #tpu.pipeline_mode<synchronous>, transform_indices = @transform_4, window_bounds = array<i64: 1, 32>}, {pipeline_mode = #tpu.pipeline_mode<synchronous>, transform_indices = @transform_5, window_bounds = array<i64: 5, 3, 32, 32>}, {pipeline_mode = #tpu.pipeline_mode<synchronous>, transform_indices = @transform_6, window_bounds = array<i64: 5, 1, 32>}, {pipeline_mode = #tpu.pipeline_mode<synchronous>, transform_indices = @transform_7, window_bounds = array<i64: 5, 3, 32, 32>}, {pipeline_mode = #tpu.pipeline_mode<synchronous>, transform_indices = @transform_8, window_bounds = array<i64: 5, 1, 32>}, {pipeline_mode = #tpu.pipeline_mode<synchronous>, transform_indices = @transform_9, window_bounds = array<i64: 32, 32>}, {pipeline_mode = #tpu.pipeline_mode<synchronous>, transform_indices = @transform_10, window_bounds = array<i64: 1, 32>}, {pipeline_mode = #tpu.pipeline_mode<synchronous>, transform_indices = @transform_11, window_bounds = array<i64: 1, 32>}, {pipeline_mode = #tpu.pipeline_mode<synchronous>, transform_indices = @transform_12, window_bounds = array<i64: 1, 32>}, {pipeline_mode = #tpu.pipeline_mode<synchronous>, transform_indices = @transform_13, window_bounds = array<i64: 4, 32, 32>}, {pipeline_mode = #tpu.pipeline_mode<synchronous>, transform_indices = @transform_14, window_bounds = array<i64: 4, 1, 32>}, {pipeline_mode = #tpu.pipeline_mode<synchronous>, transform_indices = @transform_15, window_bounds = array<i64: 4, 32, 32>}, {pipeline_mode = #tpu.pipeline_mode<synchronous>, transform_indices = @transform_16, window_bounds = array<i64: 4, 1, 32>}, {pipeline_mode = #tpu.pipeline_mode<synchronous>, transform_indices = @transform_17, window_bounds = array<i64: 4, 32, 32>}, {pipeline_mode = #tpu.pipeline_mode<synchronous>, transform_indices = @transform_18, window_bounds = array<i64: 4, 1, 32>}, {pipeline_mode = #tpu.pipeline_mode<synchronous>, transform_indices = @transform_19, window_bounds = array<i64: 4, 32, 32>}, {pipeline_mode = #tpu.pipeline_mode<synchronous>, transform_indices = @transform_20, window_bounds = array<i64: 1, 32>}, {transform_indices = @transform_21, window_bounds = array<i64: 1, 32, 32>}]} {
    %c0 = arith.constant 0 : index
    %c0_0 = arith.constant 0 : index
    %c0_1 = arith.constant 0 : index
    %0 = vector.load %arg1[%c0, %c0_0, %c0_1] : memref<1x32x16xf32, #tpu.memory_space<vmem>>, vector<1x32x16xf32>
    %1 = vector.shape_cast %0 : vector<1x32x16xf32> to vector<32x16xf32>
    %2 = tpu.iota {dimensions = array<i32: 0>} : vector<32x1xi32>
    %c32_i32 = arith.constant 32 : i32
    %c0_i32 = arith.constant 0 : i32
    %3 = arith.cmpi eq, %c32_i32, %c0_i32 : i32
    %c1_i32 = arith.constant 1 : i32
    %4 = arith.select %3, %c1_i32, %c32_i32 : i32
    %5 = vector.broadcast %4 : i32 to vector<32x1xi32>
    %6 = arith.remsi %2, %5 : vector<32x1xi32>
    %c0_i32_2 = arith.constant 0 : i32
    %7 = vector.broadcast %c0_i32_2 : i32 to vector<32x1xi32>
    %8 = arith.cmpi ne, %6, %7 : vector<32x1xi32>
    %c0_i32_3 = arith.constant 0 : i32
    %9 = vector.broadcast %c0_i32_3 : i32 to vector<32x1xi32>
    %10 = arith.cmpi slt, %6, %9 : vector<32x1xi32>
    %c0_i32_4 = arith.constant 0 : i32
    %11 = arith.cmpi slt, %4, %c0_i32_4 : i32
    %12 = vector.broadcast %11 : i1 to vector<32x1xi1>
    %13 = vector.broadcast %12 : vector<32x1xi1> to vector<32x1xi1>
    %14 = arith.xori %10, %13 : vector<32x1xi1>
    %15 = arith.andi %14, %8 : vector<32x1xi1>
    %16 = vector.broadcast %4 : i32 to vector<32x1xi32>
    %17 = arith.addi %6, %16 : vector<32x1xi32>
    %18 = arith.select %15, %17, %6 : vector<32x1xi1>, vector<32x1xi32>
    %c0_5 = arith.constant 0 : index
    %c0_6 = arith.constant 0 : index
    %19 = vector.load %arg2[%c0_5, %c0_6] : memref<16x32xf32, #tpu.memory_space<vmem>>, vector<16x32xf32>
    %cst = arith.constant dense<0.000000e+00> : vector<32x32xf32>
    %20 = tpu.matmul %1, %19, %cst {dimension_numbers = #tpu.dot_dimension_numbers<[1], [0], [0], [1], [0, 0, 1, 1], [], []>} : vector<32x16xf32>, vector<16x32xf32>, vector<32x32xf32> -> vector<32x32xf32>
    %c0_7 = arith.constant 0 : index
    %c0_8 = arith.constant 0 : index
    %21 = vector.load %arg3[%c0_7, %c0_8] : memref<1x32xf32, #tpu.memory_space<vmem>>, vector<1x32xf32>
    %22 = vector.broadcast %21 : vector<1x32xf32> to vector<32x32xf32>
    %23 = arith.addf %20, %22 : vector<32x32xf32>
    %cst_9 = arith.constant 0.000000e+00 : f32
    %24 = vector.broadcast %cst_9 : f32 to vector<32x32xf32>
    %25 = arith.maximumf %23, %24 : vector<32x32xf32>
    %c1_i32_10 = arith.constant 1 : i32
    %26 = tpu.dynamic_rotate %1 by %c1_i32_10 dim 0 : vector<32x16xf32>, i32 -> vector<32x16xf32>
    %c-1_i32 = arith.constant -1 : i32
    %27 = vector.broadcast %c-1_i32 : i32 to vector<32x1xi32>
    %28 = arith.addi %18, %27 : vector<32x1xi32>
    %c0_i32_11 = arith.constant 0 : i32
    %29 = vector.broadcast %c0_i32_11 : i32 to vector<32x1xi32>
    %30 = arith.cmpi sge, %28, %29 : vector<32x1xi32>
    %c-1_i32_12 = arith.constant -1 : i32
    %31 = vector.broadcast %c-1_i32_12 : i32 to vector<32x1xi32>
    %32 = arith.addi %18, %31 : vector<32x1xi32>
    %c32_i32_13 = arith.constant 32 : i32
    %33 = vector.broadcast %c32_i32_13 : i32 to vector<32x1xi32>
    %34 = arith.cmpi slt, %32, %33 : vector<32x1xi32>
    %35 = arith.andi %30, %34 : vector<32x1xi1>
    %cst_14 = arith.constant 0.000000e+00 : f32
    %36 = vector.shape_cast %35 : vector<32x1xi1> to vector<32x1xi1>
    %37 = vector.broadcast %36 : vector<32x1xi1> to vector<32x16xi1>
    %38 = vector.broadcast %cst_14 : f32 to vector<32x16xf32>
    %39 = arith.select %37, %26, %38 : vector<32x16xi1>, vector<32x16xf32>
    %c0_15 = arith.constant 0 : index
    %c0_16 = arith.constant 0 : index
    %c0_17 = arith.constant 0 : index
    %40 = vector.load %arg4[%c0_15, %c0_16, %c0_17] : memref<3x16x32xf32, #tpu.memory_space<vmem>>, vector<1x16x32xf32>
    %41 = vector.shape_cast %40 : vector<1x16x32xf32> to vector<16x32xf32>
    %cst_18 = arith.constant dense<0.000000e+00> : vector<32x32xf32>
    %42 = tpu.matmul %39, %41, %cst_18 {dimension_numbers = #tpu.dot_dimension_numbers<[1], [0], [0], [1], [0, 0, 1, 1], [], []>} : vector<32x16xf32>, vector<16x32xf32>, vector<32x32xf32> -> vector<32x32xf32>
    %c1 = arith.constant 1 : index
    %c0_19 = arith.constant 0 : index
    %c0_20 = arith.constant 0 : index
    %43 = vector.load %arg4[%c1, %c0_19, %c0_20] : memref<3x16x32xf32, #tpu.memory_space<vmem>>, vector<1x16x32xf32>
    %44 = vector.shape_cast %43 : vector<1x16x32xf32> to vector<16x32xf32>
    %cst_21 = arith.constant dense<0.000000e+00> : vector<32x32xf32>
    %45 = tpu.matmul %1, %44, %cst_21 {dimension_numbers = #tpu.dot_dimension_numbers<[1], [0], [0], [1], [0, 0, 1, 1], [], []>} : vector<32x16xf32>, vector<16x32xf32>, vector<32x32xf32> -> vector<32x32xf32>
    %46 = arith.addf %42, %45 : vector<32x32xf32>
    %c31_i32 = arith.constant 31 : i32
    %47 = tpu.dynamic_rotate %1 by %c31_i32 dim 0 : vector<32x16xf32>, i32 -> vector<32x16xf32>
    %c1_i32_22 = arith.constant 1 : i32
    %48 = vector.broadcast %c1_i32_22 : i32 to vector<32x1xi32>
    %49 = arith.addi %18, %48 : vector<32x1xi32>
    %c0_i32_23 = arith.constant 0 : i32
    %50 = vector.broadcast %c0_i32_23 : i32 to vector<32x1xi32>
    %51 = arith.cmpi sge, %49, %50 : vector<32x1xi32>
    %c1_i32_24 = arith.constant 1 : i32
    %52 = vector.broadcast %c1_i32_24 : i32 to vector<32x1xi32>
    %53 = arith.addi %18, %52 : vector<32x1xi32>
    %c32_i32_25 = arith.constant 32 : i32
    %54 = vector.broadcast %c32_i32_25 : i32 to vector<32x1xi32>
    %55 = arith.cmpi slt, %53, %54 : vector<32x1xi32>
    %56 = arith.andi %51, %55 : vector<32x1xi1>
    %cst_26 = arith.constant 0.000000e+00 : f32
    %57 = vector.shape_cast %56 : vector<32x1xi1> to vector<32x1xi1>
    %58 = vector.broadcast %57 : vector<32x1xi1> to vector<32x16xi1>
    %59 = vector.broadcast %cst_26 : f32 to vector<32x16xf32>
    %60 = arith.select %58, %47, %59 : vector<32x16xi1>, vector<32x16xf32>
    %c2 = arith.constant 2 : index
    %c0_27 = arith.constant 0 : index
    %c0_28 = arith.constant 0 : index
    %61 = vector.load %arg4[%c2, %c0_27, %c0_28] : memref<3x16x32xf32, #tpu.memory_space<vmem>>, vector<1x16x32xf32>
    %62 = vector.shape_cast %61 : vector<1x16x32xf32> to vector<16x32xf32>
    %cst_29 = arith.constant dense<0.000000e+00> : vector<32x32xf32>
    %63 = tpu.matmul %60, %62, %cst_29 {dimension_numbers = #tpu.dot_dimension_numbers<[1], [0], [0], [1], [0, 0, 1, 1], [], []>} : vector<32x16xf32>, vector<16x32xf32>, vector<32x32xf32> -> vector<32x32xf32>
    %64 = arith.addf %46, %63 : vector<32x32xf32>
    %c0_30 = arith.constant 0 : index
    %c0_31 = arith.constant 0 : index
    %65 = vector.load %arg5[%c0_30, %c0_31] : memref<1x32xf32, #tpu.memory_space<vmem>>, vector<1x32xf32>
    %66 = vector.broadcast %65 : vector<1x32xf32> to vector<32x32xf32>
    %67 = arith.addf %64, %66 : vector<32x32xf32>
    %c1_i32_32 = arith.constant 1 : i32
    %68 = tpu.dynamic_rotate %67 by %c1_i32_32 dim 0 : vector<32x32xf32>, i32 -> vector<32x32xf32>
    %c-1_i32_33 = arith.constant -1 : i32
    %69 = vector.broadcast %c-1_i32_33 : i32 to vector<32x1xi32>
    %70 = arith.addi %18, %69 : vector<32x1xi32>
    %c0_i32_34 = arith.constant 0 : i32
    %71 = vector.broadcast %c0_i32_34 : i32 to vector<32x1xi32>
    %72 = arith.cmpi sge, %70, %71 : vector<32x1xi32>
    %c-1_i32_35 = arith.constant -1 : i32
    %73 = vector.broadcast %c-1_i32_35 : i32 to vector<32x1xi32>
    %74 = arith.addi %18, %73 : vector<32x1xi32>
    %c32_i32_36 = arith.constant 32 : i32
    %75 = vector.broadcast %c32_i32_36 : i32 to vector<32x1xi32>
    %76 = arith.cmpi slt, %74, %75 : vector<32x1xi32>
    %77 = arith.andi %72, %76 : vector<32x1xi1>
    %cst_37 = arith.constant 0.000000e+00 : f32
    %78 = vector.shape_cast %77 : vector<32x1xi1> to vector<32x1xi1>
    %79 = vector.broadcast %78 : vector<32x1xi1> to vector<32x32xi1>
    %80 = vector.broadcast %cst_37 : f32 to vector<32x32xf32>
    %81 = arith.select %79, %68, %80 : vector<32x32xi1>, vector<32x32xf32>
    %c31_i32_38 = arith.constant 31 : i32
    %82 = tpu.dynamic_rotate %67 by %c31_i32_38 dim 0 : vector<32x32xf32>, i32 -> vector<32x32xf32>
    %c1_i32_39 = arith.constant 1 : i32
    %83 = vector.broadcast %c1_i32_39 : i32 to vector<32x1xi32>
    %84 = arith.addi %18, %83 : vector<32x1xi32>
    %c0_i32_40 = arith.constant 0 : i32
    %85 = vector.broadcast %c0_i32_40 : i32 to vector<32x1xi32>
    %86 = arith.cmpi sge, %84, %85 : vector<32x1xi32>
    %c1_i32_41 = arith.constant 1 : i32
    %87 = vector.broadcast %c1_i32_41 : i32 to vector<32x1xi32>
    %88 = arith.addi %18, %87 : vector<32x1xi32>
    %c32_i32_42 = arith.constant 32 : i32
    %89 = vector.broadcast %c32_i32_42 : i32 to vector<32x1xi32>
    %90 = arith.cmpi slt, %88, %89 : vector<32x1xi32>
    %91 = arith.andi %86, %90 : vector<32x1xi1>
    %cst_43 = arith.constant 0.000000e+00 : f32
    %92 = vector.shape_cast %91 : vector<32x1xi1> to vector<32x1xi1>
    %93 = vector.broadcast %92 : vector<32x1xi1> to vector<32x32xi1>
    %94 = vector.broadcast %cst_43 : f32 to vector<32x32xf32>
    %95 = arith.select %93, %82, %94 : vector<32x32xi1>, vector<32x32xf32>
    %c0_44 = arith.constant 0 : index
    %c0_45 = arith.constant 0 : index
    %c0_46 = arith.constant 0 : index
    %c0_47 = arith.constant 0 : index
    %96 = vector.load %arg6[%c0_44, %c0_45, %c0_46, %c0_47] : memref<5x3x32x32xf32, #tpu.memory_space<vmem>>, vector<1x1x32x32xf32>
    %97 = vector.shape_cast %96 : vector<1x1x32x32xf32> to vector<32x32xf32>
    %cst_48 = arith.constant dense<0.000000e+00> : vector<32x32xf32>
    %98 = tpu.matmul %81, %97, %cst_48 {dimension_numbers = #tpu.dot_dimension_numbers<[1], [0], [0], [1], [0, 0, 1, 1], [], []>} : vector<32x32xf32>, vector<32x32xf32>, vector<32x32xf32> -> vector<32x32xf32>
    %c0_49 = arith.constant 0 : index
    %c1_50 = arith.constant 1 : index
    %c0_51 = arith.constant 0 : index
    %c0_52 = arith.constant 0 : index
    %99 = vector.load %arg6[%c0_49, %c1_50, %c0_51, %c0_52] : memref<5x3x32x32xf32, #tpu.memory_space<vmem>>, vector<1x1x32x32xf32>
    %100 = vector.shape_cast %99 : vector<1x1x32x32xf32> to vector<32x32xf32>
    %cst_53 = arith.constant dense<0.000000e+00> : vector<32x32xf32>
    %101 = tpu.matmul %67, %100, %cst_53 {dimension_numbers = #tpu.dot_dimension_numbers<[1], [0], [0], [1], [0, 0, 1, 1], [], []>} : vector<32x32xf32>, vector<32x32xf32>, vector<32x32xf32> -> vector<32x32xf32>
    %102 = arith.addf %98, %101 : vector<32x32xf32>
    %c0_54 = arith.constant 0 : index
    %c2_55 = arith.constant 2 : index
    %c0_56 = arith.constant 0 : index
    %c0_57 = arith.constant 0 : index
    %103 = vector.load %arg6[%c0_54, %c2_55, %c0_56, %c0_57] : memref<5x3x32x32xf32, #tpu.memory_space<vmem>>, vector<1x1x32x32xf32>
    %104 = vector.shape_cast %103 : vector<1x1x32x32xf32> to vector<32x32xf32>
    %cst_58 = arith.constant dense<0.000000e+00> : vector<32x32xf32>
    %105 = tpu.matmul %95, %104, %cst_58 {dimension_numbers = #tpu.dot_dimension_numbers<[1], [0], [0], [1], [0, 0, 1, 1], [], []>} : vector<32x32xf32>, vector<32x32xf32>, vector<32x32xf32> -> vector<32x32xf32>
    %106 = arith.addf %102, %105 : vector<32x32xf32>
    %c0_59 = arith.constant 0 : index
    %c0_60 = arith.constant 0 : index
    %c0_61 = arith.constant 0 : index
    %107 = vector.load %arg7[%c0_59, %c0_60, %c0_61] : memref<5x1x32xf32, #tpu.memory_space<vmem>>, vector<1x1x32xf32>
    %108 = vector.shape_cast %107 : vector<1x1x32xf32> to vector<1x32xf32>
    %109 = vector.broadcast %108 : vector<1x32xf32> to vector<32x32xf32>
    %110 = arith.addf %106, %109 : vector<32x32xf32>
    %c0_62 = arith.constant 0 : index
    %c0_63 = arith.constant 0 : index
    %c0_64 = arith.constant 0 : index
    %c0_65 = arith.constant 0 : index
    %111 = vector.load %arg8[%c0_62, %c0_63, %c0_64, %c0_65] : memref<5x3x32x32xf32, #tpu.memory_space<vmem>>, vector<1x1x32x32xf32>
    %112 = vector.shape_cast %111 : vector<1x1x32x32xf32> to vector<32x32xf32>
    %cst_66 = arith.constant dense<0.000000e+00> : vector<32x32xf32>
    %113 = tpu.matmul %81, %112, %cst_66 {dimension_numbers = #tpu.dot_dimension_numbers<[1], [0], [0], [1], [0, 0, 1, 1], [], []>} : vector<32x32xf32>, vector<32x32xf32>, vector<32x32xf32> -> vector<32x32xf32>
    %c0_67 = arith.constant 0 : index
    %c1_68 = arith.constant 1 : index
    %c0_69 = arith.constant 0 : index
    %c0_70 = arith.constant 0 : index
    %114 = vector.load %arg8[%c0_67, %c1_68, %c0_69, %c0_70] : memref<5x3x32x32xf32, #tpu.memory_space<vmem>>, vector<1x1x32x32xf32>
    %115 = vector.shape_cast %114 : vector<1x1x32x32xf32> to vector<32x32xf32>
    %cst_71 = arith.constant dense<0.000000e+00> : vector<32x32xf32>
    %116 = tpu.matmul %67, %115, %cst_71 {dimension_numbers = #tpu.dot_dimension_numbers<[1], [0], [0], [1], [0, 0, 1, 1], [], []>} : vector<32x32xf32>, vector<32x32xf32>, vector<32x32xf32> -> vector<32x32xf32>
    %117 = arith.addf %113, %116 : vector<32x32xf32>
    %c0_72 = arith.constant 0 : index
    %c2_73 = arith.constant 2 : index
    %c0_74 = arith.constant 0 : index
    %c0_75 = arith.constant 0 : index
    %118 = vector.load %arg8[%c0_72, %c2_73, %c0_74, %c0_75] : memref<5x3x32x32xf32, #tpu.memory_space<vmem>>, vector<1x1x32x32xf32>
    %119 = vector.shape_cast %118 : vector<1x1x32x32xf32> to vector<32x32xf32>
    %cst_76 = arith.constant dense<0.000000e+00> : vector<32x32xf32>
    %120 = tpu.matmul %95, %119, %cst_76 {dimension_numbers = #tpu.dot_dimension_numbers<[1], [0], [0], [1], [0, 0, 1, 1], [], []>} : vector<32x32xf32>, vector<32x32xf32>, vector<32x32xf32> -> vector<32x32xf32>
    %121 = arith.addf %117, %120 : vector<32x32xf32>
    %c0_77 = arith.constant 0 : index
    %c0_78 = arith.constant 0 : index
    %c0_79 = arith.constant 0 : index
    %122 = vector.load %arg9[%c0_77, %c0_78, %c0_79] : memref<5x1x32xf32, #tpu.memory_space<vmem>>, vector<1x1x32xf32>
    %123 = vector.shape_cast %122 : vector<1x1x32xf32> to vector<1x32xf32>
    %124 = vector.broadcast %123 : vector<1x32xf32> to vector<32x32xf32>
    %125 = arith.addf %121, %124 : vector<32x32xf32>
    %126 = math.tanh %110 : vector<32x32xf32>
    %127 = arith.negf %125 : vector<32x32xf32>
    %128 = math.exp %127 : vector<32x32xf32>
    %cst_80 = arith.constant 1.000000e+00 : f32
    %129 = vector.broadcast %cst_80 : f32 to vector<32x32xf32>
    %130 = arith.addf %129, %128 : vector<32x32xf32>
    %131 = arith.divf %129, %130 : vector<32x32xf32>
    %132 = arith.mulf %126, %131 : vector<32x32xf32>
    %c0_81 = arith.constant 0 : index
    %c0_82 = arith.constant 0 : index
    %133 = vector.load %arg10[%c0_81, %c0_82] : memref<32x32xf32, #tpu.memory_space<vmem>>, vector<32x32xf32>
    %cst_83 = arith.constant dense<0.000000e+00> : vector<32x32xf32>
    %134 = tpu.matmul %132, %133, %cst_83 {dimension_numbers = #tpu.dot_dimension_numbers<[1], [0], [0], [1], [0, 0, 1, 1], [], []>} : vector<32x32xf32>, vector<32x32xf32>, vector<32x32xf32> -> vector<32x32xf32>
    %c0_84 = arith.constant 0 : index
    %c0_85 = arith.constant 0 : index
    %135 = vector.load %arg11[%c0_84, %c0_85] : memref<1x32xf32, #tpu.memory_space<vmem>>, vector<1x32xf32>
    %136 = vector.broadcast %135 : vector<1x32xf32> to vector<32x32xf32>
    %137 = arith.addf %134, %136 : vector<32x32xf32>
    %138 = arith.addf %67, %137 : vector<32x32xf32>
    %c2_i32 = arith.constant 2 : i32
    %139 = tpu.dynamic_rotate %137 by %c2_i32 dim 0 : vector<32x32xf32>, i32 -> vector<32x32xf32>
    %c-2_i32 = arith.constant -2 : i32
    %140 = vector.broadcast %c-2_i32 : i32 to vector<32x1xi32>
    %141 = arith.addi %18, %140 : vector<32x1xi32>
    %c0_i32_86 = arith.constant 0 : i32
    %142 = vector.broadcast %c0_i32_86 : i32 to vector<32x1xi32>
    %143 = arith.cmpi sge, %141, %142 : vector<32x1xi32>
    %c-2_i32_87 = arith.constant -2 : i32
    %144 = vector.broadcast %c-2_i32_87 : i32 to vector<32x1xi32>
    %145 = arith.addi %18, %144 : vector<32x1xi32>
    %c32_i32_88 = arith.constant 32 : i32
    %146 = vector.broadcast %c32_i32_88 : i32 to vector<32x1xi32>
    %147 = arith.cmpi slt, %145, %146 : vector<32x1xi32>
    %148 = arith.andi %143, %147 : vector<32x1xi1>
    %cst_89 = arith.constant 0.000000e+00 : f32
    %149 = vector.shape_cast %148 : vector<32x1xi1> to vector<32x1xi1>
    %150 = vector.broadcast %149 : vector<32x1xi1> to vector<32x32xi1>
    %151 = vector.broadcast %cst_89 : f32 to vector<32x32xf32>
    %152 = arith.select %150, %139, %151 : vector<32x32xi1>, vector<32x32xf32>
    %c30_i32 = arith.constant 30 : i32
    %153 = tpu.dynamic_rotate %137 by %c30_i32 dim 0 : vector<32x32xf32>, i32 -> vector<32x32xf32>
    %c2_i32_90 = arith.constant 2 : i32
    %154 = vector.broadcast %c2_i32_90 : i32 to vector<32x1xi32>
    %155 = arith.addi %18, %154 : vector<32x1xi32>
    %c0_i32_91 = arith.constant 0 : i32
    %156 = vector.broadcast %c0_i32_91 : i32 to vector<32x1xi32>
    %157 = arith.cmpi sge, %155, %156 : vector<32x1xi32>
    %c2_i32_92 = arith.constant 2 : i32
    %158 = vector.broadcast %c2_i32_92 : i32 to vector<32x1xi32>
    %159 = arith.addi %18, %158 : vector<32x1xi32>
    %c32_i32_93 = arith.constant 32 : i32
    %160 = vector.broadcast %c32_i32_93 : i32 to vector<32x1xi32>
    %161 = arith.cmpi slt, %159, %160 : vector<32x1xi32>
    %162 = arith.andi %157, %161 : vector<32x1xi1>
    %cst_94 = arith.constant 0.000000e+00 : f32
    %163 = vector.shape_cast %162 : vector<32x1xi1> to vector<32x1xi1>
    %164 = vector.broadcast %163 : vector<32x1xi1> to vector<32x32xi1>
    %165 = vector.broadcast %cst_94 : f32 to vector<32x32xf32>
    %166 = arith.select %164, %153, %165 : vector<32x32xi1>, vector<32x32xf32>
    %c1_95 = arith.constant 1 : index
    %c0_96 = arith.constant 0 : index
    %c0_97 = arith.constant 0 : index
    %c0_98 = arith.constant 0 : index
    %167 = vector.load %arg6[%c1_95, %c0_96, %c0_97, %c0_98] : memref<5x3x32x32xf32, #tpu.memory_space<vmem>>, vector<1x1x32x32xf32>
    %168 = vector.shape_cast %167 : vector<1x1x32x32xf32> to vector<32x32xf32>
    %cst_99 = arith.constant dense<0.000000e+00> : vector<32x32xf32>
    %169 = tpu.matmul %152, %168, %cst_99 {dimension_numbers = #tpu.dot_dimension_numbers<[1], [0], [0], [1], [0, 0, 1, 1], [], []>} : vector<32x32xf32>, vector<32x32xf32>, vector<32x32xf32> -> vector<32x32xf32>
    %c1_100 = arith.constant 1 : index
    %c1_101 = arith.constant 1 : index
    %c0_102 = arith.constant 0 : index
    %c0_103 = arith.constant 0 : index
    %170 = vector.load %arg6[%c1_100, %c1_101, %c0_102, %c0_103] : memref<5x3x32x32xf32, #tpu.memory_space<vmem>>, vector<1x1x32x32xf32>
    %171 = vector.shape_cast %170 : vector<1x1x32x32xf32> to vector<32x32xf32>
    %cst_104 = arith.constant dense<0.000000e+00> : vector<32x32xf32>
    %172 = tpu.matmul %137, %171, %cst_104 {dimension_numbers = #tpu.dot_dimension_numbers<[1], [0], [0], [1], [0, 0, 1, 1], [], []>} : vector<32x32xf32>, vector<32x32xf32>, vector<32x32xf32> -> vector<32x32xf32>
    %173 = arith.addf %169, %172 : vector<32x32xf32>
    %c1_105 = arith.constant 1 : index
    %c2_106 = arith.constant 2 : index
    %c0_107 = arith.constant 0 : index
    %c0_108 = arith.constant 0 : index
    %174 = vector.load %arg6[%c1_105, %c2_106, %c0_107, %c0_108] : memref<5x3x32x32xf32, #tpu.memory_space<vmem>>, vector<1x1x32x32xf32>
    %175 = vector.shape_cast %174 : vector<1x1x32x32xf32> to vector<32x32xf32>
    %cst_109 = arith.constant dense<0.000000e+00> : vector<32x32xf32>
    %176 = tpu.matmul %166, %175, %cst_109 {dimension_numbers = #tpu.dot_dimension_numbers<[1], [0], [0], [1], [0, 0, 1, 1], [], []>} : vector<32x32xf32>, vector<32x32xf32>, vector<32x32xf32> -> vector<32x32xf32>
    %177 = arith.addf %173, %176 : vector<32x32xf32>
    %c1_110 = arith.constant 1 : index
    %c0_111 = arith.constant 0 : index
    %c0_112 = arith.constant 0 : index
    %178 = vector.load %arg7[%c1_110, %c0_111, %c0_112] : memref<5x1x32xf32, #tpu.memory_space<vmem>>, vector<1x1x32xf32>
    %179 = vector.shape_cast %178 : vector<1x1x32xf32> to vector<1x32xf32>
    %180 = vector.broadcast %179 : vector<1x32xf32> to vector<32x32xf32>
    %181 = arith.addf %177, %180 : vector<32x32xf32>
    %c1_113 = arith.constant 1 : index
    %c0_114 = arith.constant 0 : index
    %c0_115 = arith.constant 0 : index
    %c0_116 = arith.constant 0 : index
    %182 = vector.load %arg8[%c1_113, %c0_114, %c0_115, %c0_116] : memref<5x3x32x32xf32, #tpu.memory_space<vmem>>, vector<1x1x32x32xf32>
    %183 = vector.shape_cast %182 : vector<1x1x32x32xf32> to vector<32x32xf32>
    %cst_117 = arith.constant dense<0.000000e+00> : vector<32x32xf32>
    %184 = tpu.matmul %152, %183, %cst_117 {dimension_numbers = #tpu.dot_dimension_numbers<[1], [0], [0], [1], [0, 0, 1, 1], [], []>} : vector<32x32xf32>, vector<32x32xf32>, vector<32x32xf32> -> vector<32x32xf32>
    %c1_118 = arith.constant 1 : index
    %c1_119 = arith.constant 1 : index
    %c0_120 = arith.constant 0 : index
    %c0_121 = arith.constant 0 : index
    %185 = vector.load %arg8[%c1_118, %c1_119, %c0_120, %c0_121] : memref<5x3x32x32xf32, #tpu.memory_space<vmem>>, vector<1x1x32x32xf32>
    %186 = vector.shape_cast %185 : vector<1x1x32x32xf32> to vector<32x32xf32>
    %cst_122 = arith.constant dense<0.000000e+00> : vector<32x32xf32>
    %187 = tpu.matmul %137, %186, %cst_122 {dimension_numbers = #tpu.dot_dimension_numbers<[1], [0], [0], [1], [0, 0, 1, 1], [], []>} : vector<32x32xf32>, vector<32x32xf32>, vector<32x32xf32> -> vector<32x32xf32>
    %188 = arith.addf %184, %187 : vector<32x32xf32>
    %c1_123 = arith.constant 1 : index
    %c2_124 = arith.constant 2 : index
    %c0_125 = arith.constant 0 : index
    %c0_126 = arith.constant 0 : index
    %189 = vector.load %arg8[%c1_123, %c2_124, %c0_125, %c0_126] : memref<5x3x32x32xf32, #tpu.memory_space<vmem>>, vector<1x1x32x32xf32>
    %190 = vector.shape_cast %189 : vector<1x1x32x32xf32> to vector<32x32xf32>
    %cst_127 = arith.constant dense<0.000000e+00> : vector<32x32xf32>
    %191 = tpu.matmul %166, %190, %cst_127 {dimension_numbers = #tpu.dot_dimension_numbers<[1], [0], [0], [1], [0, 0, 1, 1], [], []>} : vector<32x32xf32>, vector<32x32xf32>, vector<32x32xf32> -> vector<32x32xf32>
    %192 = arith.addf %188, %191 : vector<32x32xf32>
    %c1_128 = arith.constant 1 : index
    %c0_129 = arith.constant 0 : index
    %c0_130 = arith.constant 0 : index
    %193 = vector.load %arg9[%c1_128, %c0_129, %c0_130] : memref<5x1x32xf32, #tpu.memory_space<vmem>>, vector<1x1x32xf32>
    %194 = vector.shape_cast %193 : vector<1x1x32xf32> to vector<1x32xf32>
    %195 = vector.broadcast %194 : vector<1x32xf32> to vector<32x32xf32>
    %196 = arith.addf %192, %195 : vector<32x32xf32>
    %197 = math.tanh %181 : vector<32x32xf32>
    %198 = arith.negf %196 : vector<32x32xf32>
    %199 = math.exp %198 : vector<32x32xf32>
    %cst_131 = arith.constant 1.000000e+00 : f32
    %200 = vector.broadcast %cst_131 : f32 to vector<32x32xf32>
    %201 = arith.addf %200, %199 : vector<32x32xf32>
    %202 = arith.divf %200, %201 : vector<32x32xf32>
    %203 = arith.mulf %197, %202 : vector<32x32xf32>
    %c0_132 = arith.constant 0 : index
    %c0_133 = arith.constant 0 : index
    %204 = vector.load %arg10[%c0_132, %c0_133] : memref<32x32xf32, #tpu.memory_space<vmem>>, vector<32x32xf32>
    %cst_134 = arith.constant dense<0.000000e+00> : vector<32x32xf32>
    %205 = tpu.matmul %203, %204, %cst_134 {dimension_numbers = #tpu.dot_dimension_numbers<[1], [0], [0], [1], [0, 0, 1, 1], [], []>} : vector<32x32xf32>, vector<32x32xf32>, vector<32x32xf32> -> vector<32x32xf32>
    %c0_135 = arith.constant 0 : index
    %c0_136 = arith.constant 0 : index
    %206 = vector.load %arg11[%c0_135, %c0_136] : memref<1x32xf32, #tpu.memory_space<vmem>>, vector<1x32xf32>
    %207 = vector.broadcast %206 : vector<1x32xf32> to vector<32x32xf32>
    %208 = arith.addf %205, %207 : vector<32x32xf32>
    %209 = arith.addf %138, %208 : vector<32x32xf32>
    %c4_i32 = arith.constant 4 : i32
    %210 = tpu.dynamic_rotate %208 by %c4_i32 dim 0 : vector<32x32xf32>, i32 -> vector<32x32xf32>
    %c-4_i32 = arith.constant -4 : i32
    %211 = vector.broadcast %c-4_i32 : i32 to vector<32x1xi32>
    %212 = arith.addi %18, %211 : vector<32x1xi32>
    %c0_i32_137 = arith.constant 0 : i32
    %213 = vector.broadcast %c0_i32_137 : i32 to vector<32x1xi32>
    %214 = arith.cmpi sge, %212, %213 : vector<32x1xi32>
    %c-4_i32_138 = arith.constant -4 : i32
    %215 = vector.broadcast %c-4_i32_138 : i32 to vector<32x1xi32>
    %216 = arith.addi %18, %215 : vector<32x1xi32>
    %c32_i32_139 = arith.constant 32 : i32
    %217 = vector.broadcast %c32_i32_139 : i32 to vector<32x1xi32>
    %218 = arith.cmpi slt, %216, %217 : vector<32x1xi32>
    %219 = arith.andi %214, %218 : vector<32x1xi1>
    %cst_140 = arith.constant 0.000000e+00 : f32
    %220 = vector.shape_cast %219 : vector<32x1xi1> to vector<32x1xi1>
    %221 = vector.broadcast %220 : vector<32x1xi1> to vector<32x32xi1>
    %222 = vector.broadcast %cst_140 : f32 to vector<32x32xf32>
    %223 = arith.select %221, %210, %222 : vector<32x32xi1>, vector<32x32xf32>
    %c28_i32 = arith.constant 28 : i32
    %224 = tpu.dynamic_rotate %208 by %c28_i32 dim 0 : vector<32x32xf32>, i32 -> vector<32x32xf32>
    %c4_i32_141 = arith.constant 4 : i32
    %225 = vector.broadcast %c4_i32_141 : i32 to vector<32x1xi32>
    %226 = arith.addi %18, %225 : vector<32x1xi32>
    %c0_i32_142 = arith.constant 0 : i32
    %227 = vector.broadcast %c0_i32_142 : i32 to vector<32x1xi32>
    %228 = arith.cmpi sge, %226, %227 : vector<32x1xi32>
    %c4_i32_143 = arith.constant 4 : i32
    %229 = vector.broadcast %c4_i32_143 : i32 to vector<32x1xi32>
    %230 = arith.addi %18, %229 : vector<32x1xi32>
    %c32_i32_144 = arith.constant 32 : i32
    %231 = vector.broadcast %c32_i32_144 : i32 to vector<32x1xi32>
    %232 = arith.cmpi slt, %230, %231 : vector<32x1xi32>
    %233 = arith.andi %228, %232 : vector<32x1xi1>
    %cst_145 = arith.constant 0.000000e+00 : f32
    %234 = vector.shape_cast %233 : vector<32x1xi1> to vector<32x1xi1>
    %235 = vector.broadcast %234 : vector<32x1xi1> to vector<32x32xi1>
    %236 = vector.broadcast %cst_145 : f32 to vector<32x32xf32>
    %237 = arith.select %235, %224, %236 : vector<32x32xi1>, vector<32x32xf32>
    %c2_146 = arith.constant 2 : index
    %c0_147 = arith.constant 0 : index
    %c0_148 = arith.constant 0 : index
    %c0_149 = arith.constant 0 : index
    %238 = vector.load %arg6[%c2_146, %c0_147, %c0_148, %c0_149] : memref<5x3x32x32xf32, #tpu.memory_space<vmem>>, vector<1x1x32x32xf32>
    %239 = vector.shape_cast %238 : vector<1x1x32x32xf32> to vector<32x32xf32>
    %cst_150 = arith.constant dense<0.000000e+00> : vector<32x32xf32>
    %240 = tpu.matmul %223, %239, %cst_150 {dimension_numbers = #tpu.dot_dimension_numbers<[1], [0], [0], [1], [0, 0, 1, 1], [], []>} : vector<32x32xf32>, vector<32x32xf32>, vector<32x32xf32> -> vector<32x32xf32>
    %c2_151 = arith.constant 2 : index
    %c1_152 = arith.constant 1 : index
    %c0_153 = arith.constant 0 : index
    %c0_154 = arith.constant 0 : index
    %241 = vector.load %arg6[%c2_151, %c1_152, %c0_153, %c0_154] : memref<5x3x32x32xf32, #tpu.memory_space<vmem>>, vector<1x1x32x32xf32>
    %242 = vector.shape_cast %241 : vector<1x1x32x32xf32> to vector<32x32xf32>
    %cst_155 = arith.constant dense<0.000000e+00> : vector<32x32xf32>
    %243 = tpu.matmul %208, %242, %cst_155 {dimension_numbers = #tpu.dot_dimension_numbers<[1], [0], [0], [1], [0, 0, 1, 1], [], []>} : vector<32x32xf32>, vector<32x32xf32>, vector<32x32xf32> -> vector<32x32xf32>
    %244 = arith.addf %240, %243 : vector<32x32xf32>
    %c2_156 = arith.constant 2 : index
    %c2_157 = arith.constant 2 : index
    %c0_158 = arith.constant 0 : index
    %c0_159 = arith.constant 0 : index
    %245 = vector.load %arg6[%c2_156, %c2_157, %c0_158, %c0_159] : memref<5x3x32x32xf32, #tpu.memory_space<vmem>>, vector<1x1x32x32xf32>
    %246 = vector.shape_cast %245 : vector<1x1x32x32xf32> to vector<32x32xf32>
    %cst_160 = arith.constant dense<0.000000e+00> : vector<32x32xf32>
    %247 = tpu.matmul %237, %246, %cst_160 {dimension_numbers = #tpu.dot_dimension_numbers<[1], [0], [0], [1], [0, 0, 1, 1], [], []>} : vector<32x32xf32>, vector<32x32xf32>, vector<32x32xf32> -> vector<32x32xf32>
    %248 = arith.addf %244, %247 : vector<32x32xf32>
    %c2_161 = arith.constant 2 : index
    %c0_162 = arith.constant 0 : index
    %c0_163 = arith.constant 0 : index
    %249 = vector.load %arg7[%c2_161, %c0_162, %c0_163] : memref<5x1x32xf32, #tpu.memory_space<vmem>>, vector<1x1x32xf32>
    %250 = vector.shape_cast %249 : vector<1x1x32xf32> to vector<1x32xf32>
    %251 = vector.broadcast %250 : vector<1x32xf32> to vector<32x32xf32>
    %252 = arith.addf %248, %251 : vector<32x32xf32>
    %c2_164 = arith.constant 2 : index
    %c0_165 = arith.constant 0 : index
    %c0_166 = arith.constant 0 : index
    %c0_167 = arith.constant 0 : index
    %253 = vector.load %arg8[%c2_164, %c0_165, %c0_166, %c0_167] : memref<5x3x32x32xf32, #tpu.memory_space<vmem>>, vector<1x1x32x32xf32>
    %254 = vector.shape_cast %253 : vector<1x1x32x32xf32> to vector<32x32xf32>
    %cst_168 = arith.constant dense<0.000000e+00> : vector<32x32xf32>
    %255 = tpu.matmul %223, %254, %cst_168 {dimension_numbers = #tpu.dot_dimension_numbers<[1], [0], [0], [1], [0, 0, 1, 1], [], []>} : vector<32x32xf32>, vector<32x32xf32>, vector<32x32xf32> -> vector<32x32xf32>
    %c2_169 = arith.constant 2 : index
    %c1_170 = arith.constant 1 : index
    %c0_171 = arith.constant 0 : index
    %c0_172 = arith.constant 0 : index
    %256 = vector.load %arg8[%c2_169, %c1_170, %c0_171, %c0_172] : memref<5x3x32x32xf32, #tpu.memory_space<vmem>>, vector<1x1x32x32xf32>
    %257 = vector.shape_cast %256 : vector<1x1x32x32xf32> to vector<32x32xf32>
    %cst_173 = arith.constant dense<0.000000e+00> : vector<32x32xf32>
    %258 = tpu.matmul %208, %257, %cst_173 {dimension_numbers = #tpu.dot_dimension_numbers<[1], [0], [0], [1], [0, 0, 1, 1], [], []>} : vector<32x32xf32>, vector<32x32xf32>, vector<32x32xf32> -> vector<32x32xf32>
    %259 = arith.addf %255, %258 : vector<32x32xf32>
    %c2_174 = arith.constant 2 : index
    %c2_175 = arith.constant 2 : index
    %c0_176 = arith.constant 0 : index
    %c0_177 = arith.constant 0 : index
    %260 = vector.load %arg8[%c2_174, %c2_175, %c0_176, %c0_177] : memref<5x3x32x32xf32, #tpu.memory_space<vmem>>, vector<1x1x32x32xf32>
    %261 = vector.shape_cast %260 : vector<1x1x32x32xf32> to vector<32x32xf32>
    %cst_178 = arith.constant dense<0.000000e+00> : vector<32x32xf32>
    %262 = tpu.matmul %237, %261, %cst_178 {dimension_numbers = #tpu.dot_dimension_numbers<[1], [0], [0], [1], [0, 0, 1, 1], [], []>} : vector<32x32xf32>, vector<32x32xf32>, vector<32x32xf32> -> vector<32x32xf32>
    %263 = arith.addf %259, %262 : vector<32x32xf32>
    %c2_179 = arith.constant 2 : index
    %c0_180 = arith.constant 0 : index
    %c0_181 = arith.constant 0 : index
    %264 = vector.load %arg9[%c2_179, %c0_180, %c0_181] : memref<5x1x32xf32, #tpu.memory_space<vmem>>, vector<1x1x32xf32>
    %265 = vector.shape_cast %264 : vector<1x1x32xf32> to vector<1x32xf32>
    %266 = vector.broadcast %265 : vector<1x32xf32> to vector<32x32xf32>
    %267 = arith.addf %263, %266 : vector<32x32xf32>
    %268 = math.tanh %252 : vector<32x32xf32>
    %269 = arith.negf %267 : vector<32x32xf32>
    %270 = math.exp %269 : vector<32x32xf32>
    %cst_182 = arith.constant 1.000000e+00 : f32
    %271 = vector.broadcast %cst_182 : f32 to vector<32x32xf32>
    %272 = arith.addf %271, %270 : vector<32x32xf32>
    %273 = arith.divf %271, %272 : vector<32x32xf32>
    %274 = arith.mulf %268, %273 : vector<32x32xf32>
    %c0_183 = arith.constant 0 : index
    %c0_184 = arith.constant 0 : index
    %275 = vector.load %arg10[%c0_183, %c0_184] : memref<32x32xf32, #tpu.memory_space<vmem>>, vector<32x32xf32>
    %cst_185 = arith.constant dense<0.000000e+00> : vector<32x32xf32>
    %276 = tpu.matmul %274, %275, %cst_185 {dimension_numbers = #tpu.dot_dimension_numbers<[1], [0], [0], [1], [0, 0, 1, 1], [], []>} : vector<32x32xf32>, vector<32x32xf32>, vector<32x32xf32> -> vector<32x32xf32>
    %c0_186 = arith.constant 0 : index
    %c0_187 = arith.constant 0 : index
    %277 = vector.load %arg11[%c0_186, %c0_187] : memref<1x32xf32, #tpu.memory_space<vmem>>, vector<1x32xf32>
    %278 = vector.broadcast %277 : vector<1x32xf32> to vector<32x32xf32>
    %279 = arith.addf %276, %278 : vector<32x32xf32>
    %280 = arith.addf %209, %279 : vector<32x32xf32>
    %c8_i32 = arith.constant 8 : i32
    %281 = tpu.dynamic_rotate %279 by %c8_i32 dim 0 : vector<32x32xf32>, i32 -> vector<32x32xf32>
    %c-8_i32 = arith.constant -8 : i32
    %282 = vector.broadcast %c-8_i32 : i32 to vector<32x1xi32>
    %283 = arith.addi %18, %282 : vector<32x1xi32>
    %c0_i32_188 = arith.constant 0 : i32
    %284 = vector.broadcast %c0_i32_188 : i32 to vector<32x1xi32>
    %285 = arith.cmpi sge, %283, %284 : vector<32x1xi32>
    %c-8_i32_189 = arith.constant -8 : i32
    %286 = vector.broadcast %c-8_i32_189 : i32 to vector<32x1xi32>
    %287 = arith.addi %18, %286 : vector<32x1xi32>
    %c32_i32_190 = arith.constant 32 : i32
    %288 = vector.broadcast %c32_i32_190 : i32 to vector<32x1xi32>
    %289 = arith.cmpi slt, %287, %288 : vector<32x1xi32>
    %290 = arith.andi %285, %289 : vector<32x1xi1>
    %cst_191 = arith.constant 0.000000e+00 : f32
    %291 = vector.shape_cast %290 : vector<32x1xi1> to vector<32x1xi1>
    %292 = vector.broadcast %291 : vector<32x1xi1> to vector<32x32xi1>
    %293 = vector.broadcast %cst_191 : f32 to vector<32x32xf32>
    %294 = arith.select %292, %281, %293 : vector<32x32xi1>, vector<32x32xf32>
    %c24_i32 = arith.constant 24 : i32
    %295 = tpu.dynamic_rotate %279 by %c24_i32 dim 0 : vector<32x32xf32>, i32 -> vector<32x32xf32>
    %c8_i32_192 = arith.constant 8 : i32
    %296 = vector.broadcast %c8_i32_192 : i32 to vector<32x1xi32>
    %297 = arith.addi %18, %296 : vector<32x1xi32>
    %c0_i32_193 = arith.constant 0 : i32
    %298 = vector.broadcast %c0_i32_193 : i32 to vector<32x1xi32>
    %299 = arith.cmpi sge, %297, %298 : vector<32x1xi32>
    %c8_i32_194 = arith.constant 8 : i32
    %300 = vector.broadcast %c8_i32_194 : i32 to vector<32x1xi32>
    %301 = arith.addi %18, %300 : vector<32x1xi32>
    %c32_i32_195 = arith.constant 32 : i32
    %302 = vector.broadcast %c32_i32_195 : i32 to vector<32x1xi32>
    %303 = arith.cmpi slt, %301, %302 : vector<32x1xi32>
    %304 = arith.andi %299, %303 : vector<32x1xi1>
    %cst_196 = arith.constant 0.000000e+00 : f32
    %305 = vector.shape_cast %304 : vector<32x1xi1> to vector<32x1xi1>
    %306 = vector.broadcast %305 : vector<32x1xi1> to vector<32x32xi1>
    %307 = vector.broadcast %cst_196 : f32 to vector<32x32xf32>
    %308 = arith.select %306, %295, %307 : vector<32x32xi1>, vector<32x32xf32>
    %c3 = arith.constant 3 : index
    %c0_197 = arith.constant 0 : index
    %c0_198 = arith.constant 0 : index
    %c0_199 = arith.constant 0 : index
    %309 = vector.load %arg6[%c3, %c0_197, %c0_198, %c0_199] : memref<5x3x32x32xf32, #tpu.memory_space<vmem>>, vector<1x1x32x32xf32>
    %310 = vector.shape_cast %309 : vector<1x1x32x32xf32> to vector<32x32xf32>
    %cst_200 = arith.constant dense<0.000000e+00> : vector<32x32xf32>
    %311 = tpu.matmul %294, %310, %cst_200 {dimension_numbers = #tpu.dot_dimension_numbers<[1], [0], [0], [1], [0, 0, 1, 1], [], []>} : vector<32x32xf32>, vector<32x32xf32>, vector<32x32xf32> -> vector<32x32xf32>
    %c3_201 = arith.constant 3 : index
    %c1_202 = arith.constant 1 : index
    %c0_203 = arith.constant 0 : index
    %c0_204 = arith.constant 0 : index
    %312 = vector.load %arg6[%c3_201, %c1_202, %c0_203, %c0_204] : memref<5x3x32x32xf32, #tpu.memory_space<vmem>>, vector<1x1x32x32xf32>
    %313 = vector.shape_cast %312 : vector<1x1x32x32xf32> to vector<32x32xf32>
    %cst_205 = arith.constant dense<0.000000e+00> : vector<32x32xf32>
    %314 = tpu.matmul %279, %313, %cst_205 {dimension_numbers = #tpu.dot_dimension_numbers<[1], [0], [0], [1], [0, 0, 1, 1], [], []>} : vector<32x32xf32>, vector<32x32xf32>, vector<32x32xf32> -> vector<32x32xf32>
    %315 = arith.addf %311, %314 : vector<32x32xf32>
    %c3_206 = arith.constant 3 : index
    %c2_207 = arith.constant 2 : index
    %c0_208 = arith.constant 0 : index
    %c0_209 = arith.constant 0 : index
    %316 = vector.load %arg6[%c3_206, %c2_207, %c0_208, %c0_209] : memref<5x3x32x32xf32, #tpu.memory_space<vmem>>, vector<1x1x32x32xf32>
    %317 = vector.shape_cast %316 : vector<1x1x32x32xf32> to vector<32x32xf32>
    %cst_210 = arith.constant dense<0.000000e+00> : vector<32x32xf32>
    %318 = tpu.matmul %308, %317, %cst_210 {dimension_numbers = #tpu.dot_dimension_numbers<[1], [0], [0], [1], [0, 0, 1, 1], [], []>} : vector<32x32xf32>, vector<32x32xf32>, vector<32x32xf32> -> vector<32x32xf32>
    %319 = arith.addf %315, %318 : vector<32x32xf32>
    %c3_211 = arith.constant 3 : index
    %c0_212 = arith.constant 0 : index
    %c0_213 = arith.constant 0 : index
    %320 = vector.load %arg7[%c3_211, %c0_212, %c0_213] : memref<5x1x32xf32, #tpu.memory_space<vmem>>, vector<1x1x32xf32>
    %321 = vector.shape_cast %320 : vector<1x1x32xf32> to vector<1x32xf32>
    %322 = vector.broadcast %321 : vector<1x32xf32> to vector<32x32xf32>
    %323 = arith.addf %319, %322 : vector<32x32xf32>
    %c3_214 = arith.constant 3 : index
    %c0_215 = arith.constant 0 : index
    %c0_216 = arith.constant 0 : index
    %c0_217 = arith.constant 0 : index
    %324 = vector.load %arg8[%c3_214, %c0_215, %c0_216, %c0_217] : memref<5x3x32x32xf32, #tpu.memory_space<vmem>>, vector<1x1x32x32xf32>
    %325 = vector.shape_cast %324 : vector<1x1x32x32xf32> to vector<32x32xf32>
    %cst_218 = arith.constant dense<0.000000e+00> : vector<32x32xf32>
    %326 = tpu.matmul %294, %325, %cst_218 {dimension_numbers = #tpu.dot_dimension_numbers<[1], [0], [0], [1], [0, 0, 1, 1], [], []>} : vector<32x32xf32>, vector<32x32xf32>, vector<32x32xf32> -> vector<32x32xf32>
    %c3_219 = arith.constant 3 : index
    %c1_220 = arith.constant 1 : index
    %c0_221 = arith.constant 0 : index
    %c0_222 = arith.constant 0 : index
    %327 = vector.load %arg8[%c3_219, %c1_220, %c0_221, %c0_222] : memref<5x3x32x32xf32, #tpu.memory_space<vmem>>, vector<1x1x32x32xf32>
    %328 = vector.shape_cast %327 : vector<1x1x32x32xf32> to vector<32x32xf32>
    %cst_223 = arith.constant dense<0.000000e+00> : vector<32x32xf32>
    %329 = tpu.matmul %279, %328, %cst_223 {dimension_numbers = #tpu.dot_dimension_numbers<[1], [0], [0], [1], [0, 0, 1, 1], [], []>} : vector<32x32xf32>, vector<32x32xf32>, vector<32x32xf32> -> vector<32x32xf32>
    %330 = arith.addf %326, %329 : vector<32x32xf32>
    %c3_224 = arith.constant 3 : index
    %c2_225 = arith.constant 2 : index
    %c0_226 = arith.constant 0 : index
    %c0_227 = arith.constant 0 : index
    %331 = vector.load %arg8[%c3_224, %c2_225, %c0_226, %c0_227] : memref<5x3x32x32xf32, #tpu.memory_space<vmem>>, vector<1x1x32x32xf32>
    %332 = vector.shape_cast %331 : vector<1x1x32x32xf32> to vector<32x32xf32>
    %cst_228 = arith.constant dense<0.000000e+00> : vector<32x32xf32>
    %333 = tpu.matmul %308, %332, %cst_228 {dimension_numbers = #tpu.dot_dimension_numbers<[1], [0], [0], [1], [0, 0, 1, 1], [], []>} : vector<32x32xf32>, vector<32x32xf32>, vector<32x32xf32> -> vector<32x32xf32>
    %334 = arith.addf %330, %333 : vector<32x32xf32>
    %c3_229 = arith.constant 3 : index
    %c0_230 = arith.constant 0 : index
    %c0_231 = arith.constant 0 : index
    %335 = vector.load %arg9[%c3_229, %c0_230, %c0_231] : memref<5x1x32xf32, #tpu.memory_space<vmem>>, vector<1x1x32xf32>
    %336 = vector.shape_cast %335 : vector<1x1x32xf32> to vector<1x32xf32>
    %337 = vector.broadcast %336 : vector<1x32xf32> to vector<32x32xf32>
    %338 = arith.addf %334, %337 : vector<32x32xf32>
    %339 = math.tanh %323 : vector<32x32xf32>
    %340 = arith.negf %338 : vector<32x32xf32>
    %341 = math.exp %340 : vector<32x32xf32>
    %cst_232 = arith.constant 1.000000e+00 : f32
    %342 = vector.broadcast %cst_232 : f32 to vector<32x32xf32>
    %343 = arith.addf %342, %341 : vector<32x32xf32>
    %344 = arith.divf %342, %343 : vector<32x32xf32>
    %345 = arith.mulf %339, %344 : vector<32x32xf32>
    %c0_233 = arith.constant 0 : index
    %c0_234 = arith.constant 0 : index
    %346 = vector.load %arg10[%c0_233, %c0_234] : memref<32x32xf32, #tpu.memory_space<vmem>>, vector<32x32xf32>
    %cst_235 = arith.constant dense<0.000000e+00> : vector<32x32xf32>
    %347 = tpu.matmul %345, %346, %cst_235 {dimension_numbers = #tpu.dot_dimension_numbers<[1], [0], [0], [1], [0, 0, 1, 1], [], []>} : vector<32x32xf32>, vector<32x32xf32>, vector<32x32xf32> -> vector<32x32xf32>
    %c0_236 = arith.constant 0 : index
    %c0_237 = arith.constant 0 : index
    %348 = vector.load %arg11[%c0_236, %c0_237] : memref<1x32xf32, #tpu.memory_space<vmem>>, vector<1x32xf32>
    %349 = vector.broadcast %348 : vector<1x32xf32> to vector<32x32xf32>
    %350 = arith.addf %347, %349 : vector<32x32xf32>
    %351 = arith.addf %280, %350 : vector<32x32xf32>
    %c16_i32 = arith.constant 16 : i32
    %352 = tpu.dynamic_rotate %350 by %c16_i32 dim 0 : vector<32x32xf32>, i32 -> vector<32x32xf32>
    %c-16_i32 = arith.constant -16 : i32
    %353 = vector.broadcast %c-16_i32 : i32 to vector<32x1xi32>
    %354 = arith.addi %18, %353 : vector<32x1xi32>
    %c0_i32_238 = arith.constant 0 : i32
    %355 = vector.broadcast %c0_i32_238 : i32 to vector<32x1xi32>
    %356 = arith.cmpi sge, %354, %355 : vector<32x1xi32>
    %c-16_i32_239 = arith.constant -16 : i32
    %357 = vector.broadcast %c-16_i32_239 : i32 to vector<32x1xi32>
    %358 = arith.addi %18, %357 : vector<32x1xi32>
    %c32_i32_240 = arith.constant 32 : i32
    %359 = vector.broadcast %c32_i32_240 : i32 to vector<32x1xi32>
    %360 = arith.cmpi slt, %358, %359 : vector<32x1xi32>
    %361 = arith.andi %356, %360 : vector<32x1xi1>
    %cst_241 = arith.constant 0.000000e+00 : f32
    %362 = vector.shape_cast %361 : vector<32x1xi1> to vector<32x1xi1>
    %363 = vector.broadcast %362 : vector<32x1xi1> to vector<32x32xi1>
    %364 = vector.broadcast %cst_241 : f32 to vector<32x32xf32>
    %365 = arith.select %363, %352, %364 : vector<32x32xi1>, vector<32x32xf32>
    %c16_i32_242 = arith.constant 16 : i32
    %366 = tpu.dynamic_rotate %350 by %c16_i32_242 dim 0 : vector<32x32xf32>, i32 -> vector<32x32xf32>
    %c16_i32_243 = arith.constant 16 : i32
    %367 = vector.broadcast %c16_i32_243 : i32 to vector<32x1xi32>
    %368 = arith.addi %18, %367 : vector<32x1xi32>
    %c0_i32_244 = arith.constant 0 : i32
    %369 = vector.broadcast %c0_i32_244 : i32 to vector<32x1xi32>
    %370 = arith.cmpi sge, %368, %369 : vector<32x1xi32>
    %c16_i32_245 = arith.constant 16 : i32
    %371 = vector.broadcast %c16_i32_245 : i32 to vector<32x1xi32>
    %372 = arith.addi %18, %371 : vector<32x1xi32>
    %c32_i32_246 = arith.constant 32 : i32
    %373 = vector.broadcast %c32_i32_246 : i32 to vector<32x1xi32>
    %374 = arith.cmpi slt, %372, %373 : vector<32x1xi32>
    %375 = arith.andi %370, %374 : vector<32x1xi1>
    %cst_247 = arith.constant 0.000000e+00 : f32
    %376 = vector.shape_cast %375 : vector<32x1xi1> to vector<32x1xi1>
    %377 = vector.broadcast %376 : vector<32x1xi1> to vector<32x32xi1>
    %378 = vector.broadcast %cst_247 : f32 to vector<32x32xf32>
    %379 = arith.select %377, %366, %378 : vector<32x32xi1>, vector<32x32xf32>
    %c4 = arith.constant 4 : index
    %c0_248 = arith.constant 0 : index
    %c0_249 = arith.constant 0 : index
    %c0_250 = arith.constant 0 : index
    %380 = vector.load %arg6[%c4, %c0_248, %c0_249, %c0_250] : memref<5x3x32x32xf32, #tpu.memory_space<vmem>>, vector<1x1x32x32xf32>
    %381 = vector.shape_cast %380 : vector<1x1x32x32xf32> to vector<32x32xf32>
    %cst_251 = arith.constant dense<0.000000e+00> : vector<32x32xf32>
    %382 = tpu.matmul %365, %381, %cst_251 {dimension_numbers = #tpu.dot_dimension_numbers<[1], [0], [0], [1], [0, 0, 1, 1], [], []>} : vector<32x32xf32>, vector<32x32xf32>, vector<32x32xf32> -> vector<32x32xf32>
    %c4_252 = arith.constant 4 : index
    %c1_253 = arith.constant 1 : index
    %c0_254 = arith.constant 0 : index
    %c0_255 = arith.constant 0 : index
    %383 = vector.load %arg6[%c4_252, %c1_253, %c0_254, %c0_255] : memref<5x3x32x32xf32, #tpu.memory_space<vmem>>, vector<1x1x32x32xf32>
    %384 = vector.shape_cast %383 : vector<1x1x32x32xf32> to vector<32x32xf32>
    %cst_256 = arith.constant dense<0.000000e+00> : vector<32x32xf32>
    %385 = tpu.matmul %350, %384, %cst_256 {dimension_numbers = #tpu.dot_dimension_numbers<[1], [0], [0], [1], [0, 0, 1, 1], [], []>} : vector<32x32xf32>, vector<32x32xf32>, vector<32x32xf32> -> vector<32x32xf32>
    %386 = arith.addf %382, %385 : vector<32x32xf32>
    %c4_257 = arith.constant 4 : index
    %c2_258 = arith.constant 2 : index
    %c0_259 = arith.constant 0 : index
    %c0_260 = arith.constant 0 : index
    %387 = vector.load %arg6[%c4_257, %c2_258, %c0_259, %c0_260] : memref<5x3x32x32xf32, #tpu.memory_space<vmem>>, vector<1x1x32x32xf32>
    %388 = vector.shape_cast %387 : vector<1x1x32x32xf32> to vector<32x32xf32>
    %cst_261 = arith.constant dense<0.000000e+00> : vector<32x32xf32>
    %389 = tpu.matmul %379, %388, %cst_261 {dimension_numbers = #tpu.dot_dimension_numbers<[1], [0], [0], [1], [0, 0, 1, 1], [], []>} : vector<32x32xf32>, vector<32x32xf32>, vector<32x32xf32> -> vector<32x32xf32>
    %390 = arith.addf %386, %389 : vector<32x32xf32>
    %c4_262 = arith.constant 4 : index
    %c0_263 = arith.constant 0 : index
    %c0_264 = arith.constant 0 : index
    %391 = vector.load %arg7[%c4_262, %c0_263, %c0_264] : memref<5x1x32xf32, #tpu.memory_space<vmem>>, vector<1x1x32xf32>
    %392 = vector.shape_cast %391 : vector<1x1x32xf32> to vector<1x32xf32>
    %393 = vector.broadcast %392 : vector<1x32xf32> to vector<32x32xf32>
    %394 = arith.addf %390, %393 : vector<32x32xf32>
    %c4_265 = arith.constant 4 : index
    %c0_266 = arith.constant 0 : index
    %c0_267 = arith.constant 0 : index
    %c0_268 = arith.constant 0 : index
    %395 = vector.load %arg8[%c4_265, %c0_266, %c0_267, %c0_268] : memref<5x3x32x32xf32, #tpu.memory_space<vmem>>, vector<1x1x32x32xf32>
    %396 = vector.shape_cast %395 : vector<1x1x32x32xf32> to vector<32x32xf32>
    %cst_269 = arith.constant dense<0.000000e+00> : vector<32x32xf32>
    %397 = tpu.matmul %365, %396, %cst_269 {dimension_numbers = #tpu.dot_dimension_numbers<[1], [0], [0], [1], [0, 0, 1, 1], [], []>} : vector<32x32xf32>, vector<32x32xf32>, vector<32x32xf32> -> vector<32x32xf32>
    %c4_270 = arith.constant 4 : index
    %c1_271 = arith.constant 1 : index
    %c0_272 = arith.constant 0 : index
    %c0_273 = arith.constant 0 : index
    %398 = vector.load %arg8[%c4_270, %c1_271, %c0_272, %c0_273] : memref<5x3x32x32xf32, #tpu.memory_space<vmem>>, vector<1x1x32x32xf32>
    %399 = vector.shape_cast %398 : vector<1x1x32x32xf32> to vector<32x32xf32>
    %cst_274 = arith.constant dense<0.000000e+00> : vector<32x32xf32>
    %400 = tpu.matmul %350, %399, %cst_274 {dimension_numbers = #tpu.dot_dimension_numbers<[1], [0], [0], [1], [0, 0, 1, 1], [], []>} : vector<32x32xf32>, vector<32x32xf32>, vector<32x32xf32> -> vector<32x32xf32>
    %401 = arith.addf %397, %400 : vector<32x32xf32>
    %c4_275 = arith.constant 4 : index
    %c2_276 = arith.constant 2 : index
    %c0_277 = arith.constant 0 : index
    %c0_278 = arith.constant 0 : index
    %402 = vector.load %arg8[%c4_275, %c2_276, %c0_277, %c0_278] : memref<5x3x32x32xf32, #tpu.memory_space<vmem>>, vector<1x1x32x32xf32>
    %403 = vector.shape_cast %402 : vector<1x1x32x32xf32> to vector<32x32xf32>
    %cst_279 = arith.constant dense<0.000000e+00> : vector<32x32xf32>
    %404 = tpu.matmul %379, %403, %cst_279 {dimension_numbers = #tpu.dot_dimension_numbers<[1], [0], [0], [1], [0, 0, 1, 1], [], []>} : vector<32x32xf32>, vector<32x32xf32>, vector<32x32xf32> -> vector<32x32xf32>
    %405 = arith.addf %401, %404 : vector<32x32xf32>
    %c4_280 = arith.constant 4 : index
    %c0_281 = arith.constant 0 : index
    %c0_282 = arith.constant 0 : index
    %406 = vector.load %arg9[%c4_280, %c0_281, %c0_282] : memref<5x1x32xf32, #tpu.memory_space<vmem>>, vector<1x1x32xf32>
    %407 = vector.shape_cast %406 : vector<1x1x32xf32> to vector<1x32xf32>
    %408 = vector.broadcast %407 : vector<1x32xf32> to vector<32x32xf32>
    %409 = arith.addf %405, %408 : vector<32x32xf32>
    %410 = math.tanh %394 : vector<32x32xf32>
    %411 = arith.negf %409 : vector<32x32xf32>
    %412 = math.exp %411 : vector<32x32xf32>
    %cst_283 = arith.constant 1.000000e+00 : f32
    %413 = vector.broadcast %cst_283 : f32 to vector<32x32xf32>
    %414 = arith.addf %413, %412 : vector<32x32xf32>
    %415 = arith.divf %413, %414 : vector<32x32xf32>
    %416 = arith.mulf %410, %415 : vector<32x32xf32>
    %c0_284 = arith.constant 0 : index
    %c0_285 = arith.constant 0 : index
    %417 = vector.load %arg10[%c0_284, %c0_285] : memref<32x32xf32, #tpu.memory_space<vmem>>, vector<32x32xf32>
    %cst_286 = arith.constant dense<0.000000e+00> : vector<32x32xf32>
    %418 = tpu.matmul %416, %417, %cst_286 {dimension_numbers = #tpu.dot_dimension_numbers<[1], [0], [0], [1], [0, 0, 1, 1], [], []>} : vector<32x32xf32>, vector<32x32xf32>, vector<32x32xf32> -> vector<32x32xf32>
    %c0_287 = arith.constant 0 : index
    %c0_288 = arith.constant 0 : index
    %419 = vector.load %arg11[%c0_287, %c0_288] : memref<1x32xf32, #tpu.memory_space<vmem>>, vector<1x32xf32>
    %420 = vector.broadcast %419 : vector<1x32xf32> to vector<32x32xf32>
    %421 = arith.addf %418, %420 : vector<32x32xf32>
    %422 = arith.addf %351, %421 : vector<32x32xf32>
    %c0_289 = arith.constant 0 : index
    %c0_290 = arith.constant 0 : index
    %423 = vector.load %arg12[%c0_289, %c0_290] : memref<1x32xf32, #tpu.memory_space<vmem>>, vector<1x32xf32>
    %424 = vector.broadcast %423 : vector<1x32xf32> to vector<32x32xf32>
    %425 = arith.mulf %422, %424 : vector<32x32xf32>
    %c0_291 = arith.constant 0 : index
    %c0_292 = arith.constant 0 : index
    %426 = vector.load %arg13[%c0_291, %c0_292] : memref<1x32xf32, #tpu.memory_space<vmem>>, vector<1x32xf32>
    %427 = vector.broadcast %426 : vector<1x32xf32> to vector<32x32xf32>
    %428 = arith.addf %425, %427 : vector<32x32xf32>
    %cst_293 = arith.constant 0.000000e+00 : f32
    %429 = vector.broadcast %cst_293 : f32 to vector<32x32xf32>
    %c0_294 = arith.constant 0 : index
    %c0_295 = arith.constant 0 : index
    %c0_296 = arith.constant 0 : index
    %430 = vector.load %arg14[%c0_294, %c0_295, %c0_296] : memref<4x32x32xf32, #tpu.memory_space<vmem>>, vector<1x32x32xf32>
    %431 = vector.shape_cast %430 : vector<1x32x32xf32> to vector<32x32xf32>
    %cst_297 = arith.constant dense<0.000000e+00> : vector<32x32xf32>
    %432 = tpu.matmul %25, %431, %cst_297 {dimension_numbers = #tpu.dot_dimension_numbers<[1], [0], [0], [1], [0, 0, 1, 1], [], []>} : vector<32x32xf32>, vector<32x32xf32>, vector<32x32xf32> -> vector<32x32xf32>
    %c0_298 = arith.constant 0 : index
    %c0_299 = arith.constant 0 : index
    %c0_300 = arith.constant 0 : index
    %433 = vector.load %arg15[%c0_298, %c0_299, %c0_300] : memref<4x1x32xf32, #tpu.memory_space<vmem>>, vector<1x1x32xf32>
    %434 = vector.shape_cast %433 : vector<1x1x32xf32> to vector<1x32xf32>
    %435 = vector.broadcast %434 : vector<1x32xf32> to vector<32x32xf32>
    %436 = arith.addf %432, %435 : vector<32x32xf32>
    %437 = vector.shape_cast %436 : vector<32x32xf32> to vector<1x32x32xf32>
    %c0_301 = arith.constant 0 : index
    %c0_302 = arith.constant 0 : index
    %c0_303 = arith.constant 0 : index
    %438 = vector.load %arg16[%c0_301, %c0_302, %c0_303] : memref<4x32x32xf32, #tpu.memory_space<vmem>>, vector<1x32x32xf32>
    %439 = vector.shape_cast %438 : vector<1x32x32xf32> to vector<32x32xf32>
    %cst_304 = arith.constant dense<0.000000e+00> : vector<32x32xf32>
    %440 = tpu.matmul %25, %439, %cst_304 {dimension_numbers = #tpu.dot_dimension_numbers<[1], [0], [0], [1], [0, 0, 1, 1], [], []>} : vector<32x32xf32>, vector<32x32xf32>, vector<32x32xf32> -> vector<32x32xf32>
    %c0_305 = arith.constant 0 : index
    %c0_306 = arith.constant 0 : index
    %c0_307 = arith.constant 0 : index
    %441 = vector.load %arg17[%c0_305, %c0_306, %c0_307] : memref<4x1x32xf32, #tpu.memory_space<vmem>>, vector<1x1x32xf32>
    %442 = vector.shape_cast %441 : vector<1x1x32xf32> to vector<1x32xf32>
    %443 = vector.broadcast %442 : vector<1x32xf32> to vector<32x32xf32>
    %444 = arith.addf %440, %443 : vector<32x32xf32>
    %445 = vector.shape_cast %444 : vector<32x32xf32> to vector<1x32x32xf32>
    %c0_308 = arith.constant 0 : index
    %c0_309 = arith.constant 0 : index
    %c0_310 = arith.constant 0 : index
    %446 = vector.load %arg18[%c0_308, %c0_309, %c0_310] : memref<4x32x32xf32, #tpu.memory_space<vmem>>, vector<1x32x32xf32>
    %447 = vector.shape_cast %446 : vector<1x32x32xf32> to vector<32x32xf32>
    %cst_311 = arith.constant dense<0.000000e+00> : vector<32x32xf32>
    %448 = tpu.matmul %25, %447, %cst_311 {dimension_numbers = #tpu.dot_dimension_numbers<[1], [0], [0], [1], [0, 0, 1, 1], [], []>} : vector<32x32xf32>, vector<32x32xf32>, vector<32x32xf32> -> vector<32x32xf32>
    %c0_312 = arith.constant 0 : index
    %c0_313 = arith.constant 0 : index
    %c0_314 = arith.constant 0 : index
    %449 = vector.load %arg19[%c0_312, %c0_313, %c0_314] : memref<4x1x32xf32, #tpu.memory_space<vmem>>, vector<1x1x32xf32>
    %450 = vector.shape_cast %449 : vector<1x1x32xf32> to vector<1x32xf32>
    %451 = vector.broadcast %450 : vector<1x32xf32> to vector<32x32xf32>
    %452 = arith.addf %448, %451 : vector<32x32xf32>
    %453 = vector.shape_cast %452 : vector<32x32xf32> to vector<1x32x32xf32>
    "tpu.trace_start"() <{level = 10 : i32, message = "bld,bmd->blm"}> : () -> ()
    %cst_315 = arith.constant dense<0.000000e+00> : vector<1x32x32xf32>
    %454 = tpu.matmul %437, %445, %cst_315 {dimension_numbers = #tpu.dot_dimension_numbers<[2], [2], [1], [1], [0, 0, 0, 1, 1, 1], [0], [0]>} : vector<1x32x32xf32>, vector<1x32x32xf32>, vector<1x32x32xf32> -> vector<1x32x32xf32>
    "tpu.trace_stop"() : () -> ()
    %cst_316 = arith.constant 0.176776692 : f32
    %455 = vector.broadcast %cst_316 : f32 to vector<1x32x32xf32>
    %456 = arith.mulf %454, %455 : vector<1x32x32xf32>
    %cst_317 = arith.constant dense<0xFF800000> : vector<1x32xf32>
    %457 = vector.multi_reduction <maximumf>, %456, %cst_317 [2] : vector<1x32x32xf32> to vector<1x32xf32>
    %458 = vector.shape_cast %457 : vector<1x32xf32> to vector<1x32x1xf32>
    %459 = vector.broadcast %458 : vector<1x32x1xf32> to vector<1x32x32xf32>
    %460 = arith.subf %456, %459 : vector<1x32x32xf32>
    %461 = math.exp %460 : vector<1x32x32xf32>
    %cst_318 = arith.constant dense<0.000000e+00> : vector<1x32xf32>
    %462 = vector.multi_reduction <add>, %461, %cst_318 [2] : vector<1x32x32xf32> to vector<1x32xf32>
    %463 = vector.shape_cast %462 : vector<1x32xf32> to vector<1x32x1xf32>
    %464 = tpu.reciprocal %463 {approx = true} : vector<1x32x1xf32> -> vector<1x32x1xf32>
    %465 = vector.broadcast %464 : vector<1x32x1xf32> to vector<1x32x32xf32>
    %466 = arith.mulf %461, %465 : vector<1x32x32xf32>
    "tpu.trace_start"() <{level = 10 : i32, message = "blm,bmd->bld"}> : () -> ()
    %cst_319 = arith.constant dense<0.000000e+00> : vector<1x32x32xf32>
    %467 = tpu.matmul %466, %453, %cst_319 {dimension_numbers = #tpu.dot_dimension_numbers<[2], [1], [1], [2], [0, 0, 0, 1, 1, 2], [0], [0]>} : vector<1x32x32xf32>, vector<1x32x32xf32>, vector<1x32x32xf32> -> vector<1x32x32xf32>
    "tpu.trace_stop"() : () -> ()
    %468 = vector.shape_cast %467 : vector<1x32x32xf32> to vector<32x32xf32>
    %c0_320 = arith.constant 0 : index
    %c0_321 = arith.constant 0 : index
    %c0_322 = arith.constant 0 : index
    %469 = vector.load %arg20[%c0_320, %c0_321, %c0_322] : memref<4x32x32xf32, #tpu.memory_space<vmem>>, vector<1x32x32xf32>
    %470 = vector.shape_cast %469 : vector<1x32x32xf32> to vector<32x32xf32>
    %cst_323 = arith.constant dense<0.000000e+00> : vector<32x32xf32>
    %471 = tpu.matmul %468, %470, %cst_323 {dimension_numbers = #tpu.dot_dimension_numbers<[1], [0], [0], [1], [0, 0, 1, 1], [], []>} : vector<32x32xf32>, vector<32x32xf32>, vector<32x32xf32> -> vector<32x32xf32>
    %472 = arith.addf %429, %471 : vector<32x32xf32>
    %c1_324 = arith.constant 1 : index
    %c0_325 = arith.constant 0 : index
    %c0_326 = arith.constant 0 : index
    %473 = vector.load %arg14[%c1_324, %c0_325, %c0_326] : memref<4x32x32xf32, #tpu.memory_space<vmem>>, vector<1x32x32xf32>
    %474 = vector.shape_cast %473 : vector<1x32x32xf32> to vector<32x32xf32>
    %cst_327 = arith.constant dense<0.000000e+00> : vector<32x32xf32>
    %475 = tpu.matmul %25, %474, %cst_327 {dimension_numbers = #tpu.dot_dimension_numbers<[1], [0], [0], [1], [0, 0, 1, 1], [], []>} : vector<32x32xf32>, vector<32x32xf32>, vector<32x32xf32> -> vector<32x32xf32>
    %c1_328 = arith.constant 1 : index
    %c0_329 = arith.constant 0 : index
    %c0_330 = arith.constant 0 : index
    %476 = vector.load %arg15[%c1_328, %c0_329, %c0_330] : memref<4x1x32xf32, #tpu.memory_space<vmem>>, vector<1x1x32xf32>
    %477 = vector.shape_cast %476 : vector<1x1x32xf32> to vector<1x32xf32>
    %478 = vector.broadcast %477 : vector<1x32xf32> to vector<32x32xf32>
    %479 = arith.addf %475, %478 : vector<32x32xf32>
    %480 = vector.shape_cast %479 : vector<32x32xf32> to vector<1x32x32xf32>
    %c1_331 = arith.constant 1 : index
    %c0_332 = arith.constant 0 : index
    %c0_333 = arith.constant 0 : index
    %481 = vector.load %arg16[%c1_331, %c0_332, %c0_333] : memref<4x32x32xf32, #tpu.memory_space<vmem>>, vector<1x32x32xf32>
    %482 = vector.shape_cast %481 : vector<1x32x32xf32> to vector<32x32xf32>
    %cst_334 = arith.constant dense<0.000000e+00> : vector<32x32xf32>
    %483 = tpu.matmul %25, %482, %cst_334 {dimension_numbers = #tpu.dot_dimension_numbers<[1], [0], [0], [1], [0, 0, 1, 1], [], []>} : vector<32x32xf32>, vector<32x32xf32>, vector<32x32xf32> -> vector<32x32xf32>
    %c1_335 = arith.constant 1 : index
    %c0_336 = arith.constant 0 : index
    %c0_337 = arith.constant 0 : index
    %484 = vector.load %arg17[%c1_335, %c0_336, %c0_337] : memref<4x1x32xf32, #tpu.memory_space<vmem>>, vector<1x1x32xf32>
    %485 = vector.shape_cast %484 : vector<1x1x32xf32> to vector<1x32xf32>
    %486 = vector.broadcast %485 : vector<1x32xf32> to vector<32x32xf32>
    %487 = arith.addf %483, %486 : vector<32x32xf32>
    %488 = vector.shape_cast %487 : vector<32x32xf32> to vector<1x32x32xf32>
    %c1_338 = arith.constant 1 : index
    %c0_339 = arith.constant 0 : index
    %c0_340 = arith.constant 0 : index
    %489 = vector.load %arg18[%c1_338, %c0_339, %c0_340] : memref<4x32x32xf32, #tpu.memory_space<vmem>>, vector<1x32x32xf32>
    %490 = vector.shape_cast %489 : vector<1x32x32xf32> to vector<32x32xf32>
    %cst_341 = arith.constant dense<0.000000e+00> : vector<32x32xf32>
    %491 = tpu.matmul %25, %490, %cst_341 {dimension_numbers = #tpu.dot_dimension_numbers<[1], [0], [0], [1], [0, 0, 1, 1], [], []>} : vector<32x32xf32>, vector<32x32xf32>, vector<32x32xf32> -> vector<32x32xf32>
    %c1_342 = arith.constant 1 : index
    %c0_343 = arith.constant 0 : index
    %c0_344 = arith.constant 0 : index
    %492 = vector.load %arg19[%c1_342, %c0_343, %c0_344] : memref<4x1x32xf32, #tpu.memory_space<vmem>>, vector<1x1x32xf32>
    %493 = vector.shape_cast %492 : vector<1x1x32xf32> to vector<1x32xf32>
    %494 = vector.broadcast %493 : vector<1x32xf32> to vector<32x32xf32>
    %495 = arith.addf %491, %494 : vector<32x32xf32>
    %496 = vector.shape_cast %495 : vector<32x32xf32> to vector<1x32x32xf32>
    "tpu.trace_start"() <{level = 10 : i32, message = "bld,bmd->blm"}> : () -> ()
    %cst_345 = arith.constant dense<0.000000e+00> : vector<1x32x32xf32>
    %497 = tpu.matmul %480, %488, %cst_345 {dimension_numbers = #tpu.dot_dimension_numbers<[2], [2], [1], [1], [0, 0, 0, 1, 1, 1], [0], [0]>} : vector<1x32x32xf32>, vector<1x32x32xf32>, vector<1x32x32xf32> -> vector<1x32x32xf32>
    "tpu.trace_stop"() : () -> ()
    %cst_346 = arith.constant 0.176776692 : f32
    %498 = vector.broadcast %cst_346 : f32 to vector<1x32x32xf32>
    %499 = arith.mulf %497, %498 : vector<1x32x32xf32>
    %cst_347 = arith.constant dense<0xFF800000> : vector<1x32xf32>
    %500 = vector.multi_reduction <maximumf>, %499, %cst_347 [2] : vector<1x32x32xf32> to vector<1x32xf32>
    %501 = vector.shape_cast %500 : vector<1x32xf32> to vector<1x32x1xf32>
    %502 = vector.broadcast %501 : vector<1x32x1xf32> to vector<1x32x32xf32>
    %503 = arith.subf %499, %502 : vector<1x32x32xf32>
    %504 = math.exp %503 : vector<1x32x32xf32>
    %cst_348 = arith.constant dense<0.000000e+00> : vector<1x32xf32>
    %505 = vector.multi_reduction <add>, %504, %cst_348 [2] : vector<1x32x32xf32> to vector<1x32xf32>
    %506 = vector.shape_cast %505 : vector<1x32xf32> to vector<1x32x1xf32>
    %507 = tpu.reciprocal %506 {approx = true} : vector<1x32x1xf32> -> vector<1x32x1xf32>
    %508 = vector.broadcast %507 : vector<1x32x1xf32> to vector<1x32x32xf32>
    %509 = arith.mulf %504, %508 : vector<1x32x32xf32>
    "tpu.trace_start"() <{level = 10 : i32, message = "blm,bmd->bld"}> : () -> ()
    %cst_349 = arith.constant dense<0.000000e+00> : vector<1x32x32xf32>
    %510 = tpu.matmul %509, %496, %cst_349 {dimension_numbers = #tpu.dot_dimension_numbers<[2], [1], [1], [2], [0, 0, 0, 1, 1, 2], [0], [0]>} : vector<1x32x32xf32>, vector<1x32x32xf32>, vector<1x32x32xf32> -> vector<1x32x32xf32>
    "tpu.trace_stop"() : () -> ()
    %511 = vector.shape_cast %510 : vector<1x32x32xf32> to vector<32x32xf32>
    %c1_350 = arith.constant 1 : index
    %c0_351 = arith.constant 0 : index
    %c0_352 = arith.constant 0 : index
    %512 = vector.load %arg20[%c1_350, %c0_351, %c0_352] : memref<4x32x32xf32, #tpu.memory_space<vmem>>, vector<1x32x32xf32>
    %513 = vector.shape_cast %512 : vector<1x32x32xf32> to vector<32x32xf32>
    %cst_353 = arith.constant dense<0.000000e+00> : vector<32x32xf32>
    %514 = tpu.matmul %511, %513, %cst_353 {dimension_numbers = #tpu.dot_dimension_numbers<[1], [0], [0], [1], [0, 0, 1, 1], [], []>} : vector<32x32xf32>, vector<32x32xf32>, vector<32x32xf32> -> vector<32x32xf32>
    %515 = arith.addf %472, %514 : vector<32x32xf32>
    %c2_354 = arith.constant 2 : index
    %c0_355 = arith.constant 0 : index
    %c0_356 = arith.constant 0 : index
    %516 = vector.load %arg14[%c2_354, %c0_355, %c0_356] : memref<4x32x32xf32, #tpu.memory_space<vmem>>, vector<1x32x32xf32>
    %517 = vector.shape_cast %516 : vector<1x32x32xf32> to vector<32x32xf32>
    %cst_357 = arith.constant dense<0.000000e+00> : vector<32x32xf32>
    %518 = tpu.matmul %25, %517, %cst_357 {dimension_numbers = #tpu.dot_dimension_numbers<[1], [0], [0], [1], [0, 0, 1, 1], [], []>} : vector<32x32xf32>, vector<32x32xf32>, vector<32x32xf32> -> vector<32x32xf32>
    %c2_358 = arith.constant 2 : index
    %c0_359 = arith.constant 0 : index
    %c0_360 = arith.constant 0 : index
    %519 = vector.load %arg15[%c2_358, %c0_359, %c0_360] : memref<4x1x32xf32, #tpu.memory_space<vmem>>, vector<1x1x32xf32>
    %520 = vector.shape_cast %519 : vector<1x1x32xf32> to vector<1x32xf32>
    %521 = vector.broadcast %520 : vector<1x32xf32> to vector<32x32xf32>
    %522 = arith.addf %518, %521 : vector<32x32xf32>
    %523 = vector.shape_cast %522 : vector<32x32xf32> to vector<1x32x32xf32>
    %c2_361 = arith.constant 2 : index
    %c0_362 = arith.constant 0 : index
    %c0_363 = arith.constant 0 : index
    %524 = vector.load %arg16[%c2_361, %c0_362, %c0_363] : memref<4x32x32xf32, #tpu.memory_space<vmem>>, vector<1x32x32xf32>
    %525 = vector.shape_cast %524 : vector<1x32x32xf32> to vector<32x32xf32>
    %cst_364 = arith.constant dense<0.000000e+00> : vector<32x32xf32>
    %526 = tpu.matmul %25, %525, %cst_364 {dimension_numbers = #tpu.dot_dimension_numbers<[1], [0], [0], [1], [0, 0, 1, 1], [], []>} : vector<32x32xf32>, vector<32x32xf32>, vector<32x32xf32> -> vector<32x32xf32>
    %c2_365 = arith.constant 2 : index
    %c0_366 = arith.constant 0 : index
    %c0_367 = arith.constant 0 : index
    %527 = vector.load %arg17[%c2_365, %c0_366, %c0_367] : memref<4x1x32xf32, #tpu.memory_space<vmem>>, vector<1x1x32xf32>
    %528 = vector.shape_cast %527 : vector<1x1x32xf32> to vector<1x32xf32>
    %529 = vector.broadcast %528 : vector<1x32xf32> to vector<32x32xf32>
    %530 = arith.addf %526, %529 : vector<32x32xf32>
    %531 = vector.shape_cast %530 : vector<32x32xf32> to vector<1x32x32xf32>
    %c2_368 = arith.constant 2 : index
    %c0_369 = arith.constant 0 : index
    %c0_370 = arith.constant 0 : index
    %532 = vector.load %arg18[%c2_368, %c0_369, %c0_370] : memref<4x32x32xf32, #tpu.memory_space<vmem>>, vector<1x32x32xf32>
    %533 = vector.shape_cast %532 : vector<1x32x32xf32> to vector<32x32xf32>
    %cst_371 = arith.constant dense<0.000000e+00> : vector<32x32xf32>
    %534 = tpu.matmul %25, %533, %cst_371 {dimension_numbers = #tpu.dot_dimension_numbers<[1], [0], [0], [1], [0, 0, 1, 1], [], []>} : vector<32x32xf32>, vector<32x32xf32>, vector<32x32xf32> -> vector<32x32xf32>
    %c2_372 = arith.constant 2 : index
    %c0_373 = arith.constant 0 : index
    %c0_374 = arith.constant 0 : index
    %535 = vector.load %arg19[%c2_372, %c0_373, %c0_374] : memref<4x1x32xf32, #tpu.memory_space<vmem>>, vector<1x1x32xf32>
    %536 = vector.shape_cast %535 : vector<1x1x32xf32> to vector<1x32xf32>
    %537 = vector.broadcast %536 : vector<1x32xf32> to vector<32x32xf32>
    %538 = arith.addf %534, %537 : vector<32x32xf32>
    %539 = vector.shape_cast %538 : vector<32x32xf32> to vector<1x32x32xf32>
    "tpu.trace_start"() <{level = 10 : i32, message = "bld,bmd->blm"}> : () -> ()
    %cst_375 = arith.constant dense<0.000000e+00> : vector<1x32x32xf32>
    %540 = tpu.matmul %523, %531, %cst_375 {dimension_numbers = #tpu.dot_dimension_numbers<[2], [2], [1], [1], [0, 0, 0, 1, 1, 1], [0], [0]>} : vector<1x32x32xf32>, vector<1x32x32xf32>, vector<1x32x32xf32> -> vector<1x32x32xf32>
    "tpu.trace_stop"() : () -> ()
    %cst_376 = arith.constant 0.176776692 : f32
    %541 = vector.broadcast %cst_376 : f32 to vector<1x32x32xf32>
    %542 = arith.mulf %540, %541 : vector<1x32x32xf32>
    %cst_377 = arith.constant dense<0xFF800000> : vector<1x32xf32>
    %543 = vector.multi_reduction <maximumf>, %542, %cst_377 [2] : vector<1x32x32xf32> to vector<1x32xf32>
    %544 = vector.shape_cast %543 : vector<1x32xf32> to vector<1x32x1xf32>
    %545 = vector.broadcast %544 : vector<1x32x1xf32> to vector<1x32x32xf32>
    %546 = arith.subf %542, %545 : vector<1x32x32xf32>
    %547 = math.exp %546 : vector<1x32x32xf32>
    %cst_378 = arith.constant dense<0.000000e+00> : vector<1x32xf32>
    %548 = vector.multi_reduction <add>, %547, %cst_378 [2] : vector<1x32x32xf32> to vector<1x32xf32>
    %549 = vector.shape_cast %548 : vector<1x32xf32> to vector<1x32x1xf32>
    %550 = tpu.reciprocal %549 {approx = true} : vector<1x32x1xf32> -> vector<1x32x1xf32>
    %551 = vector.broadcast %550 : vector<1x32x1xf32> to vector<1x32x32xf32>
    %552 = arith.mulf %547, %551 : vector<1x32x32xf32>
    "tpu.trace_start"() <{level = 10 : i32, message = "blm,bmd->bld"}> : () -> ()
    %cst_379 = arith.constant dense<0.000000e+00> : vector<1x32x32xf32>
    %553 = tpu.matmul %552, %539, %cst_379 {dimension_numbers = #tpu.dot_dimension_numbers<[2], [1], [1], [2], [0, 0, 0, 1, 1, 2], [0], [0]>} : vector<1x32x32xf32>, vector<1x32x32xf32>, vector<1x32x32xf32> -> vector<1x32x32xf32>
    "tpu.trace_stop"() : () -> ()
    %554 = vector.shape_cast %553 : vector<1x32x32xf32> to vector<32x32xf32>
    %c2_380 = arith.constant 2 : index
    %c0_381 = arith.constant 0 : index
    %c0_382 = arith.constant 0 : index
    %555 = vector.load %arg20[%c2_380, %c0_381, %c0_382] : memref<4x32x32xf32, #tpu.memory_space<vmem>>, vector<1x32x32xf32>
    %556 = vector.shape_cast %555 : vector<1x32x32xf32> to vector<32x32xf32>
    %cst_383 = arith.constant dense<0.000000e+00> : vector<32x32xf32>
    %557 = tpu.matmul %554, %556, %cst_383 {dimension_numbers = #tpu.dot_dimension_numbers<[1], [0], [0], [1], [0, 0, 1, 1], [], []>} : vector<32x32xf32>, vector<32x32xf32>, vector<32x32xf32> -> vector<32x32xf32>
    %558 = arith.addf %515, %557 : vector<32x32xf32>
    %c3_384 = arith.constant 3 : index
    %c0_385 = arith.constant 0 : index
    %c0_386 = arith.constant 0 : index
    %559 = vector.load %arg14[%c3_384, %c0_385, %c0_386] : memref<4x32x32xf32, #tpu.memory_space<vmem>>, vector<1x32x32xf32>
    %560 = vector.shape_cast %559 : vector<1x32x32xf32> to vector<32x32xf32>
    %cst_387 = arith.constant dense<0.000000e+00> : vector<32x32xf32>
    %561 = tpu.matmul %25, %560, %cst_387 {dimension_numbers = #tpu.dot_dimension_numbers<[1], [0], [0], [1], [0, 0, 1, 1], [], []>} : vector<32x32xf32>, vector<32x32xf32>, vector<32x32xf32> -> vector<32x32xf32>
    %c3_388 = arith.constant 3 : index
    %c0_389 = arith.constant 0 : index
    %c0_390 = arith.constant 0 : index
    %562 = vector.load %arg15[%c3_388, %c0_389, %c0_390] : memref<4x1x32xf32, #tpu.memory_space<vmem>>, vector<1x1x32xf32>
    %563 = vector.shape_cast %562 : vector<1x1x32xf32> to vector<1x32xf32>
    %564 = vector.broadcast %563 : vector<1x32xf32> to vector<32x32xf32>
    %565 = arith.addf %561, %564 : vector<32x32xf32>
    %566 = vector.shape_cast %565 : vector<32x32xf32> to vector<1x32x32xf32>
    %c3_391 = arith.constant 3 : index
    %c0_392 = arith.constant 0 : index
    %c0_393 = arith.constant 0 : index
    %567 = vector.load %arg16[%c3_391, %c0_392, %c0_393] : memref<4x32x32xf32, #tpu.memory_space<vmem>>, vector<1x32x32xf32>
    %568 = vector.shape_cast %567 : vector<1x32x32xf32> to vector<32x32xf32>
    %cst_394 = arith.constant dense<0.000000e+00> : vector<32x32xf32>
    %569 = tpu.matmul %25, %568, %cst_394 {dimension_numbers = #tpu.dot_dimension_numbers<[1], [0], [0], [1], [0, 0, 1, 1], [], []>} : vector<32x32xf32>, vector<32x32xf32>, vector<32x32xf32> -> vector<32x32xf32>
    %c3_395 = arith.constant 3 : index
    %c0_396 = arith.constant 0 : index
    %c0_397 = arith.constant 0 : index
    %570 = vector.load %arg17[%c3_395, %c0_396, %c0_397] : memref<4x1x32xf32, #tpu.memory_space<vmem>>, vector<1x1x32xf32>
    %571 = vector.shape_cast %570 : vector<1x1x32xf32> to vector<1x32xf32>
    %572 = vector.broadcast %571 : vector<1x32xf32> to vector<32x32xf32>
    %573 = arith.addf %569, %572 : vector<32x32xf32>
    %574 = vector.shape_cast %573 : vector<32x32xf32> to vector<1x32x32xf32>
    %c3_398 = arith.constant 3 : index
    %c0_399 = arith.constant 0 : index
    %c0_400 = arith.constant 0 : index
    %575 = vector.load %arg18[%c3_398, %c0_399, %c0_400] : memref<4x32x32xf32, #tpu.memory_space<vmem>>, vector<1x32x32xf32>
    %576 = vector.shape_cast %575 : vector<1x32x32xf32> to vector<32x32xf32>
    %cst_401 = arith.constant dense<0.000000e+00> : vector<32x32xf32>
    %577 = tpu.matmul %25, %576, %cst_401 {dimension_numbers = #tpu.dot_dimension_numbers<[1], [0], [0], [1], [0, 0, 1, 1], [], []>} : vector<32x32xf32>, vector<32x32xf32>, vector<32x32xf32> -> vector<32x32xf32>
    %c3_402 = arith.constant 3 : index
    %c0_403 = arith.constant 0 : index
    %c0_404 = arith.constant 0 : index
    %578 = vector.load %arg19[%c3_402, %c0_403, %c0_404] : memref<4x1x32xf32, #tpu.memory_space<vmem>>, vector<1x1x32xf32>
    %579 = vector.shape_cast %578 : vector<1x1x32xf32> to vector<1x32xf32>
    %580 = vector.broadcast %579 : vector<1x32xf32> to vector<32x32xf32>
    %581 = arith.addf %577, %580 : vector<32x32xf32>
    %582 = vector.shape_cast %581 : vector<32x32xf32> to vector<1x32x32xf32>
    "tpu.trace_start"() <{level = 10 : i32, message = "bld,bmd->blm"}> : () -> ()
    %cst_405 = arith.constant dense<0.000000e+00> : vector<1x32x32xf32>
    %583 = tpu.matmul %566, %574, %cst_405 {dimension_numbers = #tpu.dot_dimension_numbers<[2], [2], [1], [1], [0, 0, 0, 1, 1, 1], [0], [0]>} : vector<1x32x32xf32>, vector<1x32x32xf32>, vector<1x32x32xf32> -> vector<1x32x32xf32>
    "tpu.trace_stop"() : () -> ()
    %cst_406 = arith.constant 0.176776692 : f32
    %584 = vector.broadcast %cst_406 : f32 to vector<1x32x32xf32>
    %585 = arith.mulf %583, %584 : vector<1x32x32xf32>
    %cst_407 = arith.constant dense<0xFF800000> : vector<1x32xf32>
    %586 = vector.multi_reduction <maximumf>, %585, %cst_407 [2] : vector<1x32x32xf32> to vector<1x32xf32>
    %587 = vector.shape_cast %586 : vector<1x32xf32> to vector<1x32x1xf32>
    %588 = vector.broadcast %587 : vector<1x32x1xf32> to vector<1x32x32xf32>
    %589 = arith.subf %585, %588 : vector<1x32x32xf32>
    %590 = math.exp %589 : vector<1x32x32xf32>
    %cst_408 = arith.constant dense<0.000000e+00> : vector<1x32xf32>
    %591 = vector.multi_reduction <add>, %590, %cst_408 [2] : vector<1x32x32xf32> to vector<1x32xf32>
    %592 = vector.shape_cast %591 : vector<1x32xf32> to vector<1x32x1xf32>
    %593 = tpu.reciprocal %592 {approx = true} : vector<1x32x1xf32> -> vector<1x32x1xf32>
    %594 = vector.broadcast %593 : vector<1x32x1xf32> to vector<1x32x32xf32>
    %595 = arith.mulf %590, %594 : vector<1x32x32xf32>
    "tpu.trace_start"() <{level = 10 : i32, message = "blm,bmd->bld"}> : () -> ()
    %cst_409 = arith.constant dense<0.000000e+00> : vector<1x32x32xf32>
    %596 = tpu.matmul %595, %582, %cst_409 {dimension_numbers = #tpu.dot_dimension_numbers<[2], [1], [1], [2], [0, 0, 0, 1, 1, 2], [0], [0]>} : vector<1x32x32xf32>, vector<1x32x32xf32>, vector<1x32x32xf32> -> vector<1x32x32xf32>
    "tpu.trace_stop"() : () -> ()
    %597 = vector.shape_cast %596 : vector<1x32x32xf32> to vector<32x32xf32>
    %c3_410 = arith.constant 3 : index
    %c0_411 = arith.constant 0 : index
    %c0_412 = arith.constant 0 : index
    %598 = vector.load %arg20[%c3_410, %c0_411, %c0_412] : memref<4x32x32xf32, #tpu.memory_space<vmem>>, vector<1x32x32xf32>
    %599 = vector.shape_cast %598 : vector<1x32x32xf32> to vector<32x32xf32>
    %cst_413 = arith.constant dense<0.000000e+00> : vector<32x32xf32>
    %600 = tpu.matmul %597, %599, %cst_413 {dimension_numbers = #tpu.dot_dimension_numbers<[1], [0], [0], [1], [0, 0, 1, 1], [], []>} : vector<32x32xf32>, vector<32x32xf32>, vector<32x32xf32> -> vector<32x32xf32>
    %601 = arith.addf %558, %600 : vector<32x32xf32>
    %c0_414 = arith.constant 0 : index
    %c0_415 = arith.constant 0 : index
    %602 = vector.load %arg21[%c0_414, %c0_415] : memref<1x32xf32, #tpu.memory_space<vmem>>, vector<1x32xf32>
    %603 = vector.broadcast %602 : vector<1x32xf32> to vector<32x32xf32>
    %604 = arith.addf %601, %603 : vector<32x32xf32>
    %605 = arith.addf %428, %604 : vector<32x32xf32>
    %606 = vector.shape_cast %605 : vector<32x32xf32> to vector<1x32x32xf32>
    %c0_416 = arith.constant 0 : index
    %c0_417 = arith.constant 0 : index
    %c0_418 = arith.constant 0 : index
    %607 = vector.load %arg22[%c0_416, %c0_417, %c0_418] : memref<1x32x32xf32, #tpu.memory_space<vmem>>, vector<1x32x32xf32>
    tpu.vector_store %arg22[%c0_416, %c0_417, %c0_418], %606 {strides = array<i32>} : memref<1x32x32xf32, #tpu.memory_space<vmem>>, vector<1x32x32xf32>,
    return
  }
  func.func @transform_0(%arg0: i32) -> (i32, i32, i32) {
    %c0_i32 = arith.constant 0 : i32
    %c0_i32_0 = arith.constant 0 : i32
    %c0_i32_1 = arith.constant 0 : i32
    return %arg0, %c0_i32, %c0_i32_0 : i32, i32, i32
  }
  func.func @transform_1(%arg0: i32) -> (i32, i32) {
    %c0_i32 = arith.constant 0 : i32
    %c0_i32_0 = arith.constant 0 : i32
    %c0_i32_1 = arith.constant 0 : i32
    return %c0_i32, %c0_i32_0 : i32, i32
  }
  func.func @transform_2(%arg0: i32) -> (i32, i32) {
    %c0_i32 = arith.constant 0 : i32
    %c0_i32_0 = arith.constant 0 : i32
    %c0_i32_1 = arith.constant 0 : i32
    return %c0_i32, %c0_i32_0 : i32, i32
  }
  func.func @transform_3(%arg0: i32) -> (i32, i32, i32) {
    %c0_i32 = arith.constant 0 : i32
    %c0_i32_0 = arith.constant 0 : i32
    %c0_i32_1 = arith.constant 0 : i32
    %c0_i32_2 = arith.constant 0 : i32
    return %c0_i32, %c0_i32_0, %c0_i32_1 : i32, i32, i32
  }
  func.func @transform_4(%arg0: i32) -> (i32, i32) {
    %c0_i32 = arith.constant 0 : i32
    %c0_i32_0 = arith.constant 0 : i32
    %c0_i32_1 = arith.constant 0 : i32
    return %c0_i32, %c0_i32_0 : i32, i32
  }
  func.func @transform_5(%arg0: i32) -> (i32, i32, i32, i32) {
    %c0_i32 = arith.constant 0 : i32
    %c0_i32_0 = arith.constant 0 : i32
    %c0_i32_1 = arith.constant 0 : i32
    %c0_i32_2 = arith.constant 0 : i32
    %c0_i32_3 = arith.constant 0 : i32
    return %c0_i32, %c0_i32_0, %c0_i32_1, %c0_i32_2 : i32, i32, i32, i32
  }
  func.func @transform_6(%arg0: i32) -> (i32, i32, i32) {
    %c0_i32 = arith.constant 0 : i32
    %c0_i32_0 = arith.constant 0 : i32
    %c0_i32_1 = arith.constant 0 : i32
    %c0_i32_2 = arith.constant 0 : i32
    return %c0_i32, %c0_i32_0, %c0_i32_1 : i32, i32, i32
  }
  func.func @transform_7(%arg0: i32) -> (i32, i32, i32, i32) {
    %c0_i32 = arith.constant 0 : i32
    %c0_i32_0 = arith.constant 0 : i32
    %c0_i32_1 = arith.constant 0 : i32
    %c0_i32_2 = arith.constant 0 : i32
    %c0_i32_3 = arith.constant 0 : i32
    return %c0_i32, %c0_i32_0, %c0_i32_1, %c0_i32_2 : i32, i32, i32, i32
  }
  func.func @transform_8(%arg0: i32) -> (i32, i32, i32) {
    %c0_i32 = arith.constant 0 : i32
    %c0_i32_0 = arith.constant 0 : i32
    %c0_i32_1 = arith.constant 0 : i32
    %c0_i32_2 = arith.constant 0 : i32
    return %c0_i32, %c0_i32_0, %c0_i32_1 : i32, i32, i32
  }
  func.func @transform_9(%arg0: i32) -> (i32, i32) {
    %c0_i32 = arith.constant 0 : i32
    %c0_i32_0 = arith.constant 0 : i32
    %c0_i32_1 = arith.constant 0 : i32
    return %c0_i32, %c0_i32_0 : i32, i32
  }
  func.func @transform_10(%arg0: i32) -> (i32, i32) {
    %c0_i32 = arith.constant 0 : i32
    %c0_i32_0 = arith.constant 0 : i32
    %c0_i32_1 = arith.constant 0 : i32
    return %c0_i32, %c0_i32_0 : i32, i32
  }
  func.func @transform_11(%arg0: i32) -> (i32, i32) {
    %c0_i32 = arith.constant 0 : i32
    %c0_i32_0 = arith.constant 0 : i32
    %c0_i32_1 = arith.constant 0 : i32
    return %c0_i32, %c0_i32_0 : i32, i32
  }
  func.func @transform_12(%arg0: i32) -> (i32, i32) {
    %c0_i32 = arith.constant 0 : i32
    %c0_i32_0 = arith.constant 0 : i32
    %c0_i32_1 = arith.constant 0 : i32
    return %c0_i32, %c0_i32_0 : i32, i32
  }
  func.func @transform_13(%arg0: i32) -> (i32, i32, i32) {
    %c0_i32 = arith.constant 0 : i32
    %c0_i32_0 = arith.constant 0 : i32
    %c0_i32_1 = arith.constant 0 : i32
    %c0_i32_2 = arith.constant 0 : i32
    return %c0_i32, %c0_i32_0, %c0_i32_1 : i32, i32, i32
  }
  func.func @transform_14(%arg0: i32) -> (i32, i32, i32) {
    %c0_i32 = arith.constant 0 : i32
    %c0_i32_0 = arith.constant 0 : i32
    %c0_i32_1 = arith.constant 0 : i32
    %c0_i32_2 = arith.constant 0 : i32
    return %c0_i32, %c0_i32_0, %c0_i32_1 : i32, i32, i32
  }
  func.func @transform_15(%arg0: i32) -> (i32, i32, i32) {
    %c0_i32 = arith.constant 0 : i32
    %c0_i32_0 = arith.constant 0 : i32
    %c0_i32_1 = arith.constant 0 : i32
    %c0_i32_2 = arith.constant 0 : i32
    return %c0_i32, %c0_i32_0, %c0_i32_1 : i32, i32, i32
  }
  func.func @transform_16(%arg0: i32) -> (i32, i32, i32) {
    %c0_i32 = arith.constant 0 : i32
    %c0_i32_0 = arith.constant 0 : i32
    %c0_i32_1 = arith.constant 0 : i32
    %c0_i32_2 = arith.constant 0 : i32
    return %c0_i32, %c0_i32_0, %c0_i32_1 : i32, i32, i32
  }
  func.func @transform_17(%arg0: i32) -> (i32, i32, i32) {
    %c0_i32 = arith.constant 0 : i32
    %c0_i32_0 = arith.constant 0 : i32
    %c0_i32_1 = arith.constant 0 : i32
    %c0_i32_2 = arith.constant 0 : i32
    return %c0_i32, %c0_i32_0, %c0_i32_1 : i32, i32, i32
  }
  func.func @transform_18(%arg0: i32) -> (i32, i32, i32) {
    %c0_i32 = arith.constant 0 : i32
    %c0_i32_0 = arith.constant 0 : i32
    %c0_i32_1 = arith.constant 0 : i32
    %c0_i32_2 = arith.constant 0 : i32
    return %c0_i32, %c0_i32_0, %c0_i32_1 : i32, i32, i32
  }
  func.func @transform_19(%arg0: i32) -> (i32, i32, i32) {
    %c0_i32 = arith.constant 0 : i32
    %c0_i32_0 = arith.constant 0 : i32
    %c0_i32_1 = arith.constant 0 : i32
    %c0_i32_2 = arith.constant 0 : i32
    return %c0_i32, %c0_i32_0, %c0_i32_1 : i32, i32, i32
  }
  func.func @transform_20(%arg0: i32) -> (i32, i32) {
    %c0_i32 = arith.constant 0 : i32
    %c0_i32_0 = arith.constant 0 : i32
    %c0_i32_1 = arith.constant 0 : i32
    return %c0_i32, %c0_i32_0 : i32, i32
  }
  func.func @transform_21(%arg0: i32) -> (i32, i32, i32) {
    %c0_i32 = arith.constant 0 : i32
    %c0_i32_0 = arith.constant 0 : i32
    %c0_i32_1 = arith.constant 0 : i32
    return %arg0, %c0_i32, %c0_i32_0 : i32, i32, i32
  }
}

</mosaic_0001>

<llo_original>
// kernel: tpu_custom_call.1
$region0: #{tpu_custom_call.1}
  #allocation0 [shape = 'u32[]', space=smem, size = 0x4, offset = 0x4, fixed_abs, tag = 'smem constant byte address 0x4 - core index']
  #allocation1 [shape = 'u32[144,128]{1,0:T(1,128)}', space=vmem, size = 0x12000, scoped, tag = 'internal scratch']
  %s0 = inlined_call_operand.vmem [shape: f32[2,32,16], index: 0, kind: input, shape index: {}]
  %s1 = inlined_call_operand.vmem [shape: f32[16,32], index: 1, kind: input, shape index: {}]
  %s2 = inlined_call_operand.hbm [shape: f32[1,32], index: 2, kind: input, shape index: {}]
  %s3 = inlined_call_operand.hbm [shape: f32[3,16,32], index: 3, kind: input, shape index: {}]
  %s4 = inlined_call_operand.hbm [shape: f32[1,32], index: 4, kind: input, shape index: {}]
  %s5 = inlined_call_operand.hbm [shape: f32[5,3,32,32], index: 5, kind: input, shape index: {}]
  %s6 = inlined_call_operand.hbm [shape: f32[5,1,32], index: 6, kind: input, shape index: {}]
  %s7 = inlined_call_operand.hbm [shape: f32[5,3,32,32], index: 7, kind: input, shape index: {}]
  %s8 = inlined_call_operand.hbm [shape: f32[5,1,32], index: 8, kind: input, shape index: {}]
  %s9 = inlined_call_operand.hbm [shape: f32[32,32], index: 9, kind: input, shape index: {}]
  %s10 = inlined_call_operand.hbm [shape: f32[1,32], index: 10, kind: input, shape index: {}]
  %s11 = inlined_call_operand.hbm [shape: f32[1,32], index: 11, kind: input, shape index: {}]
  %s12 = inlined_call_operand.hbm [shape: f32[1,32], index: 12, kind: input, shape index: {}]
  %s13 = inlined_call_operand.vmem [shape: f32[4,32,32], index: 13, kind: input, shape index: {}]
  %s14 = inlined_call_operand.vmem [shape: f32[4,1,32], index: 14, kind: input, shape index: {}]
  %s15 = inlined_call_operand.hbm [shape: f32[4,32,32], index: 15, kind: input, shape index: {}]
  %s16 = inlined_call_operand.vmem [shape: f32[4,1,32], index: 16, kind: input, shape index: {}]
  %s17 = inlined_call_operand.hbm [shape: f32[4,32,32], index: 17, kind: input, shape index: {}]
  %s18 = inlined_call_operand.vmem [shape: f32[4,1,32], index: 18, kind: input, shape index: {}]
  %s19 = inlined_call_operand.hbm [shape: f32[4,32,32], index: 19, kind: input, shape index: {}]
  %s20 = inlined_call_operand.vmem [shape: f32[1,32], index: 20, kind: input, shape index: {}]
  %s21 = inlined_call_operand.hbm [shape: f32[2,32,32], index: 21, kind: output, shape index: {}]
  %s22 = sld [smem:[#allocation0]]
  $region173: #{tpu_custom_call.1} parent=0
    _
  %s24 = ssub.s32 1, %s22
  %s25 = scalar_select 0, %s24, %s22
  $region1: #{tpu_custom_call.1} parent=0
    #allocation2 [shape = 'u8[512]{0}', space=vmem, size = 0x400, scoped, tag = 'input window, operand 2, single buffered']
    #allocation3 [shape = 's32[2]{0}', space=sflag, size = 0x8, scoped, tag = 'scoped memory for tpu_custom_call.1']
    #allocation4 [shape = 's32[2]{0}', space=sflag, size = 0x8, scoped, tag = 'scoped memory for tpu_custom_call.1']
    #allocation5 [shape = 'u8[24576]{0}', space=vmem, size = 0x6000, scoped, tag = 'input window, operand 3, single buffered']
    #allocation6 [shape = 's32[1]{0}', space=sflag, size = 0x4, scoped, tag = 'scoped memory for tpu_custom_call.1']
    #allocation7 [shape = 'u8[512]{0}', space=vmem, size = 0x400, scoped, tag = 'input window, operand 4, single buffered']
    #allocation8 [shape = 'u8[245760]{0}', space=vmem, size = 0x3c000, scoped, tag = 'input window, operand 5, single buffered']
    #allocation9 [shape = 's32[1]{0}', space=sflag, size = 0x4, scoped, tag = 'scoped memory for tpu_custom_call.1']
    #allocation10 [shape = 'u8[2560]{0}', space=vmem, size = 0xc00, scoped, tag = 'input window, operand 6, single buffered']
    #allocation11 [shape = 'u8[245760]{0}', space=vmem, size = 0x3c000, scoped, tag = 'input window, operand 7, single buffered']
    #allocation12 [shape = 's32[1]{0}', space=sflag, size = 0x4, scoped, tag = 'scoped memory for tpu_custom_call.1']
    #allocation13 [shape = 'u8[2560]{0}', space=vmem, size = 0xc00, scoped, tag = 'input window, operand 8, single buffered']
    #allocation14 [shape = 'u8[16384]{0}', space=vmem, size = 0x4000, scoped, tag = 'input window, operand 9, single buffered']
    #allocation15 [shape = 's32[1]{0}', space=sflag, size = 0x4, scoped, tag = 'scoped memory for tpu_custom_call.1']
    #allocation16 [shape = 'u8[512]{0}', space=vmem, size = 0x400, scoped, tag = 'input window, operand 10, single buffered']
    #allocation17 [shape = 'u8[512]{0}', space=vmem, size = 0x400, scoped, tag = 'input window, operand 11, single buffered']
    #allocation18 [shape = 's32[1]{0}', space=sflag, size = 0x4, scoped, tag = 'scoped memory for tpu_custom_call.1']
    #allocation19 [shape = 'u8[512]{0}', space=vmem, size = 0x400, scoped, tag = 'input window, operand 12, single buffered']
    #allocation20 [shape = 'u8[65536]{0}', space=vmem, size = 0x10000, scoped, tag = 'input window, operand 15, single buffered']
    #allocation21 [shape = 's32[1]{0}', space=sflag, size = 0x4, scoped, tag = 'scoped memory for tpu_custom_call.1']
    #allocation22 [shape = 'u8[65536]{0}', space=vmem, size = 0x10000, scoped, tag = 'input window, operand 17, single buffered']
    #allocation23 [shape = 'u8[65536]{0}', space=vmem, size = 0x10000, scoped, tag = 'input window, operand 19, single buffered']
    #allocation24 [shape = 's32[1]{0}', space=sflag, size = 0x4, scoped, tag = 'scoped memory for tpu_custom_call.1']
    #allocation25 [shape = 'u8[32768]{0}', space=vmem, size = 0x8000, scoped, tag = 'output window, operand 0']
    %26 = vsyncpa [#allocation3], 0
    %27 = vsyncpa [#allocation6], 0
    %28 = vsyncpa [#allocation9], 0
    %29 = vsyncpa [#allocation12], 0
    %30 = vsyncpa [#allocation15], 0
    %31 = vsyncpa [#allocation18], 0
    %32 = vsyncpa [#allocation21], 0
    %33 = vsyncpa [#allocation24], 0
    %34 = vsyncpa [#allocation4], 0
    %s35 = scalar_lea.sflag [#allocation4], 1
    %36 = vsyncpa %s35, 0
    loop: start=0, step=1, limit=4
    $region2: #{tpu_custom_call.1} parent=1 // loop_pre_header
      _
    $region3: #{tpu_custom_call.1} parent=1 // loop_header
      %s38 = sphi 0, %s42
      %p39 = scmp.ge.s32.totalorder %s38, 4
      %s48 = sphi 0, %s50
      %s51 = sphi 0, %s48
      %s52 = sphi 0, %s51
      %s68 = sphi 0, %s52
      %s72 = sphi 0, %s72
      %s74 = sphi 0, %s72
      %s75 = sphi 0, %s74
      %s89 = sphi 0, %s75
      %s93 = sphi 0, %s93
      %s95 = sphi 0, %s93
      %s96 = sphi 0, %s95
      %s110 = sphi 0, %s96
      %s114 = sphi 0, %s114
      %s116 = sphi 0, %s114
      %s117 = sphi 0, %s116
      %s131 = sphi 0, %s117
      %s135 = sphi 0, %s135
      %s137 = sphi 0, %s135
      %s138 = sphi 0, %s137
      %s152 = sphi 0, %s138
      %s156 = sphi 0, %s156
      %s158 = sphi 0, %s156
      %s159 = sphi 0, %s158
      %s173 = sphi 0, %s159
      %s177 = sphi 0, %s177
      %s179 = sphi 0, %s177
      %s180 = sphi 0, %s179
      %s194 = sphi 0, %s180
      %s198 = sphi 0, %s198
      %s200 = sphi 0, %s198
      %s201 = sphi 0, %s200
      %s215 = sphi 0, %s201
      %s219 = sphi 0, %s219
      %s221 = sphi 0, %s219
      %s222 = sphi 0, %s221
      %s236 = sphi 0, %s222
      %s240 = sphi 0, %s240
      %s242 = sphi 0, %s240
      %s243 = sphi 0, %s242
      %s257 = sphi 0, %s243
      %s261 = sphi 0, %s261
      %s263 = sphi 0, %s261
      %s264 = sphi 0, %s263
      %s278 = sphi 0, %s264
      %s282 = sphi 0, %s282
      %s284 = sphi 0, %s282
      %s285 = sphi 0, %s284
      %s299 = sphi 0, %s285
      %s303 = sphi 0, %s303
      %s305 = sphi 0, %s303
      %s306 = sphi 0, %s305
      %s320 = sphi 0, %s306
      %s324 = sphi 0, %s324
      %s326 = sphi 0, %s324
      %s327 = sphi 0, %s326
      %s341 = sphi 0, %s327
      %s345 = sphi 0, %s345
      %s347 = sphi 0, %s345
      %s348 = sphi 0, %s347
      %s362 = sphi 0, %s348
      %s366 = sphi 0, %s366
      %s368 = sphi 0, %s366
      %s369 = sphi 0, %s368
      %s383 = sphi 0, %s369
      %s387 = sphi 0, %s387
      %s389 = sphi 0, %s387
      %s390 = sphi 0, %s389
      %s404 = sphi 0, %s390
      %s408 = sphi 0, %s408
      %s410 = sphi 0, %s408
      %s411 = sphi 0, %s410
      %s425 = sphi 0, %s411
      %s429 = sphi 0, %s429
      %s431 = sphi 0, %s429
      %s432 = sphi 0, %s431
      %s446 = sphi 0, %s432
      %s450 = sphi 0, %s450
      %s452 = sphi 0, %s450
      %s453 = sphi 0, %s452
      %s467 = sphi 0, %s453
      %s471 = sphi 0, %s471
      %s473 = sphi 0, %s471
      %s474 = sphi 0, %s473
      %s488 = sphi 0, %s474
      %s494 = sphi 0, %s496
      %s497 = sphi 0, %s494
      %s498 = sphi 0, %s497
      %s514 = sphi 0, %s498
    $region4: #{tpu_custom_call.1} parent=1 // loop_header_branch
      %41 = sbr.rel (%p39) target = $region8
    $region5: #{tpu_custom_call.1} parent=1 // loop_body
      %s43 = ssub.s32 %s38, 1
      %s44 = ssub.s32 %s38, 2
      %s45 = sadd.s32 %s38, 1
      %s46 = ssub.s32 %s38, %s45
      %p47 = scmp.eq.s32.totalorder %s46, 0
      %s49 = sadd.s32 %s48, 1
      %s50 = scalar_select %p47, %s48, %s49
      %p53 = pneg %p47
      %p54 = scmp.eq.s32.totalorder %s38, 1
      %p55 = por %p53, %p54
      %p56 = scmp.ne.s32.totalorder %s48, %s51
      %p57 = scmp.eq.s32.totalorder %s38, 0
      %p58 = por %p56, %p57
      %p59 = scmp.ne.s32.totalorder %s48, %s51
      %p60 = scmp.eq.s32.totalorder %s43, 1
      %p61 = por %p59, %p60
      %p62 = scmp.ne.s32.totalorder %s51, %s52
      %p63 = scmp.eq.s32.totalorder %s43, 0
      %p64 = por %p62, %p63
      %p65 = scmp.ne.s32.totalorder %s51, %s52
      %p66 = scmp.eq.s32.totalorder %s44, 1
      %p67 = por %p65, %p66
      %p69 = scmp.ne.s32.totalorder %s52, %s68
      %p70 = scmp.eq.s32.totalorder %s44, 0
      %p71 = por %p69, %p70
      %s73 = sadd.s32 %s72, 1
      %p76 = scmp.eq.s32.totalorder %s38, 1
      %p77 = scmp.ne.s32.totalorder %s72, %s74
      %p78 = scmp.eq.s32.totalorder %s38, 0
      %p79 = por %p77, %p78
      %p80 = scmp.ne.s32.totalorder %s72, %s74
      %p81 = scmp.eq.s32.totalorder %s43, 1
      %p82 = por %p80, %p81
      %p83 = scmp.ne.s32.totalorder %s74, %s75
      %p84 = scmp.eq.s32.totalorder %s43, 0
      %p85 = por %p83, %p84
      %p86 = scmp.ne.s32.totalorder %s74, %s75
      %p87 = scmp.eq.s32.totalorder %s44, 1
      %p88 = por %p86, %p87
      %p90 = scmp.ne.s32.totalorder %s75, %s89
      %p91 = scmp.eq.s32.totalorder %s44, 0
      %p92 = por %p90, %p91
      %s94 = sadd.s32 %s93, 1
      %p97 = scmp.eq.s32.totalorder %s38, 1
      %p98 = scmp.ne.s32.totalorder %s93, %s95
      %p99 = scmp.eq.s32.totalorder %s38, 0
      %p100 = por %p98, %p99
      %p101 = scmp.ne.s32.totalorder %s93, %s95
      %p102 = scmp.eq.s32.totalorder %s43, 1
      %p103 = por %p101, %p102
      %p104 = scmp.ne.s32.totalorder %s95, %s96
      %p105 = scmp.eq.s32.totalorder %s43, 0
      %p106 = por %p104, %p105
      %p107 = scmp.ne.s32.totalorder %s95, %s96
      %p108 = scmp.eq.s32.totalorder %s44, 1
      %p109 = por %p107, %p108
      %p111 = scmp.ne.s32.totalorder %s96, %s110
      %p112 = scmp.eq.s32.totalorder %s44, 0
      %p113 = por %p111, %p112
      %s115 = sadd.s32 %s114, 1
      %p118 = scmp.eq.s32.totalorder %s38, 1
      %p119 = scmp.ne.s32.totalorder %s114, %s116
      %p120 = scmp.eq.s32.totalorder %s38, 0
      %p121 = por %p119, %p120
      %p122 = scmp.ne.s32.totalorder %s114, %s116
      %p123 = scmp.eq.s32.totalorder %s43, 1
      %p124 = por %p122, %p123
      %p125 = scmp.ne.s32.totalorder %s116, %s117
      %p126 = scmp.eq.s32.totalorder %s43, 0
      %p127 = por %p125, %p126
      %p128 = scmp.ne.s32.totalorder %s116, %s117
      %p129 = scmp.eq.s32.totalorder %s44, 1
      %p130 = por %p128, %p129
      %p132 = scmp.ne.s32.totalorder %s117, %s131
      %p133 = scmp.eq.s32.totalorder %s44, 0
      %p134 = por %p132, %p133
      %s136 = sadd.s32 %s135, 1
      %p139 = scmp.eq.s32.totalorder %s38, 1
      %p140 = scmp.ne.s32.totalorder %s135, %s137
      %p141 = scmp.eq.s32.totalorder %s38, 0
      %p142 = por %p140, %p141
      %p143 = scmp.ne.s32.totalorder %s135, %s137
      %p144 = scmp.eq.s32.totalorder %s43, 1
      %p145 = por %p143, %p144
      %p146 = scmp.ne.s32.totalorder %s137, %s138
      %p147 = scmp.eq.s32.totalorder %s43, 0
      %p148 = por %p146, %p147
      %p149 = scmp.ne.s32.totalorder %s137, %s138
      %p150 = scmp.eq.s32.totalorder %s44, 1
      %p151 = por %p149, %p150
      %p153 = scmp.ne.s32.totalorder %s138, %s152
      %p154 = scmp.eq.s32.totalorder %s44, 0
      %p155 = por %p153, %p154
      %s157 = sadd.s32 %s156, 1
      %p160 = scmp.eq.s32.totalorder %s38, 1
      %p161 = scmp.ne.s32.totalorder %s156, %s158
      %p162 = scmp.eq.s32.totalorder %s38, 0
      %p163 = por %p161, %p162
      %p164 = scmp.ne.s32.totalorder %s156, %s158
      %p165 = scmp.eq.s32.totalorder %s43, 1
      %p166 = por %p164, %p165
      %p167 = scmp.ne.s32.totalorder %s158, %s159
      %p168 = scmp.eq.s32.totalorder %s43, 0
      %p169 = por %p167, %p168
      %p170 = scmp.ne.s32.totalorder %s158, %s159
      %p171 = scmp.eq.s32.totalorder %s44, 1
      %p172 = por %p170, %p171
      %p174 = scmp.ne.s32.totalorder %s159, %s173
      %p175 = scmp.eq.s32.totalorder %s44, 0
      %p176 = por %p174, %p175
      %s178 = sadd.s32 %s177, 1
      %p181 = scmp.eq.s32.totalorder %s38, 1
      %p182 = scmp.ne.s32.totalorder %s177, %s179
      %p183 = scmp.eq.s32.totalorder %s38, 0
      %p184 = por %p182, %p183
      %p185 = scmp.ne.s32.totalorder %s177, %s179
      %p186 = scmp.eq.s32.totalorder %s43, 1
      %p187 = por %p185, %p186
      %p188 = scmp.ne.s32.totalorder %s179, %s180
      %p189 = scmp.eq.s32.totalorder %s43, 0
      %p190 = por %p188, %p189
      %p191 = scmp.ne.s32.totalorder %s179, %s180
      %p192 = scmp.eq.s32.totalorder %s44, 1
      %p193 = por %p191, %p192
      %p195 = scmp.ne.s32.totalorder %s180, %s194
      %p196 = scmp.eq.s32.totalorder %s44, 0
      %p197 = por %p195, %p196
      %s199 = sadd.s32 %s198, 1
      %p202 = scmp.eq.s32.totalorder %s38, 1
      %p203 = scmp.ne.s32.totalorder %s198, %s200
      %p204 = scmp.eq.s32.totalorder %s38, 0
      %p205 = por %p203, %p204
      %p206 = scmp.ne.s32.totalorder %s198, %s200
      %p207 = scmp.eq.s32.totalorder %s43, 1
      %p208 = por %p206, %p207
      %p209 = scmp.ne.s32.totalorder %s200, %s201
      %p210 = scmp.eq.s32.totalorder %s43, 0
      %p211 = por %p209, %p210
      %p212 = scmp.ne.s32.totalorder %s200, %s201
      %p213 = scmp.eq.s32.totalorder %s44, 1
      %p214 = por %p212, %p213
      %p216 = scmp.ne.s32.totalorder %s201, %s215
      %p217 = scmp.eq.s32.totalorder %s44, 0
      %p218 = por %p216, %p217
      %s220 = sadd.s32 %s219, 1
      %p223 = scmp.eq.s32.totalorder %s38, 1
      %p224 = scmp.ne.s32.totalorder %s219, %s221
      %p225 = scmp.eq.s32.totalorder %s38, 0
      %p226 = por %p224, %p225
      %p227 = scmp.ne.s32.totalorder %s219, %s221
      %p228 = scmp.eq.s32.totalorder %s43, 1
      %p229 = por %p227, %p228
      %p230 = scmp.ne.s32.totalorder %s221, %s222
      %p231 = scmp.eq.s32.totalorder %s43, 0
      %p232 = por %p230, %p231
      %p233 = scmp.ne.s32.totalorder %s221, %s222
      %p234 = scmp.eq.s32.totalorder %s44, 1
      %p235 = por %p233, %p234
      %p237 = scmp.ne.s32.totalorder %s222, %s236
      %p238 = scmp.eq.s32.totalorder %s44, 0
      %p239 = por %p237, %p238
      %s241 = sadd.s32 %s240, 1
      %p244 = scmp.eq.s32.totalorder %s38, 1
      %p245 = scmp.ne.s32.totalorder %s240, %s242
      %p246 = scmp.eq.s32.totalorder %s38, 0
      %p247 = por %p245, %p246
      %p248 = scmp.ne.s32.totalorder %s240, %s242
      %p249 = scmp.eq.s32.totalorder %s43, 1
      %p250 = por %p248, %p249
      %p251 = scmp.ne.s32.totalorder %s242, %s243
      %p252 = scmp.eq.s32.totalorder %s43, 0
      %p253 = por %p251, %p252
      %p254 = scmp.ne.s32.totalorder %s242, %s243
      %p255 = scmp.eq.s32.totalorder %s44, 1
      %p256 = por %p254, %p255
      %p258 = scmp.ne.s32.totalorder %s243, %s257
      %p259 = scmp.eq.s32.totalorder %s44, 0
      %p260 = por %p258, %p259
      %s262 = sadd.s32 %s261, 1
      %p265 = scmp.eq.s32.totalorder %s38, 1
      %p266 = scmp.ne.s32.totalorder %s261, %s263
      %p267 = scmp.eq.s32.totalorder %s38, 0
      %p268 = por %p266, %p267
      %p269 = scmp.ne.s32.totalorder %s261, %s263
      %p270 = scmp.eq.s32.totalorder %s43, 1
      %p271 = por %p269, %p270
      %p272 = scmp.ne.s32.totalorder %s263, %s264
      %p273 = scmp.eq.s32.totalorder %s43, 0
      %p274 = por %p272, %p273
      %p275 = scmp.ne.s32.totalorder %s263, %s264
      %p276 = scmp.eq.s32.totalorder %s44, 1
      %p277 = por %p275, %p276
      %p279 = scmp.ne.s32.totalorder %s264, %s278
      %p280 = scmp.eq.s32.totalorder %s44, 0
      %p281 = por %p279, %p280
      %s283 = sadd.s32 %s282, 1
      %p286 = scmp.eq.s32.totalorder %s38, 1
      %p287 = scmp.ne.s32.totalorder %s282, %s284
      %p288 = scmp.eq.s32.totalorder %s38, 0
      %p289 = por %p287, %p288
      %p290 = scmp.ne.s32.totalorder %s282, %s284
      %p291 = scmp.eq.s32.totalorder %s43, 1
      %p292 = por %p290, %p291
      %p293 = scmp.ne.s32.totalorder %s284, %s285
      %p294 = scmp.eq.s32.totalorder %s43, 0
      %p295 = por %p293, %p294
      %p296 = scmp.ne.s32.totalorder %s284, %s285
      %p297 = scmp.eq.s32.totalorder %s44, 1
      %p298 = por %p296, %p297
      %p300 = scmp.ne.s32.totalorder %s285, %s299
      %p301 = scmp.eq.s32.totalorder %s44, 0
      %p302 = por %p300, %p301
      %s304 = sadd.s32 %s303, 1
      %p307 = scmp.eq.s32.totalorder %s38, 1
      %p308 = scmp.ne.s32.totalorder %s303, %s305
      %p309 = scmp.eq.s32.totalorder %s38, 0
      %p310 = por %p308, %p309
      %p311 = scmp.ne.s32.totalorder %s303, %s305
      %p312 = scmp.eq.s32.totalorder %s43, 1
      %p313 = por %p311, %p312
      %p314 = scmp.ne.s32.totalorder %s305, %s306
      %p315 = scmp.eq.s32.totalorder %s43, 0
      %p316 = por %p314, %p315
      %p317 = scmp.ne.s32.totalorder %s305, %s306
      %p318 = scmp.eq.s32.totalorder %s44, 1
      %p319 = por %p317, %p318
      %p321 = scmp.ne.s32.totalorder %s306, %s320
      %p322 = scmp.eq.s32.totalorder %s44, 0
      %p323 = por %p321, %p322
      %s325 = sadd.s32 %s324, 1
      %p328 = scmp.eq.s32.totalorder %s38, 1
      %p329 = scmp.ne.s32.totalorder %s324, %s326
      %p330 = scmp.eq.s32.totalorder %s38, 0
      %p331 = por %p329, %p330
      %p332 = scmp.ne.s32.totalorder %s324, %s326
      %p333 = scmp.eq.s32.totalorder %s43, 1
      %p334 = por %p332, %p333
      %p335 = scmp.ne.s32.totalorder %s326, %s327
      %p336 = scmp.eq.s32.totalorder %s43, 0
      %p337 = por %p335, %p336
      %p338 = scmp.ne.s32.totalorder %s326, %s327
      %p339 = scmp.eq.s32.totalorder %s44, 1
      %p340 = por %p338, %p339
      %p342 = scmp.ne.s32.totalorder %s327, %s341
      %p343 = scmp.eq.s32.totalorder %s44, 0
      %p344 = por %p342, %p343
      %s346 = sadd.s32 %s345, 1
      %p349 = scmp.eq.s32.totalorder %s38, 1
      %p350 = scmp.ne.s32.totalorder %s345, %s347
      %p351 = scmp.eq.s32.totalorder %s38, 0
      %p352 = por %p350, %p351
      %p353 = scmp.ne.s32.totalorder %s345, %s347
      %p354 = scmp.eq.s32.totalorder %s43, 1
      %p355 = por %p353, %p354
      %p356 = scmp.ne.s32.totalorder %s347, %s348
      %p357 = scmp.eq.s32.totalorder %s43, 0
      %p358 = por %p356, %p357
      %p359 = scmp.ne.s32.totalorder %s347, %s348
      %p360 = scmp.eq.s32.totalorder %s44, 1
      %p361 = por %p359, %p360
      %p363 = scmp.ne.s32.totalorder %s348, %s362
      %p364 = scmp.eq.s32.totalorder %s44, 0
      %p365 = por %p363, %p364
      %s367 = sadd.s32 %s366, 1
      %p370 = scmp.eq.s32.totalorder %s38, 1
      %p371 = scmp.ne.s32.totalorder %s366, %s368
      %p372 = scmp.eq.s32.totalorder %s38, 0
      %p373 = por %p371, %p372
      %p374 = scmp.ne.s32.totalorder %s366, %s368
      %p375 = scmp.eq.s32.totalorder %s43, 1
      %p376 = por %p374, %p375
      %p377 = scmp.ne.s32.totalorder %s368, %s369
      %p378 = scmp.eq.s32.totalorder %s43, 0
      %p379 = por %p377, %p378
      %p380 = scmp.ne.s32.totalorder %s368, %s369
      %p381 = scmp.eq.s32.totalorder %s44, 1
      %p382 = por %p380, %p381
      %p384 = scmp.ne.s32.totalorder %s369, %s383
      %p385 = scmp.eq.s32.totalorder %s44, 0
      %p386 = por %p384, %p385
      %s388 = sadd.s32 %s387, 1
      %p391 = scmp.eq.s32.totalorder %s38, 1
      %p392 = scmp.ne.s32.totalorder %s387, %s389
      %p393 = scmp.eq.s32.totalorder %s38, 0
      %p394 = por %p392, %p393
      %p395 = scmp.ne.s32.totalorder %s387, %s389
      %p396 = scmp.eq.s32.totalorder %s43, 1
      %p397 = por %p395, %p396
      %p398 = scmp.ne.s32.totalorder %s389, %s390
      %p399 = scmp.eq.s32.totalorder %s43, 0
      %p400 = por %p398, %p399
      %p401 = scmp.ne.s32.totalorder %s389, %s390
      %p402 = scmp.eq.s32.totalorder %s44, 1
      %p403 = por %p401, %p402
      %p405 = scmp.ne.s32.totalorder %s390, %s404
      %p406 = scmp.eq.s32.totalorder %s44, 0
      %p407 = por %p405, %p406
      %s409 = sadd.s32 %s408, 1
      %p412 = scmp.eq.s32.totalorder %s38, 1
      %p413 = scmp.ne.s32.totalorder %s408, %s410
      %p414 = scmp.eq.s32.totalorder %s38, 0
      %p415 = por %p413, %p414
      %p416 = scmp.ne.s32.totalorder %s408, %s410
      %p417 = scmp.eq.s32.totalorder %s43, 1
      %p418 = por %p416, %p417
      %p419 = scmp.ne.s32.totalorder %s410, %s411
      %p420 = scmp.eq.s32.totalorder %s43, 0
      %p421 = por %p419, %p420
      %p422 = scmp.ne.s32.totalorder %s410, %s411
      %p423 = scmp.eq.s32.totalorder %s44, 1
      %p424 = por %p422, %p423
      %p426 = scmp.ne.s32.totalorder %s411, %s425
      %p427 = scmp.eq.s32.totalorder %s44, 0
      %p428 = por %p426, %p427
      %s430 = sadd.s32 %s429, 1
      %p433 = scmp.eq.s32.totalorder %s38, 1
      %p434 = scmp.ne.s32.totalorder %s429, %s431
      %p435 = scmp.eq.s32.totalorder %s38, 0
      %p436 = por %p434, %p435
      %p437 = scmp.ne.s32.totalorder %s429, %s431
      %p438 = scmp.eq.s32.totalorder %s43, 1
      %p439 = por %p437, %p438
      %p440 = scmp.ne.s32.totalorder %s431, %s432
      %p441 = scmp.eq.s32.totalorder %s43, 0
      %p442 = por %p440, %p441
      %p443 = scmp.ne.s32.totalorder %s431, %s432
      %p444 = scmp.eq.s32.totalorder %s44, 1
      %p445 = por %p443, %p444
      %p447 = scmp.ne.s32.totalorder %s432, %s446
      %p448 = scmp.eq.s32.totalorder %s44, 0
      %p449 = por %p447, %p448
      %s451 = sadd.s32 %s450, 1
      %p454 = scmp.eq.s32.totalorder %s38, 1
      %p455 = scmp.ne.s32.totalorder %s450, %s452
      %p456 = scmp.eq.s32.totalorder %s38, 0
      %p457 = por %p455, %p456
      %p458 = scmp.ne.s32.totalorder %s450, %s452
      %p459 = scmp.eq.s32.totalorder %s43, 1
      %p460 = por %p458, %p459
      %p461 = scmp.ne.s32.totalorder %s452, %s453
      %p462 = scmp.eq.s32.totalorder %s43, 0
      %p463 = por %p461, %p462
      %p464 = scmp.ne.s32.totalorder %s452, %s453
      %p465 = scmp.eq.s32.totalorder %s44, 1
      %p466 = por %p464, %p465
      %p468 = scmp.ne.s32.totalorder %s453, %s467
      %p469 = scmp.eq.s32.totalorder %s44, 0
      %p470 = por %p468, %p469
      %s472 = sadd.s32 %s471, 1
      %p475 = scmp.eq.s32.totalorder %s38, 1
      %p476 = scmp.ne.s32.totalorder %s471, %s473
      %p477 = scmp.eq.s32.totalorder %s38, 0
      %p478 = por %p476, %p477
      %p479 = scmp.ne.s32.totalorder %s471, %s473
      %p480 = scmp.eq.s32.totalorder %s43, 1
      %p481 = por %p479, %p480
      %p482 = scmp.ne.s32.totalorder %s473, %s474
      %p483 = scmp.eq.s32.totalorder %s43, 0
      %p484 = por %p482, %p483
      %p485 = scmp.ne.s32.totalorder %s473, %s474
      %p486 = scmp.eq.s32.totalorder %s44, 1
      %p487 = por %p485, %p486
      %p489 = scmp.ne.s32.totalorder %s474, %s488
      %p490 = scmp.eq.s32.totalorder %s44, 0
      %p491 = por %p489, %p490
      %s492 = ssub.s32 %s38, %s45
      %p493 = scmp.eq.s32.totalorder %s492, 0
      %s495 = sadd.s32 %s494, 1
      %s496 = scalar_select %p493, %s494, %s495
      %p499 = pneg %p493
      %p500 = scmp.eq.s32.totalorder %s38, 1
      %p501 = por %p499, %p500
      %p502 = scmp.ne.s32.totalorder %s494, %s497
      %p503 = scmp.eq.s32.totalorder %s38, 0
      %p504 = por %p502, %p503
      %p505 = scmp.ne.s32.totalorder %s494, %s497
      %p506 = scmp.eq.s32.totalorder %s43, 1
      %p507 = por %p505, %p506
      %p508 = scmp.ne.s32.totalorder %s497, %s498
      %p509 = scmp.eq.s32.totalorder %s43, 0
      %p510 = por %p508, %p509
      %p511 = scmp.ne.s32.totalorder %s497, %s498
      %p512 = scmp.eq.s32.totalorder %s44, 1
      %p513 = por %p511, %p512
      %p515 = scmp.ne.s32.totalorder %s498, %s514
      %p516 = scmp.eq.s32.totalorder %s44, 0
      %p517 = por %p515, %p516
      %p518 = scmp.le.s32.totalorder 1, %s38
      %p519 = scmp.lt.s32.totalorder %s38, 3
      %p520 = pnand %p518, %p519
      %p521 = pneg %p520
      // Predicated region
      $region9: #{tpu_custom_call.1} parent=5 // pred_check
        _
      $region10: #{tpu_custom_call.1} parent=5 // pred_check_branch
        %523 = sbr.rel (%p520) target = $region12
      $region11: #{tpu_custom_call.1} parent=5 // pred_region
        %s524 = ssub.s32 %s38, 1
        // Predicated region
        $region13: #{tpu_custom_call.1} parent=11 // pred_check
          %p525 = pneg %p85
        $region14: #{tpu_custom_call.1} parent=11 // pred_check_branch
          %527 = sbr.rel (%p525) target = $region16
        $region15: #{tpu_custom_call.1} parent=11 // pred_region
          _
        $region16: #{tpu_custom_call.1} parent=11 // pred_fallthru
          _
        // Predicated region
        $region17: #{tpu_custom_call.1} parent=11 // pred_check
          %p528 = pneg %p106
        $region18: #{tpu_custom_call.1} parent=11 // pred_check_branch
          %530 = sbr.rel (%p528) target = $region20
        $region19: #{tpu_custom_call.1} parent=11 // pred_region
          %s532 = ssub.s32 16, 16
          %533 = vsyncadd [#allocation3], %s532
          %s535 = sshll.u32 [#allocation2], 4
          %s536 = int_to_ptr.vmem [resolvable:$true] %s535
          %538 = dma.hbm_to_vmem [thread:$0]  %s2, 16, %s536, [#allocation3]
        $region20: #{tpu_custom_call.1} parent=11 // pred_fallthru
          _
        // Predicated region
        $region21: #{tpu_custom_call.1} parent=11 // pred_check
          %p539 = pneg %p127
        $region22: #{tpu_custom_call.1} parent=11 // pred_check_branch
          %541 = sbr.rel (%p539) target = $region24
        $region23: #{tpu_custom_call.1} parent=11 // pred_region
          %s543 = ssub.s32 768, 768
          %544 = vsyncadd [#allocation6], %s543
          %s545 = sshll.u32 [#allocation5], 4
          %s546 = int_to_ptr.vmem [resolvable:$true] %s545
          %551 = dma.hbm_to_vmem [thread:$0]  %s3, 768, %s546, [#allocation6], 128, 128, 8
        $region24: #{tpu_custom_call.1} parent=11 // pred_fallthru
          _
        // Predicated region
        $region25: #{tpu_custom_call.1} parent=11 // pred_check
          %p552 = pneg %p148
        $region26: #{tpu_custom_call.1} parent=11 // pred_check_branch
          %554 = sbr.rel (%p552) target = $region28
        $region27: #{tpu_custom_call.1} parent=11 // pred_region
          %s556 = ssub.s32 16, 16
          %557 = vsyncadd [#allocation6], %s556
          %s559 = sshll.u32 [#allocation7], 4
          %s560 = int_to_ptr.vmem [resolvable:$true] %s559
          %562 = dma.hbm_to_vmem [thread:$0]  %s4, 16, %s560, [#allocation6]
        $region28: #{tpu_custom_call.1} parent=11 // pred_fallthru
          _
        // Predicated region
        $region29: #{tpu_custom_call.1} parent=11 // pred_check
          %p563 = pneg %p169
        $region30: #{tpu_custom_call.1} parent=11 // pred_check_branch
          %565 = sbr.rel (%p563) target = $region32
        $region31: #{tpu_custom_call.1} parent=11 // pred_region
          %s567 = ssub.s32 7680, 7680
          %568 = vsyncadd [#allocation9], %s567
          %s569 = sshll.u32 [#allocation8], 4
          %s570 = int_to_ptr.vmem [resolvable:$true] %s569
          %575 = dma.hbm_to_vmem [thread:$0]  %s5, 7680, %s570, [#allocation9], 128, 128, 8
        $region32: #{tpu_custom_call.1} parent=11 // pred_fallthru
          _
        // Predicated region
        $region33: #{tpu_custom_call.1} parent=11 // pred_check
          %p576 = pneg %p190
        $region34: #{tpu_custom_call.1} parent=11 // pred_check_branch
          %578 = sbr.rel (%p576) target = $region36
        $region35: #{tpu_custom_call.1} parent=11 // pred_region
          %s580 = ssub.s32 80, 80
          %581 = vsyncadd [#allocation9], %s580
          %s582 = sshll.u32 [#allocation10], 4
          %s583 = int_to_ptr.vmem [resolvable:$true] %s582
          %588 = dma.hbm_to_vmem [thread:$0]  %s6, 80, %s583, [#allocation9], 16, 16, 1
        $region36: #{tpu_custom_call.1} parent=11 // pred_fallthru
          _
        // Predicated region
        $region37: #{tpu_custom_call.1} parent=11 // pred_check
          %p589 = pneg %p211
        $region38: #{tpu_custom_call.1} parent=11 // pred_check_branch
          %591 = sbr.rel (%p589) target = $region40
        $region39: #{tpu_custom_call.1} parent=11 // pred_region
          %s593 = ssub.s32 7680, 7680
          %594 = vsyncadd [#allocation12], %s593
          %s595 = sshll.u32 [#allocation11], 4
          %s596 = int_to_ptr.vmem [resolvable:$true] %s595
          %601 = dma.hbm_to_vmem [thread:$0]  %s7, 7680, %s596, [#allocation12], 128, 128, 8
        $region40: #{tpu_custom_call.1} parent=11 // pred_fallthru
          _
        // Predicated region
        $region41: #{tpu_custom_call.1} parent=11 // pred_check
          %p602 = pneg %p232
        $region42: #{tpu_custom_call.1} parent=11 // pred_check_branch
          %604 = sbr.rel (%p602) target = $region44
        $region43: #{tpu_custom_call.1} parent=11 // pred_region
          %s606 = ssub.s32 80, 80
          %607 = vsyncadd [#allocation12], %s606
          %s608 = sshll.u32 [#allocation13], 4
          %s609 = int_to_ptr.vmem [resolvable:$true] %s608
          %614 = dma.hbm_to_vmem [thread:$0]  %s8, 80, %s609, [#allocation12], 16, 16, 1
        $region44: #{tpu_custom_call.1} parent=11 // pred_fallthru
          _
        // Predicated region
        $region45: #{tpu_custom_call.1} parent=11 // pred_check
          %p615 = pneg %p253
        $region46: #{tpu_custom_call.1} parent=11 // pred_check_branch
          %617 = sbr.rel (%p615) target = $region48
        $region47: #{tpu_custom_call.1} parent=11 // pred_region
          %s619 = ssub.s32 512, 512
          %620 = vsyncadd [#allocation15], %s619
          %s621 = sshll.u32 [#allocation14], 4
          %s622 = int_to_ptr.vmem [resolvable:$true] %s621
          %627 = dma.hbm_to_vmem [thread:$0]  %s9, 512, %s622, [#allocation15], 128, 128, 8
        $region48: #{tpu_custom_call.1} parent=11 // pred_fallthru
          _
        // Predicated region
        $region49: #{tpu_custom_call.1} parent=11 // pred_check
          %p628 = pneg %p274
        $region50: #{tpu_custom_call.1} parent=11 // pred_check_branch
          %630 = sbr.rel (%p628) target = $region52
        $region51: #{tpu_custom_call.1} parent=11 // pred_region
          %s632 = ssub.s32 16, 16
          %633 = vsyncadd [#allocation15], %s632
          %s635 = sshll.u32 [#allocation16], 4
          %s636 = int_to_ptr.vmem [resolvable:$true] %s635
          %638 = dma.hbm_to_vmem [thread:$0]  %s10, 16, %s636, [#allocation15]
        $region52: #{tpu_custom_call.1} parent=11 // pred_fallthru
          _
        // Predicated region
        $region53: #{tpu_custom_call.1} parent=11 // pred_check
          %p639 = pneg %p295
        $region54: #{tpu_custom_call.1} parent=11 // pred_check_branch
          %641 = sbr.rel (%p639) target = $region56
        $region55: #{tpu_custom_call.1} parent=11 // pred_region
          %s643 = ssub.s32 16, 16
          %644 = vsyncadd [#allocation18], %s643
          %s646 = sshll.u32 [#allocation17], 4
          %s647 = int_to_ptr.vmem [resolvable:$true] %s646
          %649 = dma.hbm_to_vmem [thread:$0]  %s11, 16, %s647, [#allocation18]
        $region56: #{tpu_custom_call.1} parent=11 // pred_fallthru
          _
        // Predicated region
        $region57: #{tpu_custom_call.1} parent=11 // pred_check
          %p650 = pneg %p316
        $region58: #{tpu_custom_call.1} parent=11 // pred_check_branch
          %652 = sbr.rel (%p650) target = $region60
        $region59: #{tpu_custom_call.1} parent=11 // pred_region
          %s654 = ssub.s32 16, 16
          %655 = vsyncadd [#allocation18], %s654
          %s657 = sshll.u32 [#allocation19], 4
          %s658 = int_to_ptr.vmem [resolvable:$true] %s657
          %660 = dma.hbm_to_vmem [thread:$0]  %s12, 16, %s658, [#allocation18]
        $region60: #{tpu_custom_call.1} parent=11 // pred_fallthru
          _
        // Predicated region
        $region61: #{tpu_custom_call.1} parent=11 // pred_check
          %p661 = pneg %p337
        $region62: #{tpu_custom_call.1} parent=11 // pred_check_branch
          %663 = sbr.rel (%p661) target = $region64
        $region63: #{tpu_custom_call.1} parent=11 // pred_region
          _
        $region64: #{tpu_custom_call.1} parent=11 // pred_fallthru
          _
        // Predicated region
        $region65: #{tpu_custom_call.1} parent=11 // pred_check
          %p664 = pneg %p358
        $region66: #{tpu_custom_call.1} parent=11 // pred_check_branch
          %666 = sbr.rel (%p664) target = $region68
        $region67: #{tpu_custom_call.1} parent=11 // pred_region
          _
        $region68: #{tpu_custom_call.1} parent=11 // pred_fallthru
          _
        // Predicated region
        $region69: #{tpu_custom_call.1} parent=11 // pred_check
          %p667 = pneg %p379
        $region70: #{tpu_custom_call.1} parent=11 // pred_check_branch
          %669 = sbr.rel (%p667) target = $region72
        $region71: #{tpu_custom_call.1} parent=11 // pred_region
          %s671 = ssub.s32 2048, 2048
          %672 = vsyncadd [#allocation21], %s671
          %s673 = sshll.u32 [#allocation20], 4
          %s674 = int_to_ptr.vmem [resolvable:$true] %s673
          %679 = dma.hbm_to_vmem [thread:$0]  %s15, 2048, %s674, [#allocation21], 128, 128, 8
        $region72: #{tpu_custom_call.1} parent=11 // pred_fallthru
          _
        // Predicated region
        $region73: #{tpu_custom_call.1} parent=11 // pred_check
          %p680 = pneg %p400
        $region74: #{tpu_custom_call.1} parent=11 // pred_check_branch
          %682 = sbr.rel (%p680) target = $region76
        $region75: #{tpu_custom_call.1} parent=11 // pred_region
          _
        $region76: #{tpu_custom_call.1} parent=11 // pred_fallthru
          _
        // Predicated region
        $region77: #{tpu_custom_call.1} parent=11 // pred_check
          %p683 = pneg %p421
        $region78: #{tpu_custom_call.1} parent=11 // pred_check_branch
          %685 = sbr.rel (%p683) target = $region80
        $region79: #{tpu_custom_call.1} parent=11 // pred_region
          %s687 = ssub.s32 2048, 2048
          %688 = vsyncadd [#allocation21], %s687
          %s689 = sshll.u32 [#allocation22], 4
          %s690 = int_to_ptr.vmem [resolvable:$true] %s689
          %695 = dma.hbm_to_vmem [thread:$0]  %s17, 2048, %s690, [#allocation21], 128, 128, 8
        $region80: #{tpu_custom_call.1} parent=11 // pred_fallthru
          _
        // Predicated region
        $region81: #{tpu_custom_call.1} parent=11 // pred_check
          %p696 = pneg %p442
        $region82: #{tpu_custom_call.1} parent=11 // pred_check_branch
          %698 = sbr.rel (%p696) target = $region84
        $region83: #{tpu_custom_call.1} parent=11 // pred_region
          _
        $region84: #{tpu_custom_call.1} parent=11 // pred_fallthru
          _
        // Predicated region
        $region85: #{tpu_custom_call.1} parent=11 // pred_check
          %p699 = pneg %p463
        $region86: #{tpu_custom_call.1} parent=11 // pred_check_branch
          %701 = sbr.rel (%p699) target = $region88
        $region87: #{tpu_custom_call.1} parent=11 // pred_region
          %s703 = ssub.s32 2048, 2048
          %704 = vsyncadd [#allocation24], %s703
          %s705 = sshll.u32 [#allocation23], 4
          %s706 = int_to_ptr.vmem [resolvable:$true] %s705
          %711 = dma.hbm_to_vmem [thread:$0]  %s19, 2048, %s706, [#allocation24], 128, 128, 8
        $region88: #{tpu_custom_call.1} parent=11 // pred_fallthru
          _
        // Predicated region
        $region89: #{tpu_custom_call.1} parent=11 // pred_check
          %p712 = pneg %p484
        $region90: #{tpu_custom_call.1} parent=11 // pred_check_branch
          %714 = sbr.rel (%p712) target = $region92
        $region91: #{tpu_custom_call.1} parent=11 // pred_region
          _
        $region92: #{tpu_custom_call.1} parent=11 // pred_fallthru
          _
      $region12: #{tpu_custom_call.1} parent=5 // pred_fallthru
        _
      %p715 = scmp.lt.s32.totalorder %s38, 2
      // Predicated region
      $region93: #{tpu_custom_call.1} parent=5 // pred_check
        %p716 = pneg %p715
      $region94: #{tpu_custom_call.1} parent=5 // pred_check_branch
        %718 = sbr.rel (%p716) target = $region96
      $region95: #{tpu_custom_call.1} parent=5 // pred_region
        // Predicated region
        $region97: #{tpu_custom_call.1} parent=95 // pred_check
          %p719 = pneg %p58
        $region98: #{tpu_custom_call.1} parent=95 // pred_check_branch
          %721 = sbr.rel (%p719) target = $region100
        $region99: #{tpu_custom_call.1} parent=95 // pred_region
          %p722 = scmp.lt.s32.totalorder %s38, 1
          %s723 = scalar_select %p722, %s38, 1
          %s724 = smul.addr %s723, 4
          %s725 = smul.addr %s724, 8
          %s726 = scalar_lea.vmem %s0, %s725
        $region100: #{tpu_custom_call.1} parent=95 // pred_fallthru
          _
      $region96: #{tpu_custom_call.1} parent=5 // pred_fallthru
        _
      %p727 = scmp.le.s32.totalorder 1, %s38
      %p728 = scmp.lt.s32.totalorder %s38, 3
      %p729 = pnand %p727, %p728
      %p730 = pneg %p729
      // Predicated region
      $region101: #{tpu_custom_call.1} parent=5 // pred_check
        _
      $region102: #{tpu_custom_call.1} parent=5 // pred_check_branch
        %732 = sbr.rel (%p729) target = $region104
      $region103: #{tpu_custom_call.1} parent=5 // pred_region
        %s733 = ssub.s32 %s38, 1
        // Predicated region
        $region105: #{tpu_custom_call.1} parent=103 // pred_check
          %p734 = pneg %p106
        $region106: #{tpu_custom_call.1} parent=103 // pred_check_branch
          %736 = sbr.rel (%p734) target = $region108
        $region107: #{tpu_custom_call.1} parent=103 // pred_region
          %737 = dma.done [#allocation3], 16
        $region108: #{tpu_custom_call.1} parent=103 // pred_fallthru
          _
        // Predicated region
        $region109: #{tpu_custom_call.1} parent=103 // pred_check
          %p738 = pneg %p127
        $region110: #{tpu_custom_call.1} parent=103 // pred_check_branch
          %740 = sbr.rel (%p738) target = $region112
        $region111: #{tpu_custom_call.1} parent=103 // pred_region
          %741 = dma.done [#allocation6], 768
        $region112: #{tpu_custom_call.1} parent=103 // pred_fallthru
          _
        // Predicated region
        $region113: #{tpu_custom_call.1} parent=103 // pred_check
          %p742 = pneg %p148
        $region114: #{tpu_custom_call.1} parent=103 // pred_check_branch
          %744 = sbr.rel (%p742) target = $region116
        $region115: #{tpu_custom_call.1} parent=103 // pred_region
          %745 = dma.done [#allocation6], 16
        $region116: #{tpu_custom_call.1} parent=103 // pred_fallthru
          _
        // Predicated region
        $region117: #{tpu_custom_call.1} parent=103 // pred_check
          %p746 = pneg %p169
        $region118: #{tpu_custom_call.1} parent=103 // pred_check_branch
          %748 = sbr.rel (%p746) target = $region120
        $region119: #{tpu_custom_call.1} parent=103 // pred_region
          %749 = dma.done [#allocation9], 7680
        $region120: #{tpu_custom_call.1} parent=103 // pred_fallthru
          _
        // Predicated region
        $region121: #{tpu_custom_call.1} parent=103 // pred_check
          %p750 = pneg %p190
        $region122: #{tpu_custom_call.1} parent=103 // pred_check_branch
          %752 = sbr.rel (%p750) target = $region124
        $region123: #{tpu_custom_call.1} parent=103 // pred_region
          %753 = dma.done [#allocation9], 80
        $region124: #{tpu_custom_call.1} parent=103 // pred_fallthru
          _
        // Predicated region
        $region125: #{tpu_custom_call.1} parent=103 // pred_check
          %p754 = pneg %p211
        $region126: #{tpu_custom_call.1} parent=103 // pred_check_branch
          %756 = sbr.rel (%p754) target = $region128
        $region127: #{tpu_custom_call.1} parent=103 // pred_region
          %757 = dma.done [#allocation12], 7680
        $region128: #{tpu_custom_call.1} parent=103 // pred_fallthru
          _
        // Predicated region
        $region129: #{tpu_custom_call.1} parent=103 // pred_check
          %p758 = pneg %p232
        $region130: #{tpu_custom_call.1} parent=103 // pred_check_branch
          %760 = sbr.rel (%p758) target = $region132
        $region131: #{tpu_custom_call.1} parent=103 // pred_region
          %761 = dma.done [#allocation12], 80
        $region132: #{tpu_custom_call.1} parent=103 // pred_fallthru
          _
        // Predicated region
        $region133: #{tpu_custom_call.1} parent=103 // pred_check
          %p762 = pneg %p253
        $region134: #{tpu_custom_call.1} parent=103 // pred_check_branch
          %764 = sbr.rel (%p762) target = $region136
        $region135: #{tpu_custom_call.1} parent=103 // pred_region
          %765 = dma.done [#allocation15], 512
        $region136: #{tpu_custom_call.1} parent=103 // pred_fallthru
          _
        // Predicated region
        $region137: #{tpu_custom_call.1} parent=103 // pred_check
          %p766 = pneg %p274
        $region138: #{tpu_custom_call.1} parent=103 // pred_check_branch
          %768 = sbr.rel (%p766) target = $region140
        $region139: #{tpu_custom_call.1} parent=103 // pred_region
          %769 = dma.done [#allocation15], 16
        $region140: #{tpu_custom_call.1} parent=103 // pred_fallthru
          _
        // Predicated region
        $region141: #{tpu_custom_call.1} parent=103 // pred_check
          %p770 = pneg %p295
        $region142: #{tpu_custom_call.1} parent=103 // pred_check_branch
          %772 = sbr.rel (%p770) target = $region144
        $region143: #{tpu_custom_call.1} parent=103 // pred_region
          %773 = dma.done [#allocation18], 16
        $region144: #{tpu_custom_call.1} parent=103 // pred_fallthru
          _
        // Predicated region
        $region145: #{tpu_custom_call.1} parent=103 // pred_check
          %p774 = pneg %p316
        $region146: #{tpu_custom_call.1} parent=103 // pred_check_branch
          %776 = sbr.rel (%p774) target = $region148
        $region147: #{tpu_custom_call.1} parent=103 // pred_region
          %777 = dma.done [#allocation18], 16
        $region148: #{tpu_custom_call.1} parent=103 // pred_fallthru
          _
        // Predicated region
        $region149: #{tpu_custom_call.1} parent=103 // pred_check
          %p778 = pneg %p379
        $region150: #{tpu_custom_call.1} parent=103 // pred_check_branch
          %780 = sbr.rel (%p778) target = $region152
        $region151: #{tpu_custom_call.1} parent=103 // pred_region
          %781 = dma.done [#allocation21], 2048
        $region152: #{tpu_custom_call.1} parent=103 // pred_fallthru
          _
        // Predicated region
        $region153: #{tpu_custom_call.1} parent=103 // pred_check
          %p782 = pneg %p421
        $region154: #{tpu_custom_call.1} parent=103 // pred_check_branch
          %784 = sbr.rel (%p782) target = $region156
        $region155: #{tpu_custom_call.1} parent=103 // pred_region
          %785 = dma.done [#allocation21], 2048
        $region156: #{tpu_custom_call.1} parent=103 // pred_fallthru
          _
        // Predicated region
        $region157: #{tpu_custom_call.1} parent=103 // pred_check
          %p786 = pneg %p463
        $region158: #{tpu_custom_call.1} parent=103 // pred_check_branch
          %788 = sbr.rel (%p786) target = $region160
        $region159: #{tpu_custom_call.1} parent=103 // pred_region
          %789 = dma.done [#allocation24], 2048
        $region160: #{tpu_custom_call.1} parent=103 // pred_fallthru
          _
        %p790 = scmp.lt.s32.totalorder %s43, 1
        %s791 = scalar_select %p790, %s43, 1
        %s792 = smul.addr %s791, 4
        %s793 = smul.addr %s792, 8
        %s794 = scalar_lea.vmem %s0, %s793
        %p795 = pneg %p64
        %p796 = pneg %p61
        %p797 = pneg %p85
        %p798 = pneg %p82
        %p799 = pneg %p106
        %p800 = pneg %p103
        %p801 = pneg %p127
        %p802 = pneg %p124
        %p803 = pneg %p148
        %p804 = pneg %p145
        %p805 = pneg %p169
        %p806 = pneg %p166
        %p807 = pneg %p190
        %p808 = pneg %p187
        %p809 = pneg %p211
        %p810 = pneg %p208
        %p811 = pneg %p232
        %p812 = pneg %p229
        %p813 = pneg %p253
        %p814 = pneg %p250
        %p815 = pneg %p274
        %p816 = pneg %p271
        %p817 = pneg %p295
        %p818 = pneg %p292
        %p819 = pneg %p316
        %p820 = pneg %p313
        %p821 = pneg %p337
        %p822 = pneg %p334
        %p823 = pneg %p358
        %p824 = pneg %p355
        %p825 = pneg %p379
        %p826 = pneg %p376
        %p827 = pneg %p400
        %p828 = pneg %p397
        %p829 = pneg %p421
        %p830 = pneg %p418
        %p831 = pneg %p442
        %p832 = pneg %p439
        %p833 = pneg %p463
        %p834 = pneg %p460
        %p835 = pneg %p484
        %p836 = pneg %p481
        %p837 = pneg %p510
        %p838 = pneg %p507
        %s839 = sand.u32 %s497, 1
        %s840 = scalar_lea.sflag [#allocation4], %s839
        %s841 = sand.u32 %s497, 1
        %s842 = smul.addr %s841, 32
        %s843 = scalar_lea.vmem [#allocation25], %s842
        %p844 = scmp.lt.s32.totalorder %s43, 1
        %s845 = scalar_select %p844, %s43, 1
        %s846 = smul.addr %s845, 4
        %s847 = smul.addr %s846, 8
        %s848 = scalar_lea.vmem %s0, %s847
        %v849 = vld [vmem:[%s848] sm:$0xff]
        %v850 = vld [vmem:[%s848 + $0x8] sm:$0xff]
        %v851 = vld [vmem:[%s848 + $0x10] sm:$0xff]
        %v852 = vld [vmem:[%s848 + $0x18] sm:$0xff]
        %v853 = vlaneseq
        %v854 = vshrl.u32 %v853, 7
        %v855 = vadd.s32 %v854, 8
        %v856 = vadd.s32 %v854, 16
        %v857 = vadd.s32 %v854, 24
        %vm858 = vcmp.lt.s32.totalorder %v854, 0
        %v859 = vsub.s32 0, %v854
        %v860 = vsel %vm858, %v859, %v854
        %v861 = vshrl.u32 %v860, 5
        %v862 = vand.u32 %v860, 31
        %v863 = vsub.s32 0, %v862
        %v864 = vsel %vm858, %v863, %v862
        %vm865 = vcmp.lt.s32.totalorder %v855, 0
        %v866 = vsub.s32 0, %v855
        %v867 = vsel %vm865, %v866, %v855
        %v868 = vshrl.u32 %v867, 5
        %v869 = vand.u32 %v867, 31
        %v870 = vsub.s32 0, %v869
        %v871 = vsel %vm865, %v870, %v869
        %vm872 = vcmp.lt.s32.totalorder %v856, 0
        %v873 = vsub.s32 0, %v856
        %v874 = vsel %vm872, %v873, %v856
        %v875 = vshrl.u32 %v874, 5
        %v876 = vand.u32 %v874, 31
        %v877 = vsub.s32 0, %v876
        %v878 = vsel %vm872, %v877, %v876
        %vm879 = vcmp.lt.s32.totalorder %v857, 0
        %v880 = vsub.s32 0, %v857
        %v881 = vsel %vm879, %v880, %v857
        %v882 = vshrl.u32 %v881, 5
        %v883 = vand.u32 %v881, 31
        %v884 = vsub.s32 0, %v883
        %v885 = vsel %vm879, %v884, %v883
        %vm886 = vcmp.ne.s32.totalorder %v864, 0
        %vm887 = vcmp.ne.s32.totalorder %v871, 0
        %vm888 = vcmp.ne.s32.totalorder %v878, 0
        %vm889 = vcmp.ne.s32.totalorder %v885, 0
        %vm890 = vcmp.lt.s32.totalorder %v864, 0
        %vm891 = vcmp.lt.s32.totalorder %v871, 0
        %vm892 = vcmp.lt.s32.totalorder %v878, 0
        %vm893 = vcmp.lt.s32.totalorder %v885, 0
        %vm894 = vmand %vm890, %vm886
        %vm895 = vmand %vm891, %vm887
        %vm896 = vmand %vm892, %vm888
        %vm897 = vmand %vm893, %vm889
        %v898 = vadd.s32 %v864, 32
        %v899 = vadd.s32 %v871, 32
        %v900 = vadd.s32 %v878, 32
        %v901 = vadd.s32 %v885, 32
        %v902 = vsel %vm894, %v898, %v864
        %v903 = vsel %vm895, %v899, %v871
        %v904 = vsel %vm896, %v900, %v878
        %v905 = vsel %vm897, %v901, %v885
        %v906 = vld [vmem:[%s1] sm:$0xff]
        %v907 = vld [vmem:[%s1 + $0x8] sm:$0xff]
        %v908 = vld [vmem:[#allocation2] sm:$0x1]
        %v910 = vlaneseq
        %v911 = vshrl.u32 %v910, 7
        %v912 = vsub.s32 0, %v911
        %v913 = vrot.slane %v908, %v912
        %vm915 = vcmask 130048
        %v917 = vsel %vm915, %v849, 0
        %v920 = vsel %vm915, %v850, 0
        %v923 = vsel %vm915, %v851, 0
        %v926 = vsel %vm915, %v852, 0
        %928 = vmatprep.subr.mxu0 0.0
        %929 = vmatpush1.msra.mxu0 %v906
        %930 = vmatprep.subr.mxu0 0.0
        %931 = vmatpush1.msra.mxu0 %v907
        %932 = vmatprep.subr.mxu0 0.0
        %933 = vmatpush1.msra.mxu0 0.0
        %934 = vmatprep.subr.mxu0 0.0
        %935 = vmatpush1.msra.mxu0 0.0
        %936 = vmatprep.subr.mxu0 0.0
        %937 = vmatpush1.msra.mxu0 0.0
        %938 = vmatprep.subr.mxu0 0.0
        %939 = vmatpush1.msra.mxu0 0.0
        %940 = vmatprep.subr.mxu0 0.0
        %941 = vmatpush1.msra.mxu0 0.0
        %942 = vmatprep.subr.mxu0 0.0
        %943 = vmatpush1.msra.mxu0 0.0
        %944 = vmatprep.subr.mxu0 0.0
        %945 = vmatpush1.msra.mxu0 0.0
        %946 = vmatprep.subr.mxu0 0.0
        %947 = vmatpush1.msra.mxu0 0.0
        %948 = vmatprep.subr.mxu0 0.0
        %949 = vmatpush1.msra.mxu0 0.0
        %950 = vmatprep.subr.mxu0 0.0
        %951 = vmatpush1.msra.mxu0 0.0
        %952 = vmatprep.subr.mxu0 0.0
        %953 = vmatpush1.msra.mxu0 0.0
        %954 = vmatprep.subr.mxu0 0.0
        %955 = vmatpush1.msra.mxu0 0.0
        %956 = vmatprep.subr.mxu0 0.0
        %957 = vmatpush1.msra.mxu0 0.0
        %958 = vmatprep.subr.mxu0 0.0
        %959 = vmatpush1.msra.mxu0 0.0
        %960 = vmatprep.subr.mxu0 0.0
        %961 = vmatpush1.msra.mxu0 0.0
        %962 = vmatprep.subr.mxu0 0.0
        %963 = vmatpush1.msra.mxu0 0.0
        %964 = vmatprep.subr.mxu0 0.0
        %965 = vmatpush1.msra.mxu0 0.0
        %966 = vmatprep.subr.mxu0 0.0
        %967 = vmatpush1.msra.mxu0 0.0
        %968 = vmatprep.subr.mxu0 0.0
        %969 = vmatpush1.msra.mxu0 0.0
        %970 = vmatprep.subr.mxu0 0.0
        %971 = vmatpush1.msra.mxu0 0.0
        %972 = vmatprep.subr.mxu0 0.0
        %973 = vmatpush1.msra.mxu0 0.0
        %974 = vmatprep.subr.mxu0 0.0
        %975 = vmatpush1.msra.mxu0 0.0
        %976 = vmatprep.subr.mxu0 0.0
        %977 = vmatpush1.msra.mxu0 0.0
        %978 = vmatprep.subr.mxu0 0.0
        %979 = vmatpush1.msra.mxu0 0.0
        %980 = vmatprep.subr.mxu0 0.0
        %981 = vmatpush1.msra.mxu0 0.0
        %982 = vmatprep.subr.mxu0 0.0
        %983 = vmatpush1.msra.mxu0 0.0
        %984 = vmatprep.subr.mxu0 0.0
        %985 = vmatpush1.msra.mxu0 0.0
        %986 = vmatprep.subr.mxu0 0.0
        %987 = vmatpush1.msra.mxu0 0.0
        %988 = vmatprep.subr.mxu0 0.0
        %989 = vmatpush1.msra.mxu0 0.0
        %990 = vmatprep.subr.mxu0 0.0
        %991 = vmatpush1.msra.mxu0 0.0
        %992 = vmatprep.mubr.f32.mxu0 0.0
        %993 = vmatmul.mubr.f32.gmra.mrb[0].mxu0 %v917
        %v994 = vpop.f32.mrb[0].mxu0
        %v995 = vadd.f32 %v913, %v994
        %v996 = vpop.f32.mrb[0].mxu0
        %997 = vmatprep.mubr.f32.mxu0 0.0
        %998 = vmatmul.mubr.f32.gmra.mrb[0].mxu0 %v920
        %v999 = vpop.f32.mrb[0].mxu0
        %v1000 = vadd.f32 %v913, %v999
        %v1001 = vpop.f32.mrb[0].mxu0
        %1002 = vmatprep.mubr.f32.mxu0 0.0
        %1003 = vmatmul.mubr.f32.gmra.mrb[0].mxu0 %v923
        %v1004 = vpop.f32.mrb[0].mxu0
        %v1005 = vadd.f32 %v913, %v1004
        %v1006 = vpop.f32.mrb[0].mxu0
        %1007 = vmatprep.mubr.f32.mxu0 0.0
        %1008 = vmatmul.mubr.f32.gmra.mrb[0].mxu0 %v926
        %v1009 = vpop.f32.mrb[0].mxu0
        %v1010 = vadd.f32 %v913, %v1009
        %v1011 = vpop.f32.mrb[0].mxu0
        %1012 = vdwg.mxu0
        %v1013 = vmax.f32 %v995, 0.0
        %v1014 = vmax.f32 %v1000, 0.0
        %v1015 = vmax.f32 %v1005, 0.0
        %v1016 = vmax.f32 %v1010, 0.0
        %v1017 = vrot.slane %v849, 7
        %v1018 = vrot.slane %v850, 7
        %v1019 = vrot.slane %v851, 7
        %v1020 = vrot.slane %v852, 7
        %vm1021 = vcmp.lt.s32.totalorder %v854, 1
        %v1022 = vsel %vm1021, %v1019, %v1020
        %v1023 = vsel %vm1021, %v1018, %v1019
        %v1024 = vsel %vm1021, %v1017, %v1018
        %v1025 = vsel %vm1021, %v1020, %v1017
        %v1026 = vadd.s32 %v902, 4294967295
        %v1027 = vadd.s32 %v903, 4294967295
        %v1028 = vadd.s32 %v904, 4294967295
        %v1029 = vadd.s32 %v905, 4294967295
        %vm1030 = vcmp.ge.s32.totalorder %v1026, 0
        %vm1031 = vcmp.ge.s32.totalorder %v1027, 0
        %vm1032 = vcmp.ge.s32.totalorder %v1028, 0
        %vm1033 = vcmp.ge.s32.totalorder %v1029, 0
        %vm1034 = vcmp.lt.s32.totalorder %v1026, 32
        %vm1035 = vcmp.lt.s32.totalorder %v1027, 32
        %vm1036 = vcmp.lt.s32.totalorder %v1028, 32
        %vm1037 = vcmp.lt.s32.totalorder %v1029, 32
        %vm1038 = vmand %vm1030, %vm1034
        %vm1039 = vmand %vm1031, %vm1035
        %vm1040 = vmand %vm1032, %vm1036
        %vm1041 = vmand %vm1033, %vm1037
        %v1042 = vsel %vm1038, 1, 0
        %v1043 = vsel %vm1039, 1, 0
        %v1044 = vsel %vm1040, 1, 0
        %v1045 = vsel %vm1041, 1, 0
        %vm1046 = vcmp.eq.s32.totalorder %v1042, 1
        %vm1047 = vcmp.eq.s32.totalorder %v1043, 1
        %vm1048 = vcmp.eq.s32.totalorder %v1044, 1
        %vm1049 = vcmp.eq.s32.totalorder %v1045, 1
        %v1050 = vsel %vm1046, %v1025, 0.0
        %v1051 = vsel %vm1047, %v1024, 0.0
        %v1052 = vsel %vm1048, %v1023, 0.0
        %v1053 = vsel %vm1049, %v1022, 0.0
        %v1054 = vld [vmem:[#allocation5] sm:$0xff]
        %v1055 = vld [vmem:[#allocation5 + $0x8] sm:$0xff]
        %s1056 = scalar_lea.vmem [#allocation5], 16
        %v1057 = vld [vmem:[%s1056] sm:$0xff]
        %v1058 = vld [vmem:[%s1056 + $0x8] sm:$0xff]
        %1059 = vmatprep.subr.mxu0 0.0
        %1060 = vmatpush1.msra.mxu0 %v1057
        %1061 = vmatprep.subr.mxu0 0.0
        %1062 = vmatpush1.msra.mxu0 %v1058
        %1063 = vmatprep.subr.mxu0 0.0
        %1064 = vmatpush1.msra.mxu0 0.0
        %1065 = vmatprep.subr.mxu0 0.0
        %1066 = vmatpush1.msra.mxu0 0.0
        %1067 = vmatprep.subr.mxu0 0.0
        %1068 = vmatpush1.msra.mxu0 0.0
        %1069 = vmatprep.subr.mxu0 0.0
        %1070 = vmatpush1.msra.mxu0 0.0
        %1071 = vmatprep.subr.mxu0 0.0
        %1072 = vmatpush1.msra.mxu0 0.0
        %1073 = vmatprep.subr.mxu0 0.0
        %1074 = vmatpush1.msra.mxu0 0.0
        %1075 = vmatprep.subr.mxu0 0.0
        %1076 = vmatpush1.msra.mxu0 0.0
        %1077 = vmatprep.subr.mxu0 0.0
        %1078 = vmatpush1.msra.mxu0 0.0
        %1079 = vmatprep.subr.mxu0 0.0
        %1080 = vmatpush1.msra.mxu0 0.0
        %1081 = vmatprep.subr.mxu0 0.0
        %1082 = vmatpush1.msra.mxu0 0.0
        %1083 = vmatprep.subr.mxu0 0.0
        %1084 = vmatpush1.msra.mxu0 0.0
        %1085 = vmatprep.subr.mxu0 0.0
        %1086 = vmatpush1.msra.mxu0 0.0
        %1087 = vmatprep.subr.mxu0 0.0
        %1088 = vmatpush1.msra.mxu0 0.0
        %1089 = vmatprep.subr.mxu0 0.0
        %1090 = vmatpush1.msra.mxu0 0.0
        %1091 = vmatprep.subr.mxu0 0.0
        %1092 = vmatpush1.msra.mxu0 0.0
        %1093 = vmatprep.subr.mxu0 0.0
        %1094 = vmatpush1.msra.mxu0 0.0
        %1095 = vmatprep.subr.mxu0 0.0
        %1096 = vmatpush1.msra.mxu0 0.0
        %1097 = vmatprep.subr.mxu0 0.0
        %1098 = vmatpush1.msra.mxu0 0.0
        %1099 = vmatprep.subr.mxu0 0.0
        %1100 = vmatpush1.msra.mxu0 0.0
        %1101 = vmatprep.subr.mxu0 0.0
        %1102 = vmatpush1.msra.mxu0 0.0
        %1103 = vmatprep.subr.mxu0 0.0
        %1104 = vmatpush1.msra.mxu0 0.0
        %1105 = vmatprep.subr.mxu0 0.0
        %1106 = vmatpush1.msra.mxu0 0.0
        %1107 = vmatprep.subr.mxu0 0.0
        %1108 = vmatpush1.msra.mxu0 0.0
        %1109 = vmatprep.subr.mxu0 0.0
        %1110 = vmatpush1.msra.mxu0 0.0
        %1111 = vmatprep.subr.mxu0 0.0
        %1112 = vmatpush1.msra.mxu0 0.0
        %1113 = vmatprep.subr.mxu0 0.0
        %1114 = vmatpush1.msra.mxu0 0.0
        %1115 = vmatprep.subr.mxu0 0.0
        %1116 = vmatpush1.msra.mxu0 0.0
        %1117 = vmatprep.subr.mxu0 0.0
        %1118 = vmatpush1.msra.mxu0 0.0
        %1119 = vmatprep.subr.mxu0 0.0
        %1120 = vmatpush1.msra.mxu0 0.0
        %1121 = vmatprep.subr.mxu0 0.0
        %1122 = vmatpush1.msra.mxu0 0.0
        %1123 = vmatprep.mubr.f32.mxu0 0.0
        %1124 = vmatmul.mubr.f32.gmra.mrb[0].mxu0 %v917
        %v1125 = vpop.f32.mrb[0].mxu0
        %v1126 = vadd.f32 0.0, %v1125
        %v1127 = vpop.f32.mrb[0].mxu0
        %1128 = vmatprep.mubr.f32.mxu0 0.0
        %1129 = vmatmul.mubr.f32.gmra.mrb[0].mxu0 %v920
        %v1130 = vpop.f32.mrb[0].mxu0
        %v1131 = vadd.f32 0.0, %v1130
        %v1132 = vpop.f32.mrb[0].mxu0
        %1133 = vmatprep.mubr.f32.mxu0 0.0
        %1134 = vmatmul.mubr.f32.gmra.mrb[0].mxu0 %v923
        %v1135 = vpop.f32.mrb[0].mxu0
        %v1136 = vadd.f32 0.0, %v1135
        %v1137 = vpop.f32.mrb[0].mxu0
        %1138 = vmatprep.mubr.f32.mxu0 0.0
        %1139 = vmatmul.mubr.f32.gmra.mrb[0].mxu0 %v926
        %v1140 = vpop.f32.mrb[0].mxu0
        %v1141 = vadd.f32 0.0, %v1140
        %v1142 = vpop.f32.mrb[0].mxu0
        %1143 = vdwg.mxu0
        %v1145 = vsel %vm915, %v1050, 0
        %v1148 = vsel %vm915, %v1051, 0
        %v1151 = vsel %vm915, %v1052, 0
        %v1154 = vsel %vm915, %v1053, 0
        %1156 = vmatprep.subr.mxu0 0.0
        %1157 = vmatpush1.msra.mxu0 %v1054
        %1158 = vmatprep.subr.mxu0 0.0
        %1159 = vmatpush1.msra.mxu0 %v1055
        %1160 = vmatprep.subr.mxu0 0.0
        %1161 = vmatpush1.msra.mxu0 0.0
        %1162 = vmatprep.subr.mxu0 0.0
        %1163 = vmatpush1.msra.mxu0 0.0
        %1164 = vmatprep.subr.mxu0 0.0
        %1165 = vmatpush1.msra.mxu0 0.0
        %1166 = vmatprep.subr.mxu0 0.0
        %1167 = vmatpush1.msra.mxu0 0.0
        %1168 = vmatprep.subr.mxu0 0.0
        %1169 = vmatpush1.msra.mxu0 0.0
        %1170 = vmatprep.subr.mxu0 0.0
        %1171 = vmatpush1.msra.mxu0 0.0
        %1172 = vmatprep.subr.mxu0 0.0
        %1173 = vmatpush1.msra.mxu0 0.0
        %1174 = vmatprep.subr.mxu0 0.0
        %1175 = vmatpush1.msra.mxu0 0.0
        %1176 = vmatprep.subr.mxu0 0.0
        %1177 = vmatpush1.msra.mxu0 0.0
        %1178 = vmatprep.subr.mxu0 0.0
        %1179 = vmatpush1.msra.mxu0 0.0
        %1180 = vmatprep.subr.mxu0 0.0
        %1181 = vmatpush1.msra.mxu0 0.0
        %1182 = vmatprep.subr.mxu0 0.0
        %1183 = vmatpush1.msra.mxu0 0.0
        %1184 = vmatprep.subr.mxu0 0.0
        %1185 = vmatpush1.msra.mxu0 0.0
        %1186 = vmatprep.subr.mxu0 0.0
        %1187 = vmatpush1.msra.mxu0 0.0
        %1188 = vmatprep.subr.mxu0 0.0
        %1189 = vmatpush1.msra.mxu0 0.0
        %1190 = vmatprep.subr.mxu0 0.0
        %1191 = vmatpush1.msra.mxu0 0.0
        %1192 = vmatprep.subr.mxu0 0.0
        %1193 = vmatpush1.msra.mxu0 0.0
        %1194 = vmatprep.subr.mxu0 0.0
        %1195 = vmatpush1.msra.mxu0 0.0
        %1196 = vmatprep.subr.mxu0 0.0
        %1197 = vmatpush1.msra.mxu0 0.0
        %1198 = vmatprep.subr.mxu0 0.0
        %1199 = vmatpush1.msra.mxu0 0.0
        %1200 = vmatprep.subr.mxu0 0.0
        %1201 = vmatpush1.msra.mxu0 0.0
        %1202 = vmatprep.subr.mxu0 0.0
        %1203 = vmatpush1.msra.mxu0 0.0
        %1204 = vmatprep.subr.mxu0 0.0
        %1205 = vmatpush1.msra.mxu0 0.0
        %1206 = vmatprep.subr.mxu0 0.0
        %1207 = vmatpush1.msra.mxu0 0.0
        %1208 = vmatprep.subr.mxu0 0.0
        %1209 = vmatpush1.msra.mxu0 0.0
        %1210 = vmatprep.subr.mxu0 0.0
        %1211 = vmatpush1.msra.mxu0 0.0
        %1212 = vmatprep.subr.mxu0 0.0
        %1213 = vmatpush1.msra.mxu0 0.0
        %1214 = vmatprep.subr.mxu0 0.0
        %1215 = vmatpush1.msra.mxu0 0.0
        %1216 = vmatprep.subr.mxu0 0.0
        %1217 = vmatpush1.msra.mxu0 0.0
        %1218 = vmatprep.subr.mxu0 0.0
        %1219 = vmatpush1.msra.mxu0 0.0
        %1220 = vmatprep.mubr.f32.mxu0 0.0
        %1221 = vmatmul.mubr.f32.gmra.mrb[0].mxu0 %v1145
        %v1222 = vpop.f32.mrb[0].mxu0
        %v1223 = vadd.f32 %v1126, %v1222
        %v1224 = vpop.f32.mrb[0].mxu0
        %1225 = vmatprep.mubr.f32.mxu0 0.0
        %1226 = vmatmul.mubr.f32.gmra.mrb[0].mxu0 %v1148
        %v1227 = vpop.f32.mrb[0].mxu0
        %v1228 = vadd.f32 %v1131, %v1227
        %v1229 = vpop.f32.mrb[0].mxu0
        %1230 = vmatprep.mubr.f32.mxu0 0.0
        %1231 = vmatmul.mubr.f32.gmra.mrb[0].mxu0 %v1151
        %v1232 = vpop.f32.mrb[0].mxu0
        %v1233 = vadd.f32 %v1136, %v1232
        %v1234 = vpop.f32.mrb[0].mxu0
        %1235 = vmatprep.mubr.f32.mxu0 0.0
        %1236 = vmatmul.mubr.f32.gmra.mrb[0].mxu0 %v1154
        %v1237 = vpop.f32.mrb[0].mxu0
        %v1238 = vadd.f32 %v1141, %v1237
        %v1239 = vpop.f32.mrb[0].mxu0
        %1240 = vdwg.mxu0
        %v1241 = vrot.slane %v849, 1
        %v1242 = vrot.slane %v850, 1
        %v1243 = vrot.slane %v851, 1
        %v1244 = vrot.slane %v852, 1
        %vm1245 = vcmp.lt.s32.totalorder %v854, 7
        %v1246 = vsel %vm1245, %v1243, %v1244
        %v1247 = vsel %vm1245, %v1242, %v1243
        %v1248 = vsel %vm1245, %v1241, %v1242
        %v1249 = vsel %vm1245, %v1244, %v1241
        %v1250 = vadd.s32 %v902, 1
        %v1251 = vadd.s32 %v903, 1
        %v1252 = vadd.s32 %v904, 1
        %v1253 = vadd.s32 %v905, 1
        %vm1254 = vcmp.ge.s32.totalorder %v1250, 0
        %vm1255 = vcmp.ge.s32.totalorder %v1251, 0
        %vm1256 = vcmp.ge.s32.totalorder %v1252, 0
        %vm1257 = vcmp.ge.s32.totalorder %v1253, 0
        %vm1258 = vcmp.lt.s32.totalorder %v1250, 32
        %vm1259 = vcmp.lt.s32.totalorder %v1251, 32
        %vm1260 = vcmp.lt.s32.totalorder %v1252, 32
        %vm1261 = vcmp.lt.s32.totalorder %v1253, 32
        %vm1262 = vmand %vm1254, %vm1258
        %vm1263 = vmand %vm1255, %vm1259
        %vm1264 = vmand %vm1256, %vm1260
        %vm1265 = vmand %vm1257, %vm1261
        %v1266 = vsel %vm1262, 1, 0
        %v1267 = vsel %vm1263, 1, 0
        %v1268 = vsel %vm1264, 1, 0
        %v1269 = vsel %vm1265, 1, 0
        %vm1270 = vcmp.eq.s32.totalorder %v1266, 1
        %vm1271 = vcmp.eq.s32.totalorder %v1267, 1
        %vm1272 = vcmp.eq.s32.totalorder %v1268, 1
        %vm1273 = vcmp.eq.s32.totalorder %v1269, 1
        %v1274 = vsel %vm1270, %v1248, 0.0
        %v1275 = vsel %vm1271, %v1247, 0.0
        %v1276 = vsel %vm1272, %v1246, 0.0
        %v1277 = vsel %vm1273, %v1249, 0.0
        %s1278 = scalar_lea.vmem [#allocation5], 32
        %v1279 = vld [vmem:[%s1278] sm:$0xff]
        %v1280 = vld [vmem:[%s1278 + $0x8] sm:$0xff]
        %v1282 = vsel %vm915, %v1274, 0
        %v1285 = vsel %vm915, %v1275, 0
        %v1288 = vsel %vm915, %v1276, 0
        %v1291 = vsel %vm915, %v1277, 0
        %1293 = vmatprep.subr.mxu0 0.0
        %1294 = vmatpush1.msra.mxu0 %v1279
        %1295 = vmatprep.subr.mxu0 0.0
        %1296 = vmatpush1.msra.mxu0 %v1280
        %1297 = vmatprep.subr.mxu0 0.0
        %1298 = vmatpush1.msra.mxu0 0.0
        %1299 = vmatprep.subr.mxu0 0.0
        %1300 = vmatpush1.msra.mxu0 0.0
        %1301 = vmatprep.subr.mxu0 0.0
        %1302 = vmatpush1.msra.mxu0 0.0
        %1303 = vmatprep.subr.mxu0 0.0
        %1304 = vmatpush1.msra.mxu0 0.0
        %1305 = vmatprep.subr.mxu0 0.0
        %1306 = vmatpush1.msra.mxu0 0.0
        %1307 = vmatprep.subr.mxu0 0.0
        %1308 = vmatpush1.msra.mxu0 0.0
        %1309 = vmatprep.subr.mxu0 0.0
        %1310 = vmatpush1.msra.mxu0 0.0
        %1311 = vmatprep.subr.mxu0 0.0
        %1312 = vmatpush1.msra.mxu0 0.0
        %1313 = vmatprep.subr.mxu0 0.0
        %1314 = vmatpush1.msra.mxu0 0.0
        %1315 = vmatprep.subr.mxu0 0.0
        %1316 = vmatpush1.msra.mxu0 0.0
        %1317 = vmatprep.subr.mxu0 0.0
        %1318 = vmatpush1.msra.mxu0 0.0
        %1319 = vmatprep.subr.mxu0 0.0
        %1320 = vmatpush1.msra.mxu0 0.0
        %1321 = vmatprep.subr.mxu0 0.0
        %1322 = vmatpush1.msra.mxu0 0.0
        %1323 = vmatprep.subr.mxu0 0.0
        %1324 = vmatpush1.msra.mxu0 0.0
        %1325 = vmatprep.subr.mxu0 0.0
        %1326 = vmatpush1.msra.mxu0 0.0
        %1327 = vmatprep.subr.mxu0 0.0
        %1328 = vmatpush1.msra.mxu0 0.0
        %1329 = vmatprep.subr.mxu0 0.0
        %1330 = vmatpush1.msra.mxu0 0.0
        %1331 = vmatprep.subr.mxu0 0.0
        %1332 = vmatpush1.msra.mxu0 0.0
        %1333 = vmatprep.subr.mxu0 0.0
        %1334 = vmatpush1.msra.mxu0 0.0
        %1335 = vmatprep.subr.mxu0 0.0
        %1336 = vmatpush1.msra.mxu0 0.0
        %1337 = vmatprep.subr.mxu0 0.0
        %1338 = vmatpush1.msra.mxu0 0.0
        %1339 = vmatprep.subr.mxu0 0.0
        %1340 = vmatpush1.msra.mxu0 0.0
        %1341 = vmatprep.subr.mxu0 0.0
        %1342 = vmatpush1.msra.mxu0 0.0
        %1343 = vmatprep.subr.mxu0 0.0
        %1344 = vmatpush1.msra.mxu0 0.0
        %1345 = vmatprep.subr.mxu0 0.0
        %1346 = vmatpush1.msra.mxu0 0.0
        %1347 = vmatprep.subr.mxu0 0.0
        %1348 = vmatpush1.msra.mxu0 0.0
        %1349 = vmatprep.subr.mxu0 0.0
        %1350 = vmatpush1.msra.mxu0 0.0
        %1351 = vmatprep.subr.mxu0 0.0
        %1352 = vmatpush1.msra.mxu0 0.0
        %1353 = vmatprep.subr.mxu0 0.0
        %1354 = vmatpush1.msra.mxu0 0.0
        %1355 = vmatprep.subr.mxu0 0.0
        %1356 = vmatpush1.msra.mxu0 0.0
        %1357 = vmatprep.mubr.f32.mxu0 0.0
        %1358 = vmatmul.mubr.f32.gmra.mrb[0].mxu0 %v1282
        %v1359 = vpop.f32.mrb[0].mxu0
        %v1360 = vadd.f32 0.0, %v1359
        %v1361 = vpop.f32.mrb[0].mxu0
        %1362 = vmatprep.mubr.f32.mxu0 0.0
        %1363 = vmatmul.mubr.f32.gmra.mrb[0].mxu0 %v1285
        %v1364 = vpop.f32.mrb[0].mxu0
        %v1365 = vadd.f32 0.0, %v1364
        %v1366 = vpop.f32.mrb[0].mxu0
        %1367 = vmatprep.mubr.f32.mxu0 0.0
        %1368 = vmatmul.mubr.f32.gmra.mrb[0].mxu0 %v1288
        %v1369 = vpop.f32.mrb[0].mxu0
        %v1370 = vadd.f32 0.0, %v1369
        %v1371 = vpop.f32.mrb[0].mxu0
        %1372 = vmatprep.mubr.f32.mxu0 0.0
        %1373 = vmatmul.mubr.f32.gmra.mrb[0].mxu0 %v1291
        %v1374 = vpop.f32.mrb[0].mxu0
        %v1375 = vadd.f32 0.0, %v1374
        %v1376 = vpop.f32.mrb[0].mxu0
        %1377 = vdwg.mxu0
        %v1378 = vadd.f32 %v1223, %v1360
        %v1379 = vadd.f32 %v1228, %v1365
        %v1380 = vadd.f32 %v1233, %v1370
        %v1381 = vadd.f32 %v1238, %v1375
        %v1382 = vld [vmem:[#allocation7] sm:$0x1]
        %v1384 = vlaneseq
        %v1385 = vshrl.u32 %v1384, 7
        %v1386 = vsub.s32 0, %v1385
        %v1387 = vrot.slane %v1382, %v1386
        %v1389 = vadd.f32 %v1378, %v1387
        %v1390 = vadd.f32 %v1379, %v1387
        %v1391 = vadd.f32 %v1380, %v1387
        %v1392 = vadd.f32 %v1381, %v1387
        %v1393 = vrot.slane %v1389, 7
        %v1394 = vrot.slane %v1390, 7
        %v1395 = vrot.slane %v1391, 7
        %v1396 = vrot.slane %v1392, 7
        %v1397 = vsel %vm1021, %v1395, %v1396
        %v1398 = vsel %vm1021, %v1394, %v1395
        %v1399 = vsel %vm1021, %v1393, %v1394
        %v1400 = vsel %vm1021, %v1396, %v1393
        %v1401 = vsel %vm1046, %v1400, 0.0
        %v1402 = vsel %vm1047, %v1399, 0.0
        %v1403 = vsel %vm1048, %v1398, 0.0
        %v1404 = vsel %vm1049, %v1397, 0.0
        %v1405 = vrot.slane %v1389, 1
        %v1406 = vrot.slane %v1390, 1
        %v1407 = vrot.slane %v1391, 1
        %v1408 = vrot.slane %v1392, 1
        %v1409 = vsel %vm1245, %v1407, %v1408
        %v1410 = vsel %vm1245, %v1406, %v1407
        %v1411 = vsel %vm1245, %v1405, %v1406
        %v1412 = vsel %vm1245, %v1408, %v1405
        %v1413 = vsel %vm1270, %v1411, 0.0
        %v1414 = vsel %vm1271, %v1410, 0.0
        %v1415 = vsel %vm1272, %v1409, 0.0
        %v1416 = vsel %vm1273, %v1412, 0.0
        %v1417 = vld [vmem:[#allocation8] sm:$0xff]
        %v1418 = vld [vmem:[#allocation8 + $0x8] sm:$0xff]
        %v1419 = vld [vmem:[#allocation8 + $0x10] sm:$0xff]
        %v1420 = vld [vmem:[#allocation8 + $0x18] sm:$0xff]
        %s1421 = scalar_lea.vmem [#allocation8], 32
        %v1422 = vld [vmem:[%s1421] sm:$0xff]
        %v1423 = vld [vmem:[%s1421 + $0x8] sm:$0xff]
        %v1424 = vld [vmem:[%s1421 + $0x10] sm:$0xff]
        %v1425 = vld [vmem:[%s1421 + $0x18] sm:$0xff]
        %vm1426 = vcmask 261120
        %v1428 = vsel %vm1426, %v1389, 0
        %v1431 = vsel %vm1426, %v1390, 0
        %v1434 = vsel %vm1426, %v1391, 0
        %v1437 = vsel %vm1426, %v1392, 0
        %1439 = vmatprep.subr.mxu0 0.0
        %1440 = vmatpush1.msra.mxu0 %v1422
        %1441 = vmatprep.subr.mxu0 0.0
        %1442 = vmatpush1.msra.mxu0 %v1423
        %1443 = vmatprep.subr.mxu0 0.0
        %1444 = vmatpush1.msra.mxu0 %v1424
        %1445 = vmatprep.subr.mxu0 0.0
        %1446 = vmatpush1.msra.mxu0 %v1425
        %1447 = vmatprep.subr.mxu0 0.0
        %1448 = vmatpush1.msra.mxu0 0.0
        %1449 = vmatprep.subr.mxu0 0.0
        %1450 = vmatpush1.msra.mxu0 0.0
        %1451 = vmatprep.subr.mxu0 0.0
        %1452 = vmatpush1.msra.mxu0 0.0
        %1453 = vmatprep.subr.mxu0 0.0
        %1454 = vmatpush1.msra.mxu0 0.0
        %1455 = vmatprep.subr.mxu0 0.0
        %1456 = vmatpush1.msra.mxu0 0.0
        %1457 = vmatprep.subr.mxu0 0.0
        %1458 = vmatpush1.msra.mxu0 0.0
        %1459 = vmatprep.subr.mxu0 0.0
        %1460 = vmatpush1.msra.mxu0 0.0
        %1461 = vmatprep.subr.mxu0 0.0
        %1462 = vmatpush1.msra.mxu0 0.0
        %1463 = vmatprep.subr.mxu0 0.0
        %1464 = vmatpush1.msra.mxu0 0.0
        %1465 = vmatprep.subr.mxu0 0.0
        %1466 = vmatpush1.msra.mxu0 0.0
        %1467 = vmatprep.subr.mxu0 0.0
        %1468 = vmatpush1.msra.mxu0 0.0
        %1469 = vmatprep.subr.mxu0 0.0
        %1470 = vmatpush1.msra.mxu0 0.0
        %1471 = vmatprep.subr.mxu0 0.0
        %1472 = vmatpush1.msra.mxu0 0.0
        %1473 = vmatprep.subr.mxu0 0.0
        %1474 = vmatpush1.msra.mxu0 0.0
        %1475 = vmatprep.subr.mxu0 0.0
        %1476 = vmatpush1.msra.mxu0 0.0
        %1477 = vmatprep.subr.mxu0 0.0
        %1478 = vmatpush1.msra.mxu0 0.0
        %1479 = vmatprep.subr.mxu0 0.0
        %1480 = vmatpush1.msra.mxu0 0.0
        %1481 = vmatprep.subr.mxu0 0.0
        %1482 = vmatpush1.msra.mxu0 0.0
        %1483 = vmatprep.subr.mxu0 0.0
        %1484 = vmatpush1.msra.mxu0 0.0
        %1485 = vmatprep.subr.mxu0 0.0
        %1486 = vmatpush1.msra.mxu0 0.0
        %1487 = vmatprep.subr.mxu0 0.0
        %1488 = vmatpush1.msra.mxu0 0.0
        %1489 = vmatprep.subr.mxu0 0.0
        %1490 = vmatpush1.msra.mxu0 0.0
        %1491 = vmatprep.subr.mxu0 0.0
        %1492 = vmatpush1.msra.mxu0 0.0
        %1493 = vmatprep.subr.mxu0 0.0
        %1494 = vmatpush1.msra.mxu0 0.0
        %1495 = vmatprep.subr.mxu0 0.0
        %1496 = vmatpush1.msra.mxu0 0.0
        %1497 = vmatprep.subr.mxu0 0.0
        %1498 = vmatpush1.msra.mxu0 0.0
        %1499 = vmatprep.subr.mxu0 0.0
        %1500 = vmatpush1.msra.mxu0 0.0
        %1501 = vmatprep.subr.mxu0 0.0
        %1502 = vmatpush1.msra.mxu0 0.0
        %1503 = vmatprep.mubr.f32.mxu0 0.0
        %1504 = vmatmul.mubr.f32.gmra.mrb[0].mxu0 %v1428
        %v1505 = vpop.f32.mrb[0].mxu0
        %v1506 = vadd.f32 0.0, %v1505
        %v1507 = vpop.f32.mrb[0].mxu0
        %1508 = vmatprep.mubr.f32.mxu0 0.0
        %1509 = vmatmul.mubr.f32.gmra.mrb[0].mxu0 %v1431
        %v1510 = vpop.f32.mrb[0].mxu0
        %v1511 = vadd.f32 0.0, %v1510
        %v1512 = vpop.f32.mrb[0].mxu0
        %1513 = vmatprep.mubr.f32.mxu0 0.0
        %1514 = vmatmul.mubr.f32.gmra.mrb[0].mxu0 %v1434
        %v1515 = vpop.f32.mrb[0].mxu0
        %v1516 = vadd.f32 0.0, %v1515
        %v1517 = vpop.f32.mrb[0].mxu0
        %1518 = vmatprep.mubr.f32.mxu0 0.0
        %1519 = vmatmul.mubr.f32.gmra.mrb[0].mxu0 %v1437
        %v1520 = vpop.f32.mrb[0].mxu0
        %v1521 = vadd.f32 0.0, %v1520
        %v1522 = vpop.f32.mrb[0].mxu0
        %1523 = vdwg.mxu0
        %v1525 = vsel %vm1426, %v1401, 0
        %v1528 = vsel %vm1426, %v1402, 0
        %v1531 = vsel %vm1426, %v1403, 0
        %v1534 = vsel %vm1426, %v1404, 0
        %1536 = vmatprep.subr.mxu0 0.0
        %1537 = vmatpush1.msra.mxu0 %v1417
        %1538 = vmatprep.subr.mxu0 0.0
        %1539 = vmatpush1.msra.mxu0 %v1418
        %1540 = vmatprep.subr.mxu0 0.0
        %1541 = vmatpush1.msra.mxu0 %v1419
        %1542 = vmatprep.subr.mxu0 0.0
        %1543 = vmatpush1.msra.mxu0 %v1420
        %1544 = vmatprep.subr.mxu0 0.0
        %1545 = vmatpush1.msra.mxu0 0.0
        %1546 = vmatprep.subr.mxu0 0.0
        %1547 = vmatpush1.msra.mxu0 0.0
        %1548 = vmatprep.subr.mxu0 0.0
        %1549 = vmatpush1.msra.mxu0 0.0
        %1550 = vmatprep.subr.mxu0 0.0
        %1551 = vmatpush1.msra.mxu0 0.0
        %1552 = vmatprep.subr.mxu0 0.0
        %1553 = vmatpush1.msra.mxu0 0.0
        %1554 = vmatprep.subr.mxu0 0.0
        %1555 = vmatpush1.msra.mxu0 0.0
        %1556 = vmatprep.subr.mxu0 0.0
        %1557 = vmatpush1.msra.mxu0 0.0
        %1558 = vmatprep.subr.mxu0 0.0
        %1559 = vmatpush1.msra.mxu0 0.0
        %1560 = vmatprep.subr.mxu0 0.0
        %1561 = vmatpush1.msra.mxu0 0.0
        %1562 = vmatprep.subr.mxu0 0.0
        %1563 = vmatpush1.msra.mxu0 0.0
        %1564 = vmatprep.subr.mxu0 0.0
        %1565 = vmatpush1.msra.mxu0 0.0
        %1566 = vmatprep.subr.mxu0 0.0
        %1567 = vmatpush1.msra.mxu0 0.0
        %1568 = vmatprep.subr.mxu0 0.0
        %1569 = vmatpush1.msra.mxu0 0.0
        %1570 = vmatprep.subr.mxu0 0.0
        %1571 = vmatpush1.msra.mxu0 0.0
        %1572 = vmatprep.subr.mxu0 0.0
        %1573 = vmatpush1.msra.mxu0 0.0
        %1574 = vmatprep.subr.mxu0 0.0
        %1575 = vmatpush1.msra.mxu0 0.0
        %1576 = vmatprep.subr.mxu0 0.0
        %1577 = vmatpush1.msra.mxu0 0.0
        %1578 = vmatprep.subr.mxu0 0.0
        %1579 = vmatpush1.msra.mxu0 0.0
        %1580 = vmatprep.subr.mxu0 0.0
        %1581 = vmatpush1.msra.mxu0 0.0
        %1582 = vmatprep.subr.mxu0 0.0
        %1583 = vmatpush1.msra.mxu0 0.0
        %1584 = vmatprep.subr.mxu0 0.0
        %1585 = vmatpush1.msra.mxu0 0.0
        %1586 = vmatprep.subr.mxu0 0.0
        %1587 = vmatpush1.msra.mxu0 0.0
        %1588 = vmatprep.subr.mxu0 0.0
        %1589 = vmatpush1.msra.mxu0 0.0
        %1590 = vmatprep.subr.mxu0 0.0
        %1591 = vmatpush1.msra.mxu0 0.0
        %1592 = vmatprep.subr.mxu0 0.0
        %1593 = vmatpush1.msra.mxu0 0.0
        %1594 = vmatprep.subr.mxu0 0.0
        %1595 = vmatpush1.msra.mxu0 0.0
        %1596 = vmatprep.subr.mxu0 0.0
        %1597 = vmatpush1.msra.mxu0 0.0
        %1598 = vmatprep.subr.mxu0 0.0
        %1599 = vmatpush1.msra.mxu0 0.0
        %1600 = vmatprep.mubr.f32.mxu0 0.0
        %1601 = vmatmul.mubr.f32.gmra.mrb[0].mxu0 %v1525
        %v1602 = vpop.f32.mrb[0].mxu0
        %v1603 = vadd.f32 %v1506, %v1602
        %v1604 = vpop.f32.mrb[0].mxu0
        %1605 = vmatprep.mubr.f32.mxu0 0.0
        %1606 = vmatmul.mubr.f32.gmra.mrb[0].mxu0 %v1528
        %v1607 = vpop.f32.mrb[0].mxu0
        %v1608 = vadd.f32 %v1511, %v1607
        %v1609 = vpop.f32.mrb[0].mxu0
        %1610 = vmatprep.mubr.f32.mxu0 0.0
        %1611 = vmatmul.mubr.f32.gmra.mrb[0].mxu0 %v1531
        %v1612 = vpop.f32.mrb[0].mxu0
        %v1613 = vadd.f32 %v1516, %v1612
        %v1614 = vpop.f32.mrb[0].mxu0
        %1615 = vmatprep.mubr.f32.mxu0 0.0
        %1616 = vmatmul.mubr.f32.gmra.mrb[0].mxu0 %v1534
        %v1617 = vpop.f32.mrb[0].mxu0
        %v1618 = vadd.f32 %v1521, %v1617
        %v1619 = vpop.f32.mrb[0].mxu0
        %1620 = vdwg.mxu0
        %s1621 = scalar_lea.vmem [#allocation8], 64
        %v1622 = vld [vmem:[%s1621] sm:$0xff]
        %v1623 = vld [vmem:[%s1621 + $0x8] sm:$0xff]
        %v1624 = vld [vmem:[%s1621 + $0x10] sm:$0xff]
        %v1625 = vld [vmem:[%s1621 + $0x18] sm:$0xff]
        %v1627 = vsel %vm1426, %v1413, 0
        %v1630 = vsel %vm1426, %v1414, 0
        %v1633 = vsel %vm1426, %v1415, 0
        %v1636 = vsel %vm1426, %v1416, 0
        %1638 = vmatprep.subr.mxu0 0.0
        %1639 = vmatpush1.msra.mxu0 %v1622
        %1640 = vmatprep.subr.mxu0 0.0
        %1641 = vmatpush1.msra.mxu0 %v1623
        %1642 = vmatprep.subr.mxu0 0.0
        %1643 = vmatpush1.msra.mxu0 %v1624
        %1644 = vmatprep.subr.mxu0 0.0
        %1645 = vmatpush1.msra.mxu0 %v1625
        %1646 = vmatprep.subr.mxu0 0.0
        %1647 = vmatpush1.msra.mxu0 0.0
        %1648 = vmatprep.subr.mxu0 0.0
        %1649 = vmatpush1.msra.mxu0 0.0
        %1650 = vmatprep.subr.mxu0 0.0
        %1651 = vmatpush1.msra.mxu0 0.0
        %1652 = vmatprep.subr.mxu0 0.0
        %1653 = vmatpush1.msra.mxu0 0.0
        %1654 = vmatprep.subr.mxu0 0.0
        %1655 = vmatpush1.msra.mxu0 0.0
        %1656 = vmatprep.subr.mxu0 0.0
        %1657 = vmatpush1.msra.mxu0 0.0
        %1658 = vmatprep.subr.mxu0 0.0
        %1659 = vmatpush1.msra.mxu0 0.0
        %1660 = vmatprep.subr.mxu0 0.0
        %1661 = vmatpush1.msra.mxu0 0.0
        %1662 = vmatprep.subr.mxu0 0.0
        %1663 = vmatpush1.msra.mxu0 0.0
        %1664 = vmatprep.subr.mxu0 0.0
        %1665 = vmatpush1.msra.mxu0 0.0
        %1666 = vmatprep.subr.mxu0 0.0
        %1667 = vmatpush1.msra.mxu0 0.0
        %1668 = vmatprep.subr.mxu0 0.0
        %1669 = vmatpush1.msra.mxu0 0.0
        %1670 = vmatprep.subr.mxu0 0.0
        %1671 = vmatpush1.msra.mxu0 0.0
        %1672 = vmatprep.subr.mxu0 0.0
        %1673 = vmatpush1.msra.mxu0 0.0
        %1674 = vmatprep.subr.mxu0 0.0
        %1675 = vmatpush1.msra.mxu0 0.0
        %1676 = vmatprep.subr.mxu0 0.0
        %1677 = vmatpush1.msra.mxu0 0.0
        %1678 = vmatprep.subr.mxu0 0.0
        %1679 = vmatpush1.msra.mxu0 0.0
        %1680 = vmatprep.subr.mxu0 0.0
        %1681 = vmatpush1.msra.mxu0 0.0
        %1682 = vmatprep.subr.mxu0 0.0
        %1683 = vmatpush1.msra.mxu0 0.0
        %1684 = vmatprep.subr.mxu0 0.0
        %1685 = vmatpush1.msra.mxu0 0.0
        %1686 = vmatprep.subr.mxu0 0.0
        %1687 = vmatpush1.msra.mxu0 0.0
        %1688 = vmatprep.subr.mxu0 0.0
        %1689 = vmatpush1.msra.mxu0 0.0
        %1690 = vmatprep.subr.mxu0 0.0
        %1691 = vmatpush1.msra.mxu0 0.0
        %1692 = vmatprep.subr.mxu0 0.0
        %1693 = vmatpush1.msra.mxu0 0.0
        %1694 = vmatprep.subr.mxu0 0.0
        %1695 = vmatpush1.msra.mxu0 0.0
        %1696 = vmatprep.subr.mxu0 0.0
        %1697 = vmatpush1.msra.mxu0 0.0
        %1698 = vmatprep.subr.mxu0 0.0
        %1699 = vmatpush1.msra.mxu0 0.0
        %1700 = vmatprep.subr.mxu0 0.0
        %1701 = vmatpush1.msra.mxu0 0.0
        %1702 = vmatprep.mubr.f32.mxu0 0.0
        %1703 = vmatmul.mubr.f32.gmra.mrb[0].mxu0 %v1627
        %v1704 = vpop.f32.mrb[0].mxu0
        %v1705 = vadd.f32 0.0, %v1704
        %v1706 = vpop.f32.mrb[0].mxu0
        %1707 = vmatprep.mubr.f32.mxu0 0.0
        %1708 = vmatmul.mubr.f32.gmra.mrb[0].mxu0 %v1630
        %v1709 = vpop.f32.mrb[0].mxu0
        %v1710 = vadd.f32 0.0, %v1709
        %v1711 = vpop.f32.mrb[0].mxu0
        %1712 = vmatprep.mubr.f32.mxu0 0.0
        %1713 = vmatmul.mubr.f32.gmra.mrb[0].mxu0 %v1633
        %v1714 = vpop.f32.mrb[0].mxu0
        %v1715 = vadd.f32 0.0, %v1714
        %v1716 = vpop.f32.mrb[0].mxu0
        %1717 = vmatprep.mubr.f32.mxu0 0.0
        %1718 = vmatmul.mubr.f32.gmra.mrb[0].mxu0 %v1636
        %v1719 = vpop.f32.mrb[0].mxu0
        %v1720 = vadd.f32 0.0, %v1719
        %v1721 = vpop.f32.mrb[0].mxu0
        %1722 = vdwg.mxu0
        %v1723 = vadd.f32 %v1603, %v1705
        %v1724 = vadd.f32 %v1608, %v1710
        %v1725 = vadd.f32 %v1613, %v1715
        %v1726 = vadd.f32 %v1618, %v1720
        %v1727 = vld [vmem:[#allocation10] sm:$0x1]
        %v1729 = vlaneseq
        %v1730 = vshrl.u32 %v1729, 7
        %v1731 = vsub.s32 0, %v1730
        %v1732 = vrot.slane %v1727, %v1731
        %v1734 = vadd.f32 %v1723, %v1732
        %v1735 = vadd.f32 %v1724, %v1732
        %v1736 = vadd.f32 %v1725, %v1732
        %v1737 = vadd.f32 %v1726, %v1732
        %v1738 = vld [vmem:[#allocation11] sm:$0xff]
        %v1739 = vld [vmem:[#allocation11 + $0x8] sm:$0xff]
        %v1740 = vld [vmem:[#allocation11 + $0x10] sm:$0xff]
        %v1741 = vld [vmem:[#allocation11 + $0x18] sm:$0xff]
        %s1742 = scalar_lea.vmem [#allocation11], 32
        %v1743 = vld [vmem:[%s1742] sm:$0xff]
        %v1744 = vld [vmem:[%s1742 + $0x8] sm:$0xff]
        %v1745 = vld [vmem:[%s1742 + $0x10] sm:$0xff]
        %v1746 = vld [vmem:[%s1742 + $0x18] sm:$0xff]
        %1747 = vmatprep.subr.mxu0 0.0
        %1748 = vmatpush1.msra.mxu0 %v1743
        %1749 = vmatprep.subr.mxu0 0.0
        %1750 = vmatpush1.msra.mxu0 %v1744
        %1751 = vmatprep.subr.mxu0 0.0
        %1752 = vmatpush1.msra.mxu0 %v1745
        %1753 = vmatprep.subr.mxu0 0.0
        %1754 = vmatpush1.msra.mxu0 %v1746
        %1755 = vmatprep.subr.mxu0 0.0
        %1756 = vmatpush1.msra.mxu0 0.0
        %1757 = vmatprep.subr.mxu0 0.0
        %1758 = vmatpush1.msra.mxu0 0.0
        %1759 = vmatprep.subr.mxu0 0.0
        %1760 = vmatpush1.msra.mxu0 0.0
        %1761 = vmatprep.subr.mxu0 0.0
        %1762 = vmatpush1.msra.mxu0 0.0
        %1763 = vmatprep.subr.mxu0 0.0
        %1764 = vmatpush1.msra.mxu0 0.0
        %1765 = vmatprep.subr.mxu0 0.0
        %1766 = vmatpush1.msra.mxu0 0.0
        %1767 = vmatprep.subr.mxu0 0.0
        %1768 = vmatpush1.msra.mxu0 0.0
        %1769 = vmatprep.subr.mxu0 0.0
        %1770 = vmatpush1.msra.mxu0 0.0
        %1771 = vmatprep.subr.mxu0 0.0
        %1772 = vmatpush1.msra.mxu0 0.0
        %1773 = vmatprep.subr.mxu0 0.0
        %1774 = vmatpush1.msra.mxu0 0.0
        %1775 = vmatprep.subr.mxu0 0.0
        %1776 = vmatpush1.msra.mxu0 0.0
        %1777 = vmatprep.subr.mxu0 0.0
        %1778 = vmatpush1.msra.mxu0 0.0
        %1779 = vmatprep.subr.mxu0 0.0
        %1780 = vmatpush1.msra.mxu0 0.0
        %1781 = vmatprep.subr.mxu0 0.0
        %1782 = vmatpush1.msra.mxu0 0.0
        %1783 = vmatprep.subr.mxu0 0.0
        %1784 = vmatpush1.msra.mxu0 0.0
        %1785 = vmatprep.subr.mxu0 0.0
        %1786 = vmatpush1.msra.mxu0 0.0
        %1787 = vmatprep.subr.mxu0 0.0
        %1788 = vmatpush1.msra.mxu0 0.0
        %1789 = vmatprep.subr.mxu0 0.0
        %1790 = vmatpush1.msra.mxu0 0.0
        %1791 = vmatprep.subr.mxu0 0.0
        %1792 = vmatpush1.msra.mxu0 0.0
        %1793 = vmatprep.subr.mxu0 0.0
        %1794 = vmatpush1.msra.mxu0 0.0
        %1795 = vmatprep.subr.mxu0 0.0
        %1796 = vmatpush1.msra.mxu0 0.0
        %1797 = vmatprep.subr.mxu0 0.0
        %1798 = vmatpush1.msra.mxu0 0.0
        %1799 = vmatprep.subr.mxu0 0.0
        %1800 = vmatpush1.msra.mxu0 0.0
        %1801 = vmatprep.subr.mxu0 0.0
        %1802 = vmatpush1.msra.mxu0 0.0
        %1803 = vmatprep.subr.mxu0 0.0
        %1804 = vmatpush1.msra.mxu0 0.0
        %1805 = vmatprep.subr.mxu0 0.0
        %1806 = vmatpush1.msra.mxu0 0.0
        %1807 = vmatprep.subr.mxu0 0.0
        %1808 = vmatpush1.msra.mxu0 0.0
        %1809 = vmatprep.subr.mxu0 0.0
        %1810 = vmatpush1.msra.mxu0 0.0
        %1811 = vmatprep.mubr.f32.mxu0 0.0
        %1812 = vmatmul.mubr.f32.gmra.mrb[0].mxu0 %v1428
        %v1813 = vpop.f32.mrb[0].mxu0
        %v1814 = vadd.f32 0.0, %v1813
        %v1815 = vpop.f32.mrb[0].mxu0
        %1816 = vmatprep.mubr.f32.mxu0 0.0
        %1817 = vmatmul.mubr.f32.gmra.mrb[0].mxu0 %v1431
        %v1818 = vpop.f32.mrb[0].mxu0
        %v1819 = vadd.f32 0.0, %v1818
        %v1820 = vpop.f32.mrb[0].mxu0
        %1821 = vmatprep.mubr.f32.mxu0 0.0
        %1822 = vmatmul.mubr.f32.gmra.mrb[0].mxu0 %v1434
        %v1823 = vpop.f32.mrb[0].mxu0
        %v1824 = vadd.f32 0.0, %v1823
        %v1825 = vpop.f32.mrb[0].mxu0
        %1826 = vmatprep.mubr.f32.mxu0 0.0
        %1827 = vmatmul.mubr.f32.gmra.mrb[0].mxu0 %v1437
        %v1828 = vpop.f32.mrb[0].mxu0
        %v1829 = vadd.f32 0.0, %v1828
        %v1830 = vpop.f32.mrb[0].mxu0
        %1831 = vdwg.mxu0
        %1832 = vmatprep.subr.mxu0 0.0
        %1833 = vmatpush1.msra.mxu0 %v1738
        %1834 = vmatprep.subr.mxu0 0.0
        %1835 = vmatpush1.msra.mxu0 %v1739
        %1836 = vmatprep.subr.mxu0 0.0
        %1837 = vmatpush1.msra.mxu0 %v1740
        %1838 = vmatprep.subr.mxu0 0.0
        %1839 = vmatpush1.msra.mxu0 %v1741
        %1840 = vmatprep.subr.mxu0 0.0
        %1841 = vmatpush1.msra.mxu0 0.0
        %1842 = vmatprep.subr.mxu0 0.0
        %1843 = vmatpush1.msra.mxu0 0.0
        %1844 = vmatprep.subr.mxu0 0.0
        %1845 = vmatpush1.msra.mxu0 0.0
        %1846 = vmatprep.subr.mxu0 0.0
        %1847 = vmatpush1.msra.mxu0 0.0
        %1848 = vmatprep.subr.mxu0 0.0
        %1849 = vmatpush1.msra.mxu0 0.0
        %1850 = vmatprep.subr.mxu0 0.0
        %1851 = vmatpush1.msra.mxu0 0.0
        %1852 = vmatprep.subr.mxu0 0.0
        %1853 = vmatpush1.msra.mxu0 0.0
        %1854 = vmatprep.subr.mxu0 0.0
        %1855 = vmatpush1.msra.mxu0 0.0
        %1856 = vmatprep.subr.mxu0 0.0
        %1857 = vmatpush1.msra.mxu0 0.0
        %1858 = vmatprep.subr.mxu0 0.0
        %1859 = vmatpush1.msra.mxu0 0.0
        %1860 = vmatprep.subr.mxu0 0.0
        %1861 = vmatpush1.msra.mxu0 0.0
        %1862 = vmatprep.subr.mxu0 0.0
        %1863 = vmatpush1.msra.mxu0 0.0
        %1864 = vmatprep.subr.mxu0 0.0
        %1865 = vmatpush1.msra.mxu0 0.0
        %1866 = vmatprep.subr.mxu0 0.0
        %1867 = vmatpush1.msra.mxu0 0.0
        %1868 = vmatprep.subr.mxu0 0.0
        %1869 = vmatpush1.msra.mxu0 0.0
        %1870 = vmatprep.subr.mxu0 0.0
        %1871 = vmatpush1.msra.mxu0 0.0
        %1872 = vmatprep.subr.mxu0 0.0
        %1873 = vmatpush1.msra.mxu0 0.0
        %1874 = vmatprep.subr.mxu0 0.0
        %1875 = vmatpush1.msra.mxu0 0.0
        %1876 = vmatprep.subr.mxu0 0.0
        %1877 = vmatpush1.msra.mxu0 0.0
        %1878 = vmatprep.subr.mxu0 0.0
        %1879 = vmatpush1.msra.mxu0 0.0
        %1880 = vmatprep.subr.mxu0 0.0
        %1881 = vmatpush1.msra.mxu0 0.0
        %1882 = vmatprep.subr.mxu0 0.0
        %1883 = vmatpush1.msra.mxu0 0.0
        %1884 = vmatprep.subr.mxu0 0.0
        %1885 = vmatpush1.msra.mxu0 0.0
        %1886 = vmatprep.subr.mxu0 0.0
        %1887 = vmatpush1.msra.mxu0 0.0
        %1888 = vmatprep.subr.mxu0 0.0
        %1889 = vmatpush1.msra.mxu0 0.0
        %1890 = vmatprep.subr.mxu0 0.0
        %1891 = vmatpush1.msra.mxu0 0.0
        %1892 = vmatprep.subr.mxu0 0.0
        %1893 = vmatpush1.msra.mxu0 0.0
        %1894 = vmatprep.subr.mxu0 0.0
        %1895 = vmatpush1.msra.mxu0 0.0
        %1896 = vmatprep.mubr.f32.mxu0 0.0
        %1897 = vmatmul.mubr.f32.gmra.mrb[0].mxu0 %v1525
        %v1898 = vpop.f32.mrb[0].mxu0
        %v1899 = vadd.f32 %v1814, %v1898
        %v1900 = vpop.f32.mrb[0].mxu0
        %1901 = vmatprep.mubr.f32.mxu0 0.0
        %1902 = vmatmul.mubr.f32.gmra.mrb[0].mxu0 %v1528
        %v1903 = vpop.f32.mrb[0].mxu0
        %v1904 = vadd.f32 %v1819, %v1903
        %v1905 = vpop.f32.mrb[0].mxu0
        %1906 = vmatprep.mubr.f32.mxu0 0.0
        %1907 = vmatmul.mubr.f32.gmra.mrb[0].mxu0 %v1531
        %v1908 = vpop.f32.mrb[0].mxu0
        %v1909 = vadd.f32 %v1824, %v1908
        %v1910 = vpop.f32.mrb[0].mxu0
        %1911 = vmatprep.mubr.f32.mxu0 0.0
        %1912 = vmatmul.mubr.f32.gmra.mrb[0].mxu0 %v1534
        %v1913 = vpop.f32.mrb[0].mxu0
        %v1914 = vadd.f32 %v1829, %v1913
        %v1915 = vpop.f32.mrb[0].mxu0
        %1916 = vdwg.mxu0
        %s1917 = scalar_lea.vmem [#allocation11], 64
        %v1918 = vld [vmem:[%s1917] sm:$0xff]
        %v1919 = vld [vmem:[%s1917 + $0x8] sm:$0xff]
        %v1920 = vld [vmem:[%s1917 + $0x10] sm:$0xff]
        %v1921 = vld [vmem:[%s1917 + $0x18] sm:$0xff]
        %1922 = vmatprep.subr.mxu0 0.0
        %1923 = vmatpush1.msra.mxu0 %v1918
        %1924 = vmatprep.subr.mxu0 0.0
        %1925 = vmatpush1.msra.mxu0 %v1919
        %1926 = vmatprep.subr.mxu0 0.0
        %1927 = vmatpush1.msra.mxu0 %v1920
        %1928 = vmatprep.subr.mxu0 0.0
        %1929 = vmatpush1.msra.mxu0 %v1921
        %1930 = vmatprep.subr.mxu0 0.0
        %1931 = vmatpush1.msra.mxu0 0.0
        %1932 = vmatprep.subr.mxu0 0.0
        %1933 = vmatpush1.msra.mxu0 0.0
        %1934 = vmatprep.subr.mxu0 0.0
        %1935 = vmatpush1.msra.mxu0 0.0
        %1936 = vmatprep.subr.mxu0 0.0
        %1937 = vmatpush1.msra.mxu0 0.0
        %1938 = vmatprep.subr.mxu0 0.0
        %1939 = vmatpush1.msra.mxu0 0.0
        %1940 = vmatprep.subr.mxu0 0.0
        %1941 = vmatpush1.msra.mxu0 0.0
        %1942 = vmatprep.subr.mxu0 0.0
        %1943 = vmatpush1.msra.mxu0 0.0
        %1944 = vmatprep.subr.mxu0 0.0
        %1945 = vmatpush1.msra.mxu0 0.0
        %1946 = vmatprep.subr.mxu0 0.0
        %1947 = vmatpush1.msra.mxu0 0.0
        %1948 = vmatprep.subr.mxu0 0.0
        %1949 = vmatpush1.msra.mxu0 0.0
        %1950 = vmatprep.subr.mxu0 0.0
        %1951 = vmatpush1.msra.mxu0 0.0
        %1952 = vmatprep.subr.mxu0 0.0
        %1953 = vmatpush1.msra.mxu0 0.0
        %1954 = vmatprep.subr.mxu0 0.0
        %1955 = vmatpush1.msra.mxu0 0.0
        %1956 = vmatprep.subr.mxu0 0.0
        %1957 = vmatpush1.msra.mxu0 0.0
        %1958 = vmatprep.subr.mxu0 0.0
        %1959 = vmatpush1.msra.mxu0 0.0
        %1960 = vmatprep.subr.mxu0 0.0
        %1961 = vmatpush1.msra.mxu0 0.0
        %1962 = vmatprep.subr.mxu0 0.0
        %1963 = vmatpush1.msra.mxu0 0.0
        %1964 = vmatprep.subr.mxu0 0.0
        %1965 = vmatpush1.msra.mxu0 0.0
        %1966 = vmatprep.subr.mxu0 0.0
        %1967 = vmatpush1.msra.mxu0 0.0
        %1968 = vmatprep.subr.mxu0 0.0
        %1969 = vmatpush1.msra.mxu0 0.0
        %1970 = vmatprep.subr.mxu0 0.0
        %1971 = vmatpush1.msra.mxu0 0.0
        %1972 = vmatprep.subr.mxu0 0.0
        %1973 = vmatpush1.msra.mxu0 0.0
        %1974 = vmatprep.subr.mxu0 0.0
        %1975 = vmatpush1.msra.mxu0 0.0
        %1976 = vmatprep.subr.mxu0 0.0
        %1977 = vmatpush1.msra.mxu0 0.0
        %1978 = vmatprep.subr.mxu0 0.0
        %1979 = vmatpush1.msra.mxu0 0.0
        %1980 = vmatprep.subr.mxu0 0.0
        %1981 = vmatpush1.msra.mxu0 0.0
        %1982 = vmatprep.subr.mxu0 0.0
        %1983 = vmatpush1.msra.mxu0 0.0
        %1984 = vmatprep.subr.mxu0 0.0
        %1985 = vmatpush1.msra.mxu0 0.0
        %1986 = vmatprep.mubr.f32.mxu0 0.0
        %1987 = vmatmul.mubr.f32.gmra.mrb[0].mxu0 %v1627
        %v1988 = vpop.f32.mrb[0].mxu0
        %v1989 = vadd.f32 0.0, %v1988
        %v1990 = vpop.f32.mrb[0].mxu0
        %1991 = vmatprep.mubr.f32.mxu0 0.0
        %1992 = vmatmul.mubr.f32.gmra.mrb[0].mxu0 %v1630
        %v1993 = vpop.f32.mrb[0].mxu0
        %v1994 = vadd.f32 0.0, %v1993
        %v1995 = vpop.f32.mrb[0].mxu0
        %1996 = vmatprep.mubr.f32.mxu0 0.0
        %1997 = vmatmul.mubr.f32.gmra.mrb[0].mxu0 %v1633
        %v1998 = vpop.f32.mrb[0].mxu0
        %v1999 = vadd.f32 0.0, %v1998
        %v2000 = vpop.f32.mrb[0].mxu0
        %2001 = vmatprep.mubr.f32.mxu0 0.0
        %2002 = vmatmul.mubr.f32.gmra.mrb[0].mxu0 %v1636
        %v2003 = vpop.f32.mrb[0].mxu0
        %v2004 = vadd.f32 0.0, %v2003
        %v2005 = vpop.f32.mrb[0].mxu0
        %2006 = vdwg.mxu0
        %v2007 = vadd.f32 %v1899, %v1989
        %v2008 = vadd.f32 %v1904, %v1994
        %v2009 = vadd.f32 %v1909, %v1999
        %v2010 = vadd.f32 %v1914, %v2004
        %v2011 = vld [vmem:[#allocation13] sm:$0x1]
        %v2013 = vlaneseq
        %v2014 = vshrl.u32 %v2013, 7
        %v2015 = vsub.s32 0, %v2014
        %v2016 = vrot.slane %v2011, %v2015
        %v2018 = vadd.f32 %v2007, %v2016
        %v2019 = vadd.f32 %v2008, %v2016
        %v2020 = vadd.f32 %v2009, %v2016
        %v2021 = vadd.f32 %v2010, %v2016
        %v2022 = vtanh.pop %v1734
        %v2023 = vtanh.pop %v1735
        %v2024 = vtanh.pop %v1736
        %v2025 = vtanh.pop %v1737
        %v2026 = vxor.u32 %v2018, 2147483648
        %v2027 = vxor.u32 %v2019, 2147483648
        %v2028 = vxor.u32 %v2020, 2147483648
        %v2029 = vxor.u32 %v2021, 2147483648
        %v2030 = vmul.f32 %v2026, 1.442695
        %v2031 = vpow.pop %v2030
        %v2032 = vmul.f32 %v2027, 1.442695
        %v2033 = vpow.pop %v2032
        %v2034 = vmul.f32 %v2028, 1.442695
        %v2035 = vpow.pop %v2034
        %v2036 = vmul.f32 %v2029, 1.442695
        %v2037 = vpow.pop %v2036
        %v2038 = vadd.f32 %v2031, 1.0
        %v2039 = vadd.f32 %v2033, 1.0
        %v2040 = vadd.f32 %v2035, 1.0
        %v2041 = vadd.f32 %v2037, 1.0
        %v2042 = vrcp.pop %v2038
        %v2043 = vmul.f32 1.0, %v2042
        %v2044 = vrcp.pop %v2039
        %v2045 = vmul.f32 1.0, %v2044
        %v2046 = vrcp.pop %v2040
        %v2047 = vmul.f32 1.0, %v2046
        %v2048 = vrcp.pop %v2041
        %v2049 = vmul.f32 1.0, %v2048
        %v2050 = vmul.f32 %v2022, %v2043
        %v2051 = vmul.f32 %v2023, %v2045
        %v2052 = vmul.f32 %v2024, %v2047
        %v2053 = vmul.f32 %v2025, %v2049
        %v2054 = vld [vmem:[#allocation14] sm:$0xff]
        %v2055 = vld [vmem:[#allocation14 + $0x8] sm:$0xff]
        %v2056 = vld [vmem:[#allocation14 + $0x10] sm:$0xff]
        %v2057 = vld [vmem:[#allocation14 + $0x18] sm:$0xff]
        %v2058 = vld [vmem:[#allocation16] sm:$0x1]
        %v2060 = vlaneseq
        %v2061 = vshrl.u32 %v2060, 7
        %v2062 = vsub.s32 0, %v2061
        %v2063 = vrot.slane %v2058, %v2062
        %v2066 = vsel %vm1426, %v2050, 0
        %v2069 = vsel %vm1426, %v2051, 0
        %v2072 = vsel %vm1426, %v2052, 0
        %v2075 = vsel %vm1426, %v2053, 0
        %2077 = vmatprep.subr.mxu0 0.0
        %2078 = vmatpush1.msra.mxu0 %v2054
        %2079 = vmatprep.subr.mxu0 0.0
        %2080 = vmatpush1.msra.mxu0 %v2055
        %2081 = vmatprep.subr.mxu0 0.0
        %2082 = vmatpush1.msra.mxu0 %v2056
        %2083 = vmatprep.subr.mxu0 0.0
        %2084 = vmatpush1.msra.mxu0 %v2057
        %2085 = vmatprep.subr.mxu0 0.0
        %2086 = vmatpush1.msra.mxu0 0.0
        %2087 = vmatprep.subr.mxu0 0.0
        %2088 = vmatpush1.msra.mxu0 0.0
        %2089 = vmatprep.subr.mxu0 0.0
        %2090 = vmatpush1.msra.mxu0 0.0
        %2091 = vmatprep.subr.mxu0 0.0
        %2092 = vmatpush1.msra.mxu0 0.0
        %2093 = vmatprep.subr.mxu0 0.0
        %2094 = vmatpush1.msra.mxu0 0.0
        %2095 = vmatprep.subr.mxu0 0.0
        %2096 = vmatpush1.msra.mxu0 0.0
        %2097 = vmatprep.subr.mxu0 0.0
        %2098 = vmatpush1.msra.mxu0 0.0
        %2099 = vmatprep.subr.mxu0 0.0
        %2100 = vmatpush1.msra.mxu0 0.0
        %2101 = vmatprep.subr.mxu0 0.0
        %2102 = vmatpush1.msra.mxu0 0.0
        %2103 = vmatprep.subr.mxu0 0.0
        %2104 = vmatpush1.msra.mxu0 0.0
        %2105 = vmatprep.subr.mxu0 0.0
        %2106 = vmatpush1.msra.mxu0 0.0
        %2107 = vmatprep.subr.mxu0 0.0
        %2108 = vmatpush1.msra.mxu0 0.0
        %2109 = vmatprep.subr.mxu0 0.0
        %2110 = vmatpush1.msra.mxu0 0.0
        %2111 = vmatprep.subr.mxu0 0.0
        %2112 = vmatpush1.msra.mxu0 0.0
        %2113 = vmatprep.subr.mxu0 0.0
        %2114 = vmatpush1.msra.mxu0 0.0
        %2115 = vmatprep.subr.mxu0 0.0
        %2116 = vmatpush1.msra.mxu0 0.0
        %2117 = vmatprep.subr.mxu0 0.0
        %2118 = vmatpush1.msra.mxu0 0.0
        %2119 = vmatprep.subr.mxu0 0.0
        %2120 = vmatpush1.msra.mxu0 0.0
        %2121 = vmatprep.subr.mxu0 0.0
        %2122 = vmatpush1.msra.mxu0 0.0
        %2123 = vmatprep.subr.mxu0 0.0
        %2124 = vmatpush1.msra.mxu0 0.0
        %2125 = vmatprep.subr.mxu0 0.0
        %2126 = vmatpush1.msra.mxu0 0.0
        %2127 = vmatprep.subr.mxu0 0.0
        %2128 = vmatpush1.msra.mxu0 0.0
        %2129 = vmatprep.subr.mxu0 0.0
        %2130 = vmatpush1.msra.mxu0 0.0
        %2131 = vmatprep.subr.mxu0 0.0
        %2132 = vmatpush1.msra.mxu0 0.0
        %2133 = vmatprep.subr.mxu0 0.0
        %2134 = vmatpush1.msra.mxu0 0.0
        %2135 = vmatprep.subr.mxu0 0.0
        %2136 = vmatpush1.msra.mxu0 0.0
        %2137 = vmatprep.subr.mxu0 0.0
        %2138 = vmatpush1.msra.mxu0 0.0
        %2139 = vmatprep.subr.mxu0 0.0
        %2140 = vmatpush1.msra.mxu0 0.0
        %2141 = vmatprep.mubr.f32.mxu0 0.0
        %2142 = vmatmul.mubr.f32.gmra.mrb[0].mxu0 %v2066
        %v2143 = vpop.f32.mrb[0].mxu0
        %v2144 = vadd.f32 %v2063, %v2143
        %v2145 = vpop.f32.mrb[0].mxu0
        %2146 = vmatprep.mubr.f32.mxu0 0.0
        %2147 = vmatmul.mubr.f32.gmra.mrb[0].mxu0 %v2069
        %v2148 = vpop.f32.mrb[0].mxu0
        %v2149 = vadd.f32 %v2063, %v2148
        %v2150 = vpop.f32.mrb[0].mxu0
        %2151 = vmatprep.mubr.f32.mxu0 0.0
        %2152 = vmatmul.mubr.f32.gmra.mrb[0].mxu0 %v2072
        %v2153 = vpop.f32.mrb[0].mxu0
        %v2154 = vadd.f32 %v2063, %v2153
        %v2155 = vpop.f32.mrb[0].mxu0
        %2156 = vmatprep.mubr.f32.mxu0 0.0
        %2157 = vmatmul.mubr.f32.gmra.mrb[0].mxu0 %v2075
        %v2158 = vpop.f32.mrb[0].mxu0
        %v2159 = vadd.f32 %v2063, %v2158
        %v2160 = vpop.f32.mrb[0].mxu0
        %2161 = vdwg.mxu0
        %v2162 = vadd.f32 %v1389, %v2144
        %v2163 = vadd.f32 %v1390, %v2149
        %v2164 = vadd.f32 %v1391, %v2154
        %v2165 = vadd.f32 %v1392, %v2159
        %v2166 = vrot.slane %v2144, 6
        %v2167 = vrot.slane %v2149, 6
        %v2168 = vrot.slane %v2154, 6
        %v2169 = vrot.slane %v2159, 6
        %vm2170 = vcmp.lt.s32.totalorder %v854, 2
        %v2171 = vsel %vm2170, %v2168, %v2169
        %v2172 = vsel %vm2170, %v2167, %v2168
        %v2173 = vsel %vm2170, %v2166, %v2167
        %v2174 = vsel %vm2170, %v2169, %v2166
        %v2175 = vadd.s32 %v902, 4294967294
        %v2176 = vadd.s32 %v903, 4294967294
        %v2177 = vadd.s32 %v904, 4294967294
        %v2178 = vadd.s32 %v905, 4294967294
        %vm2179 = vcmp.ge.s32.totalorder %v2175, 0
        %vm2180 = vcmp.ge.s32.totalorder %v2176, 0
        %vm2181 = vcmp.ge.s32.totalorder %v2177, 0
        %vm2182 = vcmp.ge.s32.totalorder %v2178, 0
        %vm2183 = vcmp.lt.s32.totalorder %v2175, 32
        %vm2184 = vcmp.lt.s32.totalorder %v2176, 32
        %vm2185 = vcmp.lt.s32.totalorder %v2177, 32
        %vm2186 = vcmp.lt.s32.totalorder %v2178, 32
        %vm2187 = vmand %vm2179, %vm2183
        %vm2188 = vmand %vm2180, %vm2184
        %vm2189 = vmand %vm2181, %vm2185
        %vm2190 = vmand %vm2182, %vm2186
        %v2191 = vsel %vm2187, 1, 0
        %v2192 = vsel %vm2188, 1, 0
        %v2193 = vsel %vm2189, 1, 0
        %v2194 = vsel %vm2190, 1, 0
        %vm2195 = vcmp.eq.s32.totalorder %v2191, 1
        %vm2196 = vcmp.eq.s32.totalorder %v2192, 1
        %vm2197 = vcmp.eq.s32.totalorder %v2193, 1
        %vm2198 = vcmp.eq.s32.totalorder %v2194, 1
        %v2199 = vsel %vm2195, %v2174, 0.0
        %v2200 = vsel %vm2196, %v2173, 0.0
        %v2201 = vsel %vm2197, %v2172, 0.0
        %v2202 = vsel %vm2198, %v2171, 0.0
        %v2203 = vrot.slane %v2144, 2
        %v2204 = vrot.slane %v2149, 2
        %v2205 = vrot.slane %v2154, 2
        %v2206 = vrot.slane %v2159, 2
        %vm2207 = vcmp.lt.s32.totalorder %v854, 6
        %v2208 = vsel %vm2207, %v2205, %v2206
        %v2209 = vsel %vm2207, %v2204, %v2205
        %v2210 = vsel %vm2207, %v2203, %v2204
        %v2211 = vsel %vm2207, %v2206, %v2203
        %v2212 = vadd.s32 %v902, 2
        %v2213 = vadd.s32 %v903, 2
        %v2214 = vadd.s32 %v904, 2
        %v2215 = vadd.s32 %v905, 2
        %vm2216 = vcmp.ge.s32.totalorder %v2212, 0
        %vm2217 = vcmp.ge.s32.totalorder %v2213, 0
        %vm2218 = vcmp.ge.s32.totalorder %v2214, 0
        %vm2219 = vcmp.ge.s32.totalorder %v2215, 0
        %vm2220 = vcmp.lt.s32.totalorder %v2212, 32
        %vm2221 = vcmp.lt.s32.totalorder %v2213, 32
        %vm2222 = vcmp.lt.s32.totalorder %v2214, 32
        %vm2223 = vcmp.lt.s32.totalorder %v2215, 32
        %vm2224 = vmand %vm2216, %vm2220
        %vm2225 = vmand %vm2217, %vm2221
        %vm2226 = vmand %vm2218, %vm2222
        %vm2227 = vmand %vm2219, %vm2223
        %v2228 = vsel %vm2224, 1, 0
        %v2229 = vsel %vm2225, 1, 0
        %v2230 = vsel %vm2226, 1, 0
        %v2231 = vsel %vm2227, 1, 0
        %vm2232 = vcmp.eq.s32.totalorder %v2228, 1
        %vm2233 = vcmp.eq.s32.totalorder %v2229, 1
        %vm2234 = vcmp.eq.s32.totalorder %v2230, 1
        %vm2235 = vcmp.eq.s32.totalorder %v2231, 1
        %v2236 = vsel %vm2232, %v2210, 0.0
        %v2237 = vsel %vm2233, %v2209, 0.0
        %v2238 = vsel %vm2234, %v2208, 0.0
        %v2239 = vsel %vm2235, %v2211, 0.0
        %s2240 = scalar_lea.vmem [#allocation8], 96
        %v2241 = vld [vmem:[%s2240] sm:$0xff]
        %v2242 = vld [vmem:[%s2240 + $0x8] sm:$0xff]
        %v2243 = vld [vmem:[%s2240 + $0x10] sm:$0xff]
        %v2244 = vld [vmem:[%s2240 + $0x18] sm:$0xff]
        %s2245 = scalar_lea.vmem [#allocation8], 128
        %v2246 = vld [vmem:[%s2245] sm:$0xff]
        %v2247 = vld [vmem:[%s2245 + $0x8] sm:$0xff]
        %v2248 = vld [vmem:[%s2245 + $0x10] sm:$0xff]
        %v2249 = vld [vmem:[%s2245 + $0x18] sm:$0xff]
        %v2251 = vsel %vm1426, %v2144, 0
        %v2254 = vsel %vm1426, %v2149, 0
        %v2257 = vsel %vm1426, %v2154, 0
        %v2260 = vsel %vm1426, %v2159, 0
        %2262 = vmatprep.subr.mxu0 0.0
        %2263 = vmatpush1.msra.mxu0 %v2246
        %2264 = vmatprep.subr.mxu0 0.0
        %2265 = vmatpush1.msra.mxu0 %v2247
        %2266 = vmatprep.subr.mxu0 0.0
        %2267 = vmatpush1.msra.mxu0 %v2248
        %2268 = vmatprep.subr.mxu0 0.0
        %2269 = vmatpush1.msra.mxu0 %v2249
        %2270 = vmatprep.subr.mxu0 0.0
        %2271 = vmatpush1.msra.mxu0 0.0
        %2272 = vmatprep.subr.mxu0 0.0
        %2273 = vmatpush1.msra.mxu0 0.0
        %2274 = vmatprep.subr.mxu0 0.0
        %2275 = vmatpush1.msra.mxu0 0.0
        %2276 = vmatprep.subr.mxu0 0.0
        %2277 = vmatpush1.msra.mxu0 0.0
        %2278 = vmatprep.subr.mxu0 0.0
        %2279 = vmatpush1.msra.mxu0 0.0
        %2280 = vmatprep.subr.mxu0 0.0
        %2281 = vmatpush1.msra.mxu0 0.0
        %2282 = vmatprep.subr.mxu0 0.0
        %2283 = vmatpush1.msra.mxu0 0.0
        %2284 = vmatprep.subr.mxu0 0.0
        %2285 = vmatpush1.msra.mxu0 0.0
        %2286 = vmatprep.subr.mxu0 0.0
        %2287 = vmatpush1.msra.mxu0 0.0
        %2288 = vmatprep.subr.mxu0 0.0
        %2289 = vmatpush1.msra.mxu0 0.0
        %2290 = vmatprep.subr.mxu0 0.0
        %2291 = vmatpush1.msra.mxu0 0.0
        %2292 = vmatprep.subr.mxu0 0.0
        %2293 = vmatpush1.msra.mxu0 0.0
        %2294 = vmatprep.subr.mxu0 0.0
        %2295 = vmatpush1.msra.mxu0 0.0
        %2296 = vmatprep.subr.mxu0 0.0
        %2297 = vmatpush1.msra.mxu0 0.0
        %2298 = vmatprep.subr.mxu0 0.0
        %2299 = vmatpush1.msra.mxu0 0.0
        %2300 = vmatprep.subr.mxu0 0.0
        %2301 = vmatpush1.msra.mxu0 0.0
        %2302 = vmatprep.subr.mxu0 0.0
        %2303 = vmatpush1.msra.mxu0 0.0
        %2304 = vmatprep.subr.mxu0 0.0
        %2305 = vmatpush1.msra.mxu0 0.0
        %2306 = vmatprep.subr.mxu0 0.0
        %2307 = vmatpush1.msra.mxu0 0.0
        %2308 = vmatprep.subr.mxu0 0.0
        %2309 = vmatpush1.msra.mxu0 0.0
        %2310 = vmatprep.subr.mxu0 0.0
        %2311 = vmatpush1.msra.mxu0 0.0
        %2312 = vmatprep.subr.mxu0 0.0
        %2313 = vmatpush1.msra.mxu0 0.0
        %2314 = vmatprep.subr.mxu0 0.0
        %2315 = vmatpush1.msra.mxu0 0.0
        %2316 = vmatprep.subr.mxu0 0.0
        %2317 = vmatpush1.msra.mxu0 0.0
        %2318 = vmatprep.subr.mxu0 0.0
        %2319 = vmatpush1.msra.mxu0 0.0
        %2320 = vmatprep.subr.mxu0 0.0
        %2321 = vmatpush1.msra.mxu0 0.0
        %2322 = vmatprep.subr.mxu0 0.0
        %2323 = vmatpush1.msra.mxu0 0.0
        %2324 = vmatprep.subr.mxu0 0.0
        %2325 = vmatpush1.msra.mxu0 0.0
        %2326 = vmatprep.mubr.f32.mxu0 0.0
        %2327 = vmatmul.mubr.f32.gmra.mrb[0].mxu0 %v2251
        %v2328 = vpop.f32.mrb[0].mxu0
        %v2329 = vadd.f32 0.0, %v2328
        %v2330 = vpop.f32.mrb[0].mxu0
        %2331 = vmatprep.mubr.f32.mxu0 0.0
        %2332 = vmatmul.mubr.f32.gmra.mrb[0].mxu0 %v2254
        %v2333 = vpop.f32.mrb[0].mxu0
        %v2334 = vadd.f32 0.0, %v2333
        %v2335 = vpop.f32.mrb[0].mxu0
        %2336 = vmatprep.mubr.f32.mxu0 0.0
        %2337 = vmatmul.mubr.f32.gmra.mrb[0].mxu0 %v2257
        %v2338 = vpop.f32.mrb[0].mxu0
        %v2339 = vadd.f32 0.0, %v2338
        %v2340 = vpop.f32.mrb[0].mxu0
        %2341 = vmatprep.mubr.f32.mxu0 0.0
        %2342 = vmatmul.mubr.f32.gmra.mrb[0].mxu0 %v2260
        %v2343 = vpop.f32.mrb[0].mxu0
        %v2344 = vadd.f32 0.0, %v2343
        %v2345 = vpop.f32.mrb[0].mxu0
        %2346 = vdwg.mxu0
        %v2348 = vsel %vm1426, %v2199, 0
        %v2351 = vsel %vm1426, %v2200, 0
        %v2354 = vsel %vm1426, %v2201, 0
        %v2357 = vsel %vm1426, %v2202, 0
        %2359 = vmatprep.subr.mxu0 0.0
        %2360 = vmatpush1.msra.mxu0 %v2241
        %2361 = vmatprep.subr.mxu0 0.0
        %2362 = vmatpush1.msra.mxu0 %v2242
        %2363 = vmatprep.subr.mxu0 0.0
        %2364 = vmatpush1.msra.mxu0 %v2243
        %2365 = vmatprep.subr.mxu0 0.0
        %2366 = vmatpush1.msra.mxu0 %v2244
        %2367 = vmatprep.subr.mxu0 0.0
        %2368 = vmatpush1.msra.mxu0 0.0
        %2369 = vmatprep.subr.mxu0 0.0
        %2370 = vmatpush1.msra.mxu0 0.0
        %2371 = vmatprep.subr.mxu0 0.0
        %2372 = vmatpush1.msra.mxu0 0.0
        %2373 = vmatprep.subr.mxu0 0.0
        %2374 = vmatpush1.msra.mxu0 0.0
        %2375 = vmatprep.subr.mxu0 0.0
        %2376 = vmatpush1.msra.mxu0 0.0
        %2377 = vmatprep.subr.mxu0 0.0
        %2378 = vmatpush1.msra.mxu0 0.0
        %2379 = vmatprep.subr.mxu0 0.0
        %2380 = vmatpush1.msra.mxu0 0.0
        %2381 = vmatprep.subr.mxu0 0.0
        %2382 = vmatpush1.msra.mxu0 0.0
        %2383 = vmatprep.subr.mxu0 0.0
        %2384 = vmatpush1.msra.mxu0 0.0
        %2385 = vmatprep.subr.mxu0 0.0
        %2386 = vmatpush1.msra.mxu0 0.0
        %2387 = vmatprep.subr.mxu0 0.0
        %2388 = vmatpush1.msra.mxu0 0.0
        %2389 = vmatprep.subr.mxu0 0.0
        %2390 = vmatpush1.msra.mxu0 0.0
        %2391 = vmatprep.subr.mxu0 0.0
        %2392 = vmatpush1.msra.mxu0 0.0
        %2393 = vmatprep.subr.mxu0 0.0
        %2394 = vmatpush1.msra.mxu0 0.0
        %2395 = vmatprep.subr.mxu0 0.0
        %2396 = vmatpush1.msra.mxu0 0.0
        %2397 = vmatprep.subr.mxu0 0.0
        %2398 = vmatpush1.msra.mxu0 0.0
        %2399 = vmatprep.subr.mxu0 0.0
        %2400 = vmatpush1.msra.mxu0 0.0
        %2401 = vmatprep.subr.mxu0 0.0
        %2402 = vmatpush1.msra.mxu0 0.0
        %2403 = vmatprep.subr.mxu0 0.0
        %2404 = vmatpush1.msra.mxu0 0.0
        %2405 = vmatprep.subr.mxu0 0.0
        %2406 = vmatpush1.msra.mxu0 0.0
        %2407 = vmatprep.subr.mxu0 0.0
        %2408 = vmatpush1.msra.mxu0 0.0
        %2409 = vmatprep.subr.mxu0 0.0
        %2410 = vmatpush1.msra.mxu0 0.0
        %2411 = vmatprep.subr.mxu0 0.0
        %2412 = vmatpush1.msra.mxu0 0.0
        %2413 = vmatprep.subr.mxu0 0.0
        %2414 = vmatpush1.msra.mxu0 0.0
        %2415 = vmatprep.subr.mxu0 0.0
        %2416 = vmatpush1.msra.mxu0 0.0
        %2417 = vmatprep.subr.mxu0 0.0
        %2418 = vmatpush1.msra.mxu0 0.0
        %2419 = vmatprep.subr.mxu0 0.0
        %2420 = vmatpush1.msra.mxu0 0.0
        %2421 = vmatprep.subr.mxu0 0.0
        %2422 = vmatpush1.msra.mxu0 0.0
        %2423 = vmatprep.mubr.f32.mxu0 0.0
        %2424 = vmatmul.mubr.f32.gmra.mrb[0].mxu0 %v2348
        %v2425 = vpop.f32.mrb[0].mxu0
        %v2426 = vadd.f32 %v2329, %v2425
        %v2427 = vpop.f32.mrb[0].mxu0
        %2428 = vmatprep.mubr.f32.mxu0 0.0
        %2429 = vmatmul.mubr.f32.gmra.mrb[0].mxu0 %v2351
        %v2430 = vpop.f32.mrb[0].mxu0
        %v2431 = vadd.f32 %v2334, %v2430
        %v2432 = vpop.f32.mrb[0].mxu0
        %2433 = vmatprep.mubr.f32.mxu0 0.0
        %2434 = vmatmul.mubr.f32.gmra.mrb[0].mxu0 %v2354
        %v2435 = vpop.f32.mrb[0].mxu0
        %v2436 = vadd.f32 %v2339, %v2435
        %v2437 = vpop.f32.mrb[0].mxu0
        %2438 = vmatprep.mubr.f32.mxu0 0.0
        %2439 = vmatmul.mubr.f32.gmra.mrb[0].mxu0 %v2357
        %v2440 = vpop.f32.mrb[0].mxu0
        %v2441 = vadd.f32 %v2344, %v2440
        %v2442 = vpop.f32.mrb[0].mxu0
        %2443 = vdwg.mxu0
        %s2444 = scalar_lea.vmem [#allocation8], 160
        %v2445 = vld [vmem:[%s2444] sm:$0xff]
        %v2446 = vld [vmem:[%s2444 + $0x8] sm:$0xff]
        %v2447 = vld [vmem:[%s2444 + $0x10] sm:$0xff]
        %v2448 = vld [vmem:[%s2444 + $0x18] sm:$0xff]
        %v2450 = vsel %vm1426, %v2236, 0
        %v2453 = vsel %vm1426, %v2237, 0
        %v2456 = vsel %vm1426, %v2238, 0
        %v2459 = vsel %vm1426, %v2239, 0
        %2461 = vmatprep.subr.mxu0 0.0
        %2462 = vmatpush1.msra.mxu0 %v2445
        %2463 = vmatprep.subr.mxu0 0.0
        %2464 = vmatpush1.msra.mxu0 %v2446
        %2465 = vmatprep.subr.mxu0 0.0
        %2466 = vmatpush1.msra.mxu0 %v2447
        %2467 = vmatprep.subr.mxu0 0.0
        %2468 = vmatpush1.msra.mxu0 %v2448
        %2469 = vmatprep.subr.mxu0 0.0
        %2470 = vmatpush1.msra.mxu0 0.0
        %2471 = vmatprep.subr.mxu0 0.0
        %2472 = vmatpush1.msra.mxu0 0.0
        %2473 = vmatprep.subr.mxu0 0.0
        %2474 = vmatpush1.msra.mxu0 0.0
        %2475 = vmatprep.subr.mxu0 0.0
        %2476 = vmatpush1.msra.mxu0 0.0
        %2477 = vmatprep.subr.mxu0 0.0
        %2478 = vmatpush1.msra.mxu0 0.0
        %2479 = vmatprep.subr.mxu0 0.0
        %2480 = vmatpush1.msra.mxu0 0.0
        %2481 = vmatprep.subr.mxu0 0.0
        %2482 = vmatpush1.msra.mxu0 0.0
        %2483 = vmatprep.subr.mxu0 0.0
        %2484 = vmatpush1.msra.mxu0 0.0
        %2485 = vmatprep.subr.mxu0 0.0
        %2486 = vmatpush1.msra.mxu0 0.0
        %2487 = vmatprep.subr.mxu0 0.0
        %2488 = vmatpush1.msra.mxu0 0.0
        %2489 = vmatprep.subr.mxu0 0.0
        %2490 = vmatpush1.msra.mxu0 0.0
        %2491 = vmatprep.subr.mxu0 0.0
        %2492 = vmatpush1.msra.mxu0 0.0
        %2493 = vmatprep.subr.mxu0 0.0
        %2494 = vmatpush1.msra.mxu0 0.0
        %2495 = vmatprep.subr.mxu0 0.0
        %2496 = vmatpush1.msra.mxu0 0.0
        %2497 = vmatprep.subr.mxu0 0.0
        %2498 = vmatpush1.msra.mxu0 0.0
        %2499 = vmatprep.subr.mxu0 0.0
        %2500 = vmatpush1.msra.mxu0 0.0
        %2501 = vmatprep.subr.mxu0 0.0
        %2502 = vmatpush1.msra.mxu0 0.0
        %2503 = vmatprep.subr.mxu0 0.0
        %2504 = vmatpush1.msra.mxu0 0.0
        %2505 = vmatprep.subr.mxu0 0.0
        %2506 = vmatpush1.msra.mxu0 0.0
        %2507 = vmatprep.subr.mxu0 0.0
        %2508 = vmatpush1.msra.mxu0 0.0
        %2509 = vmatprep.subr.mxu0 0.0
        %2510 = vmatpush1.msra.mxu0 0.0
        %2511 = vmatprep.subr.mxu0 0.0
        %2512 = vmatpush1.msra.mxu0 0.0
        %2513 = vmatprep.subr.mxu0 0.0
        %2514 = vmatpush1.msra.mxu0 0.0
        %2515 = vmatprep.subr.mxu0 0.0
        %2516 = vmatpush1.msra.mxu0 0.0
        %2517 = vmatprep.subr.mxu0 0.0
        %2518 = vmatpush1.msra.mxu0 0.0
        %2519 = vmatprep.subr.mxu0 0.0
        %2520 = vmatpush1.msra.mxu0 0.0
        %2521 = vmatprep.subr.mxu0 0.0
        %2522 = vmatpush1.msra.mxu0 0.0
        %2523 = vmatprep.subr.mxu0 0.0
        %2524 = vmatpush1.msra.mxu0 0.0
        %2525 = vmatprep.mubr.f32.mxu0 0.0
        %2526 = vmatmul.mubr.f32.gmra.mrb[0].mxu0 %v2450
        %v2527 = vpop.f32.mrb[0].mxu0
        %v2528 = vadd.f32 0.0, %v2527
        %v2529 = vpop.f32.mrb[0].mxu0
        %2530 = vmatprep.mubr.f32.mxu0 0.0
        %2531 = vmatmul.mubr.f32.gmra.mrb[0].mxu0 %v2453
        %v2532 = vpop.f32.mrb[0].mxu0
        %v2533 = vadd.f32 0.0, %v2532
        %v2534 = vpop.f32.mrb[0].mxu0
        %2535 = vmatprep.mubr.f32.mxu0 0.0
        %2536 = vmatmul.mubr.f32.gmra.mrb[0].mxu0 %v2456
        %v2537 = vpop.f32.mrb[0].mxu0
        %v2538 = vadd.f32 0.0, %v2537
        %v2539 = vpop.f32.mrb[0].mxu0
        %2540 = vmatprep.mubr.f32.mxu0 0.0
        %2541 = vmatmul.mubr.f32.gmra.mrb[0].mxu0 %v2459
        %v2542 = vpop.f32.mrb[0].mxu0
        %v2543 = vadd.f32 0.0, %v2542
        %v2544 = vpop.f32.mrb[0].mxu0
        %2545 = vdwg.mxu0
        %v2546 = vadd.f32 %v2426, %v2528
        %v2547 = vadd.f32 %v2431, %v2533
        %v2548 = vadd.f32 %v2436, %v2538
        %v2549 = vadd.f32 %v2441, %v2543
        %s2550 = scalar_lea.vmem [#allocation10], 1
        %v2551 = vld [vmem:[%s2550] sm:$0x1]
        %v2553 = vlaneseq
        %v2554 = vshrl.u32 %v2553, 7
        %v2555 = vsub.s32 0, %v2554
        %v2556 = vrot.slane %v2551, %v2555
        %v2558 = vadd.f32 %v2546, %v2556
        %v2559 = vadd.f32 %v2547, %v2556
        %v2560 = vadd.f32 %v2548, %v2556
        %v2561 = vadd.f32 %v2549, %v2556
        %s2562 = scalar_lea.vmem [#allocation11], 96
        %v2563 = vld [vmem:[%s2562] sm:$0xff]
        %v2564 = vld [vmem:[%s2562 + $0x8] sm:$0xff]
        %v2565 = vld [vmem:[%s2562 + $0x10] sm:$0xff]
        %v2566 = vld [vmem:[%s2562 + $0x18] sm:$0xff]
        %s2567 = scalar_lea.vmem [#allocation11], 128
        %v2568 = vld [vmem:[%s2567] sm:$0xff]
        %v2569 = vld [vmem:[%s2567 + $0x8] sm:$0xff]
        %v2570 = vld [vmem:[%s2567 + $0x10] sm:$0xff]
        %v2571 = vld [vmem:[%s2567 + $0x18] sm:$0xff]
        %2572 = vmatprep.subr.mxu0 0.0
        %2573 = vmatpush1.msra.mxu0 %v2568
        %2574 = vmatprep.subr.mxu0 0.0
        %2575 = vmatpush1.msra.mxu0 %v2569
        %2576 = vmatprep.subr.mxu0 0.0
        %2577 = vmatpush1.msra.mxu0 %v2570
        %2578 = vmatprep.subr.mxu0 0.0
        %2579 = vmatpush1.msra.mxu0 %v2571
        %2580 = vmatprep.subr.mxu0 0.0
        %2581 = vmatpush1.msra.mxu0 0.0
        %2582 = vmatprep.subr.mxu0 0.0
        %2583 = vmatpush1.msra.mxu0 0.0
        %2584 = vmatprep.subr.mxu0 0.0
        %2585 = vmatpush1.msra.mxu0 0.0
        %2586 = vmatprep.subr.mxu0 0.0
        %2587 = vmatpush1.msra.mxu0 0.0
        %2588 = vmatprep.subr.mxu0 0.0
        %2589 = vmatpush1.msra.mxu0 0.0
        %2590 = vmatprep.subr.mxu0 0.0
        %2591 = vmatpush1.msra.mxu0 0.0
        %2592 = vmatprep.subr.mxu0 0.0
        %2593 = vmatpush1.msra.mxu0 0.0
        %2594 = vmatprep.subr.mxu0 0.0
        %2595 = vmatpush1.msra.mxu0 0.0
        %2596 = vmatprep.subr.mxu0 0.0
        %2597 = vmatpush1.msra.mxu0 0.0
        %2598 = vmatprep.subr.mxu0 0.0
        %2599 = vmatpush1.msra.mxu0 0.0
        %2600 = vmatprep.subr.mxu0 0.0
        %2601 = vmatpush1.msra.mxu0 0.0
        %2602 = vmatprep.subr.mxu0 0.0
        %2603 = vmatpush1.msra.mxu0 0.0
        %2604 = vmatprep.subr.mxu0 0.0
        %2605 = vmatpush1.msra.mxu0 0.0
        %2606 = vmatprep.subr.mxu0 0.0
        %2607 = vmatpush1.msra.mxu0 0.0
        %2608 = vmatprep.subr.mxu0 0.0
        %2609 = vmatpush1.msra.mxu0 0.0
        %2610 = vmatprep.subr.mxu0 0.0
        %2611 = vmatpush1.msra.mxu0 0.0
        %2612 = vmatprep.subr.mxu0 0.0
        %2613 = vmatpush1.msra.mxu0 0.0
        %2614 = vmatprep.subr.mxu0 0.0
        %2615 = vmatpush1.msra.mxu0 0.0
        %2616 = vmatprep.subr.mxu0 0.0
        %2617 = vmatpush1.msra.mxu0 0.0
        %2618 = vmatprep.subr.mxu0 0.0
        %2619 = vmatpush1.msra.mxu0 0.0
        %2620 = vmatprep.subr.mxu0 0.0
        %2621 = vmatpush1.msra.mxu0 0.0
        %2622 = vmatprep.subr.mxu0 0.0
        %2623 = vmatpush1.msra.mxu0 0.0
        %2624 = vmatprep.subr.mxu0 0.0
        %2625 = vmatpush1.msra.mxu0 0.0
        %2626 = vmatprep.subr.mxu0 0.0
        %2627 = vmatpush1.msra.mxu0 0.0
        %2628 = vmatprep.subr.mxu0 0.0
        %2629 = vmatpush1.msra.mxu0 0.0
        %2630 = vmatprep.subr.mxu0 0.0
        %2631 = vmatpush1.msra.mxu0 0.0
        %2632 = vmatprep.subr.mxu0 0.0
        %2633 = vmatpush1.msra.mxu0 0.0
        %2634 = vmatprep.subr.mxu0 0.0
        %2635 = vmatpush1.msra.mxu0 0.0
        %2636 = vmatprep.mubr.f32.mxu0 0.0
        %2637 = vmatmul.mubr.f32.gmra.mrb[0].mxu0 %v2251
        %v2638 = vpop.f32.mrb[0].mxu0
        %v2639 = vadd.f32 0.0, %v2638
        %v2640 = vpop.f32.mrb[0].mxu0
        %2641 = vmatprep.mubr.f32.mxu0 0.0
        %2642 = vmatmul.mubr.f32.gmra.mrb[0].mxu0 %v2254
        %v2643 = vpop.f32.mrb[0].mxu0
        %v2644 = vadd.f32 0.0, %v2643
        %v2645 = vpop.f32.mrb[0].mxu0
        %2646 = vmatprep.mubr.f32.mxu0 0.0
        %2647 = vmatmul.mubr.f32.gmra.mrb[0].mxu0 %v2257
        %v2648 = vpop.f32.mrb[0].mxu0
        %v2649 = vadd.f32 0.0, %v2648
        %v2650 = vpop.f32.mrb[0].mxu0
        %2651 = vmatprep.mubr.f32.mxu0 0.0
        %2652 = vmatmul.mubr.f32.gmra.mrb[0].mxu0 %v2260
        %v2653 = vpop.f32.mrb[0].mxu0
        %v2654 = vadd.f32 0.0, %v2653
        %v2655 = vpop.f32.mrb[0].mxu0
        %2656 = vdwg.mxu0
        %2657 = vmatprep.subr.mxu0 0.0
        %2658 = vmatpush1.msra.mxu0 %v2563
        %2659 = vmatprep.subr.mxu0 0.0
        %2660 = vmatpush1.msra.mxu0 %v2564
        %2661 = vmatprep.subr.mxu0 0.0
        %2662 = vmatpush1.msra.mxu0 %v2565
        %2663 = vmatprep.subr.mxu0 0.0
        %2664 = vmatpush1.msra.mxu0 %v2566
        %2665 = vmatprep.subr.mxu0 0.0
        %2666 = vmatpush1.msra.mxu0 0.0
        %2667 = vmatprep.subr.mxu0 0.0
        %2668 = vmatpush1.msra.mxu0 0.0
        %2669 = vmatprep.subr.mxu0 0.0
        %2670 = vmatpush1.msra.mxu0 0.0
        %2671 = vmatprep.subr.mxu0 0.0
        %2672 = vmatpush1.msra.mxu0 0.0
        %2673 = vmatprep.subr.mxu0 0.0
        %2674 = vmatpush1.msra.mxu0 0.0
        %2675 = vmatprep.subr.mxu0 0.0
        %2676 = vmatpush1.msra.mxu0 0.0
        %2677 = vmatprep.subr.mxu0 0.0
        %2678 = vmatpush1.msra.mxu0 0.0
        %2679 = vmatprep.subr.mxu0 0.0
        %2680 = vmatpush1.msra.mxu0 0.0
        %2681 = vmatprep.subr.mxu0 0.0
        %2682 = vmatpush1.msra.mxu0 0.0
        %2683 = vmatprep.subr.mxu0 0.0
        %2684 = vmatpush1.msra.mxu0 0.0
        %2685 = vmatprep.subr.mxu0 0.0
        %2686 = vmatpush1.msra.mxu0 0.0
        %2687 = vmatprep.subr.mxu0 0.0
        %2688 = vmatpush1.msra.mxu0 0.0
        %2689 = vmatprep.subr.mxu0 0.0
        %2690 = vmatpush1.msra.mxu0 0.0
        %2691 = vmatprep.subr.mxu0 0.0
        %2692 = vmatpush1.msra.mxu0 0.0
        %2693 = vmatprep.subr.mxu0 0.0
        %2694 = vmatpush1.msra.mxu0 0.0
        %2695 = vmatprep.subr.mxu0 0.0
        %2696 = vmatpush1.msra.mxu0 0.0
        %2697 = vmatprep.subr.mxu0 0.0
        %2698 = vmatpush1.msra.mxu0 0.0
        %2699 = vmatprep.subr.mxu0 0.0
        %2700 = vmatpush1.msra.mxu0 0.0
        %2701 = vmatprep.subr.mxu0 0.0
        %2702 = vmatpush1.msra.mxu0 0.0
        %2703 = vmatprep.subr.mxu0 0.0
        %2704 = vmatpush1.msra.mxu0 0.0
        %2705 = vmatprep.subr.mxu0 0.0
        %2706 = vmatpush1.msra.mxu0 0.0
        %2707 = vmatprep.subr.mxu0 0.0
        %2708 = vmatpush1.msra.mxu0 0.0
        %2709 = vmatprep.subr.mxu0 0.0
        %2710 = vmatpush1.msra.mxu0 0.0
        %2711 = vmatprep.subr.mxu0 0.0
        %2712 = vmatpush1.msra.mxu0 0.0
        %2713 = vmatprep.subr.mxu0 0.0
        %2714 = vmatpush1.msra.mxu0 0.0
        %2715 = vmatprep.subr.mxu0 0.0
        %2716 = vmatpush1.msra.mxu0 0.0
        %2717 = vmatprep.subr.mxu0 0.0
        %2718 = vmatpush1.msra.mxu0 0.0
        %2719 = vmatprep.subr.mxu0 0.0
        %2720 = vmatpush1.msra.mxu0 0.0
        %2721 = vmatprep.mubr.f32.mxu0 0.0
        %2722 = vmatmul.mubr.f32.gmra.mrb[0].mxu0 %v2348
        %v2723 = vpop.f32.mrb[0].mxu0
        %v2724 = vadd.f32 %v2639, %v2723
        %v2725 = vpop.f32.mrb[0].mxu0
        %2726 = vmatprep.mubr.f32.mxu0 0.0
        %2727 = vmatmul.mubr.f32.gmra.mrb[0].mxu0 %v2351
        %v2728 = vpop.f32.mrb[0].mxu0
        %v2729 = vadd.f32 %v2644, %v2728
        %v2730 = vpop.f32.mrb[0].mxu0
        %2731 = vmatprep.mubr.f32.mxu0 0.0
        %2732 = vmatmul.mubr.f32.gmra.mrb[0].mxu0 %v2354
        %v2733 = vpop.f32.mrb[0].mxu0
        %v2734 = vadd.f32 %v2649, %v2733
        %v2735 = vpop.f32.mrb[0].mxu0
        %2736 = vmatprep.mubr.f32.mxu0 0.0
        %2737 = vmatmul.mubr.f32.gmra.mrb[0].mxu0 %v2357
        %v2738 = vpop.f32.mrb[0].mxu0
        %v2739 = vadd.f32 %v2654, %v2738
        %v2740 = vpop.f32.mrb[0].mxu0
        %2741 = vdwg.mxu0
        %s2742 = scalar_lea.vmem [#allocation11], 160
        %v2743 = vld [vmem:[%s2742] sm:$0xff]
        %v2744 = vld [vmem:[%s2742 + $0x8] sm:$0xff]
        %v2745 = vld [vmem:[%s2742 + $0x10] sm:$0xff]
        %v2746 = vld [vmem:[%s2742 + $0x18] sm:$0xff]
        %2747 = vmatprep.subr.mxu0 0.0
        %2748 = vmatpush1.msra.mxu0 %v2743
        %2749 = vmatprep.subr.mxu0 0.0
        %2750 = vmatpush1.msra.mxu0 %v2744
        %2751 = vmatprep.subr.mxu0 0.0
        %2752 = vmatpush1.msra.mxu0 %v2745
        %2753 = vmatprep.subr.mxu0 0.0
        %2754 = vmatpush1.msra.mxu0 %v2746
        %2755 = vmatprep.subr.mxu0 0.0
        %2756 = vmatpush1.msra.mxu0 0.0
        %2757 = vmatprep.subr.mxu0 0.0
        %2758 = vmatpush1.msra.mxu0 0.0
        %2759 = vmatprep.subr.mxu0 0.0
        %2760 = vmatpush1.msra.mxu0 0.0
        %2761 = vmatprep.subr.mxu0 0.0
        %2762 = vmatpush1.msra.mxu0 0.0
        %2763 = vmatprep.subr.mxu0 0.0
        %2764 = vmatpush1.msra.mxu0 0.0
        %2765 = vmatprep.subr.mxu0 0.0
        %2766 = vmatpush1.msra.mxu0 0.0
        %2767 = vmatprep.subr.mxu0 0.0
        %2768 = vmatpush1.msra.mxu0 0.0
        %2769 = vmatprep.subr.mxu0 0.0
        %2770 = vmatpush1.msra.mxu0 0.0
        %2771 = vmatprep.subr.mxu0 0.0
        %2772 = vmatpush1.msra.mxu0 0.0
        %2773 = vmatprep.subr.mxu0 0.0
        %2774 = vmatpush1.msra.mxu0 0.0
        %2775 = vmatprep.subr.mxu0 0.0
        %2776 = vmatpush1.msra.mxu0 0.0
        %2777 = vmatprep.subr.mxu0 0.0
        %2778 = vmatpush1.msra.mxu0 0.0
        %2779 = vmatprep.subr.mxu0 0.0
        %2780 = vmatpush1.msra.mxu0 0.0
        %2781 = vmatprep.subr.mxu0 0.0
        %2782 = vmatpush1.msra.mxu0 0.0
        %2783 = vmatprep.subr.mxu0 0.0
        %2784 = vmatpush1.msra.mxu0 0.0
        %2785 = vmatprep.subr.mxu0 0.0
        %2786 = vmatpush1.msra.mxu0 0.0
        %2787 = vmatprep.subr.mxu0 0.0
        %2788 = vmatpush1.msra.mxu0 0.0
        %2789 = vmatprep.subr.mxu0 0.0
        %2790 = vmatpush1.msra.mxu0 0.0
        %2791 = vmatprep.subr.mxu0 0.0
        %2792 = vmatpush1.msra.mxu0 0.0
        %2793 = vmatprep.subr.mxu0 0.0
        %2794 = vmatpush1.msra.mxu0 0.0
        %2795 = vmatprep.subr.mxu0 0.0
        %2796 = vmatpush1.msra.mxu0 0.0
        %2797 = vmatprep.subr.mxu0 0.0
        %2798 = vmatpush1.msra.mxu0 0.0
        %2799 = vmatprep.subr.mxu0 0.0
        %2800 = vmatpush1.msra.mxu0 0.0
        %2801 = vmatprep.subr.mxu0 0.0
        %2802 = vmatpush1.msra.mxu0 0.0
        %2803 = vmatprep.subr.mxu0 0.0
        %2804 = vmatpush1.msra.mxu0 0.0
        %2805 = vmatprep.subr.mxu0 0.0
        %2806 = vmatpush1.msra.mxu0 0.0
        %2807 = vmatprep.subr.mxu0 0.0
        %2808 = vmatpush1.msra.mxu0 0.0
        %2809 = vmatprep.subr.mxu0 0.0
        %2810 = vmatpush1.msra.mxu0 0.0
        %2811 = vmatprep.mubr.f32.mxu0 0.0
        %2812 = vmatmul.mubr.f32.gmra.mrb[0].mxu0 %v2450
        %v2813 = vpop.f32.mrb[0].mxu0
        %v2814 = vadd.f32 0.0, %v2813
        %v2815 = vpop.f32.mrb[0].mxu0
        %2816 = vmatprep.mubr.f32.mxu0 0.0
        %2817 = vmatmul.mubr.f32.gmra.mrb[0].mxu0 %v2453
        %v2818 = vpop.f32.mrb[0].mxu0
        %v2819 = vadd.f32 0.0, %v2818
        %v2820 = vpop.f32.mrb[0].mxu0
        %2821 = vmatprep.mubr.f32.mxu0 0.0
        %2822 = vmatmul.mubr.f32.gmra.mrb[0].mxu0 %v2456
        %v2823 = vpop.f32.mrb[0].mxu0
        %v2824 = vadd.f32 0.0, %v2823
        %v2825 = vpop.f32.mrb[0].mxu0
        %2826 = vmatprep.mubr.f32.mxu0 0.0
        %2827 = vmatmul.mubr.f32.gmra.mrb[0].mxu0 %v2459
        %v2828 = vpop.f32.mrb[0].mxu0
        %v2829 = vadd.f32 0.0, %v2828
        %v2830 = vpop.f32.mrb[0].mxu0
        %2831 = vdwg.mxu0
        %v2832 = vadd.f32 %v2724, %v2814
        %v2833 = vadd.f32 %v2729, %v2819
        %v2834 = vadd.f32 %v2734, %v2824
        %v2835 = vadd.f32 %v2739, %v2829
        %s2836 = scalar_lea.vmem [#allocation13], 1
        %v2837 = vld [vmem:[%s2836] sm:$0x1]
        %v2839 = vlaneseq
        %v2840 = vshrl.u32 %v2839, 7
        %v2841 = vsub.s32 0, %v2840
        %v2842 = vrot.slane %v2837, %v2841
        %v2844 = vadd.f32 %v2832, %v2842
        %v2845 = vadd.f32 %v2833, %v2842
        %v2846 = vadd.f32 %v2834, %v2842
        %v2847 = vadd.f32 %v2835, %v2842
        %v2848 = vtanh.pop %v2558
        %v2849 = vtanh.pop %v2559
        %v2850 = vtanh.pop %v2560
        %v2851 = vtanh.pop %v2561
        %v2852 = vxor.u32 %v2844, 2147483648
        %v2853 = vxor.u32 %v2845, 2147483648
        %v2854 = vxor.u32 %v2846, 2147483648
        %v2855 = vxor.u32 %v2847, 2147483648
        %v2856 = vmul.f32 %v2852, 1.442695
        %v2857 = vpow.pop %v2856
        %v2858 = vmul.f32 %v2853, 1.442695
        %v2859 = vpow.pop %v2858
        %v2860 = vmul.f32 %v2854, 1.442695
        %v2861 = vpow.pop %v2860
        %v2862 = vmul.f32 %v2855, 1.442695
        %v2863 = vpow.pop %v2862
        %v2864 = vadd.f32 %v2857, 1.0
        %v2865 = vadd.f32 %v2859, 1.0
        %v2866 = vadd.f32 %v2861, 1.0
        %v2867 = vadd.f32 %v2863, 1.0
        %v2868 = vrcp.pop %v2864
        %v2869 = vmul.f32 1.0, %v2868
        %v2870 = vrcp.pop %v2865
        %v2871 = vmul.f32 1.0, %v2870
        %v2872 = vrcp.pop %v2866
        %v2873 = vmul.f32 1.0, %v2872
        %v2874 = vrcp.pop %v2867
        %v2875 = vmul.f32 1.0, %v2874
        %v2876 = vmul.f32 %v2848, %v2869
        %v2877 = vmul.f32 %v2849, %v2871
        %v2878 = vmul.f32 %v2850, %v2873
        %v2879 = vmul.f32 %v2851, %v2875
        %v2881 = vsel %vm1426, %v2876, 0
        %v2884 = vsel %vm1426, %v2877, 0
        %v2887 = vsel %vm1426, %v2878, 0
        %v2890 = vsel %vm1426, %v2879, 0
        %2892 = vmatprep.subr.mxu0 0.0
        %2893 = vmatpush1.msra.mxu0 %v2054
        %2894 = vmatprep.subr.mxu0 0.0
        %2895 = vmatpush1.msra.mxu0 %v2055
        %2896 = vmatprep.subr.mxu0 0.0
        %2897 = vmatpush1.msra.mxu0 %v2056
        %2898 = vmatprep.subr.mxu0 0.0
        %2899 = vmatpush1.msra.mxu0 %v2057
        %2900 = vmatprep.subr.mxu0 0.0
        %2901 = vmatpush1.msra.mxu0 0.0
        %2902 = vmatprep.subr.mxu0 0.0
        %2903 = vmatpush1.msra.mxu0 0.0
        %2904 = vmatprep.subr.mxu0 0.0
        %2905 = vmatpush1.msra.mxu0 0.0
        %2906 = vmatprep.subr.mxu0 0.0
        %2907 = vmatpush1.msra.mxu0 0.0
        %2908 = vmatprep.subr.mxu0 0.0
        %2909 = vmatpush1.msra.mxu0 0.0
        %2910 = vmatprep.subr.mxu0 0.0
        %2911 = vmatpush1.msra.mxu0 0.0
        %2912 = vmatprep.subr.mxu0 0.0
        %2913 = vmatpush1.msra.mxu0 0.0
        %2914 = vmatprep.subr.mxu0 0.0
        %2915 = vmatpush1.msra.mxu0 0.0
        %2916 = vmatprep.subr.mxu0 0.0
        %2917 = vmatpush1.msra.mxu0 0.0
        %2918 = vmatprep.subr.mxu0 0.0
        %2919 = vmatpush1.msra.mxu0 0.0
        %2920 = vmatprep.subr.mxu0 0.0
        %2921 = vmatpush1.msra.mxu0 0.0
        %2922 = vmatprep.subr.mxu0 0.0
        %2923 = vmatpush1.msra.mxu0 0.0
        %2924 = vmatprep.subr.mxu0 0.0
        %2925 = vmatpush1.msra.mxu0 0.0
        %2926 = vmatprep.subr.mxu0 0.0
        %2927 = vmatpush1.msra.mxu0 0.0
        %2928 = vmatprep.subr.mxu0 0.0
        %2929 = vmatpush1.msra.mxu0 0.0
        %2930 = vmatprep.subr.mxu0 0.0
        %2931 = vmatpush1.msra.mxu0 0.0
        %2932 = vmatprep.subr.mxu0 0.0
        %2933 = vmatpush1.msra.mxu0 0.0
        %2934 = vmatprep.subr.mxu0 0.0
        %2935 = vmatpush1.msra.mxu0 0.0
        %2936 = vmatprep.subr.mxu0 0.0
        %2937 = vmatpush1.msra.mxu0 0.0
        %2938 = vmatprep.subr.mxu0 0.0
        %2939 = vmatpush1.msra.mxu0 0.0
        %2940 = vmatprep.subr.mxu0 0.0
        %2941 = vmatpush1.msra.mxu0 0.0
        %2942 = vmatprep.subr.mxu0 0.0
        %2943 = vmatpush1.msra.mxu0 0.0
        %2944 = vmatprep.subr.mxu0 0.0
        %2945 = vmatpush1.msra.mxu0 0.0
        %2946 = vmatprep.subr.mxu0 0.0
        %2947 = vmatpush1.msra.mxu0 0.0
        %2948 = vmatprep.subr.mxu0 0.0
        %2949 = vmatpush1.msra.mxu0 0.0
        %2950 = vmatprep.subr.mxu0 0.0
        %2951 = vmatpush1.msra.mxu0 0.0
        %2952 = vmatprep.subr.mxu0 0.0
        %2953 = vmatpush1.msra.mxu0 0.0
        %2954 = vmatprep.subr.mxu0 0.0
        %2955 = vmatpush1.msra.mxu0 0.0
        %2956 = vmatprep.mubr.f32.mxu0 0.0
        %2957 = vmatmul.mubr.f32.gmra.mrb[0].mxu0 %v2881
        %v2958 = vpop.f32.mrb[0].mxu0
        %v2959 = vadd.f32 %v2063, %v2958
        %v2960 = vpop.f32.mrb[0].mxu0
        %2961 = vmatprep.mubr.f32.mxu0 0.0
        %2962 = vmatmul.mubr.f32.gmra.mrb[0].mxu0 %v2884
        %v2963 = vpop.f32.mrb[0].mxu0
        %v2964 = vadd.f32 %v2063, %v2963
        %v2965 = vpop.f32.mrb[0].mxu0
        %2966 = vmatprep.mubr.f32.mxu0 0.0
        %2967 = vmatmul.mubr.f32.gmra.mrb[0].mxu0 %v2887
        %v2968 = vpop.f32.mrb[0].mxu0
        %v2969 = vadd.f32 %v2063, %v2968
        %v2970 = vpop.f32.mrb[0].mxu0
        %2971 = vmatprep.mubr.f32.mxu0 0.0
        %2972 = vmatmul.mubr.f32.gmra.mrb[0].mxu0 %v2890
        %v2973 = vpop.f32.mrb[0].mxu0
        %v2974 = vadd.f32 %v2063, %v2973
        %v2975 = vpop.f32.mrb[0].mxu0
        %2976 = vdwg.mxu0
        %v2977 = vadd.f32 %v2162, %v2959
        %v2978 = vadd.f32 %v2163, %v2964
        %v2979 = vadd.f32 %v2164, %v2969
        %v2980 = vadd.f32 %v2165, %v2974
        %v2981 = vrot.slane %v2959, 4
        %v2982 = vrot.slane %v2964, 4
        %v2983 = vrot.slane %v2969, 4
        %v2984 = vrot.slane %v2974, 4
        %vm2985 = vcmp.lt.s32.totalorder %v854, 4
        %v2986 = vsel %vm2985, %v2983, %v2984
        %v2987 = vsel %vm2985, %v2982, %v2983
        %v2988 = vsel %vm2985, %v2981, %v2982
        %v2989 = vsel %vm2985, %v2984, %v2981
        %v2990 = vadd.s32 %v902, 4294967292
        %v2991 = vadd.s32 %v903, 4294967292
        %v2992 = vadd.s32 %v904, 4294967292
        %v2993 = vadd.s32 %v905, 4294967292
        %vm2994 = vcmp.ge.s32.totalorder %v2990, 0
        %vm2995 = vcmp.ge.s32.totalorder %v2991, 0
        %vm2996 = vcmp.ge.s32.totalorder %v2992, 0
        %vm2997 = vcmp.ge.s32.totalorder %v2993, 0
        %vm2998 = vcmp.lt.s32.totalorder %v2990, 32
        %vm2999 = vcmp.lt.s32.totalorder %v2991, 32
        %vm3000 = vcmp.lt.s32.totalorder %v2992, 32
        %vm3001 = vcmp.lt.s32.totalorder %v2993, 32
        %vm3002 = vmand %vm2994, %vm2998
        %vm3003 = vmand %vm2995, %vm2999
        %vm3004 = vmand %vm2996, %vm3000
        %vm3005 = vmand %vm2997, %vm3001
        %v3006 = vsel %vm3002, 1, 0
        %v3007 = vsel %vm3003, 1, 0
        %v3008 = vsel %vm3004, 1, 0
        %v3009 = vsel %vm3005, 1, 0
        %vm3010 = vcmp.eq.s32.totalorder %v3006, 1
        %vm3011 = vcmp.eq.s32.totalorder %v3007, 1
        %vm3012 = vcmp.eq.s32.totalorder %v3008, 1
        %vm3013 = vcmp.eq.s32.totalorder %v3009, 1
        %v3014 = vsel %vm3010, %v2989, 0.0
        %v3015 = vsel %vm3011, %v2988, 0.0
        %v3016 = vsel %vm3012, %v2987, 0.0
        %v3017 = vsel %vm3013, %v2986, 0.0
        %v3018 = vadd.s32 %v902, 4
        %v3019 = vadd.s32 %v903, 4
        %v3020 = vadd.s32 %v904, 4
        %v3021 = vadd.s32 %v905, 4
        %vm3022 = vcmp.ge.s32.totalorder %v3018, 0
        %vm3023 = vcmp.ge.s32.totalorder %v3019, 0
        %vm3024 = vcmp.ge.s32.totalorder %v3020, 0
        %vm3025 = vcmp.ge.s32.totalorder %v3021, 0
        %vm3026 = vcmp.lt.s32.totalorder %v3018, 32
        %vm3027 = vcmp.lt.s32.totalorder %v3019, 32
        %vm3028 = vcmp.lt.s32.totalorder %v3020, 32
        %vm3029 = vcmp.lt.s32.totalorder %v3021, 32
        %vm3030 = vmand %vm3022, %vm3026
        %vm3031 = vmand %vm3023, %vm3027
        %vm3032 = vmand %vm3024, %vm3028
        %vm3033 = vmand %vm3025, %vm3029
        %v3034 = vsel %vm3030, 1, 0
        %v3035 = vsel %vm3031, 1, 0
        %v3036 = vsel %vm3032, 1, 0
        %v3037 = vsel %vm3033, 1, 0
        %vm3038 = vcmp.eq.s32.totalorder %v3034, 1
        %vm3039 = vcmp.eq.s32.totalorder %v3035, 1
        %vm3040 = vcmp.eq.s32.totalorder %v3036, 1
        %vm3041 = vcmp.eq.s32.totalorder %v3037, 1
        %v3042 = vsel %vm3038, %v2988, 0.0
        %v3043 = vsel %vm3039, %v2987, 0.0
        %v3044 = vsel %vm3040, %v2986, 0.0
        %v3045 = vsel %vm3041, %v2989, 0.0
        %s3046 = scalar_lea.vmem [#allocation8], 192
        %v3047 = vld [vmem:[%s3046] sm:$0xff]
        %v3048 = vld [vmem:[%s3046 + $0x8] sm:$0xff]
        %v3049 = vld [vmem:[%s3046 + $0x10] sm:$0xff]
        %v3050 = vld [vmem:[%s3046 + $0x18] sm:$0xff]
        %s3051 = scalar_lea.vmem [#allocation8], 224
        %v3052 = vld [vmem:[%s3051] sm:$0xff]
        %v3053 = vld [vmem:[%s3051 + $0x8] sm:$0xff]
        %v3054 = vld [vmem:[%s3051 + $0x10] sm:$0xff]
        %v3055 = vld [vmem:[%s3051 + $0x18] sm:$0xff]
        %v3057 = vsel %vm1426, %v2959, 0
        %v3060 = vsel %vm1426, %v2964, 0
        %v3063 = vsel %vm1426, %v2969, 0
        %v3066 = vsel %vm1426, %v2974, 0
        %3068 = vmatprep.subr.mxu0 0.0
        %3069 = vmatpush1.msra.mxu0 %v3052
        %3070 = vmatprep.subr.mxu0 0.0
        %3071 = vmatpush1.msra.mxu0 %v3053
        %3072 = vmatprep.subr.mxu0 0.0
        %3073 = vmatpush1.msra.mxu0 %v3054
        %3074 = vmatprep.subr.mxu0 0.0
        %3075 = vmatpush1.msra.mxu0 %v3055
        %3076 = vmatprep.subr.mxu0 0.0
        %3077 = vmatpush1.msra.mxu0 0.0
        %3078 = vmatprep.subr.mxu0 0.0
        %3079 = vmatpush1.msra.mxu0 0.0
        %3080 = vmatprep.subr.mxu0 0.0
        %3081 = vmatpush1.msra.mxu0 0.0
        %3082 = vmatprep.subr.mxu0 0.0
        %3083 = vmatpush1.msra.mxu0 0.0
        %3084 = vmatprep.subr.mxu0 0.0
        %3085 = vmatpush1.msra.mxu0 0.0
        %3086 = vmatprep.subr.mxu0 0.0
        %3087 = vmatpush1.msra.mxu0 0.0
        %3088 = vmatprep.subr.mxu0 0.0
        %3089 = vmatpush1.msra.mxu0 0.0
        %3090 = vmatprep.subr.mxu0 0.0
        %3091 = vmatpush1.msra.mxu0 0.0
        %3092 = vmatprep.subr.mxu0 0.0
        %3093 = vmatpush1.msra.mxu0 0.0
        %3094 = vmatprep.subr.mxu0 0.0
        %3095 = vmatpush1.msra.mxu0 0.0
        %3096 = vmatprep.subr.mxu0 0.0
        %3097 = vmatpush1.msra.mxu0 0.0
        %3098 = vmatprep.subr.mxu0 0.0
        %3099 = vmatpush1.msra.mxu0 0.0
        %3100 = vmatprep.subr.mxu0 0.0
        %3101 = vmatpush1.msra.mxu0 0.0
        %3102 = vmatprep.subr.mxu0 0.0
        %3103 = vmatpush1.msra.mxu0 0.0
        %3104 = vmatprep.subr.mxu0 0.0
        %3105 = vmatpush1.msra.mxu0 0.0
        %3106 = vmatprep.subr.mxu0 0.0
        %3107 = vmatpush1.msra.mxu0 0.0
        %3108 = vmatprep.subr.mxu0 0.0
        %3109 = vmatpush1.msra.mxu0 0.0
        %3110 = vmatprep.subr.mxu0 0.0
        %3111 = vmatpush1.msra.mxu0 0.0
        %3112 = vmatprep.subr.mxu0 0.0
        %3113 = vmatpush1.msra.mxu0 0.0
        %3114 = vmatprep.subr.mxu0 0.0
        %3115 = vmatpush1.msra.mxu0 0.0
        %3116 = vmatprep.subr.mxu0 0.0
        %3117 = vmatpush1.msra.mxu0 0.0
        %3118 = vmatprep.subr.mxu0 0.0
        %3119 = vmatpush1.msra.mxu0 0.0
        %3120 = vmatprep.subr.mxu0 0.0
        %3121 = vmatpush1.msra.mxu0 0.0
        %3122 = vmatprep.subr.mxu0 0.0
        %3123 = vmatpush1.msra.mxu0 0.0
        %3124 = vmatprep.subr.mxu0 0.0
        %3125 = vmatpush1.msra.mxu0 0.0
        %3126 = vmatprep.subr.mxu0 0.0
        %3127 = vmatpush1.msra.mxu0 0.0
        %3128 = vmatprep.subr.mxu0 0.0
        %3129 = vmatpush1.msra.mxu0 0.0
        %3130 = vmatprep.subr.mxu0 0.0
        %3131 = vmatpush1.msra.mxu0 0.0
        %3132 = vmatprep.mubr.f32.mxu0 0.0
        %3133 = vmatmul.mubr.f32.gmra.mrb[0].mxu0 %v3057
        %v3134 = vpop.f32.mrb[0].mxu0
        %v3135 = vadd.f32 0.0, %v3134
        %v3136 = vpop.f32.mrb[0].mxu0
        %3137 = vmatprep.mubr.f32.mxu0 0.0
        %3138 = vmatmul.mubr.f32.gmra.mrb[0].mxu0 %v3060
        %v3139 = vpop.f32.mrb[0].mxu0
        %v3140 = vadd.f32 0.0, %v3139
        %v3141 = vpop.f32.mrb[0].mxu0
        %3142 = vmatprep.mubr.f32.mxu0 0.0
        %3143 = vmatmul.mubr.f32.gmra.mrb[0].mxu0 %v3063
        %v3144 = vpop.f32.mrb[0].mxu0
        %v3145 = vadd.f32 0.0, %v3144
        %v3146 = vpop.f32.mrb[0].mxu0
        %3147 = vmatprep.mubr.f32.mxu0 0.0
        %3148 = vmatmul.mubr.f32.gmra.mrb[0].mxu0 %v3066
        %v3149 = vpop.f32.mrb[0].mxu0
        %v3150 = vadd.f32 0.0, %v3149
        %v3151 = vpop.f32.mrb[0].mxu0
        %3152 = vdwg.mxu0
        %v3154 = vsel %vm1426, %v3014, 0
        %v3157 = vsel %vm1426, %v3015, 0
        %v3160 = vsel %vm1426, %v3016, 0
        %v3163 = vsel %vm1426, %v3017, 0
        %3165 = vmatprep.subr.mxu0 0.0
        %3166 = vmatpush1.msra.mxu0 %v3047
        %3167 = vmatprep.subr.mxu0 0.0
        %3168 = vmatpush1.msra.mxu0 %v3048
        %3169 = vmatprep.subr.mxu0 0.0
        %3170 = vmatpush1.msra.mxu0 %v3049
        %3171 = vmatprep.subr.mxu0 0.0
        %3172 = vmatpush1.msra.mxu0 %v3050
        %3173 = vmatprep.subr.mxu0 0.0
        %3174 = vmatpush1.msra.mxu0 0.0
        %3175 = vmatprep.subr.mxu0 0.0
        %3176 = vmatpush1.msra.mxu0 0.0
        %3177 = vmatprep.subr.mxu0 0.0
        %3178 = vmatpush1.msra.mxu0 0.0
        %3179 = vmatprep.subr.mxu0 0.0
        %3180 = vmatpush1.msra.mxu0 0.0
        %3181 = vmatprep.subr.mxu0 0.0
        %3182 = vmatpush1.msra.mxu0 0.0
        %3183 = vmatprep.subr.mxu0 0.0
        %3184 = vmatpush1.msra.mxu0 0.0
        %3185 = vmatprep.subr.mxu0 0.0
        %3186 = vmatpush1.msra.mxu0 0.0
        %3187 = vmatprep.subr.mxu0 0.0
        %3188 = vmatpush1.msra.mxu0 0.0
        %3189 = vmatprep.subr.mxu0 0.0
        %3190 = vmatpush1.msra.mxu0 0.0
        %3191 = vmatprep.subr.mxu0 0.0
        %3192 = vmatpush1.msra.mxu0 0.0
        %3193 = vmatprep.subr.mxu0 0.0
        %3194 = vmatpush1.msra.mxu0 0.0
        %3195 = vmatprep.subr.mxu0 0.0
        %3196 = vmatpush1.msra.mxu0 0.0
        %3197 = vmatprep.subr.mxu0 0.0
        %3198 = vmatpush1.msra.mxu0 0.0
        %3199 = vmatprep.subr.mxu0 0.0
        %3200 = vmatpush1.msra.mxu0 0.0
        %3201 = vmatprep.subr.mxu0 0.0
        %3202 = vmatpush1.msra.mxu0 0.0
        %3203 = vmatprep.subr.mxu0 0.0
        %3204 = vmatpush1.msra.mxu0 0.0
        %3205 = vmatprep.subr.mxu0 0.0
        %3206 = vmatpush1.msra.mxu0 0.0
        %3207 = vmatprep.subr.mxu0 0.0
        %3208 = vmatpush1.msra.mxu0 0.0
        %3209 = vmatprep.subr.mxu0 0.0
        %3210 = vmatpush1.msra.mxu0 0.0
        %3211 = vmatprep.subr.mxu0 0.0
        %3212 = vmatpush1.msra.mxu0 0.0
        %3213 = vmatprep.subr.mxu0 0.0
        %3214 = vmatpush1.msra.mxu0 0.0
        %3215 = vmatprep.subr.mxu0 0.0
        %3216 = vmatpush1.msra.mxu0 0.0
        %3217 = vmatprep.subr.mxu0 0.0
        %3218 = vmatpush1.msra.mxu0 0.0
        %3219 = vmatprep.subr.mxu0 0.0
        %3220 = vmatpush1.msra.mxu0 0.0
        %3221 = vmatprep.subr.mxu0 0.0
        %3222 = vmatpush1.msra.mxu0 0.0
        %3223 = vmatprep.subr.mxu0 0.0
        %3224 = vmatpush1.msra.mxu0 0.0
        %3225 = vmatprep.subr.mxu0 0.0
        %3226 = vmatpush1.msra.mxu0 0.0
        %3227 = vmatprep.subr.mxu0 0.0
        %3228 = vmatpush1.msra.mxu0 0.0
        %3229 = vmatprep.mubr.f32.mxu0 0.0
        %3230 = vmatmul.mubr.f32.gmra.mrb[0].mxu0 %v3154
        %v3231 = vpop.f32.mrb[0].mxu0
        %v3232 = vadd.f32 %v3135, %v3231
        %v3233 = vpop.f32.mrb[0].mxu0
        %3234 = vmatprep.mubr.f32.mxu0 0.0
        %3235 = vmatmul.mubr.f32.gmra.mrb[0].mxu0 %v3157
        %v3236 = vpop.f32.mrb[0].mxu0
        %v3237 = vadd.f32 %v3140, %v3236
        %v3238 = vpop.f32.mrb[0].mxu0
        %3239 = vmatprep.mubr.f32.mxu0 0.0
        %3240 = vmatmul.mubr.f32.gmra.mrb[0].mxu0 %v3160
        %v3241 = vpop.f32.mrb[0].mxu0
        %v3242 = vadd.f32 %v3145, %v3241
        %v3243 = vpop.f32.mrb[0].mxu0
        %3244 = vmatprep.mubr.f32.mxu0 0.0
        %3245 = vmatmul.mubr.f32.gmra.mrb[0].mxu0 %v3163
        %v3246 = vpop.f32.mrb[0].mxu0
        %v3247 = vadd.f32 %v3150, %v3246
        %v3248 = vpop.f32.mrb[0].mxu0
        %3249 = vdwg.mxu0
        %s3250 = scalar_lea.vmem [#allocation8], 256
        %v3251 = vld [vmem:[%s3250] sm:$0xff]
        %v3252 = vld [vmem:[%s3250 + $0x8] sm:$0xff]
        %v3253 = vld [vmem:[%s3250 + $0x10] sm:$0xff]
        %v3254 = vld [vmem:[%s3250 + $0x18] sm:$0xff]
        %v3256 = vsel %vm1426, %v3042, 0
        %v3259 = vsel %vm1426, %v3043, 0
        %v3262 = vsel %vm1426, %v3044, 0
        %v3265 = vsel %vm1426, %v3045, 0
        %3267 = vmatprep.subr.mxu0 0.0
        %3268 = vmatpush1.msra.mxu0 %v3251
        %3269 = vmatprep.subr.mxu0 0.0
        %3270 = vmatpush1.msra.mxu0 %v3252
        %3271 = vmatprep.subr.mxu0 0.0
        %3272 = vmatpush1.msra.mxu0 %v3253
        %3273 = vmatprep.subr.mxu0 0.0
        %3274 = vmatpush1.msra.mxu0 %v3254
        %3275 = vmatprep.subr.mxu0 0.0
        %3276 = vmatpush1.msra.mxu0 0.0
        %3277 = vmatprep.subr.mxu0 0.0
        %3278 = vmatpush1.msra.mxu0 0.0
        %3279 = vmatprep.subr.mxu0 0.0
        %3280 = vmatpush1.msra.mxu0 0.0
        %3281 = vmatprep.subr.mxu0 0.0
        %3282 = vmatpush1.msra.mxu0 0.0
        %3283 = vmatprep.subr.mxu0 0.0
        %3284 = vmatpush1.msra.mxu0 0.0
        %3285 = vmatprep.subr.mxu0 0.0
        %3286 = vmatpush1.msra.mxu0 0.0
        %3287 = vmatprep.subr.mxu0 0.0
        %3288 = vmatpush1.msra.mxu0 0.0
        %3289 = vmatprep.subr.mxu0 0.0
        %3290 = vmatpush1.msra.mxu0 0.0
        %3291 = vmatprep.subr.mxu0 0.0
        %3292 = vmatpush1.msra.mxu0 0.0
        %3293 = vmatprep.subr.mxu0 0.0
        %3294 = vmatpush1.msra.mxu0 0.0
        %3295 = vmatprep.subr.mxu0 0.0
        %3296 = vmatpush1.msra.mxu0 0.0
        %3297 = vmatprep.subr.mxu0 0.0
        %3298 = vmatpush1.msra.mxu0 0.0
        %3299 = vmatprep.subr.mxu0 0.0
        %3300 = vmatpush1.msra.mxu0 0.0
        %3301 = vmatprep.subr.mxu0 0.0
        %3302 = vmatpush1.msra.mxu0 0.0
        %3303 = vmatprep.subr.mxu0 0.0
        %3304 = vmatpush1.msra.mxu0 0.0
        %3305 = vmatprep.subr.mxu0 0.0
        %3306 = vmatpush1.msra.mxu0 0.0
        %3307 = vmatprep.subr.mxu0 0.0
        %3308 = vmatpush1.msra.mxu0 0.0
        %3309 = vmatprep.subr.mxu0 0.0
        %3310 = vmatpush1.msra.mxu0 0.0
        %3311 = vmatprep.subr.mxu0 0.0
        %3312 = vmatpush1.msra.mxu0 0.0
        %3313 = vmatprep.subr.mxu0 0.0
        %3314 = vmatpush1.msra.mxu0 0.0
        %3315 = vmatprep.subr.mxu0 0.0
        %3316 = vmatpush1.msra.mxu0 0.0
        %3317 = vmatprep.subr.mxu0 0.0
        %3318 = vmatpush1.msra.mxu0 0.0
        %3319 = vmatprep.subr.mxu0 0.0
        %3320 = vmatpush1.msra.mxu0 0.0
        %3321 = vmatprep.subr.mxu0 0.0
        %3322 = vmatpush1.msra.mxu0 0.0
        %3323 = vmatprep.subr.mxu0 0.0
        %3324 = vmatpush1.msra.mxu0 0.0
        %3325 = vmatprep.subr.mxu0 0.0
        %3326 = vmatpush1.msra.mxu0 0.0
        %3327 = vmatprep.subr.mxu0 0.0
        %3328 = vmatpush1.msra.mxu0 0.0
        %3329 = vmatprep.subr.mxu0 0.0
        %3330 = vmatpush1.msra.mxu0 0.0
        %3331 = vmatprep.mubr.f32.mxu0 0.0
        %3332 = vmatmul.mubr.f32.gmra.mrb[0].mxu0 %v3256
        %v3333 = vpop.f32.mrb[0].mxu0
        %v3334 = vadd.f32 0.0, %v3333
        %v3335 = vpop.f32.mrb[0].mxu0
        %3336 = vmatprep.mubr.f32.mxu0 0.0
        %3337 = vmatmul.mubr.f32.gmra.mrb[0].mxu0 %v3259
        %v3338 = vpop.f32.mrb[0].mxu0
        %v3339 = vadd.f32 0.0, %v3338
        %v3340 = vpop.f32.mrb[0].mxu0
        %3341 = vmatprep.mubr.f32.mxu0 0.0
        %3342 = vmatmul.mubr.f32.gmra.mrb[0].mxu0 %v3262
        %v3343 = vpop.f32.mrb[0].mxu0
        %v3344 = vadd.f32 0.0, %v3343
        %v3345 = vpop.f32.mrb[0].mxu0
        %3346 = vmatprep.mubr.f32.mxu0 0.0
        %3347 = vmatmul.mubr.f32.gmra.mrb[0].mxu0 %v3265
        %v3348 = vpop.f32.mrb[0].mxu0
        %v3349 = vadd.f32 0.0, %v3348
        %v3350 = vpop.f32.mrb[0].mxu0
        %3351 = vdwg.mxu0
        %v3352 = vadd.f32 %v3232, %v3334
        %v3353 = vadd.f32 %v3237, %v3339
        %v3354 = vadd.f32 %v3242, %v3344
        %v3355 = vadd.f32 %v3247, %v3349
        %s3356 = scalar_lea.vmem [#allocation10], 2
        %v3357 = vld [vmem:[%s3356] sm:$0x1]
        %v3359 = vlaneseq
        %v3360 = vshrl.u32 %v3359, 7
        %v3361 = vsub.s32 0, %v3360
        %v3362 = vrot.slane %v3357, %v3361
        %v3364 = vadd.f32 %v3352, %v3362
        %v3365 = vadd.f32 %v3353, %v3362
        %v3366 = vadd.f32 %v3354, %v3362
        %v3367 = vadd.f32 %v3355, %v3362
        %s3368 = scalar_lea.vmem [#allocation11], 192
        %v3369 = vld [vmem:[%s3368] sm:$0xff]
        %v3370 = vld [vmem:[%s3368 + $0x8] sm:$0xff]
        %v3371 = vld [vmem:[%s3368 + $0x10] sm:$0xff]
        %v3372 = vld [vmem:[%s3368 + $0x18] sm:$0xff]
        %s3373 = scalar_lea.vmem [#allocation11], 224
        %v3374 = vld [vmem:[%s3373] sm:$0xff]
        %v3375 = vld [vmem:[%s3373 + $0x8] sm:$0xff]
        %v3376 = vld [vmem:[%s3373 + $0x10] sm:$0xff]
        %v3377 = vld [vmem:[%s3373 + $0x18] sm:$0xff]
        %3378 = vmatprep.subr.mxu0 0.0
        %3379 = vmatpush1.msra.mxu0 %v3374
        %3380 = vmatprep.subr.mxu0 0.0
        %3381 = vmatpush1.msra.mxu0 %v3375
        %3382 = vmatprep.subr.mxu0 0.0
        %3383 = vmatpush1.msra.mxu0 %v3376
        %3384 = vmatprep.subr.mxu0 0.0
        %3385 = vmatpush1.msra.mxu0 %v3377
        %3386 = vmatprep.subr.mxu0 0.0
        %3387 = vmatpush1.msra.mxu0 0.0
        %3388 = vmatprep.subr.mxu0 0.0
        %3389 = vmatpush1.msra.mxu0 0.0
        %3390 = vmatprep.subr.mxu0 0.0
        %3391 = vmatpush1.msra.mxu0 0.0
        %3392 = vmatprep.subr.mxu0 0.0
        %3393 = vmatpush1.msra.mxu0 0.0
        %3394 = vmatprep.subr.mxu0 0.0
        %3395 = vmatpush1.msra.mxu0 0.0
        %3396 = vmatprep.subr.mxu0 0.0
        %3397 = vmatpush1.msra.mxu0 0.0
        %3398 = vmatprep.subr.mxu0 0.0
        %3399 = vmatpush1.msra.mxu0 0.0
        %3400 = vmatprep.subr.mxu0 0.0
        %3401 = vmatpush1.msra.mxu0 0.0
        %3402 = vmatprep.subr.mxu0 0.0
        %3403 = vmatpush1.msra.mxu0 0.0
        %3404 = vmatprep.subr.mxu0 0.0
        %3405 = vmatpush1.msra.mxu0 0.0
        %3406 = vmatprep.subr.mxu0 0.0
        %3407 = vmatpush1.msra.mxu0 0.0
        %3408 = vmatprep.subr.mxu0 0.0
        %3409 = vmatpush1.msra.mxu0 0.0
        %3410 = vmatprep.subr.mxu0 0.0
        %3411 = vmatpush1.msra.mxu0 0.0
        %3412 = vmatprep.subr.mxu0 0.0
        %3413 = vmatpush1.msra.mxu0 0.0
        %3414 = vmatprep.subr.mxu0 0.0
        %3415 = vmatpush1.msra.mxu0 0.0
        %3416 = vmatprep.subr.mxu0 0.0
        %3417 = vmatpush1.msra.mxu0 0.0
        %3418 = vmatprep.subr.mxu0 0.0
        %3419 = vmatpush1.msra.mxu0 0.0
        %3420 = vmatprep.subr.mxu0 0.0
        %3421 = vmatpush1.msra.mxu0 0.0
        %3422 = vmatprep.subr.mxu0 0.0
        %3423 = vmatpush1.msra.mxu0 0.0
        %3424 = vmatprep.subr.mxu0 0.0
        %3425 = vmatpush1.msra.mxu0 0.0
        %3426 = vmatprep.subr.mxu0 0.0
        %3427 = vmatpush1.msra.mxu0 0.0
        %3428 = vmatprep.subr.mxu0 0.0
        %3429 = vmatpush1.msra.mxu0 0.0
        %3430 = vmatprep.subr.mxu0 0.0
        %3431 = vmatpush1.msra.mxu0 0.0
        %3432 = vmatprep.subr.mxu0 0.0
        %3433 = vmatpush1.msra.mxu0 0.0
        %3434 = vmatprep.subr.mxu0 0.0
        %3435 = vmatpush1.msra.mxu0 0.0
        %3436 = vmatprep.subr.mxu0 0.0
        %3437 = vmatpush1.msra.mxu0 0.0
        %3438 = vmatprep.subr.mxu0 0.0
        %3439 = vmatpush1.msra.mxu0 0.0
        %3440 = vmatprep.subr.mxu0 0.0
        %3441 = vmatpush1.msra.mxu0 0.0
        %3442 = vmatprep.mubr.f32.mxu0 0.0
        %3443 = vmatmul.mubr.f32.gmra.mrb[0].mxu0 %v3057
        %v3444 = vpop.f32.mrb[0].mxu0
        %v3445 = vadd.f32 0.0, %v3444
        %v3446 = vpop.f32.mrb[0].mxu0
        %3447 = vmatprep.mubr.f32.mxu0 0.0
        %3448 = vmatmul.mubr.f32.gmra.mrb[0].mxu0 %v3060
        %v3449 = vpop.f32.mrb[0].mxu0
        %v3450 = vadd.f32 0.0, %v3449
        %v3451 = vpop.f32.mrb[0].mxu0
        %3452 = vmatprep.mubr.f32.mxu0 0.0
        %3453 = vmatmul.mubr.f32.gmra.mrb[0].mxu0 %v3063
        %v3454 = vpop.f32.mrb[0].mxu0
        %v3455 = vadd.f32 0.0, %v3454
        %v3456 = vpop.f32.mrb[0].mxu0
        %3457 = vmatprep.mubr.f32.mxu0 0.0
        %3458 = vmatmul.mubr.f32.gmra.mrb[0].mxu0 %v3066
        %v3459 = vpop.f32.mrb[0].mxu0
        %v3460 = vadd.f32 0.0, %v3459
        %v3461 = vpop.f32.mrb[0].mxu0
        %3462 = vdwg.mxu0
        %3463 = vmatprep.subr.mxu0 0.0
        %3464 = vmatpush1.msra.mxu0 %v3369
        %3465 = vmatprep.subr.mxu0 0.0
        %3466 = vmatpush1.msra.mxu0 %v3370
        %3467 = vmatprep.subr.mxu0 0.0
        %3468 = vmatpush1.msra.mxu0 %v3371
        %3469 = vmatprep.subr.mxu0 0.0
        %3470 = vmatpush1.msra.mxu0 %v3372
        %3471 = vmatprep.subr.mxu0 0.0
        %3472 = vmatpush1.msra.mxu0 0.0
        %3473 = vmatprep.subr.mxu0 0.0
        %3474 = vmatpush1.msra.mxu0 0.0
        %3475 = vmatprep.subr.mxu0 0.0
        %3476 = vmatpush1.msra.mxu0 0.0
        %3477 = vmatprep.subr.mxu0 0.0
        %3478 = vmatpush1.msra.mxu0 0.0
        %3479 = vmatprep.subr.mxu0 0.0
        %3480 = vmatpush1.msra.mxu0 0.0
        %3481 = vmatprep.subr.mxu0 0.0
        %3482 = vmatpush1.msra.mxu0 0.0
        %3483 = vmatprep.subr.mxu0 0.0
        %3484 = vmatpush1.msra.mxu0 0.0
        %3485 = vmatprep.subr.mxu0 0.0
        %3486 = vmatpush1.msra.mxu0 0.0
        %3487 = vmatprep.subr.mxu0 0.0
        %3488 = vmatpush1.msra.mxu0 0.0
        %3489 = vmatprep.subr.mxu0 0.0
        %3490 = vmatpush1.msra.mxu0 0.0
        %3491 = vmatprep.subr.mxu0 0.0
        %3492 = vmatpush1.msra.mxu0 0.0
        %3493 = vmatprep.subr.mxu0 0.0
        %3494 = vmatpush1.msra.mxu0 0.0
        %3495 = vmatprep.subr.mxu0 0.0
        %3496 = vmatpush1.msra.mxu0 0.0
        %3497 = vmatprep.subr.mxu0 0.0
        %3498 = vmatpush1.msra.mxu0 0.0
        %3499 = vmatprep.subr.mxu0 0.0
        %3500 = vmatpush1.msra.mxu0 0.0
        %3501 = vmatprep.subr.mxu0 0.0
        %3502 = vmatpush1.msra.mxu0 0.0
        %3503 = vmatprep.subr.mxu0 0.0
        %3504 = vmatpush1.msra.mxu0 0.0
        %3505 = vmatprep.subr.mxu0 0.0
        %3506 = vmatpush1.msra.mxu0 0.0
        %3507 = vmatprep.subr.mxu0 0.0
        %3508 = vmatpush1.msra.mxu0 0.0
        %3509 = vmatprep.subr.mxu0 0.0
        %3510 = vmatpush1.msra.mxu0 0.0
        %3511 = vmatprep.subr.mxu0 0.0
        %3512 = vmatpush1.msra.mxu0 0.0
        %3513 = vmatprep.subr.mxu0 0.0
        %3514 = vmatpush1.msra.mxu0 0.0
        %3515 = vmatprep.subr.mxu0 0.0
        %3516 = vmatpush1.msra.mxu0 0.0
        %3517 = vmatprep.subr.mxu0 0.0
        %3518 = vmatpush1.msra.mxu0 0.0
        %3519 = vmatprep.subr.mxu0 0.0
        %3520 = vmatpush1.msra.mxu0 0.0
        %3521 = vmatprep.subr.mxu0 0.0
        %3522 = vmatpush1.msra.mxu0 0.0
        %3523 = vmatprep.subr.mxu0 0.0
        %3524 = vmatpush1.msra.mxu0 0.0
        %3525 = vmatprep.subr.mxu0 0.0
        %3526 = vmatpush1.msra.mxu0 0.0
        %3527 = vmatprep.mubr.f32.mxu0 0.0
        %3528 = vmatmul.mubr.f32.gmra.mrb[0].mxu0 %v3154
        %v3529 = vpop.f32.mrb[0].mxu0
        %v3530 = vadd.f32 %v3445, %v3529
        %v3531 = vpop.f32.mrb[0].mxu0
        %3532 = vmatprep.mubr.f32.mxu0 0.0
        %3533 = vmatmul.mubr.f32.gmra.mrb[0].mxu0 %v3157
        %v3534 = vpop.f32.mrb[0].mxu0
        %v3535 = vadd.f32 %v3450, %v3534
        %v3536 = vpop.f32.mrb[0].mxu0
        %3537 = vmatprep.mubr.f32.mxu0 0.0
        %3538 = vmatmul.mubr.f32.gmra.mrb[0].mxu0 %v3160
        %v3539 = vpop.f32.mrb[0].mxu0
        %v3540 = vadd.f32 %v3455, %v3539
        %v3541 = vpop.f32.mrb[0].mxu0
        %3542 = vmatprep.mubr.f32.mxu0 0.0
        %3543 = vmatmul.mubr.f32.gmra.mrb[0].mxu0 %v3163
        %v3544 = vpop.f32.mrb[0].mxu0
        %v3545 = vadd.f32 %v3460, %v3544
        %v3546 = vpop.f32.mrb[0].mxu0
        %3547 = vdwg.mxu0
        %s3548 = scalar_lea.vmem [#allocation11], 256
        %v3549 = vld [vmem:[%s3548] sm:$0xff]
        %v3550 = vld [vmem:[%s3548 + $0x8] sm:$0xff]
        %v3551 = vld [vmem:[%s3548 + $0x10] sm:$0xff]
        %v3552 = vld [vmem:[%s3548 + $0x18] sm:$0xff]
        %3553 = vmatprep.subr.mxu0 0.0
        %3554 = vmatpush1.msra.mxu0 %v3549
        %3555 = vmatprep.subr.mxu0 0.0
        %3556 = vmatpush1.msra.mxu0 %v3550
        %3557 = vmatprep.subr.mxu0 0.0
        %3558 = vmatpush1.msra.mxu0 %v3551
        %3559 = vmatprep.subr.mxu0 0.0
        %3560 = vmatpush1.msra.mxu0 %v3552
        %3561 = vmatprep.subr.mxu0 0.0
        %3562 = vmatpush1.msra.mxu0 0.0
        %3563 = vmatprep.subr.mxu0 0.0
        %3564 = vmatpush1.msra.mxu0 0.0
        %3565 = vmatprep.subr.mxu0 0.0
        %3566 = vmatpush1.msra.mxu0 0.0
        %3567 = vmatprep.subr.mxu0 0.0
        %3568 = vmatpush1.msra.mxu0 0.0
        %3569 = vmatprep.subr.mxu0 0.0
        %3570 = vmatpush1.msra.mxu0 0.0
        %3571 = vmatprep.subr.mxu0 0.0
        %3572 = vmatpush1.msra.mxu0 0.0
        %3573 = vmatprep.subr.mxu0 0.0
        %3574 = vmatpush1.msra.mxu0 0.0
        %3575 = vmatprep.subr.mxu0 0.0
        %3576 = vmatpush1.msra.mxu0 0.0
        %3577 = vmatprep.subr.mxu0 0.0
        %3578 = vmatpush1.msra.mxu0 0.0
        %3579 = vmatprep.subr.mxu0 0.0
        %3580 = vmatpush1.msra.mxu0 0.0
        %3581 = vmatprep.subr.mxu0 0.0
        %3582 = vmatpush1.msra.mxu0 0.0
        %3583 = vmatprep.subr.mxu0 0.0
        %3584 = vmatpush1.msra.mxu0 0.0
        %3585 = vmatprep.subr.mxu0 0.0
        %3586 = vmatpush1.msra.mxu0 0.0
        %3587 = vmatprep.subr.mxu0 0.0
        %3588 = vmatpush1.msra.mxu0 0.0
        %3589 = vmatprep.subr.mxu0 0.0
        %3590 = vmatpush1.msra.mxu0 0.0
        %3591 = vmatprep.subr.mxu0 0.0
        %3592 = vmatpush1.msra.mxu0 0.0
        %3593 = vmatprep.subr.mxu0 0.0
        %3594 = vmatpush1.msra.mxu0 0.0
        %3595 = vmatprep.subr.mxu0 0.0
        %3596 = vmatpush1.msra.mxu0 0.0
        %3597 = vmatprep.subr.mxu0 0.0
        %3598 = vmatpush1.msra.mxu0 0.0
        %3599 = vmatprep.subr.mxu0 0.0
        %3600 = vmatpush1.msra.mxu0 0.0
        %3601 = vmatprep.subr.mxu0 0.0
        %3602 = vmatpush1.msra.mxu0 0.0
        %3603 = vmatprep.subr.mxu0 0.0
        %3604 = vmatpush1.msra.mxu0 0.0
        %3605 = vmatprep.subr.mxu0 0.0
        %3606 = vmatpush1.msra.mxu0 0.0
        %3607 = vmatprep.subr.mxu0 0.0
        %3608 = vmatpush1.msra.mxu0 0.0
        %3609 = vmatprep.subr.mxu0 0.0
        %3610 = vmatpush1.msra.mxu0 0.0
        %3611 = vmatprep.subr.mxu0 0.0
        %3612 = vmatpush1.msra.mxu0 0.0
        %3613 = vmatprep.subr.mxu0 0.0
        %3614 = vmatpush1.msra.mxu0 0.0
        %3615 = vmatprep.subr.mxu0 0.0
        %3616 = vmatpush1.msra.mxu0 0.0
        %3617 = vmatprep.mubr.f32.mxu0 0.0
        %3618 = vmatmul.mubr.f32.gmra.mrb[0].mxu0 %v3256
        %v3619 = vpop.f32.mrb[0].mxu0
        %v3620 = vadd.f32 0.0, %v3619
        %v3621 = vpop.f32.mrb[0].mxu0
        %3622 = vmatprep.mubr.f32.mxu0 0.0
        %3623 = vmatmul.mubr.f32.gmra.mrb[0].mxu0 %v3259
        %v3624 = vpop.f32.mrb[0].mxu0
        %v3625 = vadd.f32 0.0, %v3624
        %v3626 = vpop.f32.mrb[0].mxu0
        %3627 = vmatprep.mubr.f32.mxu0 0.0
        %3628 = vmatmul.mubr.f32.gmra.mrb[0].mxu0 %v3262
        %v3629 = vpop.f32.mrb[0].mxu0
        %v3630 = vadd.f32 0.0, %v3629
        %v3631 = vpop.f32.mrb[0].mxu0
        %3632 = vmatprep.mubr.f32.mxu0 0.0
        %3633 = vmatmul.mubr.f32.gmra.mrb[0].mxu0 %v3265
        %v3634 = vpop.f32.mrb[0].mxu0
        %v3635 = vadd.f32 0.0, %v3634
        %v3636 = vpop.f32.mrb[0].mxu0
        %3637 = vdwg.mxu0
        %v3638 = vadd.f32 %v3530, %v3620
        %v3639 = vadd.f32 %v3535, %v3625
        %v3640 = vadd.f32 %v3540, %v3630
        %v3641 = vadd.f32 %v3545, %v3635
        %s3642 = scalar_lea.vmem [#allocation13], 2
        %v3643 = vld [vmem:[%s3642] sm:$0x1]
        %v3645 = vlaneseq
        %v3646 = vshrl.u32 %v3645, 7
        %v3647 = vsub.s32 0, %v3646
        %v3648 = vrot.slane %v3643, %v3647
        %v3650 = vadd.f32 %v3638, %v3648
        %v3651 = vadd.f32 %v3639, %v3648
        %v3652 = vadd.f32 %v3640, %v3648
        %v3653 = vadd.f32 %v3641, %v3648
        %v3654 = vtanh.pop %v3364
        %v3655 = vtanh.pop %v3365
        %v3656 = vtanh.pop %v3366
        %v3657 = vtanh.pop %v3367
        %v3658 = vxor.u32 %v3650, 2147483648
        %v3659 = vxor.u32 %v3651, 2147483648
        %v3660 = vxor.u32 %v3652, 2147483648
        %v3661 = vxor.u32 %v3653, 2147483648
        %v3662 = vmul.f32 %v3658, 1.442695
        %v3663 = vpow.pop %v3662
        %v3664 = vmul.f32 %v3659, 1.442695
        %v3665 = vpow.pop %v3664
        %v3666 = vmul.f32 %v3660, 1.442695
        %v3667 = vpow.pop %v3666
        %v3668 = vmul.f32 %v3661, 1.442695
        %v3669 = vpow.pop %v3668
        %v3670 = vadd.f32 %v3663, 1.0
        %v3671 = vadd.f32 %v3665, 1.0
        %v3672 = vadd.f32 %v3667, 1.0
        %v3673 = vadd.f32 %v3669, 1.0
        %v3674 = vrcp.pop %v3670
        %v3675 = vmul.f32 1.0, %v3674
        %v3676 = vrcp.pop %v3671
        %v3677 = vmul.f32 1.0, %v3676
        %v3678 = vrcp.pop %v3672
        %v3679 = vmul.f32 1.0, %v3678
        %v3680 = vrcp.pop %v3673
        %v3681 = vmul.f32 1.0, %v3680
        %v3682 = vmul.f32 %v3654, %v3675
        %v3683 = vmul.f32 %v3655, %v3677
        %v3684 = vmul.f32 %v3656, %v3679
        %v3685 = vmul.f32 %v3657, %v3681
        %v3687 = vsel %vm1426, %v3682, 0
        %v3690 = vsel %vm1426, %v3683, 0
        %v3693 = vsel %vm1426, %v3684, 0
        %v3696 = vsel %vm1426, %v3685, 0
        %3698 = vmatprep.subr.mxu0 0.0
        %3699 = vmatpush1.msra.mxu0 %v2054
        %3700 = vmatprep.subr.mxu0 0.0
        %3701 = vmatpush1.msra.mxu0 %v2055
        %3702 = vmatprep.subr.mxu0 0.0
        %3703 = vmatpush1.msra.mxu0 %v2056
        %3704 = vmatprep.subr.mxu0 0.0
        %3705 = vmatpush1.msra.mxu0 %v2057
        %3706 = vmatprep.subr.mxu0 0.0
        %3707 = vmatpush1.msra.mxu0 0.0
        %3708 = vmatprep.subr.mxu0 0.0
        %3709 = vmatpush1.msra.mxu0 0.0
        %3710 = vmatprep.subr.mxu0 0.0
        %3711 = vmatpush1.msra.mxu0 0.0
        %3712 = vmatprep.subr.mxu0 0.0
        %3713 = vmatpush1.msra.mxu0 0.0
        %3714 = vmatprep.subr.mxu0 0.0
        %3715 = vmatpush1.msra.mxu0 0.0
        %3716 = vmatprep.subr.mxu0 0.0
        %3717 = vmatpush1.msra.mxu0 0.0
        %3718 = vmatprep.subr.mxu0 0.0
        %3719 = vmatpush1.msra.mxu0 0.0
        %3720 = vmatprep.subr.mxu0 0.0
        %3721 = vmatpush1.msra.mxu0 0.0
        %3722 = vmatprep.subr.mxu0 0.0
        %3723 = vmatpush1.msra.mxu0 0.0
        %3724 = vmatprep.subr.mxu0 0.0
        %3725 = vmatpush1.msra.mxu0 0.0
        %3726 = vmatprep.subr.mxu0 0.0
        %3727 = vmatpush1.msra.mxu0 0.0
        %3728 = vmatprep.subr.mxu0 0.0
        %3729 = vmatpush1.msra.mxu0 0.0
        %3730 = vmatprep.subr.mxu0 0.0
        %3731 = vmatpush1.msra.mxu0 0.0
        %3732 = vmatprep.subr.mxu0 0.0
        %3733 = vmatpush1.msra.mxu0 0.0
        %3734 = vmatprep.subr.mxu0 0.0
        %3735 = vmatpush1.msra.mxu0 0.0
        %3736 = vmatprep.subr.mxu0 0.0
        %3737 = vmatpush1.msra.mxu0 0.0
        %3738 = vmatprep.subr.mxu0 0.0
        %3739 = vmatpush1.msra.mxu0 0.0
        %3740 = vmatprep.subr.mxu0 0.0
        %3741 = vmatpush1.msra.mxu0 0.0
        %3742 = vmatprep.subr.mxu0 0.0
        %3743 = vmatpush1.msra.mxu0 0.0
        %3744 = vmatprep.subr.mxu0 0.0
        %3745 = vmatpush1.msra.mxu0 0.0
        %3746 = vmatprep.subr.mxu0 0.0
        %3747 = vmatpush1.msra.mxu0 0.0
        %3748 = vmatprep.subr.mxu0 0.0
        %3749 = vmatpush1.msra.mxu0 0.0
        %3750 = vmatprep.subr.mxu0 0.0
        %3751 = vmatpush1.msra.mxu0 0.0
        %3752 = vmatprep.subr.mxu0 0.0
        %3753 = vmatpush1.msra.mxu0 0.0
        %3754 = vmatprep.subr.mxu0 0.0
        %3755 = vmatpush1.msra.mxu0 0.0
        %3756 = vmatprep.subr.mxu0 0.0
        %3757 = vmatpush1.msra.mxu0 0.0
        %3758 = vmatprep.subr.mxu0 0.0
        %3759 = vmatpush1.msra.mxu0 0.0
        %3760 = vmatprep.subr.mxu0 0.0
        %3761 = vmatpush1.msra.mxu0 0.0
        %3762 = vmatprep.mubr.f32.mxu0 0.0
        %3763 = vmatmul.mubr.f32.gmra.mrb[0].mxu0 %v3687
        %v3764 = vpop.f32.mrb[0].mxu0
        %v3765 = vadd.f32 %v2063, %v3764
        %v3766 = vpop.f32.mrb[0].mxu0
        %3767 = vmatprep.mubr.f32.mxu0 0.0
        %3768 = vmatmul.mubr.f32.gmra.mrb[0].mxu0 %v3690
        %v3769 = vpop.f32.mrb[0].mxu0
        %v3770 = vadd.f32 %v2063, %v3769
        %v3771 = vpop.f32.mrb[0].mxu0
        %3772 = vmatprep.mubr.f32.mxu0 0.0
        %3773 = vmatmul.mubr.f32.gmra.mrb[0].mxu0 %v3693
        %v3774 = vpop.f32.mrb[0].mxu0
        %v3775 = vadd.f32 %v2063, %v3774
        %v3776 = vpop.f32.mrb[0].mxu0
        %3777 = vmatprep.mubr.f32.mxu0 0.0
        %3778 = vmatmul.mubr.f32.gmra.mrb[0].mxu0 %v3696
        %v3779 = vpop.f32.mrb[0].mxu0
        %v3780 = vadd.f32 %v2063, %v3779
        %v3781 = vpop.f32.mrb[0].mxu0
        %3782 = vdwg.mxu0
        %v3783 = vadd.f32 %v2977, %v3765
        %v3784 = vadd.f32 %v2978, %v3770
        %v3785 = vadd.f32 %v2979, %v3775
        %v3786 = vadd.f32 %v2980, %v3780
        %v3787 = vadd.s32 %v902, 4294967288
        %v3788 = vadd.s32 %v903, 4294967288
        %v3789 = vadd.s32 %v904, 4294967288
        %v3790 = vadd.s32 %v905, 4294967288
        %vm3791 = vcmp.ge.s32.totalorder %v3787, 0
        %vm3792 = vcmp.ge.s32.totalorder %v3788, 0
        %vm3793 = vcmp.ge.s32.totalorder %v3789, 0
        %vm3794 = vcmp.ge.s32.totalorder %v3790, 0
        %vm3795 = vcmp.lt.s32.totalorder %v3787, 32
        %vm3796 = vcmp.lt.s32.totalorder %v3788, 32
        %vm3797 = vcmp.lt.s32.totalorder %v3789, 32
        %vm3798 = vcmp.lt.s32.totalorder %v3790, 32
        %vm3799 = vmand %vm3791, %vm3795
        %vm3800 = vmand %vm3792, %vm3796
        %vm3801 = vmand %vm3793, %vm3797
        %vm3802 = vmand %vm3794, %vm3798
        %v3803 = vsel %vm3799, 1, 0
        %v3804 = vsel %vm3800, 1, 0
        %v3805 = vsel %vm3801, 1, 0
        %v3806 = vsel %vm3802, 1, 0
        %vm3807 = vcmp.eq.s32.totalorder %v3803, 1
        %vm3808 = vcmp.eq.s32.totalorder %v3804, 1
        %vm3809 = vcmp.eq.s32.totalorder %v3805, 1
        %vm3810 = vcmp.eq.s32.totalorder %v3806, 1
        %v3811 = vsel %vm3807, %v3780, 0.0
        %v3812 = vsel %vm3808, %v3765, 0.0
        %v3813 = vsel %vm3809, %v3770, 0.0
        %v3814 = vsel %vm3810, %v3775, 0.0
        %v3815 = vadd.s32 %v902, 8
        %v3816 = vadd.s32 %v903, 8
        %v3817 = vadd.s32 %v904, 8
        %v3818 = vadd.s32 %v905, 8
        %vm3819 = vcmp.ge.s32.totalorder %v3815, 0
        %vm3820 = vcmp.ge.s32.totalorder %v3816, 0
        %vm3821 = vcmp.ge.s32.totalorder %v3817, 0
        %vm3822 = vcmp.ge.s32.totalorder %v3818, 0
        %vm3823 = vcmp.lt.s32.totalorder %v3815, 32
        %vm3824 = vcmp.lt.s32.totalorder %v3816, 32
        %vm3825 = vcmp.lt.s32.totalorder %v3817, 32
        %vm3826 = vcmp.lt.s32.totalorder %v3818, 32
        %vm3827 = vmand %vm3819, %vm3823
        %vm3828 = vmand %vm3820, %vm3824
        %vm3829 = vmand %vm3821, %vm3825
        %vm3830 = vmand %vm3822, %vm3826
        %v3831 = vsel %vm3827, 1, 0
        %v3832 = vsel %vm3828, 1, 0
        %v3833 = vsel %vm3829, 1, 0
        %v3834 = vsel %vm3830, 1, 0
        %vm3835 = vcmp.eq.s32.totalorder %v3831, 1
        %vm3836 = vcmp.eq.s32.totalorder %v3832, 1
        %vm3837 = vcmp.eq.s32.totalorder %v3833, 1
        %vm3838 = vcmp.eq.s32.totalorder %v3834, 1
        %v3839 = vsel %vm3835, %v3770, 0.0
        %v3840 = vsel %vm3836, %v3775, 0.0
        %v3841 = vsel %vm3837, %v3780, 0.0
        %v3842 = vsel %vm3838, %v3765, 0.0
        %s3843 = scalar_lea.vmem [#allocation8], 288
        %v3844 = vld [vmem:[%s3843] sm:$0xff]
        %v3845 = vld [vmem:[%s3843 + $0x8] sm:$0xff]
        %v3846 = vld [vmem:[%s3843 + $0x10] sm:$0xff]
        %v3847 = vld [vmem:[%s3843 + $0x18] sm:$0xff]
        %s3848 = scalar_lea.vmem [#allocation8], 320
        %v3849 = vld [vmem:[%s3848] sm:$0xff]
        %v3850 = vld [vmem:[%s3848 + $0x8] sm:$0xff]
        %v3851 = vld [vmem:[%s3848 + $0x10] sm:$0xff]
        %v3852 = vld [vmem:[%s3848 + $0x18] sm:$0xff]
        %v3854 = vsel %vm1426, %v3765, 0
        %v3857 = vsel %vm1426, %v3770, 0
        %v3860 = vsel %vm1426, %v3775, 0
        %v3863 = vsel %vm1426, %v3780, 0
        %3865 = vmatprep.subr.mxu0 0.0
        %3866 = vmatpush1.msra.mxu0 %v3849
        %3867 = vmatprep.subr.mxu0 0.0
        %3868 = vmatpush1.msra.mxu0 %v3850
        %3869 = vmatprep.subr.mxu0 0.0
        %3870 = vmatpush1.msra.mxu0 %v3851
        %3871 = vmatprep.subr.mxu0 0.0
        %3872 = vmatpush1.msra.mxu0 %v3852
        %3873 = vmatprep.subr.mxu0 0.0
        %3874 = vmatpush1.msra.mxu0 0.0
        %3875 = vmatprep.subr.mxu0 0.0
        %3876 = vmatpush1.msra.mxu0 0.0
        %3877 = vmatprep.subr.mxu0 0.0
        %3878 = vmatpush1.msra.mxu0 0.0
        %3879 = vmatprep.subr.mxu0 0.0
        %3880 = vmatpush1.msra.mxu0 0.0
        %3881 = vmatprep.subr.mxu0 0.0
        %3882 = vmatpush1.msra.mxu0 0.0
        %3883 = vmatprep.subr.mxu0 0.0
        %3884 = vmatpush1.msra.mxu0 0.0
        %3885 = vmatprep.subr.mxu0 0.0
        %3886 = vmatpush1.msra.mxu0 0.0
        %3887 = vmatprep.subr.mxu0 0.0
        %3888 = vmatpush1.msra.mxu0 0.0
        %3889 = vmatprep.subr.mxu0 0.0
        %3890 = vmatpush1.msra.mxu0 0.0
        %3891 = vmatprep.subr.mxu0 0.0
        %3892 = vmatpush1.msra.mxu0 0.0
        %3893 = vmatprep.subr.mxu0 0.0
        %3894 = vmatpush1.msra.mxu0 0.0
        %3895 = vmatprep.subr.mxu0 0.0
        %3896 = vmatpush1.msra.mxu0 0.0
        %3897 = vmatprep.subr.mxu0 0.0
        %3898 = vmatpush1.msra.mxu0 0.0
        %3899 = vmatprep.subr.mxu0 0.0
        %3900 = vmatpush1.msra.mxu0 0.0
        %3901 = vmatprep.subr.mxu0 0.0
        %3902 = vmatpush1.msra.mxu0 0.0
        %3903 = vmatprep.subr.mxu0 0.0
        %3904 = vmatpush1.msra.mxu0 0.0
        %3905 = vmatprep.subr.mxu0 0.0
        %3906 = vmatpush1.msra.mxu0 0.0
        %3907 = vmatprep.subr.mxu0 0.0
        %3908 = vmatpush1.msra.mxu0 0.0
        %3909 = vmatprep.subr.mxu0 0.0
        %3910 = vmatpush1.msra.mxu0 0.0
        %3911 = vmatprep.subr.mxu0 0.0
        %3912 = vmatpush1.msra.mxu0 0.0
        %3913 = vmatprep.subr.mxu0 0.0
        %3914 = vmatpush1.msra.mxu0 0.0
        %3915 = vmatprep.subr.mxu0 0.0
        %3916 = vmatpush1.msra.mxu0 0.0
        %3917 = vmatprep.subr.mxu0 0.0
        %3918 = vmatpush1.msra.mxu0 0.0
        %3919 = vmatprep.subr.mxu0 0.0
        %3920 = vmatpush1.msra.mxu0 0.0
        %3921 = vmatprep.subr.mxu0 0.0
        %3922 = vmatpush1.msra.mxu0 0.0
        %3923 = vmatprep.subr.mxu0 0.0
        %3924 = vmatpush1.msra.mxu0 0.0
        %3925 = vmatprep.subr.mxu0 0.0
        %3926 = vmatpush1.msra.mxu0 0.0
        %3927 = vmatprep.subr.mxu0 0.0
        %3928 = vmatpush1.msra.mxu0 0.0
        %3929 = vmatprep.mubr.f32.mxu0 0.0
        %3930 = vmatmul.mubr.f32.gmra.mrb[0].mxu0 %v3854
        %v3931 = vpop.f32.mrb[0].mxu0
        %v3932 = vadd.f32 0.0, %v3931
        %v3933 = vpop.f32.mrb[0].mxu0
        %3934 = vmatprep.mubr.f32.mxu0 0.0
        %3935 = vmatmul.mubr.f32.gmra.mrb[0].mxu0 %v3857
        %v3936 = vpop.f32.mrb[0].mxu0
        %v3937 = vadd.f32 0.0, %v3936
        %v3938 = vpop.f32.mrb[0].mxu0
        %3939 = vmatprep.mubr.f32.mxu0 0.0
        %3940 = vmatmul.mubr.f32.gmra.mrb[0].mxu0 %v3860
        %v3941 = vpop.f32.mrb[0].mxu0
        %v3942 = vadd.f32 0.0, %v3941
        %v3943 = vpop.f32.mrb[0].mxu0
        %3944 = vmatprep.mubr.f32.mxu0 0.0
        %3945 = vmatmul.mubr.f32.gmra.mrb[0].mxu0 %v3863
        %v3946 = vpop.f32.mrb[0].mxu0
        %v3947 = vadd.f32 0.0, %v3946
        %v3948 = vpop.f32.mrb[0].mxu0
        %3949 = vdwg.mxu0
        %v3951 = vsel %vm1426, %v3811, 0
        %v3954 = vsel %vm1426, %v3812, 0
        %v3957 = vsel %vm1426, %v3813, 0
        %v3960 = vsel %vm1426, %v3814, 0
        %3962 = vmatprep.subr.mxu0 0.0
        %3963 = vmatpush1.msra.mxu0 %v3844
        %3964 = vmatprep.subr.mxu0 0.0
        %3965 = vmatpush1.msra.mxu0 %v3845
        %3966 = vmatprep.subr.mxu0 0.0
        %3967 = vmatpush1.msra.mxu0 %v3846
        %3968 = vmatprep.subr.mxu0 0.0
        %3969 = vmatpush1.msra.mxu0 %v3847
        %3970 = vmatprep.subr.mxu0 0.0
        %3971 = vmatpush1.msra.mxu0 0.0
        %3972 = vmatprep.subr.mxu0 0.0
        %3973 = vmatpush1.msra.mxu0 0.0
        %3974 = vmatprep.subr.mxu0 0.0
        %3975 = vmatpush1.msra.mxu0 0.0
        %3976 = vmatprep.subr.mxu0 0.0
        %3977 = vmatpush1.msra.mxu0 0.0
        %3978 = vmatprep.subr.mxu0 0.0
        %3979 = vmatpush1.msra.mxu0 0.0
        %3980 = vmatprep.subr.mxu0 0.0
        %3981 = vmatpush1.msra.mxu0 0.0
        %3982 = vmatprep.subr.mxu0 0.0
        %3983 = vmatpush1.msra.mxu0 0.0
        %3984 = vmatprep.subr.mxu0 0.0
        %3985 = vmatpush1.msra.mxu0 0.0
        %3986 = vmatprep.subr.mxu0 0.0
        %3987 = vmatpush1.msra.mxu0 0.0
        %3988 = vmatprep.subr.mxu0 0.0
        %3989 = vmatpush1.msra.mxu0 0.0
        %3990 = vmatprep.subr.mxu0 0.0
        %3991 = vmatpush1.msra.mxu0 0.0
        %3992 = vmatprep.subr.mxu0 0.0
        %3993 = vmatpush1.msra.mxu0 0.0
        %3994 = vmatprep.subr.mxu0 0.0
        %3995 = vmatpush1.msra.mxu0 0.0
        %3996 = vmatprep.subr.mxu0 0.0
        %3997 = vmatpush1.msra.mxu0 0.0
        %3998 = vmatprep.subr.mxu0 0.0
        %3999 = vmatpush1.msra.mxu0 0.0
        %4000 = vmatprep.subr.mxu0 0.0
        %4001 = vmatpush1.msra.mxu0 0.0
        %4002 = vmatprep.subr.mxu0 0.0
        %4003 = vmatpush1.msra.mxu0 0.0
        %4004 = vmatprep.subr.mxu0 0.0
        %4005 = vmatpush1.msra.mxu0 0.0
        %4006 = vmatprep.subr.mxu0 0.0
        %4007 = vmatpush1.msra.mxu0 0.0
        %4008 = vmatprep.subr.mxu0 0.0
        %4009 = vmatpush1.msra.mxu0 0.0
        %4010 = vmatprep.subr.mxu0 0.0
        %4011 = vmatpush1.msra.mxu0 0.0
        %4012 = vmatprep.subr.mxu0 0.0
        %4013 = vmatpush1.msra.mxu0 0.0
        %4014 = vmatprep.subr.mxu0 0.0
        %4015 = vmatpush1.msra.mxu0 0.0
        %4016 = vmatprep.subr.mxu0 0.0
        %4017 = vmatpush1.msra.mxu0 0.0
        %4018 = vmatprep.subr.mxu0 0.0
        %4019 = vmatpush1.msra.mxu0 0.0
        %4020 = vmatprep.subr.mxu0 0.0
        %4021 = vmatpush1.msra.mxu0 0.0
        %4022 = vmatprep.subr.mxu0 0.0
        %4023 = vmatpush1.msra.mxu0 0.0
        %4024 = vmatprep.subr.mxu0 0.0
        %4025 = vmatpush1.msra.mxu0 0.0
        %4026 = vmatprep.mubr.f32.mxu0 0.0
        %4027 = vmatmul.mubr.f32.gmra.mrb[0].mxu0 %v3951
        %v4028 = vpop.f32.mrb[0].mxu0
        %v4029 = vadd.f32 %v3932, %v4028
        %v4030 = vpop.f32.mrb[0].mxu0
        %4031 = vmatprep.mubr.f32.mxu0 0.0
        %4032 = vmatmul.mubr.f32.gmra.mrb[0].mxu0 %v3954
        %v4033 = vpop.f32.mrb[0].mxu0
        %v4034 = vadd.f32 %v3937, %v4033
        %v4035 = vpop.f32.mrb[0].mxu0
        %4036 = vmatprep.mubr.f32.mxu0 0.0
        %4037 = vmatmul.mubr.f32.gmra.mrb[0].mxu0 %v3957
        %v4038 = vpop.f32.mrb[0].mxu0
        %v4039 = vadd.f32 %v3942, %v4038
        %v4040 = vpop.f32.mrb[0].mxu0
        %4041 = vmatprep.mubr.f32.mxu0 0.0
        %4042 = vmatmul.mubr.f32.gmra.mrb[0].mxu0 %v3960
        %v4043 = vpop.f32.mrb[0].mxu0
        %v4044 = vadd.f32 %v3947, %v4043
        %v4045 = vpop.f32.mrb[0].mxu0
        %4046 = vdwg.mxu0
        %s4047 = scalar_lea.vmem [#allocation8], 352
        %v4048 = vld [vmem:[%s4047] sm:$0xff]
        %v4049 = vld [vmem:[%s4047 + $0x8] sm:$0xff]
        %v4050 = vld [vmem:[%s4047 + $0x10] sm:$0xff]
        %v4051 = vld [vmem:[%s4047 + $0x18] sm:$0xff]
        %v4053 = vsel %vm1426, %v3839, 0
        %v4056 = vsel %vm1426, %v3840, 0
        %v4059 = vsel %vm1426, %v3841, 0
        %v4062 = vsel %vm1426, %v3842, 0
        %4064 = vmatprep.subr.mxu0 0.0
        %4065 = vmatpush1.msra.mxu0 %v4048
        %4066 = vmatprep.subr.mxu0 0.0
        %4067 = vmatpush1.msra.mxu0 %v4049
        %4068 = vmatprep.subr.mxu0 0.0
        %4069 = vmatpush1.msra.mxu0 %v4050
        %4070 = vmatprep.subr.mxu0 0.0
        %4071 = vmatpush1.msra.mxu0 %v4051
        %4072 = vmatprep.subr.mxu0 0.0
        %4073 = vmatpush1.msra.mxu0 0.0
        %4074 = vmatprep.subr.mxu0 0.0
        %4075 = vmatpush1.msra.mxu0 0.0
        %4076 = vmatprep.subr.mxu0 0.0
        %4077 = vmatpush1.msra.mxu0 0.0
        %4078 = vmatprep.subr.mxu0 0.0
        %4079 = vmatpush1.msra.mxu0 0.0
        %4080 = vmatprep.subr.mxu0 0.0
        %4081 = vmatpush1.msra.mxu0 0.0
        %4082 = vmatprep.subr.mxu0 0.0
        %4083 = vmatpush1.msra.mxu0 0.0
        %4084 = vmatprep.subr.mxu0 0.0
        %4085 = vmatpush1.msra.mxu0 0.0
        %4086 = vmatprep.subr.mxu0 0.0
        %4087 = vmatpush1.msra.mxu0 0.0
        %4088 = vmatprep.subr.mxu0 0.0
        %4089 = vmatpush1.msra.mxu0 0.0
        %4090 = vmatprep.subr.mxu0 0.0
        %4091 = vmatpush1.msra.mxu0 0.0
        %4092 = vmatprep.subr.mxu0 0.0
        %4093 = vmatpush1.msra.mxu0 0.0
        %4094 = vmatprep.subr.mxu0 0.0
        %4095 = vmatpush1.msra.mxu0 0.0
        %4096 = vmatprep.subr.mxu0 0.0
        %4097 = vmatpush1.msra.mxu0 0.0
        %4098 = vmatprep.subr.mxu0 0.0
        %4099 = vmatpush1.msra.mxu0 0.0
        %4100 = vmatprep.subr.mxu0 0.0
        %4101 = vmatpush1.msra.mxu0 0.0
        %4102 = vmatprep.subr.mxu0 0.0
        %4103 = vmatpush1.msra.mxu0 0.0
        %4104 = vmatprep.subr.mxu0 0.0
        %4105 = vmatpush1.msra.mxu0 0.0
        %4106 = vmatprep.subr.mxu0 0.0
        %4107 = vmatpush1.msra.mxu0 0.0
        %4108 = vmatprep.subr.mxu0 0.0
        %4109 = vmatpush1.msra.mxu0 0.0
        %4110 = vmatprep.subr.mxu0 0.0
        %4111 = vmatpush1.msra.mxu0 0.0
        %4112 = vmatprep.subr.mxu0 0.0
        %4113 = vmatpush1.msra.mxu0 0.0
        %4114 = vmatprep.subr.mxu0 0.0
        %4115 = vmatpush1.msra.mxu0 0.0
        %4116 = vmatprep.subr.mxu0 0.0
        %4117 = vmatpush1.msra.mxu0 0.0
        %4118 = vmatprep.subr.mxu0 0.0
        %4119 = vmatpush1.msra.mxu0 0.0
        %4120 = vmatprep.subr.mxu0 0.0
        %4121 = vmatpush1.msra.mxu0 0.0
        %4122 = vmatprep.subr.mxu0 0.0
        %4123 = vmatpush1.msra.mxu0 0.0
        %4124 = vmatprep.subr.mxu0 0.0
        %4125 = vmatpush1.msra.mxu0 0.0
        %4126 = vmatprep.subr.mxu0 0.0
        %4127 = vmatpush1.msra.mxu0 0.0
        %4128 = vmatprep.mubr.f32.mxu0 0.0
        %4129 = vmatmul.mubr.f32.gmra.mrb[0].mxu0 %v4053
        %v4130 = vpop.f32.mrb[0].mxu0
        %v4131 = vadd.f32 0.0, %v4130
        %v4132 = vpop.f32.mrb[0].mxu0
        %4133 = vmatprep.mubr.f32.mxu0 0.0
        %4134 = vmatmul.mubr.f32.gmra.mrb[0].mxu0 %v4056
        %v4135 = vpop.f32.mrb[0].mxu0
        %v4136 = vadd.f32 0.0, %v4135
        %v4137 = vpop.f32.mrb[0].mxu0
        %4138 = vmatprep.mubr.f32.mxu0 0.0
        %4139 = vmatmul.mubr.f32.gmra.mrb[0].mxu0 %v4059
        %v4140 = vpop.f32.mrb[0].mxu0
        %v4141 = vadd.f32 0.0, %v4140
        %v4142 = vpop.f32.mrb[0].mxu0
        %4143 = vmatprep.mubr.f32.mxu0 0.0
        %4144 = vmatmul.mubr.f32.gmra.mrb[0].mxu0 %v4062
        %v4145 = vpop.f32.mrb[0].mxu0
        %v4146 = vadd.f32 0.0, %v4145
        %v4147 = vpop.f32.mrb[0].mxu0
        %4148 = vdwg.mxu0
        %v4149 = vadd.f32 %v4029, %v4131
        %v4150 = vadd.f32 %v4034, %v4136
        %v4151 = vadd.f32 %v4039, %v4141
        %v4152 = vadd.f32 %v4044, %v4146
        %s4153 = scalar_lea.vmem [#allocation10], 3
        %v4154 = vld [vmem:[%s4153] sm:$0x1]
        %v4156 = vlaneseq
        %v4157 = vshrl.u32 %v4156, 7
        %v4158 = vsub.s32 0, %v4157
        %v4159 = vrot.slane %v4154, %v4158
        %v4161 = vadd.f32 %v4149, %v4159
        %v4162 = vadd.f32 %v4150, %v4159
        %v4163 = vadd.f32 %v4151, %v4159
        %v4164 = vadd.f32 %v4152, %v4159
        %s4165 = scalar_lea.vmem [#allocation11], 288
        %v4166 = vld [vmem:[%s4165] sm:$0xff]
        %v4167 = vld [vmem:[%s4165 + $0x8] sm:$0xff]
        %v4168 = vld [vmem:[%s4165 + $0x10] sm:$0xff]
        %v4169 = vld [vmem:[%s4165 + $0x18] sm:$0xff]
        %s4170 = scalar_lea.vmem [#allocation11], 320
        %v4171 = vld [vmem:[%s4170] sm:$0xff]
        %v4172 = vld [vmem:[%s4170 + $0x8] sm:$0xff]
        %v4173 = vld [vmem:[%s4170 + $0x10] sm:$0xff]
        %v4174 = vld [vmem:[%s4170 + $0x18] sm:$0xff]
        %4175 = vmatprep.subr.mxu0 0.0
        %4176 = vmatpush1.msra.mxu0 %v4171
        %4177 = vmatprep.subr.mxu0 0.0
        %4178 = vmatpush1.msra.mxu0 %v4172
        %4179 = vmatprep.subr.mxu0 0.0
        %4180 = vmatpush1.msra.mxu0 %v4173
        %4181 = vmatprep.subr.mxu0 0.0
        %4182 = vmatpush1.msra.mxu0 %v4174
        %4183 = vmatprep.subr.mxu0 0.0
        %4184 = vmatpush1.msra.mxu0 0.0
        %4185 = vmatprep.subr.mxu0 0.0
        %4186 = vmatpush1.msra.mxu0 0.0
        %4187 = vmatprep.subr.mxu0 0.0
        %4188 = vmatpush1.msra.mxu0 0.0
        %4189 = vmatprep.subr.mxu0 0.0
        %4190 = vmatpush1.msra.mxu0 0.0
        %4191 = vmatprep.subr.mxu0 0.0
        %4192 = vmatpush1.msra.mxu0 0.0
        %4193 = vmatprep.subr.mxu0 0.0
        %4194 = vmatpush1.msra.mxu0 0.0
        %4195 = vmatprep.subr.mxu0 0.0
        %4196 = vmatpush1.msra.mxu0 0.0
        %4197 = vmatprep.subr.mxu0 0.0
        %4198 = vmatpush1.msra.mxu0 0.0
        %4199 = vmatprep.subr.mxu0 0.0
        %4200 = vmatpush1.msra.mxu0 0.0
        %4201 = vmatprep.subr.mxu0 0.0
        %4202 = vmatpush1.msra.mxu0 0.0
        %4203 = vmatprep.subr.mxu0 0.0
        %4204 = vmatpush1.msra.mxu0 0.0
        %4205 = vmatprep.subr.mxu0 0.0
        %4206 = vmatpush1.msra.mxu0 0.0
        %4207 = vmatprep.subr.mxu0 0.0
        %4208 = vmatpush1.msra.mxu0 0.0
        %4209 = vmatprep.subr.mxu0 0.0
        %4210 = vmatpush1.msra.mxu0 0.0
        %4211 = vmatprep.subr.mxu0 0.0
        %4212 = vmatpush1.msra.mxu0 0.0
        %4213 = vmatprep.subr.mxu0 0.0
        %4214 = vmatpush1.msra.mxu0 0.0
        %4215 = vmatprep.subr.mxu0 0.0
        %4216 = vmatpush1.msra.mxu0 0.0
        %4217 = vmatprep.subr.mxu0 0.0
        %4218 = vmatpush1.msra.mxu0 0.0
        %4219 = vmatprep.subr.mxu0 0.0
        %4220 = vmatpush1.msra.mxu0 0.0
        %4221 = vmatprep.subr.mxu0 0.0
        %4222 = vmatpush1.msra.mxu0 0.0
        %4223 = vmatprep.subr.mxu0 0.0
        %4224 = vmatpush1.msra.mxu0 0.0
        %4225 = vmatprep.subr.mxu0 0.0
        %4226 = vmatpush1.msra.mxu0 0.0
        %4227 = vmatprep.subr.mxu0 0.0
        %4228 = vmatpush1.msra.mxu0 0.0
        %4229 = vmatprep.subr.mxu0 0.0
        %4230 = vmatpush1.msra.mxu0 0.0
        %4231 = vmatprep.subr.mxu0 0.0
        %4232 = vmatpush1.msra.mxu0 0.0
        %4233 = vmatprep.subr.mxu0 0.0
        %4234 = vmatpush1.msra.mxu0 0.0
        %4235 = vmatprep.subr.mxu0 0.0
        %4236 = vmatpush1.msra.mxu0 0.0
        %4237 = vmatprep.subr.mxu0 0.0
        %4238 = vmatpush1.msra.mxu0 0.0
        %4239 = vmatprep.mubr.f32.mxu0 0.0
        %4240 = vmatmul.mubr.f32.gmra.mrb[0].mxu0 %v3854
        %v4241 = vpop.f32.mrb[0].mxu0
        %v4242 = vadd.f32 0.0, %v4241
        %v4243 = vpop.f32.mrb[0].mxu0
        %4244 = vmatprep.mubr.f32.mxu0 0.0
        %4245 = vmatmul.mubr.f32.gmra.mrb[0].mxu0 %v3857
        %v4246 = vpop.f32.mrb[0].mxu0
        %v4247 = vadd.f32 0.0, %v4246
        %v4248 = vpop.f32.mrb[0].mxu0
        %4249 = vmatprep.mubr.f32.mxu0 0.0
        %4250 = vmatmul.mubr.f32.gmra.mrb[0].mxu0 %v3860
        %v4251 = vpop.f32.mrb[0].mxu0
        %v4252 = vadd.f32 0.0, %v4251
        %v4253 = vpop.f32.mrb[0].mxu0
        %4254 = vmatprep.mubr.f32.mxu0 0.0
        %4255 = vmatmul.mubr.f32.gmra.mrb[0].mxu0 %v3863
        %v4256 = vpop.f32.mrb[0].mxu0
        %v4257 = vadd.f32 0.0, %v4256
        %v4258 = vpop.f32.mrb[0].mxu0
        %4259 = vdwg.mxu0
        %4260 = vmatprep.subr.mxu0 0.0
        %4261 = vmatpush1.msra.mxu0 %v4166
        %4262 = vmatprep.subr.mxu0 0.0
        %4263 = vmatpush1.msra.mxu0 %v4167
        %4264 = vmatprep.subr.mxu0 0.0
        %4265 = vmatpush1.msra.mxu0 %v4168
        %4266 = vmatprep.subr.mxu0 0.0
        %4267 = vmatpush1.msra.mxu0 %v4169
        %4268 = vmatprep.subr.mxu0 0.0
        %4269 = vmatpush1.msra.mxu0 0.0
        %4270 = vmatprep.subr.mxu0 0.0
        %4271 = vmatpush1.msra.mxu0 0.0
        %4272 = vmatprep.subr.mxu0 0.0
        %4273 = vmatpush1.msra.mxu0 0.0
        %4274 = vmatprep.subr.mxu0 0.0
        %4275 = vmatpush1.msra.mxu0 0.0
        %4276 = vmatprep.subr.mxu0 0.0
        %4277 = vmatpush1.msra.mxu0 0.0
        %4278 = vmatprep.subr.mxu0 0.0
        %4279 = vmatpush1.msra.mxu0 0.0
        %4280 = vmatprep.subr.mxu0 0.0
        %4281 = vmatpush1.msra.mxu0 0.0
        %4282 = vmatprep.subr.mxu0 0.0
        %4283 = vmatpush1.msra.mxu0 0.0
        %4284 = vmatprep.subr.mxu0 0.0
        %4285 = vmatpush1.msra.mxu0 0.0
        %4286 = vmatprep.subr.mxu0 0.0
        %4287 = vmatpush1.msra.mxu0 0.0
        %4288 = vmatprep.subr.mxu0 0.0
        %4289 = vmatpush1.msra.mxu0 0.0
        %4290 = vmatprep.subr.mxu0 0.0
        %4291 = vmatpush1.msra.mxu0 0.0
        %4292 = vmatprep.subr.mxu0 0.0
        %4293 = vmatpush1.msra.mxu0 0.0
        %4294 = vmatprep.subr.mxu0 0.0
        %4295 = vmatpush1.msra.mxu0 0.0
        %4296 = vmatprep.subr.mxu0 0.0
        %4297 = vmatpush1.msra.mxu0 0.0
        %4298 = vmatprep.subr.mxu0 0.0
        %4299 = vmatpush1.msra.mxu0 0.0
        %4300 = vmatprep.subr.mxu0 0.0
        %4301 = vmatpush1.msra.mxu0 0.0
        %4302 = vmatprep.subr.mxu0 0.0
        %4303 = vmatpush1.msra.mxu0 0.0
        %4304 = vmatprep.subr.mxu0 0.0
        %4305 = vmatpush1.msra.mxu0 0.0
        %4306 = vmatprep.subr.mxu0 0.0
        %4307 = vmatpush1.msra.mxu0 0.0
        %4308 = vmatprep.subr.mxu0 0.0
        %4309 = vmatpush1.msra.mxu0 0.0
        %4310 = vmatprep.subr.mxu0 0.0
        %4311 = vmatpush1.msra.mxu0 0.0
        %4312 = vmatprep.subr.mxu0 0.0
        %4313 = vmatpush1.msra.mxu0 0.0
        %4314 = vmatprep.subr.mxu0 0.0
        %4315 = vmatpush1.msra.mxu0 0.0
        %4316 = vmatprep.subr.mxu0 0.0
        %4317 = vmatpush1.msra.mxu0 0.0
        %4318 = vmatprep.subr.mxu0 0.0
        %4319 = vmatpush1.msra.mxu0 0.0
        %4320 = vmatprep.subr.mxu0 0.0
        %4321 = vmatpush1.msra.mxu0 0.0
        %4322 = vmatprep.subr.mxu0 0.0
        %4323 = vmatpush1.msra.mxu0 0.0
        %4324 = vmatprep.mubr.f32.mxu0 0.0
        %4325 = vmatmul.mubr.f32.gmra.mrb[0].mxu0 %v3951
        %v4326 = vpop.f32.mrb[0].mxu0
        %v4327 = vadd.f32 %v4242, %v4326
        %v4328 = vpop.f32.mrb[0].mxu0
        %4329 = vmatprep.mubr.f32.mxu0 0.0
        %4330 = vmatmul.mubr.f32.gmra.mrb[0].mxu0 %v3954
        %v4331 = vpop.f32.mrb[0].mxu0
        %v4332 = vadd.f32 %v4247, %v4331
        %v4333 = vpop.f32.mrb[0].mxu0
        %4334 = vmatprep.mubr.f32.mxu0 0.0
        %4335 = vmatmul.mubr.f32.gmra.mrb[0].mxu0 %v3957
        %v4336 = vpop.f32.mrb[0].mxu0
        %v4337 = vadd.f32 %v4252, %v4336
        %v4338 = vpop.f32.mrb[0].mxu0
        %4339 = vmatprep.mubr.f32.mxu0 0.0
        %4340 = vmatmul.mubr.f32.gmra.mrb[0].mxu0 %v3960
        %v4341 = vpop.f32.mrb[0].mxu0
        %v4342 = vadd.f32 %v4257, %v4341
        %v4343 = vpop.f32.mrb[0].mxu0
        %4344 = vdwg.mxu0
        %s4345 = scalar_lea.vmem [#allocation11], 352
        %v4346 = vld [vmem:[%s4345] sm:$0xff]
        %v4347 = vld [vmem:[%s4345 + $0x8] sm:$0xff]
        %v4348 = vld [vmem:[%s4345 + $0x10] sm:$0xff]
        %v4349 = vld [vmem:[%s4345 + $0x18] sm:$0xff]
        %4350 = vmatprep.subr.mxu0 0.0
        %4351 = vmatpush1.msra.mxu0 %v4346
        %4352 = vmatprep.subr.mxu0 0.0
        %4353 = vmatpush1.msra.mxu0 %v4347
        %4354 = vmatprep.subr.mxu0 0.0
        %4355 = vmatpush1.msra.mxu0 %v4348
        %4356 = vmatprep.subr.mxu0 0.0
        %4357 = vmatpush1.msra.mxu0 %v4349
        %4358 = vmatprep.subr.mxu0 0.0
        %4359 = vmatpush1.msra.mxu0 0.0
        %4360 = vmatprep.subr.mxu0 0.0
        %4361 = vmatpush1.msra.mxu0 0.0
        %4362 = vmatprep.subr.mxu0 0.0
        %4363 = vmatpush1.msra.mxu0 0.0
        %4364 = vmatprep.subr.mxu0 0.0
        %4365 = vmatpush1.msra.mxu0 0.0
        %4366 = vmatprep.subr.mxu0 0.0
        %4367 = vmatpush1.msra.mxu0 0.0
        %4368 = vmatprep.subr.mxu0 0.0
        %4369 = vmatpush1.msra.mxu0 0.0
        %4370 = vmatprep.subr.mxu0 0.0
        %4371 = vmatpush1.msra.mxu0 0.0
        %4372 = vmatprep.subr.mxu0 0.0
        %4373 = vmatpush1.msra.mxu0 0.0
        %4374 = vmatprep.subr.mxu0 0.0
        %4375 = vmatpush1.msra.mxu0 0.0
        %4376 = vmatprep.subr.mxu0 0.0
        %4377 = vmatpush1.msra.mxu0 0.0
        %4378 = vmatprep.subr.mxu0 0.0
        %4379 = vmatpush1.msra.mxu0 0.0
        %4380 = vmatprep.subr.mxu0 0.0
        %4381 = vmatpush1.msra.mxu0 0.0
        %4382 = vmatprep.subr.mxu0 0.0
        %4383 = vmatpush1.msra.mxu0 0.0
        %4384 = vmatprep.subr.mxu0 0.0
        %4385 = vmatpush1.msra.mxu0 0.0
        %4386 = vmatprep.subr.mxu0 0.0
        %4387 = vmatpush1.msra.mxu0 0.0
        %4388 = vmatprep.subr.mxu0 0.0
        %4389 = vmatpush1.msra.mxu0 0.0
        %4390 = vmatprep.subr.mxu0 0.0
        %4391 = vmatpush1.msra.mxu0 0.0
        %4392 = vmatprep.subr.mxu0 0.0
        %4393 = vmatpush1.msra.mxu0 0.0
        %4394 = vmatprep.subr.mxu0 0.0
        %4395 = vmatpush1.msra.mxu0 0.0
        %4396 = vmatprep.subr.mxu0 0.0
        %4397 = vmatpush1.msra.mxu0 0.0
        %4398 = vmatprep.subr.mxu0 0.0
        %4399 = vmatpush1.msra.mxu0 0.0
        %4400 = vmatprep.subr.mxu0 0.0
        %4401 = vmatpush1.msra.mxu0 0.0
        %4402 = vmatprep.subr.mxu0 0.0
        %4403 = vmatpush1.msra.mxu0 0.0
        %4404 = vmatprep.subr.mxu0 0.0
        %4405 = vmatpush1.msra.mxu0 0.0
        %4406 = vmatprep.subr.mxu0 0.0
        %4407 = vmatpush1.msra.mxu0 0.0
        %4408 = vmatprep.subr.mxu0 0.0
        %4409 = vmatpush1.msra.mxu0 0.0
        %4410 = vmatprep.subr.mxu0 0.0
        %4411 = vmatpush1.msra.mxu0 0.0
        %4412 = vmatprep.subr.mxu0 0.0
        %4413 = vmatpush1.msra.mxu0 0.0
        %4414 = vmatprep.mubr.f32.mxu0 0.0
        %4415 = vmatmul.mubr.f32.gmra.mrb[0].mxu0 %v4053
        %v4416 = vpop.f32.mrb[0].mxu0
        %v4417 = vadd.f32 0.0, %v4416
        %v4418 = vpop.f32.mrb[0].mxu0
        %4419 = vmatprep.mubr.f32.mxu0 0.0
        %4420 = vmatmul.mubr.f32.gmra.mrb[0].mxu0 %v4056
        %v4421 = vpop.f32.mrb[0].mxu0
        %v4422 = vadd.f32 0.0, %v4421
        %v4423 = vpop.f32.mrb[0].mxu0
        %4424 = vmatprep.mubr.f32.mxu0 0.0
        %4425 = vmatmul.mubr.f32.gmra.mrb[0].mxu0 %v4059
        %v4426 = vpop.f32.mrb[0].mxu0
        %v4427 = vadd.f32 0.0, %v4426
        %v4428 = vpop.f32.mrb[0].mxu0
        %4429 = vmatprep.mubr.f32.mxu0 0.0
        %4430 = vmatmul.mubr.f32.gmra.mrb[0].mxu0 %v4062
        %v4431 = vpop.f32.mrb[0].mxu0
        %v4432 = vadd.f32 0.0, %v4431
        %v4433 = vpop.f32.mrb[0].mxu0
        %4434 = vdwg.mxu0
        %v4435 = vadd.f32 %v4327, %v4417
        %v4436 = vadd.f32 %v4332, %v4422
        %v4437 = vadd.f32 %v4337, %v4427
        %v4438 = vadd.f32 %v4342, %v4432
        %s4439 = scalar_lea.vmem [#allocation13], 3
        %v4440 = vld [vmem:[%s4439] sm:$0x1]
        %v4442 = vlaneseq
        %v4443 = vshrl.u32 %v4442, 7
        %v4444 = vsub.s32 0, %v4443
        %v4445 = vrot.slane %v4440, %v4444
        %v4447 = vadd.f32 %v4435, %v4445
        %v4448 = vadd.f32 %v4436, %v4445
        %v4449 = vadd.f32 %v4437, %v4445
        %v4450 = vadd.f32 %v4438, %v4445
        %v4451 = vtanh.pop %v4161
        %v4452 = vtanh.pop %v4162
        %v4453 = vtanh.pop %v4163
        %v4454 = vtanh.pop %v4164
        %v4455 = vxor.u32 %v4447, 2147483648
        %v4456 = vxor.u32 %v4448, 2147483648
        %v4457 = vxor.u32 %v4449, 2147483648
        %v4458 = vxor.u32 %v4450, 2147483648
        %v4459 = vmul.f32 %v4455, 1.442695
        %v4460 = vpow.pop %v4459
        %v4461 = vmul.f32 %v4456, 1.442695
        %v4462 = vpow.pop %v4461
        %v4463 = vmul.f32 %v4457, 1.442695
        %v4464 = vpow.pop %v4463
        %v4465 = vmul.f32 %v4458, 1.442695
        %v4466 = vpow.pop %v4465
        %v4467 = vadd.f32 %v4460, 1.0
        %v4468 = vadd.f32 %v4462, 1.0
        %v4469 = vadd.f32 %v4464, 1.0
        %v4470 = vadd.f32 %v4466, 1.0
        %v4471 = vrcp.pop %v4467
        %v4472 = vmul.f32 1.0, %v4471
        %v4473 = vrcp.pop %v4468
        %v4474 = vmul.f32 1.0, %v4473
        %v4475 = vrcp.pop %v4469
        %v4476 = vmul.f32 1.0, %v4475
        %v4477 = vrcp.pop %v4470
        %v4478 = vmul.f32 1.0, %v4477
        %v4479 = vmul.f32 %v4451, %v4472
        %v4480 = vmul.f32 %v4452, %v4474
        %v4481 = vmul.f32 %v4453, %v4476
        %v4482 = vmul.f32 %v4454, %v4478
        %v4484 = vsel %vm1426, %v4479, 0
        %v4487 = vsel %vm1426, %v4480, 0
        %v4490 = vsel %vm1426, %v4481, 0
        %v4493 = vsel %vm1426, %v4482, 0
        %4495 = vmatprep.subr.mxu0 0.0
        %4496 = vmatpush1.msra.mxu0 %v2054
        %4497 = vmatprep.subr.mxu0 0.0
        %4498 = vmatpush1.msra.mxu0 %v2055
        %4499 = vmatprep.subr.mxu0 0.0
        %4500 = vmatpush1.msra.mxu0 %v2056
        %4501 = vmatprep.subr.mxu0 0.0
        %4502 = vmatpush1.msra.mxu0 %v2057
        %4503 = vmatprep.subr.mxu0 0.0
        %4504 = vmatpush1.msra.mxu0 0.0
        %4505 = vmatprep.subr.mxu0 0.0
        %4506 = vmatpush1.msra.mxu0 0.0
        %4507 = vmatprep.subr.mxu0 0.0
        %4508 = vmatpush1.msra.mxu0 0.0
        %4509 = vmatprep.subr.mxu0 0.0
        %4510 = vmatpush1.msra.mxu0 0.0
        %4511 = vmatprep.subr.mxu0 0.0
        %4512 = vmatpush1.msra.mxu0 0.0
        %4513 = vmatprep.subr.mxu0 0.0
        %4514 = vmatpush1.msra.mxu0 0.0
        %4515 = vmatprep.subr.mxu0 0.0
        %4516 = vmatpush1.msra.mxu0 0.0
        %4517 = vmatprep.subr.mxu0 0.0
        %4518 = vmatpush1.msra.mxu0 0.0
        %4519 = vmatprep.subr.mxu0 0.0
        %4520 = vmatpush1.msra.mxu0 0.0
        %4521 = vmatprep.subr.mxu0 0.0
        %4522 = vmatpush1.msra.mxu0 0.0
        %4523 = vmatprep.subr.mxu0 0.0
        %4524 = vmatpush1.msra.mxu0 0.0
        %4525 = vmatprep.subr.mxu0 0.0
        %4526 = vmatpush1.msra.mxu0 0.0
        %4527 = vmatprep.subr.mxu0 0.0
        %4528 = vmatpush1.msra.mxu0 0.0
        %4529 = vmatprep.subr.mxu0 0.0
        %4530 = vmatpush1.msra.mxu0 0.0
        %4531 = vmatprep.subr.mxu0 0.0
        %4532 = vmatpush1.msra.mxu0 0.0
        %4533 = vmatprep.subr.mxu0 0.0
        %4534 = vmatpush1.msra.mxu0 0.0
        %4535 = vmatprep.subr.mxu0 0.0
        %4536 = vmatpush1.msra.mxu0 0.0
        %4537 = vmatprep.subr.mxu0 0.0
        %4538 = vmatpush1.msra.mxu0 0.0
        %4539 = vmatprep.subr.mxu0 0.0
        %4540 = vmatpush1.msra.mxu0 0.0
        %4541 = vmatprep.subr.mxu0 0.0
        %4542 = vmatpush1.msra.mxu0 0.0
        %4543 = vmatprep.subr.mxu0 0.0
        %4544 = vmatpush1.msra.mxu0 0.0
        %4545 = vmatprep.subr.mxu0 0.0
        %4546 = vmatpush1.msra.mxu0 0.0
        %4547 = vmatprep.subr.mxu0 0.0
        %4548 = vmatpush1.msra.mxu0 0.0
        %4549 = vmatprep.subr.mxu0 0.0
        %4550 = vmatpush1.msra.mxu0 0.0
        %4551 = vmatprep.subr.mxu0 0.0
        %4552 = vmatpush1.msra.mxu0 0.0
        %4553 = vmatprep.subr.mxu0 0.0
        %4554 = vmatpush1.msra.mxu0 0.0
        %4555 = vmatprep.subr.mxu0 0.0
        %4556 = vmatpush1.msra.mxu0 0.0
        %4557 = vmatprep.subr.mxu0 0.0
        %4558 = vmatpush1.msra.mxu0 0.0
        %4559 = vmatprep.mubr.f32.mxu0 0.0
        %4560 = vmatmul.mubr.f32.gmra.mrb[0].mxu0 %v4484
        %v4561 = vpop.f32.mrb[0].mxu0
        %v4562 = vadd.f32 %v2063, %v4561
        %v4563 = vpop.f32.mrb[0].mxu0
        %4564 = vmatprep.mubr.f32.mxu0 0.0
        %4565 = vmatmul.mubr.f32.gmra.mrb[0].mxu0 %v4487
        %v4566 = vpop.f32.mrb[0].mxu0
        %v4567 = vadd.f32 %v2063, %v4566
        %v4568 = vpop.f32.mrb[0].mxu0
        %4569 = vmatprep.mubr.f32.mxu0 0.0
        %4570 = vmatmul.mubr.f32.gmra.mrb[0].mxu0 %v4490
        %v4571 = vpop.f32.mrb[0].mxu0
        %v4572 = vadd.f32 %v2063, %v4571
        %v4573 = vpop.f32.mrb[0].mxu0
        %4574 = vmatprep.mubr.f32.mxu0 0.0
        %4575 = vmatmul.mubr.f32.gmra.mrb[0].mxu0 %v4493
        %v4576 = vpop.f32.mrb[0].mxu0
        %v4577 = vadd.f32 %v2063, %v4576
        %v4578 = vpop.f32.mrb[0].mxu0
        %4579 = vdwg.mxu0
        %v4580 = vadd.f32 %v3783, %v4562
        %v4581 = vadd.f32 %v3784, %v4567
        %v4582 = vadd.f32 %v3785, %v4572
        %v4583 = vadd.f32 %v3786, %v4577
        %v4584 = vadd.s32 %v902, 4294967280
        %v4585 = vadd.s32 %v903, 4294967280
        %v4586 = vadd.s32 %v904, 4294967280
        %v4587 = vadd.s32 %v905, 4294967280
        %vm4588 = vcmp.ge.s32.totalorder %v4584, 0
        %vm4589 = vcmp.ge.s32.totalorder %v4585, 0
        %vm4590 = vcmp.ge.s32.totalorder %v4586, 0
        %vm4591 = vcmp.ge.s32.totalorder %v4587, 0
        %vm4592 = vcmp.lt.s32.totalorder %v4584, 32
        %vm4593 = vcmp.lt.s32.totalorder %v4585, 32
        %vm4594 = vcmp.lt.s32.totalorder %v4586, 32
        %vm4595 = vcmp.lt.s32.totalorder %v4587, 32
        %vm4596 = vmand %vm4588, %vm4592
        %vm4597 = vmand %vm4589, %vm4593
        %vm4598 = vmand %vm4590, %vm4594
        %vm4599 = vmand %vm4591, %vm4595
        %v4600 = vsel %vm4596, 1, 0
        %v4601 = vsel %vm4597, 1, 0
        %v4602 = vsel %vm4598, 1, 0
        %v4603 = vsel %vm4599, 1, 0
        %vm4604 = vcmp.eq.s32.totalorder %v4600, 1
        %vm4605 = vcmp.eq.s32.totalorder %v4601, 1
        %vm4606 = vcmp.eq.s32.totalorder %v4602, 1
        %vm4607 = vcmp.eq.s32.totalorder %v4603, 1
        %v4608 = vsel %vm4604, %v4572, 0.0
        %v4609 = vsel %vm4605, %v4577, 0.0
        %v4610 = vsel %vm4606, %v4562, 0.0
        %v4611 = vsel %vm4607, %v4567, 0.0
        %v4612 = vadd.s32 %v902, 16
        %v4613 = vadd.s32 %v903, 16
        %v4614 = vadd.s32 %v904, 16
        %v4615 = vadd.s32 %v905, 16
        %vm4616 = vcmp.ge.s32.totalorder %v4612, 0
        %vm4617 = vcmp.ge.s32.totalorder %v4613, 0
        %vm4618 = vcmp.ge.s32.totalorder %v4614, 0
        %vm4619 = vcmp.ge.s32.totalorder %v4615, 0
        %vm4620 = vcmp.lt.s32.totalorder %v4612, 32
        %vm4621 = vcmp.lt.s32.totalorder %v4613, 32
        %vm4622 = vcmp.lt.s32.totalorder %v4614, 32
        %vm4623 = vcmp.lt.s32.totalorder %v4615, 32
        %vm4624 = vmand %vm4616, %vm4620
        %vm4625 = vmand %vm4617, %vm4621
        %vm4626 = vmand %vm4618, %vm4622
        %vm4627 = vmand %vm4619, %vm4623
        %v4628 = vsel %vm4624, 1, 0
        %v4629 = vsel %vm4625, 1, 0
        %v4630 = vsel %vm4626, 1, 0
        %v4631 = vsel %vm4627, 1, 0
        %vm4632 = vcmp.eq.s32.totalorder %v4628, 1
        %vm4633 = vcmp.eq.s32.totalorder %v4629, 1
        %vm4634 = vcmp.eq.s32.totalorder %v4630, 1
        %vm4635 = vcmp.eq.s32.totalorder %v4631, 1
        %v4636 = vsel %vm4632, %v4572, 0.0
        %v4637 = vsel %vm4633, %v4577, 0.0
        %v4638 = vsel %vm4634, %v4562, 0.0
        %v4639 = vsel %vm4635, %v4567, 0.0
        %s4640 = scalar_lea.vmem [#allocation8], 384
        %v4641 = vld [vmem:[%s4640] sm:$0xff]
        %v4642 = vld [vmem:[%s4640 + $0x8] sm:$0xff]
        %v4643 = vld [vmem:[%s4640 + $0x10] sm:$0xff]
        %v4644 = vld [vmem:[%s4640 + $0x18] sm:$0xff]
        %s4645 = scalar_lea.vmem [#allocation8], 416
        %v4646 = vld [vmem:[%s4645] sm:$0xff]
        %v4647 = vld [vmem:[%s4645 + $0x8] sm:$0xff]
        %v4648 = vld [vmem:[%s4645 + $0x10] sm:$0xff]
        %v4649 = vld [vmem:[%s4645 + $0x18] sm:$0xff]
        %v4651 = vsel %vm1426, %v4562, 0
        %v4654 = vsel %vm1426, %v4567, 0
        %v4657 = vsel %vm1426, %v4572, 0
        %v4660 = vsel %vm1426, %v4577, 0
        %4662 = vmatprep.subr.mxu0 0.0
        %4663 = vmatpush1.msra.mxu0 %v4646
        %4664 = vmatprep.subr.mxu0 0.0
        %4665 = vmatpush1.msra.mxu0 %v4647
        %4666 = vmatprep.subr.mxu0 0.0
        %4667 = vmatpush1.msra.mxu0 %v4648
        %4668 = vmatprep.subr.mxu0 0.0
        %4669 = vmatpush1.msra.mxu0 %v4649
        %4670 = vmatprep.subr.mxu0 0.0
        %4671 = vmatpush1.msra.mxu0 0.0
        %4672 = vmatprep.subr.mxu0 0.0
        %4673 = vmatpush1.msra.mxu0 0.0
        %4674 = vmatprep.subr.mxu0 0.0
        %4675 = vmatpush1.msra.mxu0 0.0
        %4676 = vmatprep.subr.mxu0 0.0
        %4677 = vmatpush1.msra.mxu0 0.0
        %4678 = vmatprep.subr.mxu0 0.0
        %4679 = vmatpush1.msra.mxu0 0.0
        %4680 = vmatprep.subr.mxu0 0.0
        %4681 = vmatpush1.msra.mxu0 0.0
        %4682 = vmatprep.subr.mxu0 0.0
        %4683 = vmatpush1.msra.mxu0 0.0
        %4684 = vmatprep.subr.mxu0 0.0
        %4685 = vmatpush1.msra.mxu0 0.0
        %4686 = vmatprep.subr.mxu0 0.0
        %4687 = vmatpush1.msra.mxu0 0.0
        %4688 = vmatprep.subr.mxu0 0.0
        %4689 = vmatpush1.msra.mxu0 0.0
        %4690 = vmatprep.subr.mxu0 0.0
        %4691 = vmatpush1.msra.mxu0 0.0
        %4692 = vmatprep.subr.mxu0 0.0
        %4693 = vmatpush1.msra.mxu0 0.0
        %4694 = vmatprep.subr.mxu0 0.0
        %4695 = vmatpush1.msra.mxu0 0.0
        %4696 = vmatprep.subr.mxu0 0.0
        %4697 = vmatpush1.msra.mxu0 0.0
        %4698 = vmatprep.subr.mxu0 0.0
        %4699 = vmatpush1.msra.mxu0 0.0
        %4700 = vmatprep.subr.mxu0 0.0
        %4701 = vmatpush1.msra.mxu0 0.0
        %4702 = vmatprep.subr.mxu0 0.0
        %4703 = vmatpush1.msra.mxu0 0.0
        %4704 = vmatprep.subr.mxu0 0.0
        %4705 = vmatpush1.msra.mxu0 0.0
        %4706 = vmatprep.subr.mxu0 0.0
        %4707 = vmatpush1.msra.mxu0 0.0
        %4708 = vmatprep.subr.mxu0 0.0
        %4709 = vmatpush1.msra.mxu0 0.0
        %4710 = vmatprep.subr.mxu0 0.0
        %4711 = vmatpush1.msra.mxu0 0.0
        %4712 = vmatprep.subr.mxu0 0.0
        %4713 = vmatpush1.msra.mxu0 0.0
        %4714 = vmatprep.subr.mxu0 0.0
        %4715 = vmatpush1.msra.mxu0 0.0
        %4716 = vmatprep.subr.mxu0 0.0
        %4717 = vmatpush1.msra.mxu0 0.0
        %4718 = vmatprep.subr.mxu0 0.0
        %4719 = vmatpush1.msra.mxu0 0.0
        %4720 = vmatprep.subr.mxu0 0.0
        %4721 = vmatpush1.msra.mxu0 0.0
        %4722 = vmatprep.subr.mxu0 0.0
        %4723 = vmatpush1.msra.mxu0 0.0
        %4724 = vmatprep.subr.mxu0 0.0
        %4725 = vmatpush1.msra.mxu0 0.0
        %4726 = vmatprep.mubr.f32.mxu0 0.0
        %4727 = vmatmul.mubr.f32.gmra.mrb[0].mxu0 %v4651
        %v4728 = vpop.f32.mrb[0].mxu0
        %v4729 = vadd.f32 0.0, %v4728
        %v4730 = vpop.f32.mrb[0].mxu0
        %4731 = vmatprep.mubr.f32.mxu0 0.0
        %4732 = vmatmul.mubr.f32.gmra.mrb[0].mxu0 %v4654
        %v4733 = vpop.f32.mrb[0].mxu0
        %v4734 = vadd.f32 0.0, %v4733
        %v4735 = vpop.f32.mrb[0].mxu0
        %4736 = vmatprep.mubr.f32.mxu0 0.0
        %4737 = vmatmul.mubr.f32.gmra.mrb[0].mxu0 %v4657
        %v4738 = vpop.f32.mrb[0].mxu0
        %v4739 = vadd.f32 0.0, %v4738
        %v4740 = vpop.f32.mrb[0].mxu0
        %4741 = vmatprep.mubr.f32.mxu0 0.0
        %4742 = vmatmul.mubr.f32.gmra.mrb[0].mxu0 %v4660
        %v4743 = vpop.f32.mrb[0].mxu0
        %v4744 = vadd.f32 0.0, %v4743
        %v4745 = vpop.f32.mrb[0].mxu0
        %4746 = vdwg.mxu0
        %v4748 = vsel %vm1426, %v4608, 0
        %v4751 = vsel %vm1426, %v4609, 0
        %v4754 = vsel %vm1426, %v4610, 0
        %v4757 = vsel %vm1426, %v4611, 0
        %4759 = vmatprep.subr.mxu0 0.0
        %4760 = vmatpush1.msra.mxu0 %v4641
        %4761 = vmatprep.subr.mxu0 0.0
        %4762 = vmatpush1.msra.mxu0 %v4642
        %4763 = vmatprep.subr.mxu0 0.0
        %4764 = vmatpush1.msra.mxu0 %v4643
        %4765 = vmatprep.subr.mxu0 0.0
        %4766 = vmatpush1.msra.mxu0 %v4644
        %4767 = vmatprep.subr.mxu0 0.0
        %4768 = vmatpush1.msra.mxu0 0.0
        %4769 = vmatprep.subr.mxu0 0.0
        %4770 = vmatpush1.msra.mxu0 0.0
        %4771 = vmatprep.subr.mxu0 0.0
        %4772 = vmatpush1.msra.mxu0 0.0
        %4773 = vmatprep.subr.mxu0 0.0
        %4774 = vmatpush1.msra.mxu0 0.0
        %4775 = vmatprep.subr.mxu0 0.0
        %4776 = vmatpush1.msra.mxu0 0.0
        %4777 = vmatprep.subr.mxu0 0.0
        %4778 = vmatpush1.msra.mxu0 0.0
        %4779 = vmatprep.subr.mxu0 0.0
        %4780 = vmatpush1.msra.mxu0 0.0
        %4781 = vmatprep.subr.mxu0 0.0
        %4782 = vmatpush1.msra.mxu0 0.0
        %4783 = vmatprep.subr.mxu0 0.0
        %4784 = vmatpush1.msra.mxu0 0.0
        %4785 = vmatprep.subr.mxu0 0.0
        %4786 = vmatpush1.msra.mxu0 0.0
        %4787 = vmatprep.subr.mxu0 0.0
        %4788 = vmatpush1.msra.mxu0 0.0
        %4789 = vmatprep.subr.mxu0 0.0
        %4790 = vmatpush1.msra.mxu0 0.0
        %4791 = vmatprep.subr.mxu0 0.0
        %4792 = vmatpush1.msra.mxu0 0.0
        %4793 = vmatprep.subr.mxu0 0.0
        %4794 = vmatpush1.msra.mxu0 0.0
        %4795 = vmatprep.subr.mxu0 0.0
        %4796 = vmatpush1.msra.mxu0 0.0
        %4797 = vmatprep.subr.mxu0 0.0
        %4798 = vmatpush1.msra.mxu0 0.0
        %4799 = vmatprep.subr.mxu0 0.0
        %4800 = vmatpush1.msra.mxu0 0.0
        %4801 = vmatprep.subr.mxu0 0.0
        %4802 = vmatpush1.msra.mxu0 0.0
        %4803 = vmatprep.subr.mxu0 0.0
        %4804 = vmatpush1.msra.mxu0 0.0
        %4805 = vmatprep.subr.mxu0 0.0
        %4806 = vmatpush1.msra.mxu0 0.0
        %4807 = vmatprep.subr.mxu0 0.0
        %4808 = vmatpush1.msra.mxu0 0.0
        %4809 = vmatprep.subr.mxu0 0.0
        %4810 = vmatpush1.msra.mxu0 0.0
        %4811 = vmatprep.subr.mxu0 0.0
        %4812 = vmatpush1.msra.mxu0 0.0
        %4813 = vmatprep.subr.mxu0 0.0
        %4814 = vmatpush1.msra.mxu0 0.0
        %4815 = vmatprep.subr.mxu0 0.0
        %4816 = vmatpush1.msra.mxu0 0.0
        %4817 = vmatprep.subr.mxu0 0.0
        %4818 = vmatpush1.msra.mxu0 0.0
        %4819 = vmatprep.subr.mxu0 0.0
        %4820 = vmatpush1.msra.mxu0 0.0
        %4821 = vmatprep.subr.mxu0 0.0
        %4822 = vmatpush1.msra.mxu0 0.0
        %4823 = vmatprep.mubr.f32.mxu0 0.0
        %4824 = vmatmul.mubr.f32.gmra.mrb[0].mxu0 %v4748
        %v4825 = vpop.f32.mrb[0].mxu0
        %v4826 = vadd.f32 %v4729, %v4825
        %v4827 = vpop.f32.mrb[0].mxu0
        %4828 = vmatprep.mubr.f32.mxu0 0.0
        %4829 = vmatmul.mubr.f32.gmra.mrb[0].mxu0 %v4751
        %v4830 = vpop.f32.mrb[0].mxu0
        %v4831 = vadd.f32 %v4734, %v4830
        %v4832 = vpop.f32.mrb[0].mxu0
        %4833 = vmatprep.mubr.f32.mxu0 0.0
        %4834 = vmatmul.mubr.f32.gmra.mrb[0].mxu0 %v4754
        %v4835 = vpop.f32.mrb[0].mxu0
        %v4836 = vadd.f32 %v4739, %v4835
        %v4837 = vpop.f32.mrb[0].mxu0
        %4838 = vmatprep.mubr.f32.mxu0 0.0
        %4839 = vmatmul.mubr.f32.gmra.mrb[0].mxu0 %v4757
        %v4840 = vpop.f32.mrb[0].mxu0
        %v4841 = vadd.f32 %v4744, %v4840
        %v4842 = vpop.f32.mrb[0].mxu0
        %4843 = vdwg.mxu0
        %s4844 = scalar_lea.vmem [#allocation8], 448
        %v4845 = vld [vmem:[%s4844] sm:$0xff]
        %v4846 = vld [vmem:[%s4844 + $0x8] sm:$0xff]
        %v4847 = vld [vmem:[%s4844 + $0x10] sm:$0xff]
        %v4848 = vld [vmem:[%s4844 + $0x18] sm:$0xff]
        %v4850 = vsel %vm1426, %v4636, 0
        %v4853 = vsel %vm1426, %v4637, 0
        %v4856 = vsel %vm1426, %v4638, 0
        %v4859 = vsel %vm1426, %v4639, 0
        %4861 = vmatprep.subr.mxu0 0.0
        %4862 = vmatpush1.msra.mxu0 %v4845
        %4863 = vmatprep.subr.mxu0 0.0
        %4864 = vmatpush1.msra.mxu0 %v4846
        %4865 = vmatprep.subr.mxu0 0.0
        %4866 = vmatpush1.msra.mxu0 %v4847
        %4867 = vmatprep.subr.mxu0 0.0
        %4868 = vmatpush1.msra.mxu0 %v4848
        %4869 = vmatprep.subr.mxu0 0.0
        %4870 = vmatpush1.msra.mxu0 0.0
        %4871 = vmatprep.subr.mxu0 0.0
        %4872 = vmatpush1.msra.mxu0 0.0
        %4873 = vmatprep.subr.mxu0 0.0
        %4874 = vmatpush1.msra.mxu0 0.0
        %4875 = vmatprep.subr.mxu0 0.0
        %4876 = vmatpush1.msra.mxu0 0.0
        %4877 = vmatprep.subr.mxu0 0.0
        %4878 = vmatpush1.msra.mxu0 0.0
        %4879 = vmatprep.subr.mxu0 0.0
        %4880 = vmatpush1.msra.mxu0 0.0
        %4881 = vmatprep.subr.mxu0 0.0
        %4882 = vmatpush1.msra.mxu0 0.0
        %4883 = vmatprep.subr.mxu0 0.0
        %4884 = vmatpush1.msra.mxu0 0.0
        %4885 = vmatprep.subr.mxu0 0.0
        %4886 = vmatpush1.msra.mxu0 0.0
        %4887 = vmatprep.subr.mxu0 0.0
        %4888 = vmatpush1.msra.mxu0 0.0
        %4889 = vmatprep.subr.mxu0 0.0
        %4890 = vmatpush1.msra.mxu0 0.0
        %4891 = vmatprep.subr.mxu0 0.0
        %4892 = vmatpush1.msra.mxu0 0.0
        %4893 = vmatprep.subr.mxu0 0.0
        %4894 = vmatpush1.msra.mxu0 0.0
        %4895 = vmatprep.subr.mxu0 0.0
        %4896 = vmatpush1.msra.mxu0 0.0
        %4897 = vmatprep.subr.mxu0 0.0
        %4898 = vmatpush1.msra.mxu0 0.0
        %4899 = vmatprep.subr.mxu0 0.0
        %4900 = vmatpush1.msra.mxu0 0.0
        %4901 = vmatprep.subr.mxu0 0.0
        %4902 = vmatpush1.msra.mxu0 0.0
        %4903 = vmatprep.subr.mxu0 0.0
        %4904 = vmatpush1.msra.mxu0 0.0
        %4905 = vmatprep.subr.mxu0 0.0
        %4906 = vmatpush1.msra.mxu0 0.0
        %4907 = vmatprep.subr.mxu0 0.0
        %4908 = vmatpush1.msra.mxu0 0.0
        %4909 = vmatprep.subr.mxu0 0.0
        %4910 = vmatpush1.msra.mxu0 0.0
        %4911 = vmatprep.subr.mxu0 0.0
        %4912 = vmatpush1.msra.mxu0 0.0
        %4913 = vmatprep.subr.mxu0 0.0
        %4914 = vmatpush1.msra.mxu0 0.0
        %4915 = vmatprep.subr.mxu0 0.0
        %4916 = vmatpush1.msra.mxu0 0.0
        %4917 = vmatprep.subr.mxu0 0.0
        %4918 = vmatpush1.msra.mxu0 0.0
        %4919 = vmatprep.subr.mxu0 0.0
        %4920 = vmatpush1.msra.mxu0 0.0
        %4921 = vmatprep.subr.mxu0 0.0
        %4922 = vmatpush1.msra.mxu0 0.0
        %4923 = vmatprep.subr.mxu0 0.0
        %4924 = vmatpush1.msra.mxu0 0.0
        %4925 = vmatprep.mubr.f32.mxu0 0.0
        %4926 = vmatmul.mubr.f32.gmra.mrb[0].mxu0 %v4850
        %v4927 = vpop.f32.mrb[0].mxu0
        %v4928 = vadd.f32 0.0, %v4927
        %v4929 = vpop.f32.mrb[0].mxu0
        %4930 = vmatprep.mubr.f32.mxu0 0.0
        %4931 = vmatmul.mubr.f32.gmra.mrb[0].mxu0 %v4853
        %v4932 = vpop.f32.mrb[0].mxu0
        %v4933 = vadd.f32 0.0, %v4932
        %v4934 = vpop.f32.mrb[0].mxu0
        %4935 = vmatprep.mubr.f32.mxu0 0.0
        %4936 = vmatmul.mubr.f32.gmra.mrb[0].mxu0 %v4856
        %v4937 = vpop.f32.mrb[0].mxu0
        %v4938 = vadd.f32 0.0, %v4937
        %v4939 = vpop.f32.mrb[0].mxu0
        %4940 = vmatprep.mubr.f32.mxu0 0.0
        %4941 = vmatmul.mubr.f32.gmra.mrb[0].mxu0 %v4859
        %v4942 = vpop.f32.mrb[0].mxu0
        %v4943 = vadd.f32 0.0, %v4942
        %v4944 = vpop.f32.mrb[0].mxu0
        %4945 = vdwg.mxu0
        %v4946 = vadd.f32 %v4826, %v4928
        %v4947 = vadd.f32 %v4831, %v4933
        %v4948 = vadd.f32 %v4836, %v4938
        %v4949 = vadd.f32 %v4841, %v4943
        %s4950 = scalar_lea.vmem [#allocation10], 4
        %v4951 = vld [vmem:[%s4950] sm:$0x1]
        %v4953 = vlaneseq
        %v4954 = vshrl.u32 %v4953, 7
        %v4955 = vsub.s32 0, %v4954
        %v4956 = vrot.slane %v4951, %v4955
        %v4958 = vadd.f32 %v4946, %v4956
        %v4959 = vadd.f32 %v4947, %v4956
        %v4960 = vadd.f32 %v4948, %v4956
        %v4961 = vadd.f32 %v4949, %v4956
        %s4962 = scalar_lea.vmem [#allocation11], 384
        %v4963 = vld [vmem:[%s4962] sm:$0xff]
        %v4964 = vld [vmem:[%s4962 + $0x8] sm:$0xff]
        %v4965 = vld [vmem:[%s4962 + $0x10] sm:$0xff]
        %v4966 = vld [vmem:[%s4962 + $0x18] sm:$0xff]
        %s4967 = scalar_lea.vmem [#allocation11], 416
        %v4968 = vld [vmem:[%s4967] sm:$0xff]
        %v4969 = vld [vmem:[%s4967 + $0x8] sm:$0xff]
        %v4970 = vld [vmem:[%s4967 + $0x10] sm:$0xff]
        %v4971 = vld [vmem:[%s4967 + $0x18] sm:$0xff]
        %4972 = vmatprep.subr.mxu0 0.0
        %4973 = vmatpush1.msra.mxu0 %v4968
        %4974 = vmatprep.subr.mxu0 0.0
        %4975 = vmatpush1.msra.mxu0 %v4969
        %4976 = vmatprep.subr.mxu0 0.0
        %4977 = vmatpush1.msra.mxu0 %v4970
        %4978 = vmatprep.subr.mxu0 0.0
        %4979 = vmatpush1.msra.mxu0 %v4971
        %4980 = vmatprep.subr.mxu0 0.0
        %4981 = vmatpush1.msra.mxu0 0.0
        %4982 = vmatprep.subr.mxu0 0.0
        %4983 = vmatpush1.msra.mxu0 0.0
        %4984 = vmatprep.subr.mxu0 0.0
        %4985 = vmatpush1.msra.mxu0 0.0
        %4986 = vmatprep.subr.mxu0 0.0
        %4987 = vmatpush1.msra.mxu0 0.0
        %4988 = vmatprep.subr.mxu0 0.0
        %4989 = vmatpush1.msra.mxu0 0.0
        %4990 = vmatprep.subr.mxu0 0.0
        %4991 = vmatpush1.msra.mxu0 0.0
        %4992 = vmatprep.subr.mxu0 0.0
        %4993 = vmatpush1.msra.mxu0 0.0
        %4994 = vmatprep.subr.mxu0 0.0
        %4995 = vmatpush1.msra.mxu0 0.0
        %4996 = vmatprep.subr.mxu0 0.0
        %4997 = vmatpush1.msra.mxu0 0.0
        %4998 = vmatprep.subr.mxu0 0.0
        %4999 = vmatpush1.msra.mxu0 0.0
        %5000 = vmatprep.subr.mxu0 0.0
        %5001 = vmatpush1.msra.mxu0 0.0
        %5002 = vmatprep.subr.mxu0 0.0
        %5003 = vmatpush1.msra.mxu0 0.0
        %5004 = vmatprep.subr.mxu0 0.0
        %5005 = vmatpush1.msra.mxu0 0.0
        %5006 = vmatprep.subr.mxu0 0.0
        %5007 = vmatpush1.msra.mxu0 0.0
        %5008 = vmatprep.subr.mxu0 0.0
        %5009 = vmatpush1.msra.mxu0 0.0
        %5010 = vmatprep.subr.mxu0 0.0
        %5011 = vmatpush1.msra.mxu0 0.0
        %5012 = vmatprep.subr.mxu0 0.0
        %5013 = vmatpush1.msra.mxu0 0.0
        %5014 = vmatprep.subr.mxu0 0.0
        %5015 = vmatpush1.msra.mxu0 0.0
        %5016 = vmatprep.subr.mxu0 0.0
        %5017 = vmatpush1.msra.mxu0 0.0
        %5018 = vmatprep.subr.mxu0 0.0
        %5019 = vmatpush1.msra.mxu0 0.0
        %5020 = vmatprep.subr.mxu0 0.0
        %5021 = vmatpush1.msra.mxu0 0.0
        %5022 = vmatprep.subr.mxu0 0.0
        %5023 = vmatpush1.msra.mxu0 0.0
        %5024 = vmatprep.subr.mxu0 0.0
        %5025 = vmatpush1.msra.mxu0 0.0
        %5026 = vmatprep.subr.mxu0 0.0
        %5027 = vmatpush1.msra.mxu0 0.0
        %5028 = vmatprep.subr.mxu0 0.0
        %5029 = vmatpush1.msra.mxu0 0.0
        %5030 = vmatprep.subr.mxu0 0.0
        %5031 = vmatpush1.msra.mxu0 0.0
        %5032 = vmatprep.subr.mxu0 0.0
        %5033 = vmatpush1.msra.mxu0 0.0
        %5034 = vmatprep.subr.mxu0 0.0
        %5035 = vmatpush1.msra.mxu0 0.0
        %5036 = vmatprep.mubr.f32.mxu0 0.0
        %5037 = vmatmul.mubr.f32.gmra.mrb[0].mxu0 %v4651
        %v5038 = vpop.f32.mrb[0].mxu0
        %v5039 = vadd.f32 0.0, %v5038
        %v5040 = vpop.f32.mrb[0].mxu0
        %5041 = vmatprep.mubr.f32.mxu0 0.0
        %5042 = vmatmul.mubr.f32.gmra.mrb[0].mxu0 %v4654
        %v5043 = vpop.f32.mrb[0].mxu0
        %v5044 = vadd.f32 0.0, %v5043
        %v5045 = vpop.f32.mrb[0].mxu0
        %5046 = vmatprep.mubr.f32.mxu0 0.0
        %5047 = vmatmul.mubr.f32.gmra.mrb[0].mxu0 %v4657
        %v5048 = vpop.f32.mrb[0].mxu0
        %v5049 = vadd.f32 0.0, %v5048
        %v5050 = vpop.f32.mrb[0].mxu0
        %5051 = vmatprep.mubr.f32.mxu0 0.0
        %5052 = vmatmul.mubr.f32.gmra.mrb[0].mxu0 %v4660
        %v5053 = vpop.f32.mrb[0].mxu0
        %v5054 = vadd.f32 0.0, %v5053
        %v5055 = vpop.f32.mrb[0].mxu0
        %5056 = vdwg.mxu0
        %5057 = vmatprep.subr.mxu0 0.0
        %5058 = vmatpush1.msra.mxu0 %v4963
        %5059 = vmatprep.subr.mxu0 0.0
        %5060 = vmatpush1.msra.mxu0 %v4964
        %5061 = vmatprep.subr.mxu0 0.0
        %5062 = vmatpush1.msra.mxu0 %v4965
        %5063 = vmatprep.subr.mxu0 0.0
        %5064 = vmatpush1.msra.mxu0 %v4966
        %5065 = vmatprep.subr.mxu0 0.0
        %5066 = vmatpush1.msra.mxu0 0.0
        %5067 = vmatprep.subr.mxu0 0.0
        %5068 = vmatpush1.msra.mxu0 0.0
        %5069 = vmatprep.subr.mxu0 0.0
        %5070 = vmatpush1.msra.mxu0 0.0
        %5071 = vmatprep.subr.mxu0 0.0
        %5072 = vmatpush1.msra.mxu0 0.0
        %5073 = vmatprep.subr.mxu0 0.0
        %5074 = vmatpush1.msra.mxu0 0.0
        %5075 = vmatprep.subr.mxu0 0.0
        %5076 = vmatpush1.msra.mxu0 0.0
        %5077 = vmatprep.subr.mxu0 0.0
        %5078 = vmatpush1.msra.mxu0 0.0
        %5079 = vmatprep.subr.mxu0 0.0
        %5080 = vmatpush1.msra.mxu0 0.0
        %5081 = vmatprep.subr.mxu0 0.0
        %5082 = vmatpush1.msra.mxu0 0.0
        %5083 = vmatprep.subr.mxu0 0.0
        %5084 = vmatpush1.msra.mxu0 0.0
        %5085 = vmatprep.subr.mxu0 0.0
        %5086 = vmatpush1.msra.mxu0 0.0
        %5087 = vmatprep.subr.mxu0 0.0
        %5088 = vmatpush1.msra.mxu0 0.0
        %5089 = vmatprep.subr.mxu0 0.0
        %5090 = vmatpush1.msra.mxu0 0.0
        %5091 = vmatprep.subr.mxu0 0.0
        %5092 = vmatpush1.msra.mxu0 0.0
        %5093 = vmatprep.subr.mxu0 0.0
        %5094 = vmatpush1.msra.mxu0 0.0
        %5095 = vmatprep.subr.mxu0 0.0
        %5096 = vmatpush1.msra.mxu0 0.0
        %5097 = vmatprep.subr.mxu0 0.0
        %5098 = vmatpush1.msra.mxu0 0.0
        %5099 = vmatprep.subr.mxu0 0.0
        %5100 = vmatpush1.msra.mxu0 0.0
        %5101 = vmatprep.subr.mxu0 0.0
        %5102 = vmatpush1.msra.mxu0 0.0
        %5103 = vmatprep.subr.mxu0 0.0
        %5104 = vmatpush1.msra.mxu0 0.0
        %5105 = vmatprep.subr.mxu0 0.0
        %5106 = vmatpush1.msra.mxu0 0.0
        %5107 = vmatprep.subr.mxu0 0.0
        %5108 = vmatpush1.msra.mxu0 0.0
        %5109 = vmatprep.subr.mxu0 0.0
        %5110 = vmatpush1.msra.mxu0 0.0
        %5111 = vmatprep.subr.mxu0 0.0
        %5112 = vmatpush1.msra.mxu0 0.0
        %5113 = vmatprep.subr.mxu0 0.0
        %5114 = vmatpush1.msra.mxu0 0.0
        %5115 = vmatprep.subr.mxu0 0.0
        %5116 = vmatpush1.msra.mxu0 0.0
        %5117 = vmatprep.subr.mxu0 0.0
        %5118 = vmatpush1.msra.mxu0 0.0
        %5119 = vmatprep.subr.mxu0 0.0
        %5120 = vmatpush1.msra.mxu0 0.0
        %5121 = vmatprep.mubr.f32.mxu0 0.0
        %5122 = vmatmul.mubr.f32.gmra.mrb[0].mxu0 %v4748
        %v5123 = vpop.f32.mrb[0].mxu0
        %v5124 = vadd.f32 %v5039, %v5123
        %v5125 = vpop.f32.mrb[0].mxu0
        %5126 = vmatprep.mubr.f32.mxu0 0.0
        %5127 = vmatmul.mubr.f32.gmra.mrb[0].mxu0 %v4751
        %v5128 = vpop.f32.mrb[0].mxu0
        %v5129 = vadd.f32 %v5044, %v5128
        %v5130 = vpop.f32.mrb[0].mxu0
        %5131 = vmatprep.mubr.f32.mxu0 0.0
        %5132 = vmatmul.mubr.f32.gmra.mrb[0].mxu0 %v4754
        %v5133 = vpop.f32.mrb[0].mxu0
        %v5134 = vadd.f32 %v5049, %v5133
        %v5135 = vpop.f32.mrb[0].mxu0
        %5136 = vmatprep.mubr.f32.mxu0 0.0
        %5137 = vmatmul.mubr.f32.gmra.mrb[0].mxu0 %v4757
        %v5138 = vpop.f32.mrb[0].mxu0
        %v5139 = vadd.f32 %v5054, %v5138
        %v5140 = vpop.f32.mrb[0].mxu0
        %5141 = vdwg.mxu0
        %s5142 = scalar_lea.vmem [#allocation11], 448
        %v5143 = vld [vmem:[%s5142] sm:$0xff]
        %v5144 = vld [vmem:[%s5142 + $0x8] sm:$0xff]
        %v5145 = vld [vmem:[%s5142 + $0x10] sm:$0xff]
        %v5146 = vld [vmem:[%s5142 + $0x18] sm:$0xff]
        %5147 = vmatprep.subr.mxu0 0.0
        %5148 = vmatpush1.msra.mxu0 %v5143
        %5149 = vmatprep.subr.mxu0 0.0
        %5150 = vmatpush1.msra.mxu0 %v5144
        %5151 = vmatprep.subr.mxu0 0.0
        %5152 = vmatpush1.msra.mxu0 %v5145
        %5153 = vmatprep.subr.mxu0 0.0
        %5154 = vmatpush1.msra.mxu0 %v5146
        %5155 = vmatprep.subr.mxu0 0.0
        %5156 = vmatpush1.msra.mxu0 0.0
        %5157 = vmatprep.subr.mxu0 0.0
        %5158 = vmatpush1.msra.mxu0 0.0
        %5159 = vmatprep.subr.mxu0 0.0
        %5160 = vmatpush1.msra.mxu0 0.0
        %5161 = vmatprep.subr.mxu0 0.0
        %5162 = vmatpush1.msra.mxu0 0.0
        %5163 = vmatprep.subr.mxu0 0.0
        %5164 = vmatpush1.msra.mxu0 0.0
        %5165 = vmatprep.subr.mxu0 0.0
        %5166 = vmatpush1.msra.mxu0 0.0
        %5167 = vmatprep.subr.mxu0 0.0
        %5168 = vmatpush1.msra.mxu0 0.0
        %5169 = vmatprep.subr.mxu0 0.0
        %5170 = vmatpush1.msra.mxu0 0.0
        %5171 = vmatprep.subr.mxu0 0.0
        %5172 = vmatpush1.msra.mxu0 0.0
        %5173 = vmatprep.subr.mxu0 0.0
        %5174 = vmatpush1.msra.mxu0 0.0
        %5175 = vmatprep.subr.mxu0 0.0
        %5176 = vmatpush1.msra.mxu0 0.0
        %5177 = vmatprep.subr.mxu0 0.0
        %5178 = vmatpush1.msra.mxu0 0.0
        %5179 = vmatprep.subr.mxu0 0.0
        %5180 = vmatpush1.msra.mxu0 0.0
        %5181 = vmatprep.subr.mxu0 0.0
        %5182 = vmatpush1.msra.mxu0 0.0
        %5183 = vmatprep.subr.mxu0 0.0
        %5184 = vmatpush1.msra.mxu0 0.0
        %5185 = vmatprep.subr.mxu0 0.0
        %5186 = vmatpush1.msra.mxu0 0.0
        %5187 = vmatprep.subr.mxu0 0.0
        %5188 = vmatpush1.msra.mxu0 0.0
        %5189 = vmatprep.subr.mxu0 0.0
        %5190 = vmatpush1.msra.mxu0 0.0
        %5191 = vmatprep.subr.mxu0 0.0
        %5192 = vmatpush1.msra.mxu0 0.0
        %5193 = vmatprep.subr.mxu0 0.0
        %5194 = vmatpush1.msra.mxu0 0.0
        %5195 = vmatprep.subr.mxu0 0.0
        %5196 = vmatpush1.msra.mxu0 0.0
        %5197 = vmatprep.subr.mxu0 0.0
        %5198 = vmatpush1.msra.mxu0 0.0
        %5199 = vmatprep.subr.mxu0 0.0
        %5200 = vmatpush1.msra.mxu0 0.0
        %5201 = vmatprep.subr.mxu0 0.0
        %5202 = vmatpush1.msra.mxu0 0.0
        %5203 = vmatprep.subr.mxu0 0.0
        %5204 = vmatpush1.msra.mxu0 0.0
        %5205 = vmatprep.subr.mxu0 0.0
        %5206 = vmatpush1.msra.mxu0 0.0
        %5207 = vmatprep.subr.mxu0 0.0
        %5208 = vmatpush1.msra.mxu0 0.0
        %5209 = vmatprep.subr.mxu0 0.0
        %5210 = vmatpush1.msra.mxu0 0.0
        %5211 = vmatprep.mubr.f32.mxu0 0.0
        %5212 = vmatmul.mubr.f32.gmra.mrb[0].mxu0 %v4850
        %v5213 = vpop.f32.mrb[0].mxu0
        %v5214 = vadd.f32 0.0, %v5213
        %v5215 = vpop.f32.mrb[0].mxu0
        %5216 = vmatprep.mubr.f32.mxu0 0.0
        %5217 = vmatmul.mubr.f32.gmra.mrb[0].mxu0 %v4853
        %v5218 = vpop.f32.mrb[0].mxu0
        %v5219 = vadd.f32 0.0, %v5218
        %v5220 = vpop.f32.mrb[0].mxu0
        %5221 = vmatprep.mubr.f32.mxu0 0.0
        %5222 = vmatmul.mubr.f32.gmra.mrb[0].mxu0 %v4856
        %v5223 = vpop.f32.mrb[0].mxu0
        %v5224 = vadd.f32 0.0, %v5223
        %v5225 = vpop.f32.mrb[0].mxu0
        %5226 = vmatprep.mubr.f32.mxu0 0.0
        %5227 = vmatmul.mubr.f32.gmra.mrb[0].mxu0 %v4859
        %v5228 = vpop.f32.mrb[0].mxu0
        %v5229 = vadd.f32 0.0, %v5228
        %v5230 = vpop.f32.mrb[0].mxu0
        %5231 = vdwg.mxu0
        %v5232 = vadd.f32 %v5124, %v5214
        %v5233 = vadd.f32 %v5129, %v5219
        %v5234 = vadd.f32 %v5134, %v5224
        %v5235 = vadd.f32 %v5139, %v5229
        %s5236 = scalar_lea.vmem [#allocation13], 4
        %v5237 = vld [vmem:[%s5236] sm:$0x1]
        %v5239 = vlaneseq
        %v5240 = vshrl.u32 %v5239, 7
        %v5241 = vsub.s32 0, %v5240
        %v5242 = vrot.slane %v5237, %v5241
        %v5244 = vadd.f32 %v5232, %v5242
        %v5245 = vadd.f32 %v5233, %v5242
        %v5246 = vadd.f32 %v5234, %v5242
        %v5247 = vadd.f32 %v5235, %v5242
        %v5248 = vtanh.pop %v4958
        %v5249 = vtanh.pop %v4959
        %v5250 = vtanh.pop %v4960
        %v5251 = vtanh.pop %v4961
        %v5252 = vxor.u32 %v5244, 2147483648
        %v5253 = vxor.u32 %v5245, 2147483648
        %v5254 = vxor.u32 %v5246, 2147483648
        %v5255 = vxor.u32 %v5247, 2147483648
        %v5256 = vmul.f32 %v5252, 1.442695
        %v5257 = vpow.pop %v5256
        %v5258 = vmul.f32 %v5253, 1.442695
        %v5259 = vpow.pop %v5258
        %v5260 = vmul.f32 %v5254, 1.442695
        %v5261 = vpow.pop %v5260
        %v5262 = vmul.f32 %v5255, 1.442695
        %v5263 = vpow.pop %v5262
        %v5264 = vadd.f32 %v5257, 1.0
        %v5265 = vadd.f32 %v5259, 1.0
        %v5266 = vadd.f32 %v5261, 1.0
        %v5267 = vadd.f32 %v5263, 1.0
        %v5268 = vrcp.pop %v5264
        %v5269 = vmul.f32 1.0, %v5268
        %v5270 = vrcp.pop %v5265
        %v5271 = vmul.f32 1.0, %v5270
        %v5272 = vrcp.pop %v5266
        %v5273 = vmul.f32 1.0, %v5272
        %v5274 = vrcp.pop %v5267
        %v5275 = vmul.f32 1.0, %v5274
        %v5276 = vmul.f32 %v5248, %v5269
        %v5277 = vmul.f32 %v5249, %v5271
        %v5278 = vmul.f32 %v5250, %v5273
        %v5279 = vmul.f32 %v5251, %v5275
        %v5281 = vsel %vm1426, %v5276, 0
        %v5284 = vsel %vm1426, %v5277, 0
        %v5287 = vsel %vm1426, %v5278, 0
        %v5290 = vsel %vm1426, %v5279, 0
        %5292 = vmatprep.subr.mxu0 0.0
        %5293 = vmatpush1.msra.mxu0 %v2054
        %5294 = vmatprep.subr.mxu0 0.0
        %5295 = vmatpush1.msra.mxu0 %v2055
        %5296 = vmatprep.subr.mxu0 0.0
        %5297 = vmatpush1.msra.mxu0 %v2056
        %5298 = vmatprep.subr.mxu0 0.0
        %5299 = vmatpush1.msra.mxu0 %v2057
        %5300 = vmatprep.subr.mxu0 0.0
        %5301 = vmatpush1.msra.mxu0 0.0
        %5302 = vmatprep.subr.mxu0 0.0
        %5303 = vmatpush1.msra.mxu0 0.0
        %5304 = vmatprep.subr.mxu0 0.0
        %5305 = vmatpush1.msra.mxu0 0.0
        %5306 = vmatprep.subr.mxu0 0.0
        %5307 = vmatpush1.msra.mxu0 0.0
        %5308 = vmatprep.subr.mxu0 0.0
        %5309 = vmatpush1.msra.mxu0 0.0
        %5310 = vmatprep.subr.mxu0 0.0
        %5311 = vmatpush1.msra.mxu0 0.0
        %5312 = vmatprep.subr.mxu0 0.0
        %5313 = vmatpush1.msra.mxu0 0.0
        %5314 = vmatprep.subr.mxu0 0.0
        %5315 = vmatpush1.msra.mxu0 0.0
        %5316 = vmatprep.subr.mxu0 0.0
        %5317 = vmatpush1.msra.mxu0 0.0
        %5318 = vmatprep.subr.mxu0 0.0
        %5319 = vmatpush1.msra.mxu0 0.0
        %5320 = vmatprep.subr.mxu0 0.0
        %5321 = vmatpush1.msra.mxu0 0.0
        %5322 = vmatprep.subr.mxu0 0.0
        %5323 = vmatpush1.msra.mxu0 0.0
        %5324 = vmatprep.subr.mxu0 0.0
        %5325 = vmatpush1.msra.mxu0 0.0
        %5326 = vmatprep.subr.mxu0 0.0
        %5327 = vmatpush1.msra.mxu0 0.0
        %5328 = vmatprep.subr.mxu0 0.0
        %5329 = vmatpush1.msra.mxu0 0.0
        %5330 = vmatprep.subr.mxu0 0.0
        %5331 = vmatpush1.msra.mxu0 0.0
        %5332 = vmatprep.subr.mxu0 0.0
        %5333 = vmatpush1.msra.mxu0 0.0
        %5334 = vmatprep.subr.mxu0 0.0
        %5335 = vmatpush1.msra.mxu0 0.0
        %5336 = vmatprep.subr.mxu0 0.0
        %5337 = vmatpush1.msra.mxu0 0.0
        %5338 = vmatprep.subr.mxu0 0.0
        %5339 = vmatpush1.msra.mxu0 0.0
        %5340 = vmatprep.subr.mxu0 0.0
        %5341 = vmatpush1.msra.mxu0 0.0
        %5342 = vmatprep.subr.mxu0 0.0
        %5343 = vmatpush1.msra.mxu0 0.0
        %5344 = vmatprep.subr.mxu0 0.0
        %5345 = vmatpush1.msra.mxu0 0.0
        %5346 = vmatprep.subr.mxu0 0.0
        %5347 = vmatpush1.msra.mxu0 0.0
        %5348 = vmatprep.subr.mxu0 0.0
        %5349 = vmatpush1.msra.mxu0 0.0
        %5350 = vmatprep.subr.mxu0 0.0
        %5351 = vmatpush1.msra.mxu0 0.0
        %5352 = vmatprep.subr.mxu0 0.0
        %5353 = vmatpush1.msra.mxu0 0.0
        %5354 = vmatprep.subr.mxu0 0.0
        %5355 = vmatpush1.msra.mxu0 0.0
        %5356 = vmatprep.mubr.f32.mxu0 0.0
        %5357 = vmatmul.mubr.f32.gmra.mrb[0].mxu0 %v5281
        %v5358 = vpop.f32.mrb[0].mxu0
        %v5359 = vadd.f32 %v2063, %v5358
        %v5360 = vpop.f32.mrb[0].mxu0
        %5361 = vmatprep.mubr.f32.mxu0 0.0
        %5362 = vmatmul.mubr.f32.gmra.mrb[0].mxu0 %v5284
        %v5363 = vpop.f32.mrb[0].mxu0
        %v5364 = vadd.f32 %v2063, %v5363
        %v5365 = vpop.f32.mrb[0].mxu0
        %5366 = vmatprep.mubr.f32.mxu0 0.0
        %5367 = vmatmul.mubr.f32.gmra.mrb[0].mxu0 %v5287
        %v5368 = vpop.f32.mrb[0].mxu0
        %v5369 = vadd.f32 %v2063, %v5368
        %v5370 = vpop.f32.mrb[0].mxu0
        %5371 = vmatprep.mubr.f32.mxu0 0.0
        %5372 = vmatmul.mubr.f32.gmra.mrb[0].mxu0 %v5290
        %v5373 = vpop.f32.mrb[0].mxu0
        %v5374 = vadd.f32 %v2063, %v5373
        %v5375 = vpop.f32.mrb[0].mxu0
        %5376 = vdwg.mxu0
        %v5377 = vadd.f32 %v4580, %v5359
        %v5378 = vadd.f32 %v4581, %v5364
        %v5379 = vadd.f32 %v4582, %v5369
        %v5380 = vadd.f32 %v4583, %v5374
        %v5381 = vld [vmem:[#allocation17] sm:$0x1]
        %v5383 = vlaneseq
        %v5384 = vshrl.u32 %v5383, 7
        %v5385 = vsub.s32 0, %v5384
        %v5386 = vrot.slane %v5381, %v5385
        %v5388 = vmul.f32 %v5377, %v5386
        %v5389 = vmul.f32 %v5378, %v5386
        %v5390 = vmul.f32 %v5379, %v5386
        %v5391 = vmul.f32 %v5380, %v5386
        %v5392 = vld [vmem:[#allocation19] sm:$0x1]
        %v5394 = vlaneseq
        %v5395 = vshrl.u32 %v5394, 7
        %v5396 = vsub.s32 0, %v5395
        %v5397 = vrot.slane %v5392, %v5396
        %v5399 = vadd.f32 %v5388, %v5397
        %v5400 = vadd.f32 %v5389, %v5397
        %v5401 = vadd.f32 %v5390, %v5397
        %v5402 = vadd.f32 %v5391, %v5397
        %v5403 = vld [vmem:[%s13] sm:$0xff]
        %v5404 = vld [vmem:[%s13 + $0x8] sm:$0xff]
        %v5405 = vld [vmem:[%s13 + $0x10] sm:$0xff]
        %v5406 = vld [vmem:[%s13 + $0x18] sm:$0xff]
        %v5407 = vld [vmem:[%s14] sm:$0x1]
        %v5409 = vlaneseq
        %v5410 = vshrl.u32 %v5409, 7
        %v5411 = vsub.s32 0, %v5410
        %v5412 = vrot.slane %v5407, %v5411
        %v5415 = vsel %vm1426, %v1013, 0
        %v5418 = vsel %vm1426, %v1014, 0
        %v5421 = vsel %vm1426, %v1015, 0
        %v5424 = vsel %vm1426, %v1016, 0
        %5426 = vmatprep.subr.mxu0 0.0
        %5427 = vmatpush1.msra.mxu0 %v5403
        %5428 = vmatprep.subr.mxu0 0.0
        %5429 = vmatpush1.msra.mxu0 %v5404
        %5430 = vmatprep.subr.mxu0 0.0
        %5431 = vmatpush1.msra.mxu0 %v5405
        %5432 = vmatprep.subr.mxu0 0.0
        %5433 = vmatpush1.msra.mxu0 %v5406
        %5434 = vmatprep.subr.mxu0 0.0
        %5435 = vmatpush1.msra.mxu0 0.0
        %5436 = vmatprep.subr.mxu0 0.0
        %5437 = vmatpush1.msra.mxu0 0.0
        %5438 = vmatprep.subr.mxu0 0.0
        %5439 = vmatpush1.msra.mxu0 0.0
        %5440 = vmatprep.subr.mxu0 0.0
        %5441 = vmatpush1.msra.mxu0 0.0
        %5442 = vmatprep.subr.mxu0 0.0
        %5443 = vmatpush1.msra.mxu0 0.0
        %5444 = vmatprep.subr.mxu0 0.0
        %5445 = vmatpush1.msra.mxu0 0.0
        %5446 = vmatprep.subr.mxu0 0.0
        %5447 = vmatpush1.msra.mxu0 0.0
        %5448 = vmatprep.subr.mxu0 0.0
        %5449 = vmatpush1.msra.mxu0 0.0
        %5450 = vmatprep.subr.mxu0 0.0
        %5451 = vmatpush1.msra.mxu0 0.0
        %5452 = vmatprep.subr.mxu0 0.0
        %5453 = vmatpush1.msra.mxu0 0.0
        %5454 = vmatprep.subr.mxu0 0.0
        %5455 = vmatpush1.msra.mxu0 0.0
        %5456 = vmatprep.subr.mxu0 0.0
        %5457 = vmatpush1.msra.mxu0 0.0
        %5458 = vmatprep.subr.mxu0 0.0
        %5459 = vmatpush1.msra.mxu0 0.0
        %5460 = vmatprep.subr.mxu0 0.0
        %5461 = vmatpush1.msra.mxu0 0.0
        %5462 = vmatprep.subr.mxu0 0.0
        %5463 = vmatpush1.msra.mxu0 0.0
        %5464 = vmatprep.subr.mxu0 0.0
        %5465 = vmatpush1.msra.mxu0 0.0
        %5466 = vmatprep.subr.mxu0 0.0
        %5467 = vmatpush1.msra.mxu0 0.0
        %5468 = vmatprep.subr.mxu0 0.0
        %5469 = vmatpush1.msra.mxu0 0.0
        %5470 = vmatprep.subr.mxu0 0.0
        %5471 = vmatpush1.msra.mxu0 0.0
        %5472 = vmatprep.subr.mxu0 0.0
        %5473 = vmatpush1.msra.mxu0 0.0
        %5474 = vmatprep.subr.mxu0 0.0
        %5475 = vmatpush1.msra.mxu0 0.0
        %5476 = vmatprep.subr.mxu0 0.0
        %5477 = vmatpush1.msra.mxu0 0.0
        %5478 = vmatprep.subr.mxu0 0.0
        %5479 = vmatpush1.msra.mxu0 0.0
        %5480 = vmatprep.subr.mxu0 0.0
        %5481 = vmatpush1.msra.mxu0 0.0
        %5482 = vmatprep.subr.mxu0 0.0
        %5483 = vmatpush1.msra.mxu0 0.0
        %5484 = vmatprep.subr.mxu0 0.0
        %5485 = vmatpush1.msra.mxu0 0.0
        %5486 = vmatprep.subr.mxu0 0.0
        %5487 = vmatpush1.msra.mxu0 0.0
        %5488 = vmatprep.subr.mxu0 0.0
        %5489 = vmatpush1.msra.mxu0 0.0
        %5490 = vmatprep.mubr.f32.mxu0 0.0
        %5491 = vmatmul.mubr.f32.gmra.mrb[0].mxu0 %v5415
        %v5492 = vpop.f32.mrb[0].mxu0
        %v5493 = vadd.f32 %v5412, %v5492
        %v5494 = vpop.f32.mrb[0].mxu0
        %5495 = vmatprep.mubr.f32.mxu0 0.0
        %5496 = vmatmul.mubr.f32.gmra.mrb[0].mxu0 %v5418
        %v5497 = vpop.f32.mrb[0].mxu0
        %v5498 = vadd.f32 %v5412, %v5497
        %v5499 = vpop.f32.mrb[0].mxu0
        %5500 = vmatprep.mubr.f32.mxu0 0.0
        %5501 = vmatmul.mubr.f32.gmra.mrb[0].mxu0 %v5421
        %v5502 = vpop.f32.mrb[0].mxu0
        %v5503 = vadd.f32 %v5412, %v5502
        %v5504 = vpop.f32.mrb[0].mxu0
        %5505 = vmatprep.mubr.f32.mxu0 0.0
        %5506 = vmatmul.mubr.f32.gmra.mrb[0].mxu0 %v5424
        %v5507 = vpop.f32.mrb[0].mxu0
        %v5508 = vadd.f32 %v5412, %v5507
        %v5509 = vpop.f32.mrb[0].mxu0
        %5510 = vdwg.mxu0
        %v5511 = vld [vmem:[#allocation20] sm:$0xff]
        %v5512 = vld [vmem:[#allocation20 + $0x8] sm:$0xff]
        %v5513 = vld [vmem:[#allocation20 + $0x10] sm:$0xff]
        %v5514 = vld [vmem:[#allocation20 + $0x18] sm:$0xff]
        %v5515 = vld [vmem:[%s16] sm:$0x1]
        %v5517 = vlaneseq
        %v5518 = vshrl.u32 %v5517, 7
        %v5519 = vsub.s32 0, %v5518
        %v5520 = vrot.slane %v5515, %v5519
        %5522 = vmatprep.subr.mxu0 0.0
        %5523 = vmatpush1.msra.mxu0 %v5511
        %5524 = vmatprep.subr.mxu0 0.0
        %5525 = vmatpush1.msra.mxu0 %v5512
        %5526 = vmatprep.subr.mxu0 0.0
        %5527 = vmatpush1.msra.mxu0 %v5513
        %5528 = vmatprep.subr.mxu0 0.0
        %5529 = vmatpush1.msra.mxu0 %v5514
        %5530 = vmatprep.subr.mxu0 0.0
        %5531 = vmatpush1.msra.mxu0 0.0
        %5532 = vmatprep.subr.mxu0 0.0
        %5533 = vmatpush1.msra.mxu0 0.0
        %5534 = vmatprep.subr.mxu0 0.0
        %5535 = vmatpush1.msra.mxu0 0.0
        %5536 = vmatprep.subr.mxu0 0.0
        %5537 = vmatpush1.msra.mxu0 0.0
        %5538 = vmatprep.subr.mxu0 0.0
        %5539 = vmatpush1.msra.mxu0 0.0
        %5540 = vmatprep.subr.mxu0 0.0
        %5541 = vmatpush1.msra.mxu0 0.0
        %5542 = vmatprep.subr.mxu0 0.0
        %5543 = vmatpush1.msra.mxu0 0.0
        %5544 = vmatprep.subr.mxu0 0.0
        %5545 = vmatpush1.msra.mxu0 0.0
        %5546 = vmatprep.subr.mxu0 0.0
        %5547 = vmatpush1.msra.mxu0 0.0
        %5548 = vmatprep.subr.mxu0 0.0
        %5549 = vmatpush1.msra.mxu0 0.0
        %5550 = vmatprep.subr.mxu0 0.0
        %5551 = vmatpush1.msra.mxu0 0.0
        %5552 = vmatprep.subr.mxu0 0.0
        %5553 = vmatpush1.msra.mxu0 0.0
        %5554 = vmatprep.subr.mxu0 0.0
        %5555 = vmatpush1.msra.mxu0 0.0
        %5556 = vmatprep.subr.mxu0 0.0
        %5557 = vmatpush1.msra.mxu0 0.0
        %5558 = vmatprep.subr.mxu0 0.0
        %5559 = vmatpush1.msra.mxu0 0.0
        %5560 = vmatprep.subr.mxu0 0.0
        %5561 = vmatpush1.msra.mxu0 0.0
        %5562 = vmatprep.subr.mxu0 0.0
        %5563 = vmatpush1.msra.mxu0 0.0
        %5564 = vmatprep.subr.mxu0 0.0
        %5565 = vmatpush1.msra.mxu0 0.0
        %5566 = vmatprep.subr.mxu0 0.0
        %5567 = vmatpush1.msra.mxu0 0.0
        %5568 = vmatprep.subr.mxu0 0.0
        %5569 = vmatpush1.msra.mxu0 0.0
        %5570 = vmatprep.subr.mxu0 0.0
        %5571 = vmatpush1.msra.mxu0 0.0
        %5572 = vmatprep.subr.mxu0 0.0
        %5573 = vmatpush1.msra.mxu0 0.0
        %5574 = vmatprep.subr.mxu0 0.0
        %5575 = vmatpush1.msra.mxu0 0.0
        %5576 = vmatprep.subr.mxu0 0.0
        %5577 = vmatpush1.msra.mxu0 0.0
        %5578 = vmatprep.subr.mxu0 0.0
        %5579 = vmatpush1.msra.mxu0 0.0
        %5580 = vmatprep.subr.mxu0 0.0
        %5581 = vmatpush1.msra.mxu0 0.0
        %5582 = vmatprep.subr.mxu0 0.0
        %5583 = vmatpush1.msra.mxu0 0.0
        %5584 = vmatprep.subr.mxu0 0.0
        %5585 = vmatpush1.msra.mxu0 0.0
        %5586 = vmatprep.mubr.f32.mxu0 0.0
        %5587 = vmatmul.mubr.f32.gmra.mrb[0].mxu0 %v5415
        %v5588 = vpop.f32.mrb[0].mxu0
        %v5589 = vadd.f32 %v5520, %v5588
        %v5590 = vpop.f32.mrb[0].mxu0
        %5591 = vmatprep.mubr.f32.mxu0 0.0
        %5592 = vmatmul.mubr.f32.gmra.mrb[0].mxu0 %v5418
        %v5593 = vpop.f32.mrb[0].mxu0
        %v5594 = vadd.f32 %v5520, %v5593
        %v5595 = vpop.f32.mrb[0].mxu0
        %5596 = vmatprep.mubr.f32.mxu0 0.0
        %5597 = vmatmul.mubr.f32.gmra.mrb[0].mxu0 %v5421
        %v5598 = vpop.f32.mrb[0].mxu0
        %v5599 = vadd.f32 %v5520, %v5598
        %v5600 = vpop.f32.mrb[0].mxu0
        %5601 = vmatprep.mubr.f32.mxu0 0.0
        %5602 = vmatmul.mubr.f32.gmra.mrb[0].mxu0 %v5424
        %v5603 = vpop.f32.mrb[0].mxu0
        %v5604 = vadd.f32 %v5520, %v5603
        %v5605 = vpop.f32.mrb[0].mxu0
        %5606 = vdwg.mxu0
        %v5607 = vld [vmem:[#allocation22] sm:$0xff]
        %v5608 = vld [vmem:[#allocation22 + $0x8] sm:$0xff]
        %v5609 = vld [vmem:[#allocation22 + $0x10] sm:$0xff]
        %v5610 = vld [vmem:[#allocation22 + $0x18] sm:$0xff]
        %v5611 = vld [vmem:[%s18] sm:$0x1]
        %v5613 = vlaneseq
        %v5614 = vshrl.u32 %v5613, 7
        %v5615 = vsub.s32 0, %v5614
        %v5616 = vrot.slane %v5611, %v5615
        %5618 = vmatprep.subr.mxu0 0.0
        %5619 = vmatpush1.msra.mxu0 %v5607
        %5620 = vmatprep.subr.mxu0 0.0
        %5621 = vmatpush1.msra.mxu0 %v5608
        %5622 = vmatprep.subr.mxu0 0.0
        %5623 = vmatpush1.msra.mxu0 %v5609
        %5624 = vmatprep.subr.mxu0 0.0
        %5625 = vmatpush1.msra.mxu0 %v5610
        %5626 = vmatprep.subr.mxu0 0.0
        %5627 = vmatpush1.msra.mxu0 0.0
        %5628 = vmatprep.subr.mxu0 0.0
        %5629 = vmatpush1.msra.mxu0 0.0
        %5630 = vmatprep.subr.mxu0 0.0
        %5631 = vmatpush1.msra.mxu0 0.0
        %5632 = vmatprep.subr.mxu0 0.0
        %5633 = vmatpush1.msra.mxu0 0.0
        %5634 = vmatprep.subr.mxu0 0.0
        %5635 = vmatpush1.msra.mxu0 0.0
        %5636 = vmatprep.subr.mxu0 0.0
        %5637 = vmatpush1.msra.mxu0 0.0
        %5638 = vmatprep.subr.mxu0 0.0
        %5639 = vmatpush1.msra.mxu0 0.0
        %5640 = vmatprep.subr.mxu0 0.0
        %5641 = vmatpush1.msra.mxu0 0.0
        %5642 = vmatprep.subr.mxu0 0.0
        %5643 = vmatpush1.msra.mxu0 0.0
        %5644 = vmatprep.subr.mxu0 0.0
        %5645 = vmatpush1.msra.mxu0 0.0
        %5646 = vmatprep.subr.mxu0 0.0
        %5647 = vmatpush1.msra.mxu0 0.0
        %5648 = vmatprep.subr.mxu0 0.0
        %5649 = vmatpush1.msra.mxu0 0.0
        %5650 = vmatprep.subr.mxu0 0.0
        %5651 = vmatpush1.msra.mxu0 0.0
        %5652 = vmatprep.subr.mxu0 0.0
        %5653 = vmatpush1.msra.mxu0 0.0
        %5654 = vmatprep.subr.mxu0 0.0
        %5655 = vmatpush1.msra.mxu0 0.0
        %5656 = vmatprep.subr.mxu0 0.0
        %5657 = vmatpush1.msra.mxu0 0.0
        %5658 = vmatprep.subr.mxu0 0.0
        %5659 = vmatpush1.msra.mxu0 0.0
        %5660 = vmatprep.subr.mxu0 0.0
        %5661 = vmatpush1.msra.mxu0 0.0
        %5662 = vmatprep.subr.mxu0 0.0
        %5663 = vmatpush1.msra.mxu0 0.0
        %5664 = vmatprep.subr.mxu0 0.0
        %5665 = vmatpush1.msra.mxu0 0.0
        %5666 = vmatprep.subr.mxu0 0.0
        %5667 = vmatpush1.msra.mxu0 0.0
        %5668 = vmatprep.subr.mxu0 0.0
        %5669 = vmatpush1.msra.mxu0 0.0
        %5670 = vmatprep.subr.mxu0 0.0
        %5671 = vmatpush1.msra.mxu0 0.0
        %5672 = vmatprep.subr.mxu0 0.0
        %5673 = vmatpush1.msra.mxu0 0.0
        %5674 = vmatprep.subr.mxu0 0.0
        %5675 = vmatpush1.msra.mxu0 0.0
        %5676 = vmatprep.subr.mxu0 0.0
        %5677 = vmatpush1.msra.mxu0 0.0
        %5678 = vmatprep.subr.mxu0 0.0
        %5679 = vmatpush1.msra.mxu0 0.0
        %5680 = vmatprep.subr.mxu0 0.0
        %5681 = vmatpush1.msra.mxu0 0.0
        %5682 = vmatprep.mubr.f32.mxu0 0.0
        %5683 = vmatmul.mubr.f32.gmra.mrb[0].mxu0 %v5415
        %v5684 = vpop.f32.mrb[0].mxu0
        %v5685 = vadd.f32 %v5616, %v5684
        %v5686 = vpop.f32.mrb[0].mxu0
        %5687 = vmatprep.mubr.f32.mxu0 0.0
        %5688 = vmatmul.mubr.f32.gmra.mrb[0].mxu0 %v5418
        %v5689 = vpop.f32.mrb[0].mxu0
        %v5690 = vadd.f32 %v5616, %v5689
        %v5691 = vpop.f32.mrb[0].mxu0
        %5692 = vmatprep.mubr.f32.mxu0 0.0
        %5693 = vmatmul.mubr.f32.gmra.mrb[0].mxu0 %v5421
        %v5694 = vpop.f32.mrb[0].mxu0
        %v5695 = vadd.f32 %v5616, %v5694
        %v5696 = vpop.f32.mrb[0].mxu0
        %5697 = vmatprep.mubr.f32.mxu0 0.0
        %5698 = vmatmul.mubr.f32.gmra.mrb[0].mxu0 %v5424
        %v5699 = vpop.f32.mrb[0].mxu0
        %v5700 = vadd.f32 %v5616, %v5699
        %v5701 = vpop.f32.mrb[0].mxu0
        %5702 = vdwg.mxu0
        %v5704 = vsel %vm1426, %v5493, 0
        %v5707 = vsel %vm1426, %v5498, 0
        %v5710 = vsel %vm1426, %v5503, 0
        %v5713 = vsel %vm1426, %v5508, 0
        %v5716 = vsel %vm1426, %v5589, 0
        %v5719 = vsel %vm1426, %v5594, 0
        %v5722 = vsel %vm1426, %v5599, 0
        %v5725 = vsel %vm1426, %v5604, 0
        %5727 = vmatprep.subr.mxu0 0.0
        %5728 = vmatpush1.xpose.msra.mxu0 %v5716
        %5729 = vmatprep.subr.mxu0 0.0
        %5730 = vmatpush1.xpose.msra.mxu0 %v5719
        %5731 = vmatprep.subr.mxu0 0.0
        %5732 = vmatpush1.xpose.msra.mxu0 %v5722
        %5733 = vmatprep.subr.mxu0 0.0
        %5734 = vmatpush1.xpose.msra.mxu0 %v5725
        %5735 = vmatprep.subr.mxu0 0.0
        %5736 = vmatpush1.xpose.msra.mxu0 0.0
        %5737 = vmatprep.subr.mxu0 0.0
        %5738 = vmatpush1.xpose.msra.mxu0 0.0
        %5739 = vmatprep.subr.mxu0 0.0
        %5740 = vmatpush1.xpose.msra.mxu0 0.0
        %5741 = vmatprep.subr.mxu0 0.0
        %5742 = vmatpush1.xpose.msra.mxu0 0.0
        %5743 = vmatprep.subr.mxu0 0.0
        %5744 = vmatpush1.xpose.msra.mxu0 0.0
        %5745 = vmatprep.subr.mxu0 0.0
        %5746 = vmatpush1.xpose.msra.mxu0 0.0
        %5747 = vmatprep.subr.mxu0 0.0
        %5748 = vmatpush1.xpose.msra.mxu0 0.0
        %5749 = vmatprep.subr.mxu0 0.0
        %5750 = vmatpush1.xpose.msra.mxu0 0.0
        %5751 = vmatprep.subr.mxu0 0.0
        %5752 = vmatpush1.xpose.msra.mxu0 0.0
        %5753 = vmatprep.subr.mxu0 0.0
        %5754 = vmatpush1.xpose.msra.mxu0 0.0
        %5755 = vmatprep.subr.mxu0 0.0
        %5756 = vmatpush1.xpose.msra.mxu0 0.0
        %5757 = vmatprep.subr.mxu0 0.0
        %5758 = vmatpush1.xpose.msra.mxu0 0.0
        %5759 = vmatprep.subr.mxu0 0.0
        %5760 = vmatpush1.xpose.msra.mxu0 0.0
        %5761 = vmatprep.subr.mxu0 0.0
        %5762 = vmatpush1.xpose.msra.mxu0 0.0
        %5763 = vmatprep.subr.mxu0 0.0
        %5764 = vmatpush1.xpose.msra.mxu0 0.0
        %5765 = vmatprep.subr.mxu0 0.0
        %5766 = vmatpush1.xpose.msra.mxu0 0.0
        %5767 = vmatprep.subr.mxu0 0.0
        %5768 = vmatpush1.xpose.msra.mxu0 0.0
        %5769 = vmatprep.subr.mxu0 0.0
        %5770 = vmatpush1.xpose.msra.mxu0 0.0
        %5771 = vmatprep.subr.mxu0 0.0
        %5772 = vmatpush1.xpose.msra.mxu0 0.0
        %5773 = vmatprep.subr.mxu0 0.0
        %5774 = vmatpush1.xpose.msra.mxu0 0.0
        %5775 = vmatprep.subr.mxu0 0.0
        %5776 = vmatpush1.xpose.msra.mxu0 0.0
        %5777 = vmatprep.subr.mxu0 0.0
        %5778 = vmatpush1.xpose.msra.mxu0 0.0
        %5779 = vmatprep.subr.mxu0 0.0
        %5780 = vmatpush1.xpose.msra.mxu0 0.0
        %5781 = vmatprep.subr.mxu0 0.0
        %5782 = vmatpush1.xpose.msra.mxu0 0.0
        %5783 = vmatprep.subr.mxu0 0.0
        %5784 = vmatpush1.xpose.msra.mxu0 0.0
        %5785 = vmatprep.subr.mxu0 0.0
        %5786 = vmatpush1.xpose.msra.mxu0 0.0
        %5787 = vmatprep.subr.mxu0 0.0
        %5788 = vmatpush1.xpose.msra.mxu0 0.0
        %5789 = vmatprep.subr.mxu0 0.0
        %5790 = vmatpush1.xpose.msra.mxu0 0.0
        %5791 = vmatprep.mubr.f32.mxu0 0.0
        %5792 = vmatmul.mubr.f32.gmra.mrb[0].mxu0 %v5704
        %v5793 = vpop.f32.mrb[0].mxu0
        %v5794 = vadd.f32 0.0, %v5793
        %v5795 = vpop.f32.mrb[0].mxu0
        %5796 = vmatprep.mubr.f32.mxu0 0.0
        %5797 = vmatmul.mubr.f32.gmra.mrb[0].mxu0 %v5707
        %v5798 = vpop.f32.mrb[0].mxu0
        %v5799 = vadd.f32 0.0, %v5798
        %v5800 = vpop.f32.mrb[0].mxu0
        %5801 = vmatprep.mubr.f32.mxu0 0.0
        %5802 = vmatmul.mubr.f32.gmra.mrb[0].mxu0 %v5710
        %v5803 = vpop.f32.mrb[0].mxu0
        %v5804 = vadd.f32 0.0, %v5803
        %v5805 = vpop.f32.mrb[0].mxu0
        %5806 = vmatprep.mubr.f32.mxu0 0.0
        %5807 = vmatmul.mubr.f32.gmra.mrb[0].mxu0 %v5713
        %v5808 = vpop.f32.mrb[0].mxu0
        %v5809 = vadd.f32 0.0, %v5808
        %v5810 = vpop.f32.mrb[0].mxu0
        %5811 = vdwg.mxu0
        %v5812 = vmul.f32 %v5794, 0.17677669
        %v5813 = vmul.f32 %v5799, 0.17677669
        %v5814 = vmul.f32 %v5804, 0.17677669
        %v5815 = vmul.f32 %v5809, 0.17677669
        %v5816 = vsel %vm1426, %v5812, -inf
        %5817 = vmax.xlane.f32.xlu0 %v5816
        %v5818 = vpop.xlane.xlu0 %5817
        %v5819 = vsel %vm1426, %v5813, -inf
        %5820 = vmax.xlane.f32.xlu0 %v5819
        %v5821 = vpop.xlane.xlu0 %5820
        %v5822 = vsel %vm1426, %v5814, -inf
        %5823 = vmax.xlane.f32.xlu0 %v5822
        %v5824 = vpop.xlane.xlu0 %5823
        %v5825 = vsel %vm1426, %v5815, -inf
        %5826 = vmax.xlane.f32.xlu0 %v5825
        %v5827 = vpop.xlane.xlu0 %5826
        %v5828 = vsub.f32 %v5812, %v5818
        %v5829 = vsub.f32 %v5813, %v5821
        %v5830 = vsub.f32 %v5814, %v5824
        %v5831 = vsub.f32 %v5815, %v5827
        %v5832 = vmul.f32 %v5828, 1.442695
        %v5833 = vpow.pop %v5832
        %v5834 = vmul.f32 %v5829, 1.442695
        %v5835 = vpow.pop %v5834
        %v5836 = vmul.f32 %v5830, 1.442695
        %v5837 = vpow.pop %v5836
        %v5838 = vmul.f32 %v5831, 1.442695
        %v5839 = vpow.pop %v5838
        %v5840 = vsel %vm1426, %v5833, 0.0
        %5841 = vadd.xlane.f32.xlu0 %v5840
        %v5842 = vpop.xlane.xlu0 %5841
        %v5843 = vsel %vm1426, %v5835, 0.0
        %5844 = vadd.xlane.f32.xlu0 %v5843
        %v5845 = vpop.xlane.xlu0 %5844
        %v5846 = vsel %vm1426, %v5837, 0.0
        %5847 = vadd.xlane.f32.xlu0 %v5846
        %v5848 = vpop.xlane.xlu0 %5847
        %v5849 = vsel %vm1426, %v5839, 0.0
        %5850 = vadd.xlane.f32.xlu0 %v5849
        %v5851 = vpop.xlane.xlu0 %5850
        %v5852 = vrcp.pop %v5842
        %v5853 = vrcp.pop %v5845
        %v5854 = vrcp.pop %v5848
        %v5855 = vrcp.pop %v5851
        %v5856 = vmul.f32 %v5833, %v5852
        %v5857 = vmul.f32 %v5835, %v5853
        %v5858 = vmul.f32 %v5837, %v5854
        %v5859 = vmul.f32 %v5839, %v5855
        %v5861 = vsel %vm1426, %v5856, 0
        %v5864 = vsel %vm1426, %v5857, 0
        %v5867 = vsel %vm1426, %v5858, 0
        %v5870 = vsel %vm1426, %v5859, 0
        %5872 = vmatprep.subr.mxu0 0.0
        %5873 = vmatpush1.msra.mxu0 %v5685
        %5874 = vmatprep.subr.mxu0 0.0
        %5875 = vmatpush1.msra.mxu0 %v5690
        %5876 = vmatprep.subr.mxu0 0.0
        %5877 = vmatpush1.msra.mxu0 %v5695
        %5878 = vmatprep.subr.mxu0 0.0
        %5879 = vmatpush1.msra.mxu0 %v5700
        %5880 = vmatprep.subr.mxu0 0.0
        %5881 = vmatpush1.msra.mxu0 0.0
        %5882 = vmatprep.subr.mxu0 0.0
        %5883 = vmatpush1.msra.mxu0 0.0
        %5884 = vmatprep.subr.mxu0 0.0
        %5885 = vmatpush1.msra.mxu0 0.0
        %5886 = vmatprep.subr.mxu0 0.0
        %5887 = vmatpush1.msra.mxu0 0.0
        %5888 = vmatprep.subr.mxu0 0.0
        %5889 = vmatpush1.msra.mxu0 0.0
        %5890 = vmatprep.subr.mxu0 0.0
        %5891 = vmatpush1.msra.mxu0 0.0
        %5892 = vmatprep.subr.mxu0 0.0
        %5893 = vmatpush1.msra.mxu0 0.0
        %5894 = vmatprep.subr.mxu0 0.0
        %5895 = vmatpush1.msra.mxu0 0.0
        %5896 = vmatprep.subr.mxu0 0.0
        %5897 = vmatpush1.msra.mxu0 0.0
        %5898 = vmatprep.subr.mxu0 0.0
        %5899 = vmatpush1.msra.mxu0 0.0
        %5900 = vmatprep.subr.mxu0 0.0
        %5901 = vmatpush1.msra.mxu0 0.0
        %5902 = vmatprep.subr.mxu0 0.0
        %5903 = vmatpush1.msra.mxu0 0.0
        %5904 = vmatprep.subr.mxu0 0.0
        %5905 = vmatpush1.msra.mxu0 0.0
        %5906 = vmatprep.subr.mxu0 0.0
        %5907 = vmatpush1.msra.mxu0 0.0
        %5908 = vmatprep.subr.mxu0 0.0
        %5909 = vmatpush1.msra.mxu0 0.0
        %5910 = vmatprep.subr.mxu0 0.0
        %5911 = vmatpush1.msra.mxu0 0.0
        %5912 = vmatprep.subr.mxu0 0.0
        %5913 = vmatpush1.msra.mxu0 0.0
        %5914 = vmatprep.subr.mxu0 0.0
        %5915 = vmatpush1.msra.mxu0 0.0
        %5916 = vmatprep.subr.mxu0 0.0
        %5917 = vmatpush1.msra.mxu0 0.0
        %5918 = vmatprep.subr.mxu0 0.0
        %5919 = vmatpush1.msra.mxu0 0.0
        %5920 = vmatprep.subr.mxu0 0.0
        %5921 = vmatpush1.msra.mxu0 0.0
        %5922 = vmatprep.subr.mxu0 0.0
        %5923 = vmatpush1.msra.mxu0 0.0
        %5924 = vmatprep.subr.mxu0 0.0
        %5925 = vmatpush1.msra.mxu0 0.0
        %5926 = vmatprep.subr.mxu0 0.0
        %5927 = vmatpush1.msra.mxu0 0.0
        %5928 = vmatprep.subr.mxu0 0.0
        %5929 = vmatpush1.msra.mxu0 0.0
        %5930 = vmatprep.subr.mxu0 0.0
        %5931 = vmatpush1.msra.mxu0 0.0
        %5932 = vmatprep.subr.mxu0 0.0
        %5933 = vmatpush1.msra.mxu0 0.0
        %5934 = vmatprep.subr.mxu0 0.0
        %5935 = vmatpush1.msra.mxu0 0.0
        %5936 = vmatprep.mubr.f32.mxu0 0.0
        %5937 = vmatmul.mubr.f32.gmra.mrb[0].mxu0 %v5861
        %v5938 = vpop.f32.mrb[0].mxu0
        %v5939 = vadd.f32 0.0, %v5938
        %v5940 = vpop.f32.mrb[0].mxu0
        %5941 = vmatprep.mubr.f32.mxu0 0.0
        %5942 = vmatmul.mubr.f32.gmra.mrb[0].mxu0 %v5864
        %v5943 = vpop.f32.mrb[0].mxu0
        %v5944 = vadd.f32 0.0, %v5943
        %v5945 = vpop.f32.mrb[0].mxu0
        %5946 = vmatprep.mubr.f32.mxu0 0.0
        %5947 = vmatmul.mubr.f32.gmra.mrb[0].mxu0 %v5867
        %v5948 = vpop.f32.mrb[0].mxu0
        %v5949 = vadd.f32 0.0, %v5948
        %v5950 = vpop.f32.mrb[0].mxu0
        %5951 = vmatprep.mubr.f32.mxu0 0.0
        %5952 = vmatmul.mubr.f32.gmra.mrb[0].mxu0 %v5870
        %v5953 = vpop.f32.mrb[0].mxu0
        %v5954 = vadd.f32 0.0, %v5953
        %v5955 = vpop.f32.mrb[0].mxu0
        %5956 = vdwg.mxu0
        %v5957 = vld [vmem:[#allocation23] sm:$0xff]
        %v5958 = vld [vmem:[#allocation23 + $0x8] sm:$0xff]
        %v5959 = vld [vmem:[#allocation23 + $0x10] sm:$0xff]
        %v5960 = vld [vmem:[#allocation23 + $0x18] sm:$0xff]
        %s5961 = scalar_lea.vmem %s13, 32
        %v5962 = vld [vmem:[%s5961] sm:$0xff]
        %v5963 = vld [vmem:[%s5961 + $0x8] sm:$0xff]
        %v5964 = vld [vmem:[%s5961 + $0x10] sm:$0xff]
        %v5965 = vld [vmem:[%s5961 + $0x18] sm:$0xff]
        %s5966 = scalar_lea.vmem %s14, 1
        %v5967 = vld [vmem:[%s5966] sm:$0x1]
        %v5969 = vlaneseq
        %v5970 = vshrl.u32 %v5969, 7
        %v5971 = vsub.s32 0, %v5970
        %v5972 = vrot.slane %v5967, %v5971
        %5974 = vmatprep.subr.mxu0 0.0
        %5975 = vmatpush1.msra.mxu0 %v5962
        %5976 = vmatprep.subr.mxu0 0.0
        %5977 = vmatpush1.msra.mxu0 %v5963
        %5978 = vmatprep.subr.mxu0 0.0
        %5979 = vmatpush1.msra.mxu0 %v5964
        %5980 = vmatprep.subr.mxu0 0.0
        %5981 = vmatpush1.msra.mxu0 %v5965
        %5982 = vmatprep.subr.mxu0 0.0
        %5983 = vmatpush1.msra.mxu0 0.0
        %5984 = vmatprep.subr.mxu0 0.0
        %5985 = vmatpush1.msra.mxu0 0.0
        %5986 = vmatprep.subr.mxu0 0.0
        %5987 = vmatpush1.msra.mxu0 0.0
        %5988 = vmatprep.subr.mxu0 0.0
        %5989 = vmatpush1.msra.mxu0 0.0
        %5990 = vmatprep.subr.mxu0 0.0
        %5991 = vmatpush1.msra.mxu0 0.0
        %5992 = vmatprep.subr.mxu0 0.0
        %5993 = vmatpush1.msra.mxu0 0.0
        %5994 = vmatprep.subr.mxu0 0.0
        %5995 = vmatpush1.msra.mxu0 0.0
        %5996 = vmatprep.subr.mxu0 0.0
        %5997 = vmatpush1.msra.mxu0 0.0
        %5998 = vmatprep.subr.mxu0 0.0
        %5999 = vmatpush1.msra.mxu0 0.0
        %6000 = vmatprep.subr.mxu0 0.0
        %6001 = vmatpush1.msra.mxu0 0.0
        %6002 = vmatprep.subr.mxu0 0.0
        %6003 = vmatpush1.msra.mxu0 0.0
        %6004 = vmatprep.subr.mxu0 0.0
        %6005 = vmatpush1.msra.mxu0 0.0
        %6006 = vmatprep.subr.mxu0 0.0
        %6007 = vmatpush1.msra.mxu0 0.0
        %6008 = vmatprep.subr.mxu0 0.0
        %6009 = vmatpush1.msra.mxu0 0.0
        %6010 = vmatprep.subr.mxu0 0.0
        %6011 = vmatpush1.msra.mxu0 0.0
        %6012 = vmatprep.subr.mxu0 0.0
        %6013 = vmatpush1.msra.mxu0 0.0
        %6014 = vmatprep.subr.mxu0 0.0
        %6015 = vmatpush1.msra.mxu0 0.0
        %6016 = vmatprep.subr.mxu0 0.0
        %6017 = vmatpush1.msra.mxu0 0.0
        %6018 = vmatprep.subr.mxu0 0.0
        %6019 = vmatpush1.msra.mxu0 0.0
        %6020 = vmatprep.subr.mxu0 0.0
        %6021 = vmatpush1.msra.mxu0 0.0
        %6022 = vmatprep.subr.mxu0 0.0
        %6023 = vmatpush1.msra.mxu0 0.0
        %6024 = vmatprep.subr.mxu0 0.0
        %6025 = vmatpush1.msra.mxu0 0.0
        %6026 = vmatprep.subr.mxu0 0.0
        %6027 = vmatpush1.msra.mxu0 0.0
        %6028 = vmatprep.subr.mxu0 0.0
        %6029 = vmatpush1.msra.mxu0 0.0
        %6030 = vmatprep.subr.mxu0 0.0
        %6031 = vmatpush1.msra.mxu0 0.0
        %6032 = vmatprep.subr.mxu0 0.0
        %6033 = vmatpush1.msra.mxu0 0.0
        %6034 = vmatprep.subr.mxu0 0.0
        %6035 = vmatpush1.msra.mxu0 0.0
        %6036 = vmatprep.subr.mxu0 0.0
        %6037 = vmatpush1.msra.mxu0 0.0
        %6038 = vmatprep.mubr.f32.mxu0 0.0
        %6039 = vmatmul.mubr.f32.gmra.mrb[0].mxu0 %v5415
        %v6040 = vpop.f32.mrb[0].mxu0
        %v6041 = vadd.f32 %v5972, %v6040
        %v6042 = vpop.f32.mrb[0].mxu0
        %6043 = vmatprep.mubr.f32.mxu0 0.0
        %6044 = vmatmul.mubr.f32.gmra.mrb[0].mxu0 %v5418
        %v6045 = vpop.f32.mrb[0].mxu0
        %v6046 = vadd.f32 %v5972, %v6045
        %v6047 = vpop.f32.mrb[0].mxu0
        %6048 = vmatprep.mubr.f32.mxu0 0.0
        %6049 = vmatmul.mubr.f32.gmra.mrb[0].mxu0 %v5421
        %v6050 = vpop.f32.mrb[0].mxu0
        %v6051 = vadd.f32 %v5972, %v6050
        %v6052 = vpop.f32.mrb[0].mxu0
        %6053 = vmatprep.mubr.f32.mxu0 0.0
        %6054 = vmatmul.mubr.f32.gmra.mrb[0].mxu0 %v5424
        %v6055 = vpop.f32.mrb[0].mxu0
        %v6056 = vadd.f32 %v5972, %v6055
        %v6057 = vpop.f32.mrb[0].mxu0
        %6058 = vdwg.mxu0
        %s6059 = scalar_lea.vmem [#allocation20], 32
        %v6060 = vld [vmem:[%s6059] sm:$0xff]
        %v6061 = vld [vmem:[%s6059 + $0x8] sm:$0xff]
        %v6062 = vld [vmem:[%s6059 + $0x10] sm:$0xff]
        %v6063 = vld [vmem:[%s6059 + $0x18] sm:$0xff]
        %s6064 = scalar_lea.vmem %s16, 1
        %v6065 = vld [vmem:[%s6064] sm:$0x1]
        %v6067 = vlaneseq
        %v6068 = vshrl.u32 %v6067, 7
        %v6069 = vsub.s32 0, %v6068
        %v6070 = vrot.slane %v6065, %v6069
        %6072 = vmatprep.subr.mxu0 0.0
        %6073 = vmatpush1.msra.mxu0 %v6060
        %6074 = vmatprep.subr.mxu0 0.0
        %6075 = vmatpush1.msra.mxu0 %v6061
        %6076 = vmatprep.subr.mxu0 0.0
        %6077 = vmatpush1.msra.mxu0 %v6062
        %6078 = vmatprep.subr.mxu0 0.0
        %6079 = vmatpush1.msra.mxu0 %v6063
        %6080 = vmatprep.subr.mxu0 0.0
        %6081 = vmatpush1.msra.mxu0 0.0
        %6082 = vmatprep.subr.mxu0 0.0
        %6083 = vmatpush1.msra.mxu0 0.0
        %6084 = vmatprep.subr.mxu0 0.0
        %6085 = vmatpush1.msra.mxu0 0.0
        %6086 = vmatprep.subr.mxu0 0.0
        %6087 = vmatpush1.msra.mxu0 0.0
        %6088 = vmatprep.subr.mxu0 0.0
        %6089 = vmatpush1.msra.mxu0 0.0
        %6090 = vmatprep.subr.mxu0 0.0
        %6091 = vmatpush1.msra.mxu0 0.0
        %6092 = vmatprep.subr.mxu0 0.0
        %6093 = vmatpush1.msra.mxu0 0.0
        %6094 = vmatprep.subr.mxu0 0.0
        %6095 = vmatpush1.msra.mxu0 0.0
        %6096 = vmatprep.subr.mxu0 0.0
        %6097 = vmatpush1.msra.mxu0 0.0
        %6098 = vmatprep.subr.mxu0 0.0
        %6099 = vmatpush1.msra.mxu0 0.0
        %6100 = vmatprep.subr.mxu0 0.0
        %6101 = vmatpush1.msra.mxu0 0.0
        %6102 = vmatprep.subr.mxu0 0.0
        %6103 = vmatpush1.msra.mxu0 0.0
        %6104 = vmatprep.subr.mxu0 0.0
        %6105 = vmatpush1.msra.mxu0 0.0
        %6106 = vmatprep.subr.mxu0 0.0
        %6107 = vmatpush1.msra.mxu0 0.0
        %6108 = vmatprep.subr.mxu0 0.0
        %6109 = vmatpush1.msra.mxu0 0.0
        %6110 = vmatprep.subr.mxu0 0.0
        %6111 = vmatpush1.msra.mxu0 0.0
        %6112 = vmatprep.subr.mxu0 0.0
        %6113 = vmatpush1.msra.mxu0 0.0
        %6114 = vmatprep.subr.mxu0 0.0
        %6115 = vmatpush1.msra.mxu0 0.0
        %6116 = vmatprep.subr.mxu0 0.0
        %6117 = vmatpush1.msra.mxu0 0.0
        %6118 = vmatprep.subr.mxu0 0.0
        %6119 = vmatpush1.msra.mxu0 0.0
        %6120 = vmatprep.subr.mxu0 0.0
        %6121 = vmatpush1.msra.mxu0 0.0
        %6122 = vmatprep.subr.mxu0 0.0
        %6123 = vmatpush1.msra.mxu0 0.0
        %6124 = vmatprep.subr.mxu0 0.0
        %6125 = vmatpush1.msra.mxu0 0.0
        %6126 = vmatprep.subr.mxu0 0.0
        %6127 = vmatpush1.msra.mxu0 0.0
        %6128 = vmatprep.subr.mxu0 0.0
        %6129 = vmatpush1.msra.mxu0 0.0
        %6130 = vmatprep.subr.mxu0 0.0
        %6131 = vmatpush1.msra.mxu0 0.0
        %6132 = vmatprep.subr.mxu0 0.0
        %6133 = vmatpush1.msra.mxu0 0.0
        %6134 = vmatprep.subr.mxu0 0.0
        %6135 = vmatpush1.msra.mxu0 0.0
        %6136 = vmatprep.mubr.f32.mxu0 0.0
        %6137 = vmatmul.mubr.f32.gmra.mrb[0].mxu0 %v5415
        %v6138 = vpop.f32.mrb[0].mxu0
        %v6139 = vadd.f32 %v6070, %v6138
        %v6140 = vpop.f32.mrb[0].mxu0
        %6141 = vmatprep.mubr.f32.mxu0 0.0
        %6142 = vmatmul.mubr.f32.gmra.mrb[0].mxu0 %v5418
        %v6143 = vpop.f32.mrb[0].mxu0
        %v6144 = vadd.f32 %v6070, %v6143
        %v6145 = vpop.f32.mrb[0].mxu0
        %6146 = vmatprep.mubr.f32.mxu0 0.0
        %6147 = vmatmul.mubr.f32.gmra.mrb[0].mxu0 %v5421
        %v6148 = vpop.f32.mrb[0].mxu0
        %v6149 = vadd.f32 %v6070, %v6148
        %v6150 = vpop.f32.mrb[0].mxu0
        %6151 = vmatprep.mubr.f32.mxu0 0.0
        %6152 = vmatmul.mubr.f32.gmra.mrb[0].mxu0 %v5424
        %v6153 = vpop.f32.mrb[0].mxu0
        %v6154 = vadd.f32 %v6070, %v6153
        %v6155 = vpop.f32.mrb[0].mxu0
        %6156 = vdwg.mxu0
        %s6157 = scalar_lea.vmem [#allocation22], 32
        %v6158 = vld [vmem:[%s6157] sm:$0xff]
        %v6159 = vld [vmem:[%s6157 + $0x8] sm:$0xff]
        %v6160 = vld [vmem:[%s6157 + $0x10] sm:$0xff]
        %v6161 = vld [vmem:[%s6157 + $0x18] sm:$0xff]
        %s6162 = scalar_lea.vmem %s18, 1
        %v6163 = vld [vmem:[%s6162] sm:$0x1]
        %v6165 = vlaneseq
        %v6166 = vshrl.u32 %v6165, 7
        %v6167 = vsub.s32 0, %v6166
        %v6168 = vrot.slane %v6163, %v6167
        %6170 = vmatprep.subr.mxu0 0.0
        %6171 = vmatpush1.msra.mxu0 %v6158
        %6172 = vmatprep.subr.mxu0 0.0
        %6173 = vmatpush1.msra.mxu0 %v6159
        %6174 = vmatprep.subr.mxu0 0.0
        %6175 = vmatpush1.msra.mxu0 %v6160
        %6176 = vmatprep.subr.mxu0 0.0
        %6177 = vmatpush1.msra.mxu0 %v6161
        %6178 = vmatprep.subr.mxu0 0.0
        %6179 = vmatpush1.msra.mxu0 0.0
        %6180 = vmatprep.subr.mxu0 0.0
        %6181 = vmatpush1.msra.mxu0 0.0
        %6182 = vmatprep.subr.mxu0 0.0
        %6183 = vmatpush1.msra.mxu0 0.0
        %6184 = vmatprep.subr.mxu0 0.0
        %6185 = vmatpush1.msra.mxu0 0.0
        %6186 = vmatprep.subr.mxu0 0.0
        %6187 = vmatpush1.msra.mxu0 0.0
        %6188 = vmatprep.subr.mxu0 0.0
        %6189 = vmatpush1.msra.mxu0 0.0
        %6190 = vmatprep.subr.mxu0 0.0
        %6191 = vmatpush1.msra.mxu0 0.0
        %6192 = vmatprep.subr.mxu0 0.0
        %6193 = vmatpush1.msra.mxu0 0.0
        %6194 = vmatprep.subr.mxu0 0.0
        %6195 = vmatpush1.msra.mxu0 0.0
        %6196 = vmatprep.subr.mxu0 0.0
        %6197 = vmatpush1.msra.mxu0 0.0
        %6198 = vmatprep.subr.mxu0 0.0
        %6199 = vmatpush1.msra.mxu0 0.0
        %6200 = vmatprep.subr.mxu0 0.0
        %6201 = vmatpush1.msra.mxu0 0.0
        %6202 = vmatprep.subr.mxu0 0.0
        %6203 = vmatpush1.msra.mxu0 0.0
        %6204 = vmatprep.subr.mxu0 0.0
        %6205 = vmatpush1.msra.mxu0 0.0
        %6206 = vmatprep.subr.mxu0 0.0
        %6207 = vmatpush1.msra.mxu0 0.0
        %6208 = vmatprep.subr.mxu0 0.0
        %6209 = vmatpush1.msra.mxu0 0.0
        %6210 = vmatprep.subr.mxu0 0.0
        %6211 = vmatpush1.msra.mxu0 0.0
        %6212 = vmatprep.subr.mxu0 0.0
        %6213 = vmatpush1.msra.mxu0 0.0
        %6214 = vmatprep.subr.mxu0 0.0
        %6215 = vmatpush1.msra.mxu0 0.0
        %6216 = vmatprep.subr.mxu0 0.0
        %6217 = vmatpush1.msra.mxu0 0.0
        %6218 = vmatprep.subr.mxu0 0.0
        %6219 = vmatpush1.msra.mxu0 0.0
        %6220 = vmatprep.subr.mxu0 0.0
        %6221 = vmatpush1.msra.mxu0 0.0
        %6222 = vmatprep.subr.mxu0 0.0
        %6223 = vmatpush1.msra.mxu0 0.0
        %6224 = vmatprep.subr.mxu0 0.0
        %6225 = vmatpush1.msra.mxu0 0.0
        %6226 = vmatprep.subr.mxu0 0.0
        %6227 = vmatpush1.msra.mxu0 0.0
        %6228 = vmatprep.subr.mxu0 0.0
        %6229 = vmatpush1.msra.mxu0 0.0
        %6230 = vmatprep.subr.mxu0 0.0
        %6231 = vmatpush1.msra.mxu0 0.0
        %6232 = vmatprep.subr.mxu0 0.0
        %6233 = vmatpush1.msra.mxu0 0.0
        %6234 = vmatprep.mubr.f32.mxu0 0.0
        %6235 = vmatmul.mubr.f32.gmra.mrb[0].mxu0 %v5415
        %v6236 = vpop.f32.mrb[0].mxu0
        %v6237 = vadd.f32 %v6168, %v6236
        %v6238 = vpop.f32.mrb[0].mxu0
        %6239 = vmatprep.mubr.f32.mxu0 0.0
        %6240 = vmatmul.mubr.f32.gmra.mrb[0].mxu0 %v5418
        %v6241 = vpop.f32.mrb[0].mxu0
        %v6242 = vadd.f32 %v6168, %v6241
        %v6243 = vpop.f32.mrb[0].mxu0
        %6244 = vmatprep.mubr.f32.mxu0 0.0
        %6245 = vmatmul.mubr.f32.gmra.mrb[0].mxu0 %v5421
        %v6246 = vpop.f32.mrb[0].mxu0
        %v6247 = vadd.f32 %v6168, %v6246
        %v6248 = vpop.f32.mrb[0].mxu0
        %6249 = vmatprep.mubr.f32.mxu0 0.0
        %6250 = vmatmul.mubr.f32.gmra.mrb[0].mxu0 %v5424
        %v6251 = vpop.f32.mrb[0].mxu0
        %v6252 = vadd.f32 %v6168, %v6251
        %v6253 = vpop.f32.mrb[0].mxu0
        %6254 = vdwg.mxu0
        %v6256 = vsel %vm1426, %v6041, 0
        %v6259 = vsel %vm1426, %v6046, 0
        %v6262 = vsel %vm1426, %v6051, 0
        %v6265 = vsel %vm1426, %v6056, 0
        %v6268 = vsel %vm1426, %v6139, 0
        %v6271 = vsel %vm1426, %v6144, 0
        %v6274 = vsel %vm1426, %v6149, 0
        %v6277 = vsel %vm1426, %v6154, 0
        %6279 = vmatprep.subr.mxu0 0.0
        %6280 = vmatpush1.xpose.msra.mxu0 %v6268
        %6281 = vmatprep.subr.mxu0 0.0
        %6282 = vmatpush1.xpose.msra.mxu0 %v6271
        %6283 = vmatprep.subr.mxu0 0.0
        %6284 = vmatpush1.xpose.msra.mxu0 %v6274
        %6285 = vmatprep.subr.mxu0 0.0
        %6286 = vmatpush1.xpose.msra.mxu0 %v6277
        %6287 = vmatprep.subr.mxu0 0.0
        %6288 = vmatpush1.xpose.msra.mxu0 0.0
        %6289 = vmatprep.subr.mxu0 0.0
        %6290 = vmatpush1.xpose.msra.mxu0 0.0
        %6291 = vmatprep.subr.mxu0 0.0
        %6292 = vmatpush1.xpose.msra.mxu0 0.0
        %6293 = vmatprep.subr.mxu0 0.0
        %6294 = vmatpush1.xpose.msra.mxu0 0.0
        %6295 = vmatprep.subr.mxu0 0.0
        %6296 = vmatpush1.xpose.msra.mxu0 0.0
        %6297 = vmatprep.subr.mxu0 0.0
        %6298 = vmatpush1.xpose.msra.mxu0 0.0
        %6299 = vmatprep.subr.mxu0 0.0
        %6300 = vmatpush1.xpose.msra.mxu0 0.0
        %6301 = vmatprep.subr.mxu0 0.0
        %6302 = vmatpush1.xpose.msra.mxu0 0.0
        %6303 = vmatprep.subr.mxu0 0.0
        %6304 = vmatpush1.xpose.msra.mxu0 0.0
        %6305 = vmatprep.subr.mxu0 0.0
        %6306 = vmatpush1.xpose.msra.mxu0 0.0
        %6307 = vmatprep.subr.mxu0 0.0
        %6308 = vmatpush1.xpose.msra.mxu0 0.0
        %6309 = vmatprep.subr.mxu0 0.0
        %6310 = vmatpush1.xpose.msra.mxu0 0.0
        %6311 = vmatprep.subr.mxu0 0.0
        %6312 = vmatpush1.xpose.msra.mxu0 0.0
        %6313 = vmatprep.subr.mxu0 0.0
        %6314 = vmatpush1.xpose.msra.mxu0 0.0
        %6315 = vmatprep.subr.mxu0 0.0
        %6316 = vmatpush1.xpose.msra.mxu0 0.0
        %6317 = vmatprep.subr.mxu0 0.0
        %6318 = vmatpush1.xpose.msra.mxu0 0.0
        %6319 = vmatprep.subr.mxu0 0.0
        %6320 = vmatpush1.xpose.msra.mxu0 0.0
        %6321 = vmatprep.subr.mxu0 0.0
        %6322 = vmatpush1.xpose.msra.mxu0 0.0
        %6323 = vmatprep.subr.mxu0 0.0
        %6324 = vmatpush1.xpose.msra.mxu0 0.0
        %6325 = vmatprep.subr.mxu0 0.0
        %6326 = vmatpush1.xpose.msra.mxu0 0.0
        %6327 = vmatprep.subr.mxu0 0.0
        %6328 = vmatpush1.xpose.msra.mxu0 0.0
        %6329 = vmatprep.subr.mxu0 0.0
        %6330 = vmatpush1.xpose.msra.mxu0 0.0
        %6331 = vmatprep.subr.mxu0 0.0
        %6332 = vmatpush1.xpose.msra.mxu0 0.0
        %6333 = vmatprep.subr.mxu0 0.0
        %6334 = vmatpush1.xpose.msra.mxu0 0.0
        %6335 = vmatprep.subr.mxu0 0.0
        %6336 = vmatpush1.xpose.msra.mxu0 0.0
        %6337 = vmatprep.subr.mxu0 0.0
        %6338 = vmatpush1.xpose.msra.mxu0 0.0
        %6339 = vmatprep.subr.mxu0 0.0
        %6340 = vmatpush1.xpose.msra.mxu0 0.0
        %6341 = vmatprep.subr.mxu0 0.0
        %6342 = vmatpush1.xpose.msra.mxu0 0.0
        %6343 = vmatprep.mubr.f32.mxu0 0.0
        %6344 = vmatmul.mubr.f32.gmra.mrb[0].mxu0 %v6256
        %v6345 = vpop.f32.mrb[0].mxu0
        %v6346 = vadd.f32 0.0, %v6345
        %v6347 = vpop.f32.mrb[0].mxu0
        %6348 = vmatprep.mubr.f32.mxu0 0.0
        %6349 = vmatmul.mubr.f32.gmra.mrb[0].mxu0 %v6259
        %v6350 = vpop.f32.mrb[0].mxu0
        %v6351 = vadd.f32 0.0, %v6350
        %v6352 = vpop.f32.mrb[0].mxu0
        %6353 = vmatprep.mubr.f32.mxu0 0.0
        %6354 = vmatmul.mubr.f32.gmra.mrb[0].mxu0 %v6262
        %v6355 = vpop.f32.mrb[0].mxu0
        %v6356 = vadd.f32 0.0, %v6355
        %v6357 = vpop.f32.mrb[0].mxu0
        %6358 = vmatprep.mubr.f32.mxu0 0.0
        %6359 = vmatmul.mubr.f32.gmra.mrb[0].mxu0 %v6265
        %v6360 = vpop.f32.mrb[0].mxu0
        %v6361 = vadd.f32 0.0, %v6360
        %v6362 = vpop.f32.mrb[0].mxu0
        %6363 = vdwg.mxu0
        %v6364 = vmul.f32 %v6346, 0.17677669
        %v6365 = vmul.f32 %v6351, 0.17677669
        %v6366 = vmul.f32 %v6356, 0.17677669
        %v6367 = vmul.f32 %v6361, 0.17677669
        %v6368 = vsel %vm1426, %v6364, -inf
        %6369 = vmax.xlane.f32.xlu0 %v6368
        %v6370 = vpop.xlane.xlu0 %6369
        %v6371 = vsel %vm1426, %v6365, -inf
        %6372 = vmax.xlane.f32.xlu0 %v6371
        %v6373 = vpop.xlane.xlu0 %6372
        %v6374 = vsel %vm1426, %v6366, -inf
        %6375 = vmax.xlane.f32.xlu0 %v6374
        %v6376 = vpop.xlane.xlu0 %6375
        %v6377 = vsel %vm1426, %v6367, -inf
        %6378 = vmax.xlane.f32.xlu0 %v6377
        %v6379 = vpop.xlane.xlu0 %6378
        %v6380 = vsub.f32 %v6364, %v6370
        %v6381 = vsub.f32 %v6365, %v6373
        %v6382 = vsub.f32 %v6366, %v6376
        %v6383 = vsub.f32 %v6367, %v6379
        %v6384 = vmul.f32 %v6380, 1.442695
        %v6385 = vpow.pop %v6384
        %v6386 = vmul.f32 %v6381, 1.442695
        %v6387 = vpow.pop %v6386
        %v6388 = vmul.f32 %v6382, 1.442695
        %v6389 = vpow.pop %v6388
        %v6390 = vmul.f32 %v6383, 1.442695
        %v6391 = vpow.pop %v6390
        %v6392 = vsel %vm1426, %v6385, 0.0
        %6393 = vadd.xlane.f32.xlu0 %v6392
        %v6394 = vpop.xlane.xlu0 %6393
        %v6395 = vsel %vm1426, %v6387, 0.0
        %6396 = vadd.xlane.f32.xlu0 %v6395
        %v6397 = vpop.xlane.xlu0 %6396
        %v6398 = vsel %vm1426, %v6389, 0.0
        %6399 = vadd.xlane.f32.xlu0 %v6398
        %v6400 = vpop.xlane.xlu0 %6399
        %v6401 = vsel %vm1426, %v6391, 0.0
        %6402 = vadd.xlane.f32.xlu0 %v6401
        %v6403 = vpop.xlane.xlu0 %6402
        %v6404 = vrcp.pop %v6394
        %v6405 = vrcp.pop %v6397
        %v6406 = vrcp.pop %v6400
        %v6407 = vrcp.pop %v6403
        %v6408 = vmul.f32 %v6385, %v6404
        %v6409 = vmul.f32 %v6387, %v6405
        %v6410 = vmul.f32 %v6389, %v6406
        %v6411 = vmul.f32 %v6391, %v6407
        %v6413 = vsel %vm1426, %v6408, 0
        %v6416 = vsel %vm1426, %v6409, 0
        %v6419 = vsel %vm1426, %v6410, 0
        %v6422 = vsel %vm1426, %v6411, 0
        %6424 = vmatprep.subr.mxu0 0.0
        %6425 = vmatpush1.msra.mxu0 %v6237
        %6426 = vmatprep.subr.mxu0 0.0
        %6427 = vmatpush1.msra.mxu0 %v6242
        %6428 = vmatprep.subr.mxu0 0.0
        %6429 = vmatpush1.msra.mxu0 %v6247
        %6430 = vmatprep.subr.mxu0 0.0
        %6431 = vmatpush1.msra.mxu0 %v6252
        %6432 = vmatprep.subr.mxu0 0.0
        %6433 = vmatpush1.msra.mxu0 0.0
        %6434 = vmatprep.subr.mxu0 0.0
        %6435 = vmatpush1.msra.mxu0 0.0
        %6436 = vmatprep.subr.mxu0 0.0
        %6437 = vmatpush1.msra.mxu0 0.0
        %6438 = vmatprep.subr.mxu0 0.0
        %6439 = vmatpush1.msra.mxu0 0.0
        %6440 = vmatprep.subr.mxu0 0.0
        %6441 = vmatpush1.msra.mxu0 0.0
        %6442 = vmatprep.subr.mxu0 0.0
        %6443 = vmatpush1.msra.mxu0 0.0
        %6444 = vmatprep.subr.mxu0 0.0
        %6445 = vmatpush1.msra.mxu0 0.0
        %6446 = vmatprep.subr.mxu0 0.0
        %6447 = vmatpush1.msra.mxu0 0.0
        %6448 = vmatprep.subr.mxu0 0.0
        %6449 = vmatpush1.msra.mxu0 0.0
        %6450 = vmatprep.subr.mxu0 0.0
        %6451 = vmatpush1.msra.mxu0 0.0
        %6452 = vmatprep.subr.mxu0 0.0
        %6453 = vmatpush1.msra.mxu0 0.0
        %6454 = vmatprep.subr.mxu0 0.0
        %6455 = vmatpush1.msra.mxu0 0.0
        %6456 = vmatprep.subr.mxu0 0.0
        %6457 = vmatpush1.msra.mxu0 0.0
        %6458 = vmatprep.subr.mxu0 0.0
        %6459 = vmatpush1.msra.mxu0 0.0
        %6460 = vmatprep.subr.mxu0 0.0
        %6461 = vmatpush1.msra.mxu0 0.0
        %6462 = vmatprep.subr.mxu0 0.0
        %6463 = vmatpush1.msra.mxu0 0.0
        %6464 = vmatprep.subr.mxu0 0.0
        %6465 = vmatpush1.msra.mxu0 0.0
        %6466 = vmatprep.subr.mxu0 0.0
        %6467 = vmatpush1.msra.mxu0 0.0
        %6468 = vmatprep.subr.mxu0 0.0
        %6469 = vmatpush1.msra.mxu0 0.0
        %6470 = vmatprep.subr.mxu0 0.0
        %6471 = vmatpush1.msra.mxu0 0.0
        %6472 = vmatprep.subr.mxu0 0.0
        %6473 = vmatpush1.msra.mxu0 0.0
        %6474 = vmatprep.subr.mxu0 0.0
        %6475 = vmatpush1.msra.mxu0 0.0
        %6476 = vmatprep.subr.mxu0 0.0
        %6477 = vmatpush1.msra.mxu0 0.0
        %6478 = vmatprep.subr.mxu0 0.0
        %6479 = vmatpush1.msra.mxu0 0.0
        %6480 = vmatprep.subr.mxu0 0.0
        %6481 = vmatpush1.msra.mxu0 0.0
        %6482 = vmatprep.subr.mxu0 0.0
        %6483 = vmatpush1.msra.mxu0 0.0
        %6484 = vmatprep.subr.mxu0 0.0
        %6485 = vmatpush1.msra.mxu0 0.0
        %6486 = vmatprep.subr.mxu0 0.0
        %6487 = vmatpush1.msra.mxu0 0.0
        %6488 = vmatprep.mubr.f32.mxu0 0.0
        %6489 = vmatmul.mubr.f32.gmra.mrb[0].mxu0 %v6413
        %v6490 = vpop.f32.mrb[0].mxu0
        %v6491 = vadd.f32 0.0, %v6490
        %v6492 = vpop.f32.mrb[0].mxu0
        %6493 = vmatprep.mubr.f32.mxu0 0.0
        %6494 = vmatmul.mubr.f32.gmra.mrb[0].mxu0 %v6416
        %v6495 = vpop.f32.mrb[0].mxu0
        %v6496 = vadd.f32 0.0, %v6495
        %v6497 = vpop.f32.mrb[0].mxu0
        %6498 = vmatprep.mubr.f32.mxu0 0.0
        %6499 = vmatmul.mubr.f32.gmra.mrb[0].mxu0 %v6419
        %v6500 = vpop.f32.mrb[0].mxu0
        %v6501 = vadd.f32 0.0, %v6500
        %v6502 = vpop.f32.mrb[0].mxu0
        %6503 = vmatprep.mubr.f32.mxu0 0.0
        %6504 = vmatmul.mubr.f32.gmra.mrb[0].mxu0 %v6422
        %v6505 = vpop.f32.mrb[0].mxu0
        %v6506 = vadd.f32 0.0, %v6505
        %v6507 = vpop.f32.mrb[0].mxu0
        %6508 = vdwg.mxu0
        %s6509 = scalar_lea.vmem [#allocation23], 32
        %v6510 = vld [vmem:[%s6509] sm:$0xff]
        %v6511 = vld [vmem:[%s6509 + $0x8] sm:$0xff]
        %v6512 = vld [vmem:[%s6509 + $0x10] sm:$0xff]
        %v6513 = vld [vmem:[%s6509 + $0x18] sm:$0xff]
        %v6515 = vsel %vm1426, %v6491, 0
        %v6518 = vsel %vm1426, %v6496, 0
        %v6521 = vsel %vm1426, %v6501, 0
        %v6524 = vsel %vm1426, %v6506, 0
        %6526 = vmatprep.subr.mxu0 0.0
        %6527 = vmatpush1.msra.mxu0 %v6510
        %6528 = vmatprep.subr.mxu0 0.0
        %6529 = vmatpush1.msra.mxu0 %v6511
        %6530 = vmatprep.subr.mxu0 0.0
        %6531 = vmatpush1.msra.mxu0 %v6512
        %6532 = vmatprep.subr.mxu0 0.0
        %6533 = vmatpush1.msra.mxu0 %v6513
        %6534 = vmatprep.subr.mxu0 0.0
        %6535 = vmatpush1.msra.mxu0 0.0
        %6536 = vmatprep.subr.mxu0 0.0
        %6537 = vmatpush1.msra.mxu0 0.0
        %6538 = vmatprep.subr.mxu0 0.0
        %6539 = vmatpush1.msra.mxu0 0.0
        %6540 = vmatprep.subr.mxu0 0.0
        %6541 = vmatpush1.msra.mxu0 0.0
        %6542 = vmatprep.subr.mxu0 0.0
        %6543 = vmatpush1.msra.mxu0 0.0
        %6544 = vmatprep.subr.mxu0 0.0
        %6545 = vmatpush1.msra.mxu0 0.0
        %6546 = vmatprep.subr.mxu0 0.0
        %6547 = vmatpush1.msra.mxu0 0.0
        %6548 = vmatprep.subr.mxu0 0.0
        %6549 = vmatpush1.msra.mxu0 0.0
        %6550 = vmatprep.subr.mxu0 0.0
        %6551 = vmatpush1.msra.mxu0 0.0
        %6552 = vmatprep.subr.mxu0 0.0
        %6553 = vmatpush1.msra.mxu0 0.0
        %6554 = vmatprep.subr.mxu0 0.0
        %6555 = vmatpush1.msra.mxu0 0.0
        %6556 = vmatprep.subr.mxu0 0.0
        %6557 = vmatpush1.msra.mxu0 0.0
        %6558 = vmatprep.subr.mxu0 0.0
        %6559 = vmatpush1.msra.mxu0 0.0
        %6560 = vmatprep.subr.mxu0 0.0
        %6561 = vmatpush1.msra.mxu0 0.0
        %6562 = vmatprep.subr.mxu0 0.0
        %6563 = vmatpush1.msra.mxu0 0.0
        %6564 = vmatprep.subr.mxu0 0.0
        %6565 = vmatpush1.msra.mxu0 0.0
        %6566 = vmatprep.subr.mxu0 0.0
        %6567 = vmatpush1.msra.mxu0 0.0
        %6568 = vmatprep.subr.mxu0 0.0
        %6569 = vmatpush1.msra.mxu0 0.0
        %6570 = vmatprep.subr.mxu0 0.0
        %6571 = vmatpush1.msra.mxu0 0.0
        %6572 = vmatprep.subr.mxu0 0.0
        %6573 = vmatpush1.msra.mxu0 0.0
        %6574 = vmatprep.subr.mxu0 0.0
        %6575 = vmatpush1.msra.mxu0 0.0
        %6576 = vmatprep.subr.mxu0 0.0
        %6577 = vmatpush1.msra.mxu0 0.0
        %6578 = vmatprep.subr.mxu0 0.0
        %6579 = vmatpush1.msra.mxu0 0.0
        %6580 = vmatprep.subr.mxu0 0.0
        %6581 = vmatpush1.msra.mxu0 0.0
        %6582 = vmatprep.subr.mxu0 0.0
        %6583 = vmatpush1.msra.mxu0 0.0
        %6584 = vmatprep.subr.mxu0 0.0
        %6585 = vmatpush1.msra.mxu0 0.0
        %6586 = vmatprep.subr.mxu0 0.0
        %6587 = vmatpush1.msra.mxu0 0.0
        %6588 = vmatprep.subr.mxu0 0.0
        %6589 = vmatpush1.msra.mxu0 0.0
        %6590 = vmatprep.mubr.f32.mxu0 0.0
        %6591 = vmatmul.mubr.f32.gmra.mrb[0].mxu0 %v6515
        %v6592 = vpop.f32.mrb[0].mxu0
        %v6593 = vadd.f32 0.0, %v6592
        %v6594 = vpop.f32.mrb[0].mxu0
        %6595 = vmatprep.mubr.f32.mxu0 0.0
        %6596 = vmatmul.mubr.f32.gmra.mrb[0].mxu0 %v6518
        %v6597 = vpop.f32.mrb[0].mxu0
        %v6598 = vadd.f32 0.0, %v6597
        %v6599 = vpop.f32.mrb[0].mxu0
        %6600 = vmatprep.mubr.f32.mxu0 0.0
        %6601 = vmatmul.mubr.f32.gmra.mrb[0].mxu0 %v6521
        %v6602 = vpop.f32.mrb[0].mxu0
        %v6603 = vadd.f32 0.0, %v6602
        %v6604 = vpop.f32.mrb[0].mxu0
        %6605 = vmatprep.mubr.f32.mxu0 0.0
        %6606 = vmatmul.mubr.f32.gmra.mrb[0].mxu0 %v6524
        %v6607 = vpop.f32.mrb[0].mxu0
        %v6608 = vadd.f32 0.0, %v6607
        %v6609 = vpop.f32.mrb[0].mxu0
        %6610 = vdwg.mxu0
        %v6612 = vsel %vm1426, %v5939, 0
        %v6615 = vsel %vm1426, %v5944, 0
        %v6618 = vsel %vm1426, %v5949, 0
        %v6621 = vsel %vm1426, %v5954, 0
        %6623 = vmatprep.subr.mxu0 0.0
        %6624 = vmatpush1.msra.mxu0 %v5957
        %6625 = vmatprep.subr.mxu0 0.0
        %6626 = vmatpush1.msra.mxu0 %v5958
        %6627 = vmatprep.subr.mxu0 0.0
        %6628 = vmatpush1.msra.mxu0 %v5959
        %6629 = vmatprep.subr.mxu0 0.0
        %6630 = vmatpush1.msra.mxu0 %v5960
        %6631 = vmatprep.subr.mxu0 0.0
        %6632 = vmatpush1.msra.mxu0 0.0
        %6633 = vmatprep.subr.mxu0 0.0
        %6634 = vmatpush1.msra.mxu0 0.0
        %6635 = vmatprep.subr.mxu0 0.0
        %6636 = vmatpush1.msra.mxu0 0.0
        %6637 = vmatprep.subr.mxu0 0.0
        %6638 = vmatpush1.msra.mxu0 0.0
        %6639 = vmatprep.subr.mxu0 0.0
        %6640 = vmatpush1.msra.mxu0 0.0
        %6641 = vmatprep.subr.mxu0 0.0
        %6642 = vmatpush1.msra.mxu0 0.0
        %6643 = vmatprep.subr.mxu0 0.0
        %6644 = vmatpush1.msra.mxu0 0.0
        %6645 = vmatprep.subr.mxu0 0.0
        %6646 = vmatpush1.msra.mxu0 0.0
        %6647 = vmatprep.subr.mxu0 0.0
        %6648 = vmatpush1.msra.mxu0 0.0
        %6649 = vmatprep.subr.mxu0 0.0
        %6650 = vmatpush1.msra.mxu0 0.0
        %6651 = vmatprep.subr.mxu0 0.0
        %6652 = vmatpush1.msra.mxu0 0.0
        %6653 = vmatprep.subr.mxu0 0.0
        %6654 = vmatpush1.msra.mxu0 0.0
        %6655 = vmatprep.subr.mxu0 0.0
        %6656 = vmatpush1.msra.mxu0 0.0
        %6657 = vmatprep.subr.mxu0 0.0
        %6658 = vmatpush1.msra.mxu0 0.0
        %6659 = vmatprep.subr.mxu0 0.0
        %6660 = vmatpush1.msra.mxu0 0.0
        %6661 = vmatprep.subr.mxu0 0.0
        %6662 = vmatpush1.msra.mxu0 0.0
        %6663 = vmatprep.subr.mxu0 0.0
        %6664 = vmatpush1.msra.mxu0 0.0
        %6665 = vmatprep.subr.mxu0 0.0
        %6666 = vmatpush1.msra.mxu0 0.0
        %6667 = vmatprep.subr.mxu0 0.0
        %6668 = vmatpush1.msra.mxu0 0.0
        %6669 = vmatprep.subr.mxu0 0.0
        %6670 = vmatpush1.msra.mxu0 0.0
        %6671 = vmatprep.subr.mxu0 0.0
        %6672 = vmatpush1.msra.mxu0 0.0
        %6673 = vmatprep.subr.mxu0 0.0
        %6674 = vmatpush1.msra.mxu0 0.0
        %6675 = vmatprep.subr.mxu0 0.0
        %6676 = vmatpush1.msra.mxu0 0.0
        %6677 = vmatprep.subr.mxu0 0.0
        %6678 = vmatpush1.msra.mxu0 0.0
        %6679 = vmatprep.subr.mxu0 0.0
        %6680 = vmatpush1.msra.mxu0 0.0
        %6681 = vmatprep.subr.mxu0 0.0
        %6682 = vmatpush1.msra.mxu0 0.0
        %6683 = vmatprep.subr.mxu0 0.0
        %6684 = vmatpush1.msra.mxu0 0.0
        %6685 = vmatprep.subr.mxu0 0.0
        %6686 = vmatpush1.msra.mxu0 0.0
        %6687 = vmatprep.mubr.f32.mxu0 0.0
        %6688 = vmatmul.mubr.f32.gmra.mrb[0].mxu0 %v6612
        %v6689 = vpop.f32.mrb[0].mxu0
        %v6690 = vadd.f32 %v6593, %v6689
        %v6691 = vpop.f32.mrb[0].mxu0
        %6692 = vmatprep.mubr.f32.mxu0 0.0
        %6693 = vmatmul.mubr.f32.gmra.mrb[0].mxu0 %v6615
        %v6694 = vpop.f32.mrb[0].mxu0
        %v6695 = vadd.f32 %v6598, %v6694
        %v6696 = vpop.f32.mrb[0].mxu0
        %6697 = vmatprep.mubr.f32.mxu0 0.0
        %6698 = vmatmul.mubr.f32.gmra.mrb[0].mxu0 %v6618
        %v6699 = vpop.f32.mrb[0].mxu0
        %v6700 = vadd.f32 %v6603, %v6699
        %v6701 = vpop.f32.mrb[0].mxu0
        %6702 = vmatprep.mubr.f32.mxu0 0.0
        %6703 = vmatmul.mubr.f32.gmra.mrb[0].mxu0 %v6621
        %v6704 = vpop.f32.mrb[0].mxu0
        %v6705 = vadd.f32 %v6608, %v6704
        %v6706 = vpop.f32.mrb[0].mxu0
        %6707 = vdwg.mxu0
        %s6708 = scalar_lea.vmem %s13, 64
        %v6709 = vld [vmem:[%s6708] sm:$0xff]
        %v6710 = vld [vmem:[%s6708 + $0x8] sm:$0xff]
        %v6711 = vld [vmem:[%s6708 + $0x10] sm:$0xff]
        %v6712 = vld [vmem:[%s6708 + $0x18] sm:$0xff]
        %s6713 = scalar_lea.vmem %s14, 2
        %v6714 = vld [vmem:[%s6713] sm:$0x1]
        %v6716 = vlaneseq
        %v6717 = vshrl.u32 %v6716, 7
        %v6718 = vsub.s32 0, %v6717
        %v6719 = vrot.slane %v6714, %v6718
        %6721 = vmatprep.subr.mxu0 0.0
        %6722 = vmatpush1.msra.mxu0 %v6709
        %6723 = vmatprep.subr.mxu0 0.0
        %6724 = vmatpush1.msra.mxu0 %v6710
        %6725 = vmatprep.subr.mxu0 0.0
        %6726 = vmatpush1.msra.mxu0 %v6711
        %6727 = vmatprep.subr.mxu0 0.0
        %6728 = vmatpush1.msra.mxu0 %v6712
        %6729 = vmatprep.subr.mxu0 0.0
        %6730 = vmatpush1.msra.mxu0 0.0
        %6731 = vmatprep.subr.mxu0 0.0
        %6732 = vmatpush1.msra.mxu0 0.0
        %6733 = vmatprep.subr.mxu0 0.0
        %6734 = vmatpush1.msra.mxu0 0.0
        %6735 = vmatprep.subr.mxu0 0.0
        %6736 = vmatpush1.msra.mxu0 0.0
        %6737 = vmatprep.subr.mxu0 0.0
        %6738 = vmatpush1.msra.mxu0 0.0
        %6739 = vmatprep.subr.mxu0 0.0
        %6740 = vmatpush1.msra.mxu0 0.0
        %6741 = vmatprep.subr.mxu0 0.0
        %6742 = vmatpush1.msra.mxu0 0.0
        %6743 = vmatprep.subr.mxu0 0.0
        %6744 = vmatpush1.msra.mxu0 0.0
        %6745 = vmatprep.subr.mxu0 0.0
        %6746 = vmatpush1.msra.mxu0 0.0
        %6747 = vmatprep.subr.mxu0 0.0
        %6748 = vmatpush1.msra.mxu0 0.0
        %6749 = vmatprep.subr.mxu0 0.0
        %6750 = vmatpush1.msra.mxu0 0.0
        %6751 = vmatprep.subr.mxu0 0.0
        %6752 = vmatpush1.msra.mxu0 0.0
        %6753 = vmatprep.subr.mxu0 0.0
        %6754 = vmatpush1.msra.mxu0 0.0
        %6755 = vmatprep.subr.mxu0 0.0
        %6756 = vmatpush1.msra.mxu0 0.0
        %6757 = vmatprep.subr.mxu0 0.0
        %6758 = vmatpush1.msra.mxu0 0.0
        %6759 = vmatprep.subr.mxu0 0.0
        %6760 = vmatpush1.msra.mxu0 0.0
        %6761 = vmatprep.subr.mxu0 0.0
        %6762 = vmatpush1.msra.mxu0 0.0
        %6763 = vmatprep.subr.mxu0 0.0
        %6764 = vmatpush1.msra.mxu0 0.0
        %6765 = vmatprep.subr.mxu0 0.0
        %6766 = vmatpush1.msra.mxu0 0.0
        %6767 = vmatprep.subr.mxu0 0.0
        %6768 = vmatpush1.msra.mxu0 0.0
        %6769 = vmatprep.subr.mxu0 0.0
        %6770 = vmatpush1.msra.mxu0 0.0
        %6771 = vmatprep.subr.mxu0 0.0
        %6772 = vmatpush1.msra.mxu0 0.0
        %6773 = vmatprep.subr.mxu0 0.0
        %6774 = vmatpush1.msra.mxu0 0.0
        %6775 = vmatprep.subr.mxu0 0.0
        %6776 = vmatpush1.msra.mxu0 0.0
        %6777 = vmatprep.subr.mxu0 0.0
        %6778 = vmatpush1.msra.mxu0 0.0
        %6779 = vmatprep.subr.mxu0 0.0
        %6780 = vmatpush1.msra.mxu0 0.0
        %6781 = vmatprep.subr.mxu0 0.0
        %6782 = vmatpush1.msra.mxu0 0.0
        %6783 = vmatprep.subr.mxu0 0.0
        %6784 = vmatpush1.msra.mxu0 0.0
        %6785 = vmatprep.mubr.f32.mxu0 0.0
        %6786 = vmatmul.mubr.f32.gmra.mrb[0].mxu0 %v5415
        %v6787 = vpop.f32.mrb[0].mxu0
        %v6788 = vadd.f32 %v6719, %v6787
        %v6789 = vpop.f32.mrb[0].mxu0
        %6790 = vmatprep.mubr.f32.mxu0 0.0
        %6791 = vmatmul.mubr.f32.gmra.mrb[0].mxu0 %v5418
        %v6792 = vpop.f32.mrb[0].mxu0
        %v6793 = vadd.f32 %v6719, %v6792
        %v6794 = vpop.f32.mrb[0].mxu0
        %6795 = vmatprep.mubr.f32.mxu0 0.0
        %6796 = vmatmul.mubr.f32.gmra.mrb[0].mxu0 %v5421
        %v6797 = vpop.f32.mrb[0].mxu0
        %v6798 = vadd.f32 %v6719, %v6797
        %v6799 = vpop.f32.mrb[0].mxu0
        %6800 = vmatprep.mubr.f32.mxu0 0.0
        %6801 = vmatmul.mubr.f32.gmra.mrb[0].mxu0 %v5424
        %v6802 = vpop.f32.mrb[0].mxu0
        %v6803 = vadd.f32 %v6719, %v6802
        %v6804 = vpop.f32.mrb[0].mxu0
        %6805 = vdwg.mxu0
        %s6806 = scalar_lea.vmem [#allocation20], 64
        %v6807 = vld [vmem:[%s6806] sm:$0xff]
        %v6808 = vld [vmem:[%s6806 + $0x8] sm:$0xff]
        %v6809 = vld [vmem:[%s6806 + $0x10] sm:$0xff]
        %v6810 = vld [vmem:[%s6806 + $0x18] sm:$0xff]
        %s6811 = scalar_lea.vmem %s16, 2
        %v6812 = vld [vmem:[%s6811] sm:$0x1]
        %v6814 = vlaneseq
        %v6815 = vshrl.u32 %v6814, 7
        %v6816 = vsub.s32 0, %v6815
        %v6817 = vrot.slane %v6812, %v6816
        %6819 = vmatprep.subr.mxu0 0.0
        %6820 = vmatpush1.msra.mxu0 %v6807
        %6821 = vmatprep.subr.mxu0 0.0
        %6822 = vmatpush1.msra.mxu0 %v6808
        %6823 = vmatprep.subr.mxu0 0.0
        %6824 = vmatpush1.msra.mxu0 %v6809
        %6825 = vmatprep.subr.mxu0 0.0
        %6826 = vmatpush1.msra.mxu0 %v6810
        %6827 = vmatprep.subr.mxu0 0.0
        %6828 = vmatpush1.msra.mxu0 0.0
        %6829 = vmatprep.subr.mxu0 0.0
        %6830 = vmatpush1.msra.mxu0 0.0
        %6831 = vmatprep.subr.mxu0 0.0
        %6832 = vmatpush1.msra.mxu0 0.0
        %6833 = vmatprep.subr.mxu0 0.0
        %6834 = vmatpush1.msra.mxu0 0.0
        %6835 = vmatprep.subr.mxu0 0.0
        %6836 = vmatpush1.msra.mxu0 0.0
        %6837 = vmatprep.subr.mxu0 0.0
        %6838 = vmatpush1.msra.mxu0 0.0
        %6839 = vmatprep.subr.mxu0 0.0
        %6840 = vmatpush1.msra.mxu0 0.0
        %6841 = vmatprep.subr.mxu0 0.0
        %6842 = vmatpush1.msra.mxu0 0.0
        %6843 = vmatprep.subr.mxu0 0.0
        %6844 = vmatpush1.msra.mxu0 0.0
        %6845 = vmatprep.subr.mxu0 0.0
        %6846 = vmatpush1.msra.mxu0 0.0
        %6847 = vmatprep.subr.mxu0 0.0
        %6848 = vmatpush1.msra.mxu0 0.0
        %6849 = vmatprep.subr.mxu0 0.0
        %6850 = vmatpush1.msra.mxu0 0.0
        %6851 = vmatprep.subr.mxu0 0.0
        %6852 = vmatpush1.msra.mxu0 0.0
        %6853 = vmatprep.subr.mxu0 0.0
        %6854 = vmatpush1.msra.mxu0 0.0
        %6855 = vmatprep.subr.mxu0 0.0
        %6856 = vmatpush1.msra.mxu0 0.0
        %6857 = vmatprep.subr.mxu0 0.0
        %6858 = vmatpush1.msra.mxu0 0.0
        %6859 = vmatprep.subr.mxu0 0.0
        %6860 = vmatpush1.msra.mxu0 0.0
        %6861 = vmatprep.subr.mxu0 0.0
        %6862 = vmatpush1.msra.mxu0 0.0
        %6863 = vmatprep.subr.mxu0 0.0
        %6864 = vmatpush1.msra.mxu0 0.0
        %6865 = vmatprep.subr.mxu0 0.0
        %6866 = vmatpush1.msra.mxu0 0.0
        %6867 = vmatprep.subr.mxu0 0.0
        %6868 = vmatpush1.msra.mxu0 0.0
        %6869 = vmatprep.subr.mxu0 0.0
        %6870 = vmatpush1.msra.mxu0 0.0
        %6871 = vmatprep.subr.mxu0 0.0
        %6872 = vmatpush1.msra.mxu0 0.0
        %6873 = vmatprep.subr.mxu0 0.0
        %6874 = vmatpush1.msra.mxu0 0.0
        %6875 = vmatprep.subr.mxu0 0.0
        %6876 = vmatpush1.msra.mxu0 0.0
        %6877 = vmatprep.subr.mxu0 0.0
        %6878 = vmatpush1.msra.mxu0 0.0
        %6879 = vmatprep.subr.mxu0 0.0
        %6880 = vmatpush1.msra.mxu0 0.0
        %6881 = vmatprep.subr.mxu0 0.0
        %6882 = vmatpush1.msra.mxu0 0.0
        %6883 = vmatprep.mubr.f32.mxu0 0.0
        %6884 = vmatmul.mubr.f32.gmra.mrb[0].mxu0 %v5415
        %v6885 = vpop.f32.mrb[0].mxu0
        %v6886 = vadd.f32 %v6817, %v6885
        %v6887 = vpop.f32.mrb[0].mxu0
        %6888 = vmatprep.mubr.f32.mxu0 0.0
        %6889 = vmatmul.mubr.f32.gmra.mrb[0].mxu0 %v5418
        %v6890 = vpop.f32.mrb[0].mxu0
        %v6891 = vadd.f32 %v6817, %v6890
        %v6892 = vpop.f32.mrb[0].mxu0
        %6893 = vmatprep.mubr.f32.mxu0 0.0
        %6894 = vmatmul.mubr.f32.gmra.mrb[0].mxu0 %v5421
        %v6895 = vpop.f32.mrb[0].mxu0
        %v6896 = vadd.f32 %v6817, %v6895
        %v6897 = vpop.f32.mrb[0].mxu0
        %6898 = vmatprep.mubr.f32.mxu0 0.0
        %6899 = vmatmul.mubr.f32.gmra.mrb[0].mxu0 %v5424
        %v6900 = vpop.f32.mrb[0].mxu0
        %v6901 = vadd.f32 %v6817, %v6900
        %v6902 = vpop.f32.mrb[0].mxu0
        %6903 = vdwg.mxu0
        %s6904 = scalar_lea.vmem [#allocation22], 64
        %v6905 = vld [vmem:[%s6904] sm:$0xff]
        %v6906 = vld [vmem:[%s6904 + $0x8] sm:$0xff]
        %v6907 = vld [vmem:[%s6904 + $0x10] sm:$0xff]
        %v6908 = vld [vmem:[%s6904 + $0x18] sm:$0xff]
        %s6909 = scalar_lea.vmem %s18, 2
        %v6910 = vld [vmem:[%s6909] sm:$0x1]
        %v6912 = vlaneseq
        %v6913 = vshrl.u32 %v6912, 7
        %v6914 = vsub.s32 0, %v6913
        %v6915 = vrot.slane %v6910, %v6914
        %6917 = vmatprep.subr.mxu0 0.0
        %6918 = vmatpush1.msra.mxu0 %v6905
        %6919 = vmatprep.subr.mxu0 0.0
        %6920 = vmatpush1.msra.mxu0 %v6906
        %6921 = vmatprep.subr.mxu0 0.0
        %6922 = vmatpush1.msra.mxu0 %v6907
        %6923 = vmatprep.subr.mxu0 0.0
        %6924 = vmatpush1.msra.mxu0 %v6908
        %6925 = vmatprep.subr.mxu0 0.0
        %6926 = vmatpush1.msra.mxu0 0.0
        %6927 = vmatprep.subr.mxu0 0.0
        %6928 = vmatpush1.msra.mxu0 0.0
        %6929 = vmatprep.subr.mxu0 0.0
        %6930 = vmatpush1.msra.mxu0 0.0
        %6931 = vmatprep.subr.mxu0 0.0
        %6932 = vmatpush1.msra.mxu0 0.0
        %6933 = vmatprep.subr.mxu0 0.0
        %6934 = vmatpush1.msra.mxu0 0.0
        %6935 = vmatprep.subr.mxu0 0.0
        %6936 = vmatpush1.msra.mxu0 0.0
        %6937 = vmatprep.subr.mxu0 0.0
        %6938 = vmatpush1.msra.mxu0 0.0
        %6939 = vmatprep.subr.mxu0 0.0
        %6940 = vmatpush1.msra.mxu0 0.0
        %6941 = vmatprep.subr.mxu0 0.0
        %6942 = vmatpush1.msra.mxu0 0.0
        %6943 = vmatprep.subr.mxu0 0.0
        %6944 = vmatpush1.msra.mxu0 0.0
        %6945 = vmatprep.subr.mxu0 0.0
        %6946 = vmatpush1.msra.mxu0 0.0
        %6947 = vmatprep.subr.mxu0 0.0
        %6948 = vmatpush1.msra.mxu0 0.0
        %6949 = vmatprep.subr.mxu0 0.0
        %6950 = vmatpush1.msra.mxu0 0.0
        %6951 = vmatprep.subr.mxu0 0.0
        %6952 = vmatpush1.msra.mxu0 0.0
        %6953 = vmatprep.subr.mxu0 0.0
        %6954 = vmatpush1.msra.mxu0 0.0
        %6955 = vmatprep.subr.mxu0 0.0
        %6956 = vmatpush1.msra.mxu0 0.0
        %6957 = vmatprep.subr.mxu0 0.0
        %6958 = vmatpush1.msra.mxu0 0.0
        %6959 = vmatprep.subr.mxu0 0.0
        %6960 = vmatpush1.msra.mxu0 0.0
        %6961 = vmatprep.subr.mxu0 0.0
        %6962 = vmatpush1.msra.mxu0 0.0
        %6963 = vmatprep.subr.mxu0 0.0
        %6964 = vmatpush1.msra.mxu0 0.0
        %6965 = vmatprep.subr.mxu0 0.0
        %6966 = vmatpush1.msra.mxu0 0.0
        %6967 = vmatprep.subr.mxu0 0.0
        %6968 = vmatpush1.msra.mxu0 0.0
        %6969 = vmatprep.subr.mxu0 0.0
        %6970 = vmatpush1.msra.mxu0 0.0
        %6971 = vmatprep.subr.mxu0 0.0
        %6972 = vmatpush1.msra.mxu0 0.0
        %6973 = vmatprep.subr.mxu0 0.0
        %6974 = vmatpush1.msra.mxu0 0.0
        %6975 = vmatprep.subr.mxu0 0.0
        %6976 = vmatpush1.msra.mxu0 0.0
        %6977 = vmatprep.subr.mxu0 0.0
        %6978 = vmatpush1.msra.mxu0 0.0
        %6979 = vmatprep.subr.mxu0 0.0
        %6980 = vmatpush1.msra.mxu0 0.0
        %6981 = vmatprep.mubr.f32.mxu0 0.0
        %6982 = vmatmul.mubr.f32.gmra.mrb[0].mxu0 %v5415
        %v6983 = vpop.f32.mrb[0].mxu0
        %v6984 = vadd.f32 %v6915, %v6983
        %v6985 = vpop.f32.mrb[0].mxu0
        %6986 = vmatprep.mubr.f32.mxu0 0.0
        %6987 = vmatmul.mubr.f32.gmra.mrb[0].mxu0 %v5418
        %v6988 = vpop.f32.mrb[0].mxu0
        %v6989 = vadd.f32 %v6915, %v6988
        %v6990 = vpop.f32.mrb[0].mxu0
        %6991 = vmatprep.mubr.f32.mxu0 0.0
        %6992 = vmatmul.mubr.f32.gmra.mrb[0].mxu0 %v5421
        %v6993 = vpop.f32.mrb[0].mxu0
        %v6994 = vadd.f32 %v6915, %v6993
        %v6995 = vpop.f32.mrb[0].mxu0
        %6996 = vmatprep.mubr.f32.mxu0 0.0
        %6997 = vmatmul.mubr.f32.gmra.mrb[0].mxu0 %v5424
        %v6998 = vpop.f32.mrb[0].mxu0
        %v6999 = vadd.f32 %v6915, %v6998
        %v7000 = vpop.f32.mrb[0].mxu0
        %7001 = vdwg.mxu0
        %v7003 = vsel %vm1426, %v6788, 0
        %v7006 = vsel %vm1426, %v6793, 0
        %v7009 = vsel %vm1426, %v6798, 0
        %v7012 = vsel %vm1426, %v6803, 0
        %v7015 = vsel %vm1426, %v6886, 0
        %v7018 = vsel %vm1426, %v6891, 0
        %v7021 = vsel %vm1426, %v6896, 0
        %v7024 = vsel %vm1426, %v6901, 0
        %7026 = vmatprep.subr.mxu0 0.0
        %7027 = vmatpush1.xpose.msra.mxu0 %v7015
        %7028 = vmatprep.subr.mxu0 0.0
        %7029 = vmatpush1.xpose.msra.mxu0 %v7018
        %7030 = vmatprep.subr.mxu0 0.0
        %7031 = vmatpush1.xpose.msra.mxu0 %v7021
        %7032 = vmatprep.subr.mxu0 0.0
        %7033 = vmatpush1.xpose.msra.mxu0 %v7024
        %7034 = vmatprep.subr.mxu0 0.0
        %7035 = vmatpush1.xpose.msra.mxu0 0.0
        %7036 = vmatprep.subr.mxu0 0.0
        %7037 = vmatpush1.xpose.msra.mxu0 0.0
        %7038 = vmatprep.subr.mxu0 0.0
        %7039 = vmatpush1.xpose.msra.mxu0 0.0
        %7040 = vmatprep.subr.mxu0 0.0
        %7041 = vmatpush1.xpose.msra.mxu0 0.0
        %7042 = vmatprep.subr.mxu0 0.0
        %7043 = vmatpush1.xpose.msra.mxu0 0.0
        %7044 = vmatprep.subr.mxu0 0.0
        %7045 = vmatpush1.xpose.msra.mxu0 0.0
        %7046 = vmatprep.subr.mxu0 0.0
        %7047 = vmatpush1.xpose.msra.mxu0 0.0
        %7048 = vmatprep.subr.mxu0 0.0
        %7049 = vmatpush1.xpose.msra.mxu0 0.0
        %7050 = vmatprep.subr.mxu0 0.0
        %7051 = vmatpush1.xpose.msra.mxu0 0.0
        %7052 = vmatprep.subr.mxu0 0.0
        %7053 = vmatpush1.xpose.msra.mxu0 0.0
        %7054 = vmatprep.subr.mxu0 0.0
        %7055 = vmatpush1.xpose.msra.mxu0 0.0
        %7056 = vmatprep.subr.mxu0 0.0
        %7057 = vmatpush1.xpose.msra.mxu0 0.0
        %7058 = vmatprep.subr.mxu0 0.0
        %7059 = vmatpush1.xpose.msra.mxu0 0.0
        %7060 = vmatprep.subr.mxu0 0.0
        %7061 = vmatpush1.xpose.msra.mxu0 0.0
        %7062 = vmatprep.subr.mxu0 0.0
        %7063 = vmatpush1.xpose.msra.mxu0 0.0
        %7064 = vmatprep.subr.mxu0 0.0
        %7065 = vmatpush1.xpose.msra.mxu0 0.0
        %7066 = vmatprep.subr.mxu0 0.0
        %7067 = vmatpush1.xpose.msra.mxu0 0.0
        %7068 = vmatprep.subr.mxu0 0.0
        %7069 = vmatpush1.xpose.msra.mxu0 0.0
        %7070 = vmatprep.subr.mxu0 0.0
        %7071 = vmatpush1.xpose.msra.mxu0 0.0
        %7072 = vmatprep.subr.mxu0 0.0
        %7073 = vmatpush1.xpose.msra.mxu0 0.0
        %7074 = vmatprep.subr.mxu0 0.0
        %7075 = vmatpush1.xpose.msra.mxu0 0.0
        %7076 = vmatprep.subr.mxu0 0.0
        %7077 = vmatpush1.xpose.msra.mxu0 0.0
        %7078 = vmatprep.subr.mxu0 0.0
        %7079 = vmatpush1.xpose.msra.mxu0 0.0
        %7080 = vmatprep.subr.mxu0 0.0
        %7081 = vmatpush1.xpose.msra.mxu0 0.0
        %7082 = vmatprep.subr.mxu0 0.0
        %7083 = vmatpush1.xpose.msra.mxu0 0.0
        %7084 = vmatprep.subr.mxu0 0.0
        %7085 = vmatpush1.xpose.msra.mxu0 0.0
        %7086 = vmatprep.subr.mxu0 0.0
        %7087 = vmatpush1.xpose.msra.mxu0 0.0
        %7088 = vmatprep.subr.mxu0 0.0
        %7089 = vmatpush1.xpose.msra.mxu0 0.0
        %7090 = vmatprep.mubr.f32.mxu0 0.0
        %7091 = vmatmul.mubr.f32.gmra.mrb[0].mxu0 %v7003
        %v7092 = vpop.f32.mrb[0].mxu0
        %v7093 = vadd.f32 0.0, %v7092
        %v7094 = vpop.f32.mrb[0].mxu0
        %7095 = vmatprep.mubr.f32.mxu0 0.0
        %7096 = vmatmul.mubr.f32.gmra.mrb[0].mxu0 %v7006
        %v7097 = vpop.f32.mrb[0].mxu0
        %v7098 = vadd.f32 0.0, %v7097
        %v7099 = vpop.f32.mrb[0].mxu0
        %7100 = vmatprep.mubr.f32.mxu0 0.0
        %7101 = vmatmul.mubr.f32.gmra.mrb[0].mxu0 %v7009
        %v7102 = vpop.f32.mrb[0].mxu0
        %v7103 = vadd.f32 0.0, %v7102
        %v7104 = vpop.f32.mrb[0].mxu0
        %7105 = vmatprep.mubr.f32.mxu0 0.0
        %7106 = vmatmul.mubr.f32.gmra.mrb[0].mxu0 %v7012
        %v7107 = vpop.f32.mrb[0].mxu0
        %v7108 = vadd.f32 0.0, %v7107
        %v7109 = vpop.f32.mrb[0].mxu0
        %7110 = vdwg.mxu0
        %v7111 = vmul.f32 %v7093, 0.17677669
        %v7112 = vmul.f32 %v7098, 0.17677669
        %v7113 = vmul.f32 %v7103, 0.17677669
        %v7114 = vmul.f32 %v7108, 0.17677669
        %v7115 = vsel %vm1426, %v7111, -inf
        %7116 = vmax.xlane.f32.xlu0 %v7115
        %v7117 = vpop.xlane.xlu0 %7116
        %v7118 = vsel %vm1426, %v7112, -inf
        %7119 = vmax.xlane.f32.xlu0 %v7118
        %v7120 = vpop.xlane.xlu0 %7119
        %v7121 = vsel %vm1426, %v7113, -inf
        %7122 = vmax.xlane.f32.xlu0 %v7121
        %v7123 = vpop.xlane.xlu0 %7122
        %v7124 = vsel %vm1426, %v7114, -inf
        %7125 = vmax.xlane.f32.xlu0 %v7124
        %v7126 = vpop.xlane.xlu0 %7125
        %v7127 = vsub.f32 %v7111, %v7117
        %v7128 = vsub.f32 %v7112, %v7120
        %v7129 = vsub.f32 %v7113, %v7123
        %v7130 = vsub.f32 %v7114, %v7126
        %v7131 = vmul.f32 %v7127, 1.442695
        %v7132 = vpow.pop %v7131
        %v7133 = vmul.f32 %v7128, 1.442695
        %v7134 = vpow.pop %v7133
        %v7135 = vmul.f32 %v7129, 1.442695
        %v7136 = vpow.pop %v7135
        %v7137 = vmul.f32 %v7130, 1.442695
        %v7138 = vpow.pop %v7137
        %v7139 = vsel %vm1426, %v7132, 0.0
        %7140 = vadd.xlane.f32.xlu0 %v7139
        %v7141 = vpop.xlane.xlu0 %7140
        %v7142 = vsel %vm1426, %v7134, 0.0
        %7143 = vadd.xlane.f32.xlu0 %v7142
        %v7144 = vpop.xlane.xlu0 %7143
        %v7145 = vsel %vm1426, %v7136, 0.0
        %7146 = vadd.xlane.f32.xlu0 %v7145
        %v7147 = vpop.xlane.xlu0 %7146
        %v7148 = vsel %vm1426, %v7138, 0.0
        %7149 = vadd.xlane.f32.xlu0 %v7148
        %v7150 = vpop.xlane.xlu0 %7149
        %v7151 = vrcp.pop %v7141
        %v7152 = vrcp.pop %v7144
        %v7153 = vrcp.pop %v7147
        %v7154 = vrcp.pop %v7150
        %v7155 = vmul.f32 %v7132, %v7151
        %v7156 = vmul.f32 %v7134, %v7152
        %v7157 = vmul.f32 %v7136, %v7153
        %v7158 = vmul.f32 %v7138, %v7154
        %v7160 = vsel %vm1426, %v7155, 0
        %v7163 = vsel %vm1426, %v7156, 0
        %v7166 = vsel %vm1426, %v7157, 0
        %v7169 = vsel %vm1426, %v7158, 0
        %7171 = vmatprep.subr.mxu0 0.0
        %7172 = vmatpush1.msra.mxu0 %v6984
        %7173 = vmatprep.subr.mxu0 0.0
        %7174 = vmatpush1.msra.mxu0 %v6989
        %7175 = vmatprep.subr.mxu0 0.0
        %7176 = vmatpush1.msra.mxu0 %v6994
        %7177 = vmatprep.subr.mxu0 0.0
        %7178 = vmatpush1.msra.mxu0 %v6999
        %7179 = vmatprep.subr.mxu0 0.0
        %7180 = vmatpush1.msra.mxu0 0.0
        %7181 = vmatprep.subr.mxu0 0.0
        %7182 = vmatpush1.msra.mxu0 0.0
        %7183 = vmatprep.subr.mxu0 0.0
        %7184 = vmatpush1.msra.mxu0 0.0
        %7185 = vmatprep.subr.mxu0 0.0
        %7186 = vmatpush1.msra.mxu0 0.0
        %7187 = vmatprep.subr.mxu0 0.0
        %7188 = vmatpush1.msra.mxu0 0.0
        %7189 = vmatprep.subr.mxu0 0.0
        %7190 = vmatpush1.msra.mxu0 0.0
        %7191 = vmatprep.subr.mxu0 0.0
        %7192 = vmatpush1.msra.mxu0 0.0
        %7193 = vmatprep.subr.mxu0 0.0
        %7194 = vmatpush1.msra.mxu0 0.0
        %7195 = vmatprep.subr.mxu0 0.0
        %7196 = vmatpush1.msra.mxu0 0.0
        %7197 = vmatprep.subr.mxu0 0.0
        %7198 = vmatpush1.msra.mxu0 0.0
        %7199 = vmatprep.subr.mxu0 0.0
        %7200 = vmatpush1.msra.mxu0 0.0
        %7201 = vmatprep.subr.mxu0 0.0
        %7202 = vmatpush1.msra.mxu0 0.0
        %7203 = vmatprep.subr.mxu0 0.0
        %7204 = vmatpush1.msra.mxu0 0.0
        %7205 = vmatprep.subr.mxu0 0.0
        %7206 = vmatpush1.msra.mxu0 0.0
        %7207 = vmatprep.subr.mxu0 0.0
        %7208 = vmatpush1.msra.mxu0 0.0
        %7209 = vmatprep.subr.mxu0 0.0
        %7210 = vmatpush1.msra.mxu0 0.0
        %7211 = vmatprep.subr.mxu0 0.0
        %7212 = vmatpush1.msra.mxu0 0.0
        %7213 = vmatprep.subr.mxu0 0.0
        %7214 = vmatpush1.msra.mxu0 0.0
        %7215 = vmatprep.subr.mxu0 0.0
        %7216 = vmatpush1.msra.mxu0 0.0
        %7217 = vmatprep.subr.mxu0 0.0
        %7218 = vmatpush1.msra.mxu0 0.0
        %7219 = vmatprep.subr.mxu0 0.0
        %7220 = vmatpush1.msra.mxu0 0.0
        %7221 = vmatprep.subr.mxu0 0.0
        %7222 = vmatpush1.msra.mxu0 0.0
        %7223 = vmatprep.subr.mxu0 0.0
        %7224 = vmatpush1.msra.mxu0 0.0
        %7225 = vmatprep.subr.mxu0 0.0
        %7226 = vmatpush1.msra.mxu0 0.0
        %7227 = vmatprep.subr.mxu0 0.0
        %7228 = vmatpush1.msra.mxu0 0.0
        %7229 = vmatprep.subr.mxu0 0.0
        %7230 = vmatpush1.msra.mxu0 0.0
        %7231 = vmatprep.subr.mxu0 0.0
        %7232 = vmatpush1.msra.mxu0 0.0
        %7233 = vmatprep.subr.mxu0 0.0
        %7234 = vmatpush1.msra.mxu0 0.0
        %7235 = vmatprep.mubr.f32.mxu0 0.0
        %7236 = vmatmul.mubr.f32.gmra.mrb[0].mxu0 %v7160
        %v7237 = vpop.f32.mrb[0].mxu0
        %v7238 = vadd.f32 0.0, %v7237
        %v7239 = vpop.f32.mrb[0].mxu0
        %7240 = vmatprep.mubr.f32.mxu0 0.0
        %7241 = vmatmul.mubr.f32.gmra.mrb[0].mxu0 %v7163
        %v7242 = vpop.f32.mrb[0].mxu0
        %v7243 = vadd.f32 0.0, %v7242
        %v7244 = vpop.f32.mrb[0].mxu0
        %7245 = vmatprep.mubr.f32.mxu0 0.0
        %7246 = vmatmul.mubr.f32.gmra.mrb[0].mxu0 %v7166
        %v7247 = vpop.f32.mrb[0].mxu0
        %v7248 = vadd.f32 0.0, %v7247
        %v7249 = vpop.f32.mrb[0].mxu0
        %7250 = vmatprep.mubr.f32.mxu0 0.0
        %7251 = vmatmul.mubr.f32.gmra.mrb[0].mxu0 %v7169
        %v7252 = vpop.f32.mrb[0].mxu0
        %v7253 = vadd.f32 0.0, %v7252
        %v7254 = vpop.f32.mrb[0].mxu0
        %7255 = vdwg.mxu0
        %s7256 = scalar_lea.vmem [#allocation23], 64
        %v7257 = vld [vmem:[%s7256] sm:$0xff]
        %v7258 = vld [vmem:[%s7256 + $0x8] sm:$0xff]
        %v7259 = vld [vmem:[%s7256 + $0x10] sm:$0xff]
        %v7260 = vld [vmem:[%s7256 + $0x18] sm:$0xff]
        %v7262 = vsel %vm1426, %v7238, 0
        %v7265 = vsel %vm1426, %v7243, 0
        %v7268 = vsel %vm1426, %v7248, 0
        %v7271 = vsel %vm1426, %v7253, 0
        %7273 = vmatprep.subr.mxu0 0.0
        %7274 = vmatpush1.msra.mxu0 %v7257
        %7275 = vmatprep.subr.mxu0 0.0
        %7276 = vmatpush1.msra.mxu0 %v7258
        %7277 = vmatprep.subr.mxu0 0.0
        %7278 = vmatpush1.msra.mxu0 %v7259
        %7279 = vmatprep.subr.mxu0 0.0
        %7280 = vmatpush1.msra.mxu0 %v7260
        %7281 = vmatprep.subr.mxu0 0.0
        %7282 = vmatpush1.msra.mxu0 0.0
        %7283 = vmatprep.subr.mxu0 0.0
        %7284 = vmatpush1.msra.mxu0 0.0
        %7285 = vmatprep.subr.mxu0 0.0
        %7286 = vmatpush1.msra.mxu0 0.0
        %7287 = vmatprep.subr.mxu0 0.0
        %7288 = vmatpush1.msra.mxu0 0.0
        %7289 = vmatprep.subr.mxu0 0.0
        %7290 = vmatpush1.msra.mxu0 0.0
        %7291 = vmatprep.subr.mxu0 0.0
        %7292 = vmatpush1.msra.mxu0 0.0
        %7293 = vmatprep.subr.mxu0 0.0
        %7294 = vmatpush1.msra.mxu0 0.0
        %7295 = vmatprep.subr.mxu0 0.0
        %7296 = vmatpush1.msra.mxu0 0.0
        %7297 = vmatprep.subr.mxu0 0.0
        %7298 = vmatpush1.msra.mxu0 0.0
        %7299 = vmatprep.subr.mxu0 0.0
        %7300 = vmatpush1.msra.mxu0 0.0
        %7301 = vmatprep.subr.mxu0 0.0
        %7302 = vmatpush1.msra.mxu0 0.0
        %7303 = vmatprep.subr.mxu0 0.0
        %7304 = vmatpush1.msra.mxu0 0.0
        %7305 = vmatprep.subr.mxu0 0.0
        %7306 = vmatpush1.msra.mxu0 0.0
        %7307 = vmatprep.subr.mxu0 0.0
        %7308 = vmatpush1.msra.mxu0 0.0
        %7309 = vmatprep.subr.mxu0 0.0
        %7310 = vmatpush1.msra.mxu0 0.0
        %7311 = vmatprep.subr.mxu0 0.0
        %7312 = vmatpush1.msra.mxu0 0.0
        %7313 = vmatprep.subr.mxu0 0.0
        %7314 = vmatpush1.msra.mxu0 0.0
        %7315 = vmatprep.subr.mxu0 0.0
        %7316 = vmatpush1.msra.mxu0 0.0
        %7317 = vmatprep.subr.mxu0 0.0
        %7318 = vmatpush1.msra.mxu0 0.0
        %7319 = vmatprep.subr.mxu0 0.0
        %7320 = vmatpush1.msra.mxu0 0.0
        %7321 = vmatprep.subr.mxu0 0.0
        %7322 = vmatpush1.msra.mxu0 0.0
        %7323 = vmatprep.subr.mxu0 0.0
        %7324 = vmatpush1.msra.mxu0 0.0
        %7325 = vmatprep.subr.mxu0 0.0
        %7326 = vmatpush1.msra.mxu0 0.0
        %7327 = vmatprep.subr.mxu0 0.0
        %7328 = vmatpush1.msra.mxu0 0.0
        %7329 = vmatprep.subr.mxu0 0.0
        %7330 = vmatpush1.msra.mxu0 0.0
        %7331 = vmatprep.subr.mxu0 0.0
        %7332 = vmatpush1.msra.mxu0 0.0
        %7333 = vmatprep.subr.mxu0 0.0
        %7334 = vmatpush1.msra.mxu0 0.0
        %7335 = vmatprep.subr.mxu0 0.0
        %7336 = vmatpush1.msra.mxu0 0.0
        %7337 = vmatprep.mubr.f32.mxu0 0.0
        %7338 = vmatmul.mubr.f32.gmra.mrb[0].mxu0 %v7262
        %v7339 = vpop.f32.mrb[0].mxu0
        %v7340 = vadd.f32 0.0, %v7339
        %v7341 = vpop.f32.mrb[0].mxu0
        %7342 = vmatprep.mubr.f32.mxu0 0.0
        %7343 = vmatmul.mubr.f32.gmra.mrb[0].mxu0 %v7265
        %v7344 = vpop.f32.mrb[0].mxu0
        %v7345 = vadd.f32 0.0, %v7344
        %v7346 = vpop.f32.mrb[0].mxu0
        %7347 = vmatprep.mubr.f32.mxu0 0.0
        %7348 = vmatmul.mubr.f32.gmra.mrb[0].mxu0 %v7268
        %v7349 = vpop.f32.mrb[0].mxu0
        %v7350 = vadd.f32 0.0, %v7349
        %v7351 = vpop.f32.mrb[0].mxu0
        %7352 = vmatprep.mubr.f32.mxu0 0.0
        %7353 = vmatmul.mubr.f32.gmra.mrb[0].mxu0 %v7271
        %v7354 = vpop.f32.mrb[0].mxu0
        %v7355 = vadd.f32 0.0, %v7354
        %v7356 = vpop.f32.mrb[0].mxu0
        %7357 = vdwg.mxu0
        %v7358 = vadd.f32 %v6690, %v7340
        %v7359 = vadd.f32 %v6695, %v7345
        %v7360 = vadd.f32 %v6700, %v7350
        %v7361 = vadd.f32 %v6705, %v7355
        %s7362 = scalar_lea.vmem %s13, 96
        %v7363 = vld [vmem:[%s7362] sm:$0xff]
        %v7364 = vld [vmem:[%s7362 + $0x8] sm:$0xff]
        %v7365 = vld [vmem:[%s7362 + $0x10] sm:$0xff]
        %v7366 = vld [vmem:[%s7362 + $0x18] sm:$0xff]
        %s7367 = scalar_lea.vmem %s14, 3
        %v7368 = vld [vmem:[%s7367] sm:$0x1]
        %v7370 = vlaneseq
        %v7371 = vshrl.u32 %v7370, 7
        %v7372 = vsub.s32 0, %v7371
        %v7373 = vrot.slane %v7368, %v7372
        %7375 = vmatprep.subr.mxu0 0.0
        %7376 = vmatpush1.msra.mxu0 %v7363
        %7377 = vmatprep.subr.mxu0 0.0
        %7378 = vmatpush1.msra.mxu0 %v7364
        %7379 = vmatprep.subr.mxu0 0.0
        %7380 = vmatpush1.msra.mxu0 %v7365
        %7381 = vmatprep.subr.mxu0 0.0
        %7382 = vmatpush1.msra.mxu0 %v7366
        %7383 = vmatprep.subr.mxu0 0.0
        %7384 = vmatpush1.msra.mxu0 0.0
        %7385 = vmatprep.subr.mxu0 0.0
        %7386 = vmatpush1.msra.mxu0 0.0
        %7387 = vmatprep.subr.mxu0 0.0
        %7388 = vmatpush1.msra.mxu0 0.0
        %7389 = vmatprep.subr.mxu0 0.0
        %7390 = vmatpush1.msra.mxu0 0.0
        %7391 = vmatprep.subr.mxu0 0.0
        %7392 = vmatpush1.msra.mxu0 0.0
        %7393 = vmatprep.subr.mxu0 0.0
        %7394 = vmatpush1.msra.mxu0 0.0
        %7395 = vmatprep.subr.mxu0 0.0
        %7396 = vmatpush1.msra.mxu0 0.0
        %7397 = vmatprep.subr.mxu0 0.0
        %7398 = vmatpush1.msra.mxu0 0.0
        %7399 = vmatprep.subr.mxu0 0.0
        %7400 = vmatpush1.msra.mxu0 0.0
        %7401 = vmatprep.subr.mxu0 0.0
        %7402 = vmatpush1.msra.mxu0 0.0
        %7403 = vmatprep.subr.mxu0 0.0
        %7404 = vmatpush1.msra.mxu0 0.0
        %7405 = vmatprep.subr.mxu0 0.0
        %7406 = vmatpush1.msra.mxu0 0.0
        %7407 = vmatprep.subr.mxu0 0.0
        %7408 = vmatpush1.msra.mxu0 0.0
        %7409 = vmatprep.subr.mxu0 0.0
        %7410 = vmatpush1.msra.mxu0 0.0
        %7411 = vmatprep.subr.mxu0 0.0
        %7412 = vmatpush1.msra.mxu0 0.0
        %7413 = vmatprep.subr.mxu0 0.0
        %7414 = vmatpush1.msra.mxu0 0.0
        %7415 = vmatprep.subr.mxu0 0.0
        %7416 = vmatpush1.msra.mxu0 0.0
        %7417 = vmatprep.subr.mxu0 0.0
        %7418 = vmatpush1.msra.mxu0 0.0
        %7419 = vmatprep.subr.mxu0 0.0
        %7420 = vmatpush1.msra.mxu0 0.0
        %7421 = vmatprep.subr.mxu0 0.0
        %7422 = vmatpush1.msra.mxu0 0.0
        %7423 = vmatprep.subr.mxu0 0.0
        %7424 = vmatpush1.msra.mxu0 0.0
        %7425 = vmatprep.subr.mxu0 0.0
        %7426 = vmatpush1.msra.mxu0 0.0
        %7427 = vmatprep.subr.mxu0 0.0
        %7428 = vmatpush1.msra.mxu0 0.0
        %7429 = vmatprep.subr.mxu0 0.0
        %7430 = vmatpush1.msra.mxu0 0.0
        %7431 = vmatprep.subr.mxu0 0.0
        %7432 = vmatpush1.msra.mxu0 0.0
        %7433 = vmatprep.subr.mxu0 0.0
        %7434 = vmatpush1.msra.mxu0 0.0
        %7435 = vmatprep.subr.mxu0 0.0
        %7436 = vmatpush1.msra.mxu0 0.0
        %7437 = vmatprep.subr.mxu0 0.0
        %7438 = vmatpush1.msra.mxu0 0.0
        %7439 = vmatprep.mubr.f32.mxu0 0.0
        %7440 = vmatmul.mubr.f32.gmra.mrb[0].mxu0 %v5415
        %v7441 = vpop.f32.mrb[0].mxu0
        %v7442 = vadd.f32 %v7373, %v7441
        %v7443 = vpop.f32.mrb[0].mxu0
        %7444 = vmatprep.mubr.f32.mxu0 0.0
        %7445 = vmatmul.mubr.f32.gmra.mrb[0].mxu0 %v5418
        %v7446 = vpop.f32.mrb[0].mxu0
        %v7447 = vadd.f32 %v7373, %v7446
        %v7448 = vpop.f32.mrb[0].mxu0
        %7449 = vmatprep.mubr.f32.mxu0 0.0
        %7450 = vmatmul.mubr.f32.gmra.mrb[0].mxu0 %v5421
        %v7451 = vpop.f32.mrb[0].mxu0
        %v7452 = vadd.f32 %v7373, %v7451
        %v7453 = vpop.f32.mrb[0].mxu0
        %7454 = vmatprep.mubr.f32.mxu0 0.0
        %7455 = vmatmul.mubr.f32.gmra.mrb[0].mxu0 %v5424
        %v7456 = vpop.f32.mrb[0].mxu0
        %v7457 = vadd.f32 %v7373, %v7456
        %v7458 = vpop.f32.mrb[0].mxu0
        %7459 = vdwg.mxu0
        %s7460 = scalar_lea.vmem [#allocation20], 96
        %v7461 = vld [vmem:[%s7460] sm:$0xff]
        %v7462 = vld [vmem:[%s7460 + $0x8] sm:$0xff]
        %v7463 = vld [vmem:[%s7460 + $0x10] sm:$0xff]
        %v7464 = vld [vmem:[%s7460 + $0x18] sm:$0xff]
        %s7465 = scalar_lea.vmem %s16, 3
        %v7466 = vld [vmem:[%s7465] sm:$0x1]
        %v7468 = vlaneseq
        %v7469 = vshrl.u32 %v7468, 7
        %v7470 = vsub.s32 0, %v7469
        %v7471 = vrot.slane %v7466, %v7470
        %7473 = vmatprep.subr.mxu0 0.0
        %7474 = vmatpush1.msra.mxu0 %v7461
        %7475 = vmatprep.subr.mxu0 0.0
        %7476 = vmatpush1.msra.mxu0 %v7462
        %7477 = vmatprep.subr.mxu0 0.0
        %7478 = vmatpush1.msra.mxu0 %v7463
        %7479 = vmatprep.subr.mxu0 0.0
        %7480 = vmatpush1.msra.mxu0 %v7464
        %7481 = vmatprep.subr.mxu0 0.0
        %7482 = vmatpush1.msra.mxu0 0.0
        %7483 = vmatprep.subr.mxu0 0.0
        %7484 = vmatpush1.msra.mxu0 0.0
        %7485 = vmatprep.subr.mxu0 0.0
        %7486 = vmatpush1.msra.mxu0 0.0
        %7487 = vmatprep.subr.mxu0 0.0
        %7488 = vmatpush1.msra.mxu0 0.0
        %7489 = vmatprep.subr.mxu0 0.0
        %7490 = vmatpush1.msra.mxu0 0.0
        %7491 = vmatprep.subr.mxu0 0.0
        %7492 = vmatpush1.msra.mxu0 0.0
        %7493 = vmatprep.subr.mxu0 0.0
        %7494 = vmatpush1.msra.mxu0 0.0
        %7495 = vmatprep.subr.mxu0 0.0
        %7496 = vmatpush1.msra.mxu0 0.0
        %7497 = vmatprep.subr.mxu0 0.0
        %7498 = vmatpush1.msra.mxu0 0.0
        %7499 = vmatprep.subr.mxu0 0.0
        %7500 = vmatpush1.msra.mxu0 0.0
        %7501 = vmatprep.subr.mxu0 0.0
        %7502 = vmatpush1.msra.mxu0 0.0
        %7503 = vmatprep.subr.mxu0 0.0
        %7504 = vmatpush1.msra.mxu0 0.0
        %7505 = vmatprep.subr.mxu0 0.0
        %7506 = vmatpush1.msra.mxu0 0.0
        %7507 = vmatprep.subr.mxu0 0.0
        %7508 = vmatpush1.msra.mxu0 0.0
        %7509 = vmatprep.subr.mxu0 0.0
        %7510 = vmatpush1.msra.mxu0 0.0
        %7511 = vmatprep.subr.mxu0 0.0
        %7512 = vmatpush1.msra.mxu0 0.0
        %7513 = vmatprep.subr.mxu0 0.0
        %7514 = vmatpush1.msra.mxu0 0.0
        %7515 = vmatprep.subr.mxu0 0.0
        %7516 = vmatpush1.msra.mxu0 0.0
        %7517 = vmatprep.subr.mxu0 0.0
        %7518 = vmatpush1.msra.mxu0 0.0
        %7519 = vmatprep.subr.mxu0 0.0
        %7520 = vmatpush1.msra.mxu0 0.0
        %7521 = vmatprep.subr.mxu0 0.0
        %7522 = vmatpush1.msra.mxu0 0.0
        %7523 = vmatprep.subr.mxu0 0.0
        %7524 = vmatpush1.msra.mxu0 0.0
        %7525 = vmatprep.subr.mxu0 0.0
        %7526 = vmatpush1.msra.mxu0 0.0
        %7527 = vmatprep.subr.mxu0 0.0
        %7528 = vmatpush1.msra.mxu0 0.0
        %7529 = vmatprep.subr.mxu0 0.0
        %7530 = vmatpush1.msra.mxu0 0.0
        %7531 = vmatprep.subr.mxu0 0.0
        %7532 = vmatpush1.msra.mxu0 0.0
        %7533 = vmatprep.subr.mxu0 0.0
        %7534 = vmatpush1.msra.mxu0 0.0
        %7535 = vmatprep.subr.mxu0 0.0
        %7536 = vmatpush1.msra.mxu0 0.0
        %7537 = vmatprep.mubr.f32.mxu0 0.0
        %7538 = vmatmul.mubr.f32.gmra.mrb[0].mxu0 %v5415
        %v7539 = vpop.f32.mrb[0].mxu0
        %v7540 = vadd.f32 %v7471, %v7539
        %v7541 = vpop.f32.mrb[0].mxu0
        %7542 = vmatprep.mubr.f32.mxu0 0.0
        %7543 = vmatmul.mubr.f32.gmra.mrb[0].mxu0 %v5418
        %v7544 = vpop.f32.mrb[0].mxu0
        %v7545 = vadd.f32 %v7471, %v7544
        %v7546 = vpop.f32.mrb[0].mxu0
        %7547 = vmatprep.mubr.f32.mxu0 0.0
        %7548 = vmatmul.mubr.f32.gmra.mrb[0].mxu0 %v5421
        %v7549 = vpop.f32.mrb[0].mxu0
        %v7550 = vadd.f32 %v7471, %v7549
        %v7551 = vpop.f32.mrb[0].mxu0
        %7552 = vmatprep.mubr.f32.mxu0 0.0
        %7553 = vmatmul.mubr.f32.gmra.mrb[0].mxu0 %v5424
        %v7554 = vpop.f32.mrb[0].mxu0
        %v7555 = vadd.f32 %v7471, %v7554
        %v7556 = vpop.f32.mrb[0].mxu0
        %7557 = vdwg.mxu0
        %s7558 = scalar_lea.vmem [#allocation22], 96
        %v7559 = vld [vmem:[%s7558] sm:$0xff]
        %v7560 = vld [vmem:[%s7558 + $0x8] sm:$0xff]
        %v7561 = vld [vmem:[%s7558 + $0x10] sm:$0xff]
        %v7562 = vld [vmem:[%s7558 + $0x18] sm:$0xff]
        %s7563 = scalar_lea.vmem %s18, 3
        %v7564 = vld [vmem:[%s7563] sm:$0x1]
        %v7566 = vlaneseq
        %v7567 = vshrl.u32 %v7566, 7
        %v7568 = vsub.s32 0, %v7567
        %v7569 = vrot.slane %v7564, %v7568
        %7571 = vmatprep.subr.mxu0 0.0
        %7572 = vmatpush1.msra.mxu0 %v7559
        %7573 = vmatprep.subr.mxu0 0.0
        %7574 = vmatpush1.msra.mxu0 %v7560
        %7575 = vmatprep.subr.mxu0 0.0
        %7576 = vmatpush1.msra.mxu0 %v7561
        %7577 = vmatprep.subr.mxu0 0.0
        %7578 = vmatpush1.msra.mxu0 %v7562
        %7579 = vmatprep.subr.mxu0 0.0
        %7580 = vmatpush1.msra.mxu0 0.0
        %7581 = vmatprep.subr.mxu0 0.0
        %7582 = vmatpush1.msra.mxu0 0.0
        %7583 = vmatprep.subr.mxu0 0.0
        %7584 = vmatpush1.msra.mxu0 0.0
        %7585 = vmatprep.subr.mxu0 0.0
        %7586 = vmatpush1.msra.mxu0 0.0
        %7587 = vmatprep.subr.mxu0 0.0
        %7588 = vmatpush1.msra.mxu0 0.0
        %7589 = vmatprep.subr.mxu0 0.0
        %7590 = vmatpush1.msra.mxu0 0.0
        %7591 = vmatprep.subr.mxu0 0.0
        %7592 = vmatpush1.msra.mxu0 0.0
        %7593 = vmatprep.subr.mxu0 0.0
        %7594 = vmatpush1.msra.mxu0 0.0
        %7595 = vmatprep.subr.mxu0 0.0
        %7596 = vmatpush1.msra.mxu0 0.0
        %7597 = vmatprep.subr.mxu0 0.0
        %7598 = vmatpush1.msra.mxu0 0.0
        %7599 = vmatprep.subr.mxu0 0.0
        %7600 = vmatpush1.msra.mxu0 0.0
        %7601 = vmatprep.subr.mxu0 0.0
        %7602 = vmatpush1.msra.mxu0 0.0
        %7603 = vmatprep.subr.mxu0 0.0
        %7604 = vmatpush1.msra.mxu0 0.0
        %7605 = vmatprep.subr.mxu0 0.0
        %7606 = vmatpush1.msra.mxu0 0.0
        %7607 = vmatprep.subr.mxu0 0.0
        %7608 = vmatpush1.msra.mxu0 0.0
        %7609 = vmatprep.subr.mxu0 0.0
        %7610 = vmatpush1.msra.mxu0 0.0
        %7611 = vmatprep.subr.mxu0 0.0
        %7612 = vmatpush1.msra.mxu0 0.0
        %7613 = vmatprep.subr.mxu0 0.0
        %7614 = vmatpush1.msra.mxu0 0.0
        %7615 = vmatprep.subr.mxu0 0.0
        %7616 = vmatpush1.msra.mxu0 0.0
        %7617 = vmatprep.subr.mxu0 0.0
        %7618 = vmatpush1.msra.mxu0 0.0
        %7619 = vmatprep.subr.mxu0 0.0
        %7620 = vmatpush1.msra.mxu0 0.0
        %7621 = vmatprep.subr.mxu0 0.0
        %7622 = vmatpush1.msra.mxu0 0.0
        %7623 = vmatprep.subr.mxu0 0.0
        %7624 = vmatpush1.msra.mxu0 0.0
        %7625 = vmatprep.subr.mxu0 0.0
        %7626 = vmatpush1.msra.mxu0 0.0
        %7627 = vmatprep.subr.mxu0 0.0
        %7628 = vmatpush1.msra.mxu0 0.0
        %7629 = vmatprep.subr.mxu0 0.0
        %7630 = vmatpush1.msra.mxu0 0.0
        %7631 = vmatprep.subr.mxu0 0.0
        %7632 = vmatpush1.msra.mxu0 0.0
        %7633 = vmatprep.subr.mxu0 0.0
        %7634 = vmatpush1.msra.mxu0 0.0
        %7635 = vmatprep.mubr.f32.mxu0 0.0
        %7636 = vmatmul.mubr.f32.gmra.mrb[0].mxu0 %v5415
        %v7637 = vpop.f32.mrb[0].mxu0
        %v7638 = vadd.f32 %v7569, %v7637
        %v7639 = vpop.f32.mrb[0].mxu0
        %7640 = vmatprep.mubr.f32.mxu0 0.0
        %7641 = vmatmul.mubr.f32.gmra.mrb[0].mxu0 %v5418
        %v7642 = vpop.f32.mrb[0].mxu0
        %v7643 = vadd.f32 %v7569, %v7642
        %v7644 = vpop.f32.mrb[0].mxu0
        %7645 = vmatprep.mubr.f32.mxu0 0.0
        %7646 = vmatmul.mubr.f32.gmra.mrb[0].mxu0 %v5421
        %v7647 = vpop.f32.mrb[0].mxu0
        %v7648 = vadd.f32 %v7569, %v7647
        %v7649 = vpop.f32.mrb[0].mxu0
        %7650 = vmatprep.mubr.f32.mxu0 0.0
        %7651 = vmatmul.mubr.f32.gmra.mrb[0].mxu0 %v5424
        %v7652 = vpop.f32.mrb[0].mxu0
        %v7653 = vadd.f32 %v7569, %v7652
        %v7654 = vpop.f32.mrb[0].mxu0
        %7655 = vdwg.mxu0
        %v7657 = vsel %vm1426, %v7442, 0
        %v7660 = vsel %vm1426, %v7447, 0
        %v7663 = vsel %vm1426, %v7452, 0
        %v7666 = vsel %vm1426, %v7457, 0
        %v7669 = vsel %vm1426, %v7540, 0
        %v7672 = vsel %vm1426, %v7545, 0
        %v7675 = vsel %vm1426, %v7550, 0
        %v7678 = vsel %vm1426, %v7555, 0
        %7680 = vmatprep.subr.mxu0 0.0
        %7681 = vmatpush1.xpose.msra.mxu0 %v7669
        %7682 = vmatprep.subr.mxu0 0.0
        %7683 = vmatpush1.xpose.msra.mxu0 %v7672
        %7684 = vmatprep.subr.mxu0 0.0
        %7685 = vmatpush1.xpose.msra.mxu0 %v7675
        %7686 = vmatprep.subr.mxu0 0.0
        %7687 = vmatpush1.xpose.msra.mxu0 %v7678
        %7688 = vmatprep.subr.mxu0 0.0
        %7689 = vmatpush1.xpose.msra.mxu0 0.0
        %7690 = vmatprep.subr.mxu0 0.0
        %7691 = vmatpush1.xpose.msra.mxu0 0.0
        %7692 = vmatprep.subr.mxu0 0.0
        %7693 = vmatpush1.xpose.msra.mxu0 0.0
        %7694 = vmatprep.subr.mxu0 0.0
        %7695 = vmatpush1.xpose.msra.mxu0 0.0
        %7696 = vmatprep.subr.mxu0 0.0
        %7697 = vmatpush1.xpose.msra.mxu0 0.0
        %7698 = vmatprep.subr.mxu0 0.0
        %7699 = vmatpush1.xpose.msra.mxu0 0.0
        %7700 = vmatprep.subr.mxu0 0.0
        %7701 = vmatpush1.xpose.msra.mxu0 0.0
        %7702 = vmatprep.subr.mxu0 0.0
        %7703 = vmatpush1.xpose.msra.mxu0 0.0
        %7704 = vmatprep.subr.mxu0 0.0
        %7705 = vmatpush1.xpose.msra.mxu0 0.0
        %7706 = vmatprep.subr.mxu0 0.0
        %7707 = vmatpush1.xpose.msra.mxu0 0.0
        %7708 = vmatprep.subr.mxu0 0.0
        %7709 = vmatpush1.xpose.msra.mxu0 0.0
        %7710 = vmatprep.subr.mxu0 0.0
        %7711 = vmatpush1.xpose.msra.mxu0 0.0
        %7712 = vmatprep.subr.mxu0 0.0
        %7713 = vmatpush1.xpose.msra.mxu0 0.0
        %7714 = vmatprep.subr.mxu0 0.0
        %7715 = vmatpush1.xpose.msra.mxu0 0.0
        %7716 = vmatprep.subr.mxu0 0.0
        %7717 = vmatpush1.xpose.msra.mxu0 0.0
        %7718 = vmatprep.subr.mxu0 0.0
        %7719 = vmatpush1.xpose.msra.mxu0 0.0
        %7720 = vmatprep.subr.mxu0 0.0
        %7721 = vmatpush1.xpose.msra.mxu0 0.0
        %7722 = vmatprep.subr.mxu0 0.0
        %7723 = vmatpush1.xpose.msra.mxu0 0.0
        %7724 = vmatprep.subr.mxu0 0.0
        %7725 = vmatpush1.xpose.msra.mxu0 0.0
        %7726 = vmatprep.subr.mxu0 0.0
        %7727 = vmatpush1.xpose.msra.mxu0 0.0
        %7728 = vmatprep.subr.mxu0 0.0
        %7729 = vmatpush1.xpose.msra.mxu0 0.0
        %7730 = vmatprep.subr.mxu0 0.0
        %7731 = vmatpush1.xpose.msra.mxu0 0.0
        %7732 = vmatprep.subr.mxu0 0.0
        %7733 = vmatpush1.xpose.msra.mxu0 0.0
        %7734 = vmatprep.subr.mxu0 0.0
        %7735 = vmatpush1.xpose.msra.mxu0 0.0
        %7736 = vmatprep.subr.mxu0 0.0
        %7737 = vmatpush1.xpose.msra.mxu0 0.0
        %7738 = vmatprep.subr.mxu0 0.0
        %7739 = vmatpush1.xpose.msra.mxu0 0.0
        %7740 = vmatprep.subr.mxu0 0.0
        %7741 = vmatpush1.xpose.msra.mxu0 0.0
        %7742 = vmatprep.subr.mxu0 0.0
        %7743 = vmatpush1.xpose.msra.mxu0 0.0
        %7744 = vmatprep.mubr.f32.mxu0 0.0
        %7745 = vmatmul.mubr.f32.gmra.mrb[0].mxu0 %v7657
        %v7746 = vpop.f32.mrb[0].mxu0
        %v7747 = vadd.f32 0.0, %v7746
        %v7748 = vpop.f32.mrb[0].mxu0
        %7749 = vmatprep.mubr.f32.mxu0 0.0
        %7750 = vmatmul.mubr.f32.gmra.mrb[0].mxu0 %v7660
        %v7751 = vpop.f32.mrb[0].mxu0
        %v7752 = vadd.f32 0.0, %v7751
        %v7753 = vpop.f32.mrb[0].mxu0
        %7754 = vmatprep.mubr.f32.mxu0 0.0
        %7755 = vmatmul.mubr.f32.gmra.mrb[0].mxu0 %v7663
        %v7756 = vpop.f32.mrb[0].mxu0
        %v7757 = vadd.f32 0.0, %v7756
        %v7758 = vpop.f32.mrb[0].mxu0
        %7759 = vmatprep.mubr.f32.mxu0 0.0
        %7760 = vmatmul.mubr.f32.gmra.mrb[0].mxu0 %v7666
        %v7761 = vpop.f32.mrb[0].mxu0
        %v7762 = vadd.f32 0.0, %v7761
        %v7763 = vpop.f32.mrb[0].mxu0
        %7764 = vdwg.mxu0
        %v7765 = vmul.f32 %v7747, 0.17677669
        %v7766 = vmul.f32 %v7752, 0.17677669
        %v7767 = vmul.f32 %v7757, 0.17677669
        %v7768 = vmul.f32 %v7762, 0.17677669
        %v7769 = vsel %vm1426, %v7765, -inf
        %7770 = vmax.xlane.f32.xlu0 %v7769
        %v7771 = vpop.xlane.xlu0 %7770
        %v7772 = vsel %vm1426, %v7766, -inf
        %7773 = vmax.xlane.f32.xlu0 %v7772
        %v7774 = vpop.xlane.xlu0 %7773
        %v7775 = vsel %vm1426, %v7767, -inf
        %7776 = vmax.xlane.f32.xlu0 %v7775
        %v7777 = vpop.xlane.xlu0 %7776
        %v7778 = vsel %vm1426, %v7768, -inf
        %7779 = vmax.xlane.f32.xlu0 %v7778
        %v7780 = vpop.xlane.xlu0 %7779
        %v7781 = vsub.f32 %v7765, %v7771
        %v7782 = vsub.f32 %v7766, %v7774
        %v7783 = vsub.f32 %v7767, %v7777
        %v7784 = vsub.f32 %v7768, %v7780
        %v7785 = vmul.f32 %v7781, 1.442695
        %v7786 = vpow.pop %v7785
        %v7787 = vmul.f32 %v7782, 1.442695
        %v7788 = vpow.pop %v7787
        %v7789 = vmul.f32 %v7783, 1.442695
        %v7790 = vpow.pop %v7789
        %v7791 = vmul.f32 %v7784, 1.442695
        %v7792 = vpow.pop %v7791
        %v7793 = vsel %vm1426, %v7786, 0.0
        %7794 = vadd.xlane.f32.xlu0 %v7793
        %v7795 = vpop.xlane.xlu0 %7794
        %v7796 = vsel %vm1426, %v7788, 0.0
        %7797 = vadd.xlane.f32.xlu0 %v7796
        %v7798 = vpop.xlane.xlu0 %7797
        %v7799 = vsel %vm1426, %v7790, 0.0
        %7800 = vadd.xlane.f32.xlu0 %v7799
        %v7801 = vpop.xlane.xlu0 %7800
        %v7802 = vsel %vm1426, %v7792, 0.0
        %7803 = vadd.xlane.f32.xlu0 %v7802
        %v7804 = vpop.xlane.xlu0 %7803
        %v7805 = vrcp.pop %v7795
        %v7806 = vrcp.pop %v7798
        %v7807 = vrcp.pop %v7801
        %v7808 = vrcp.pop %v7804
        %v7809 = vmul.f32 %v7786, %v7805
        %v7810 = vmul.f32 %v7788, %v7806
        %v7811 = vmul.f32 %v7790, %v7807
        %v7812 = vmul.f32 %v7792, %v7808
        %v7814 = vsel %vm1426, %v7809, 0
        %v7817 = vsel %vm1426, %v7810, 0
        %v7820 = vsel %vm1426, %v7811, 0
        %v7823 = vsel %vm1426, %v7812, 0
        %7825 = vmatprep.subr.mxu0 0.0
        %7826 = vmatpush1.msra.mxu0 %v7638
        %7827 = vmatprep.subr.mxu0 0.0
        %7828 = vmatpush1.msra.mxu0 %v7643
        %7829 = vmatprep.subr.mxu0 0.0
        %7830 = vmatpush1.msra.mxu0 %v7648
        %7831 = vmatprep.subr.mxu0 0.0
        %7832 = vmatpush1.msra.mxu0 %v7653
        %7833 = vmatprep.subr.mxu0 0.0
        %7834 = vmatpush1.msra.mxu0 0.0
        %7835 = vmatprep.subr.mxu0 0.0
        %7836 = vmatpush1.msra.mxu0 0.0
        %7837 = vmatprep.subr.mxu0 0.0
        %7838 = vmatpush1.msra.mxu0 0.0
        %7839 = vmatprep.subr.mxu0 0.0
        %7840 = vmatpush1.msra.mxu0 0.0
        %7841 = vmatprep.subr.mxu0 0.0
        %7842 = vmatpush1.msra.mxu0 0.0
        %7843 = vmatprep.subr.mxu0 0.0
        %7844 = vmatpush1.msra.mxu0 0.0
        %7845 = vmatprep.subr.mxu0 0.0
        %7846 = vmatpush1.msra.mxu0 0.0
        %7847 = vmatprep.subr.mxu0 0.0
        %7848 = vmatpush1.msra.mxu0 0.0
        %7849 = vmatprep.subr.mxu0 0.0
        %7850 = vmatpush1.msra.mxu0 0.0
        %7851 = vmatprep.subr.mxu0 0.0
        %7852 = vmatpush1.msra.mxu0 0.0
        %7853 = vmatprep.subr.mxu0 0.0
        %7854 = vmatpush1.msra.mxu0 0.0
        %7855 = vmatprep.subr.mxu0 0.0
        %7856 = vmatpush1.msra.mxu0 0.0
        %7857 = vmatprep.subr.mxu0 0.0
        %7858 = vmatpush1.msra.mxu0 0.0
        %7859 = vmatprep.subr.mxu0 0.0
        %7860 = vmatpush1.msra.mxu0 0.0
        %7861 = vmatprep.subr.mxu0 0.0
        %7862 = vmatpush1.msra.mxu0 0.0
        %7863 = vmatprep.subr.mxu0 0.0
        %7864 = vmatpush1.msra.mxu0 0.0
        %7865 = vmatprep.subr.mxu0 0.0
        %7866 = vmatpush1.msra.mxu0 0.0
        %7867 = vmatprep.subr.mxu0 0.0
        %7868 = vmatpush1.msra.mxu0 0.0
        %7869 = vmatprep.subr.mxu0 0.0
        %7870 = vmatpush1.msra.mxu0 0.0
        %7871 = vmatprep.subr.mxu0 0.0
        %7872 = vmatpush1.msra.mxu0 0.0
        %7873 = vmatprep.subr.mxu0 0.0
        %7874 = vmatpush1.msra.mxu0 0.0
        %7875 = vmatprep.subr.mxu0 0.0
        %7876 = vmatpush1.msra.mxu0 0.0
        %7877 = vmatprep.subr.mxu0 0.0
        %7878 = vmatpush1.msra.mxu0 0.0
        %7879 = vmatprep.subr.mxu0 0.0
        %7880 = vmatpush1.msra.mxu0 0.0
        %7881 = vmatprep.subr.mxu0 0.0
        %7882 = vmatpush1.msra.mxu0 0.0
        %7883 = vmatprep.subr.mxu0 0.0
        %7884 = vmatpush1.msra.mxu0 0.0
        %7885 = vmatprep.subr.mxu0 0.0
        %7886 = vmatpush1.msra.mxu0 0.0
        %7887 = vmatprep.subr.mxu0 0.0
        %7888 = vmatpush1.msra.mxu0 0.0
        %7889 = vmatprep.mubr.f32.mxu0 0.0
        %7890 = vmatmul.mubr.f32.gmra.mrb[0].mxu0 %v7814
        %v7891 = vpop.f32.mrb[0].mxu0
        %v7892 = vadd.f32 0.0, %v7891
        %v7893 = vpop.f32.mrb[0].mxu0
        %7894 = vmatprep.mubr.f32.mxu0 0.0
        %7895 = vmatmul.mubr.f32.gmra.mrb[0].mxu0 %v7817
        %v7896 = vpop.f32.mrb[0].mxu0
        %v7897 = vadd.f32 0.0, %v7896
        %v7898 = vpop.f32.mrb[0].mxu0
        %7899 = vmatprep.mubr.f32.mxu0 0.0
        %7900 = vmatmul.mubr.f32.gmra.mrb[0].mxu0 %v7820
        %v7901 = vpop.f32.mrb[0].mxu0
        %v7902 = vadd.f32 0.0, %v7901
        %v7903 = vpop.f32.mrb[0].mxu0
        %7904 = vmatprep.mubr.f32.mxu0 0.0
        %7905 = vmatmul.mubr.f32.gmra.mrb[0].mxu0 %v7823
        %v7906 = vpop.f32.mrb[0].mxu0
        %v7907 = vadd.f32 0.0, %v7906
        %v7908 = vpop.f32.mrb[0].mxu0
        %7909 = vdwg.mxu0
        %s7910 = scalar_lea.vmem [#allocation23], 96
        %v7911 = vld [vmem:[%s7910] sm:$0xff]
        %v7912 = vld [vmem:[%s7910 + $0x8] sm:$0xff]
        %v7913 = vld [vmem:[%s7910 + $0x10] sm:$0xff]
        %v7914 = vld [vmem:[%s7910 + $0x18] sm:$0xff]
        %v7916 = vsel %vm1426, %v7892, 0
        %v7919 = vsel %vm1426, %v7897, 0
        %v7922 = vsel %vm1426, %v7902, 0
        %v7925 = vsel %vm1426, %v7907, 0
        %7927 = vmatprep.subr.mxu0 0.0
        %7928 = vmatpush1.msra.mxu0 %v7911
        %7929 = vmatprep.subr.mxu0 0.0
        %7930 = vmatpush1.msra.mxu0 %v7912
        %7931 = vmatprep.subr.mxu0 0.0
        %7932 = vmatpush1.msra.mxu0 %v7913
        %7933 = vmatprep.subr.mxu0 0.0
        %7934 = vmatpush1.msra.mxu0 %v7914
        %7935 = vmatprep.subr.mxu0 0.0
        %7936 = vmatpush1.msra.mxu0 0.0
        %7937 = vmatprep.subr.mxu0 0.0
        %7938 = vmatpush1.msra.mxu0 0.0
        %7939 = vmatprep.subr.mxu0 0.0
        %7940 = vmatpush1.msra.mxu0 0.0
        %7941 = vmatprep.subr.mxu0 0.0
        %7942 = vmatpush1.msra.mxu0 0.0
        %7943 = vmatprep.subr.mxu0 0.0
        %7944 = vmatpush1.msra.mxu0 0.0
        %7945 = vmatprep.subr.mxu0 0.0
        %7946 = vmatpush1.msra.mxu0 0.0
        %7947 = vmatprep.subr.mxu0 0.0
        %7948 = vmatpush1.msra.mxu0 0.0
        %7949 = vmatprep.subr.mxu0 0.0
        %7950 = vmatpush1.msra.mxu0 0.0
        %7951 = vmatprep.subr.mxu0 0.0
        %7952 = vmatpush1.msra.mxu0 0.0
        %7953 = vmatprep.subr.mxu0 0.0
        %7954 = vmatpush1.msra.mxu0 0.0
        %7955 = vmatprep.subr.mxu0 0.0
        %7956 = vmatpush1.msra.mxu0 0.0
        %7957 = vmatprep.subr.mxu0 0.0
        %7958 = vmatpush1.msra.mxu0 0.0
        %7959 = vmatprep.subr.mxu0 0.0
        %7960 = vmatpush1.msra.mxu0 0.0
        %7961 = vmatprep.subr.mxu0 0.0
        %7962 = vmatpush1.msra.mxu0 0.0
        %7963 = vmatprep.subr.mxu0 0.0
        %7964 = vmatpush1.msra.mxu0 0.0
        %7965 = vmatprep.subr.mxu0 0.0
        %7966 = vmatpush1.msra.mxu0 0.0
        %7967 = vmatprep.subr.mxu0 0.0
        %7968 = vmatpush1.msra.mxu0 0.0
        %7969 = vmatprep.subr.mxu0 0.0
        %7970 = vmatpush1.msra.mxu0 0.0
        %7971 = vmatprep.subr.mxu0 0.0
        %7972 = vmatpush1.msra.mxu0 0.0
        %7973 = vmatprep.subr.mxu0 0.0
        %7974 = vmatpush1.msra.mxu0 0.0
        %7975 = vmatprep.subr.mxu0 0.0
        %7976 = vmatpush1.msra.mxu0 0.0
        %7977 = vmatprep.subr.mxu0 0.0
        %7978 = vmatpush1.msra.mxu0 0.0
        %7979 = vmatprep.subr.mxu0 0.0
        %7980 = vmatpush1.msra.mxu0 0.0
        %7981 = vmatprep.subr.mxu0 0.0
        %7982 = vmatpush1.msra.mxu0 0.0
        %7983 = vmatprep.subr.mxu0 0.0
        %7984 = vmatpush1.msra.mxu0 0.0
        %7985 = vmatprep.subr.mxu0 0.0
        %7986 = vmatpush1.msra.mxu0 0.0
        %7987 = vmatprep.subr.mxu0 0.0
        %7988 = vmatpush1.msra.mxu0 0.0
        %7989 = vmatprep.subr.mxu0 0.0
        %7990 = vmatpush1.msra.mxu0 0.0
        %7991 = vmatprep.mubr.f32.mxu0 0.0
        %7992 = vmatmul.mubr.f32.gmra.mrb[0].mxu0 %v7916
        %v7993 = vpop.f32.mrb[0].mxu0
        %v7994 = vadd.f32 0.0, %v7993
        %v7995 = vpop.f32.mrb[0].mxu0
        %7996 = vmatprep.mubr.f32.mxu0 0.0
        %7997 = vmatmul.mubr.f32.gmra.mrb[0].mxu0 %v7919
        %v7998 = vpop.f32.mrb[0].mxu0
        %v7999 = vadd.f32 0.0, %v7998
        %v8000 = vpop.f32.mrb[0].mxu0
        %8001 = vmatprep.mubr.f32.mxu0 0.0
        %8002 = vmatmul.mubr.f32.gmra.mrb[0].mxu0 %v7922
        %v8003 = vpop.f32.mrb[0].mxu0
        %v8004 = vadd.f32 0.0, %v8003
        %v8005 = vpop.f32.mrb[0].mxu0
        %8006 = vmatprep.mubr.f32.mxu0 0.0
        %8007 = vmatmul.mubr.f32.gmra.mrb[0].mxu0 %v7925
        %v8008 = vpop.f32.mrb[0].mxu0
        %v8009 = vadd.f32 0.0, %v8008
        %v8010 = vpop.f32.mrb[0].mxu0
        %8011 = vdwg.mxu0
        %v8012 = vadd.f32 %v7358, %v7994
        %v8013 = vadd.f32 %v7359, %v7999
        %v8014 = vadd.f32 %v7360, %v8004
        %v8015 = vadd.f32 %v7361, %v8009
        %v8016 = vld [vmem:[%s20] sm:$0x1]
        %v8018 = vlaneseq
        %v8019 = vshrl.u32 %v8018, 7
        %v8020 = vsub.s32 0, %v8019
        %v8021 = vrot.slane %v8016, %v8020
        %v8023 = vadd.f32 %v8012, %v8021
        %v8024 = vadd.f32 %v8013, %v8021
        %v8025 = vadd.f32 %v8014, %v8021
        %v8026 = vadd.f32 %v8015, %v8021
        %v8027 = vadd.f32 %v5399, %v8023
        %v8028 = vadd.f32 %v5400, %v8024
        %v8029 = vadd.f32 %v5401, %v8025
        %v8030 = vadd.f32 %v5402, %v8026
        %8031 = vst.msk [vmem:[%s843] sm:$0xff] %vm1426, %v8027
        %8032 = vst.msk [vmem:[%s843 + $0x8] sm:$0xff] %vm1426, %v8028
        %8033 = vst.msk [vmem:[%s843 + $0x10] sm:$0xff] %vm1426, %v8029
        %8034 = vst.msk [vmem:[%s843 + $0x18] sm:$0xff] %vm1426, %v8030
        %s8035 = sand.u32 %s497, 1
        %s8036 = scalar_lea.sflag [#allocation4], %s8035
        %s8037 = sand.u32 %s497, 1
        %s8038 = smul.addr %s8037, 32
        %s8039 = scalar_lea.vmem [#allocation25], %s8038
        // Predicated region
        $region161: #{tpu_custom_call.1} parent=103 // pred_check
          %p8040 = pneg %p507
        $region162: #{tpu_custom_call.1} parent=103 // pred_check_branch
          %8042 = sbr.rel (%p8040) target = $region164
        $region163: #{tpu_custom_call.1} parent=103 // pred_region
          %s8044 = ssub.s32 512, 512
          %8045 = vsyncadd %s8036, %s8044
          %s8046 = smul.addr %s43, 4
          %s8047 = smul.addr %s8046, 128
          %s8048 = scalar_lea.hbm %s21, %s8047
          %s8049 = sshll.u32 %s8039, 4
          %s8050 = int_to_ptr.vmem [resolvable:$true] %s8049
          %8055 = dma.vmem_to_hbm [thread:$0]  %s8050, 512, %s8048, %s8036, 128, 128, 8
        $region164: #{tpu_custom_call.1} parent=103 // pred_fallthru
          _
      $region104: #{tpu_custom_call.1} parent=5 // pred_fallthru
        _
      %p8056 = scmp.le.s32.totalorder 2, %s38
      // Predicated region
      $region165: #{tpu_custom_call.1} parent=5 // pred_check
        %p8057 = pneg %p8056
      $region166: #{tpu_custom_call.1} parent=5 // pred_check_branch
        %8059 = sbr.rel (%p8057) target = $region168
      $region167: #{tpu_custom_call.1} parent=5 // pred_region
        %s8060 = ssub.s32 %s38, 2
        // Predicated region
        $region169: #{tpu_custom_call.1} parent=167 // pred_check
          %p8061 = pneg %p513
        $region170: #{tpu_custom_call.1} parent=167 // pred_check_branch
          %8063 = sbr.rel (%p8061) target = $region172
        $region171: #{tpu_custom_call.1} parent=167 // pred_region
          %s8064 = sand.u32 %s498, 1
          %s8065 = scalar_lea.sflag [#allocation4], %s8064
          %s8066 = sand.u32 %s498, 1
          %s8067 = smul.addr %s8066, 32
          %s8068 = scalar_lea.vmem [#allocation25], %s8067
          %8069 = dma.done %s8065, 512
        $region172: #{tpu_custom_call.1} parent=167 // pred_fallthru
          _
      $region168: #{tpu_custom_call.1} parent=5 // pred_fallthru
        _
    $region6: #{tpu_custom_call.1} parent=1 // loop_footer
      %s42 = sadd.s32 1, %s38
    $region7: #{tpu_custom_call.1} parent=1 // loop_footer_branch
      %37 = sbr.rel target = $region3
    $region8: #{tpu_custom_call.1} parent=1 // loop_exit
      _
    %8070 = vsyncpa [#allocation3], 1
    %s8071 = scalar_lea.sflag [#allocation3], 1
    %8072 = vsyncpa %s8071, 1
    %8073 = vsyncpa [#allocation6], 1
    %8074 = vsyncpa [#allocation9], 1
    %8075 = vsyncpa [#allocation12], 1
    %8076 = vsyncpa [#allocation15], 1
    %8077 = vsyncpa [#allocation18], 1
    %8078 = vsyncpa [#allocation21], 1
    %8079 = vsyncpa [#allocation24], 1
    %8080 = vsyncpa [#allocation4], 1
    %s8081 = scalar_lea.sflag [#allocation4], 1
    %8082 = vsyncpa %s8081, 1

</llo_original>
